<compile_context>
chip_gen: v7x
topology: tpu7x:2x2x1
jax: 0.10.0
libtpu: 0.0.40
codegen_flags: <defaults>
</compile_context>

<pallas_src>
import functools
import math

import jax
import jax.numpy as jnp
from jax.experimental import pallas as pl
from jax.experimental.pallas import tpu as pltpu


# ----------------------------------------------------------------------------
# Optional single-buffering of constant weight blocks (falls back cleanly).
# ----------------------------------------------------------------------------
def _check_buffered_support():
    if not hasattr(pl, "Buffered"):
        return False
    try:
        pl.BlockSpec((8, 128), lambda b: (0, 0), pipeline_mode=pl.Buffered(1))
        return True
    except Exception:
        return False


_BUFFERED_SUPPORTED = _check_buffered_support()


def _const_spec(shape, buffered):
    """BlockSpec for a block whose index is constant across the batch grid."""
    nd = len(shape)

    def index_map(b, _nd=nd):
        return (0,) * _nd

    if buffered and _BUFFERED_SUPPORTED:
        return pl.BlockSpec(shape, index_map, pipeline_mode=pl.Buffered(1))
    return pl.BlockSpec(shape, index_map)


# ----------------------------------------------------------------------------
# In-kernel helpers (traced inside the fused kernel; not separate pallas_calls)
# ----------------------------------------------------------------------------
def _layernorm_f32(x, gamma, beta, eps):
    """Annotated-Transformer LayerNorm: unbiased std (D-1), eps added to std."""
    d = x.shape[-1]
    mean = jnp.mean(x, axis=-1, keepdims=True)
    xc = x - mean
    var = jnp.sum(xc * xc, axis=-1, keepdims=True) * (1.0 / (d - 1))
    # Exact reciprocal here (numeric parity); approx kept only for softmax.
    inv = 1.0 / (jnp.sqrt(var) + eps)
    return gamma * (xc * inv) + beta


def _split_heads(t, num_heads):
    """(L, H*dk) bf16 -> (H, L, dk) bf16 (static lane slices stacked on axis 0)."""
    l, d = t.shape
    dk = d // num_heads
    return jnp.stack([t[:, h * dk:(h + 1) * dk] for h in range(num_heads)],
                     axis=0)


def _mha_heads(q, k, v, bias2d, num_heads):
    """Batched-over-heads attention.

    q: (Lq, D) bf16 (already scaled by 1/sqrt(dk)); k, v: (Lk, D) bf16.
    bias2d: additive mask, (Lq, Lk) or (1, Lk); broadcast over heads in-kernel.
    Returns ctx in head-major layout (H, Lq, dk) f32.
    """
    qh = _split_heads(q, num_heads)          # (H, Lq, dk)
    kh = _split_heads(k, num_heads)          # (H, Lk, dk)
    vh = _split_heads(v, num_heads)          # (H, Lk, dk)
    # QK^T: single batched dot_general (contract dk of both, batch over heads).
    s = jax.lax.dot_general(qh, kh, (((2,), (2,)), ((0,), (0,))),
                            preferred_element_type=jnp.float32)  # (H, Lq, Lk)
    s = s + bias2d[None]
    # NOTE: a fully-masked row would give NaN (sum(exp)=0); not reachable with
    # the causal / all-ones padding masks this module is used with.
    m = jnp.max(s, axis=-1, keepdims=True)
    p = jnp.exp(s - m)
    denom = jnp.sum(p, axis=-1, keepdims=True)
    p = p * pl.reciprocal(denom, approx=True)
    # PV: single batched dot_general.
    return jax.lax.dot_general(p.astype(jnp.bfloat16), vh,
                               (((2,), (1,)), ((0,), (0,))),
                               preferred_element_type=jnp.float32)  # (H, Lq, dk)


def _merge_heads_project(ctx, wo_heads, bo):
    """out = sum_h ctx_h @ Wo_h + bo, merging heads without a lane concatenate.

    ctx: (H, L, dk) f32; wo_heads: (H, dk, D) bf16; bo: (1, D) f32.
    """
    out_h = jax.lax.dot_general(ctx.astype(jnp.bfloat16), wo_heads,
                                (((2,), (1,)), ((0,), (0,))),
                                preferred_element_type=jnp.float32)  # (H, L, D)
    return jnp.sum(out_h, axis=0) + bo


# ----------------------------------------------------------------------------
# Fused decoder-layer kernel (one grid step per batch element)
# ----------------------------------------------------------------------------
def _decoder_layer_kernel(
        x_ref, mem_ref, srcmask_ref,
        ln0_g_ref, ln0_b_ref, wqkv_ref, bqkv_ref, wo0_ref, bo0_ref,
        ln1_g_ref, ln1_b_ref, wq_ref, bq_ref, wkv_ref, bkv_ref, wo1_ref, bo1_ref,
        ln2_g_ref, ln2_b_ref, w1_ref, b1_ref, w2_ref, b2_ref,
        o_ref, *, num_heads, eps):
    x = x_ref[0].astype(jnp.float32)                       # (L, D)
    l, d = x.shape
    dk = d // num_heads
    scale = 1.0 / math.sqrt(dk)

    # Causal target mask generated in-kernel (no (L,L) HBM traffic).
    row = jax.lax.broadcasted_iota(jnp.int32, (l, l), 0)
    col = jax.lax.broadcasted_iota(jnp.int32, (l, l), 1)
    tgt_bias = jnp.where(col <= row, 0.0, -1e9).astype(jnp.float32)     # (L, L)
    # Source padding mask shipped compact: (1, Lm) additive bias.
    src_bias = jnp.where(srcmask_ref[0] == 0.0, -1e9, 0.0).astype(jnp.float32)

    # ---- sublayer 0: masked self-attention (pre-LN, residual fused) --------
    xn = _layernorm_f32(x, ln0_g_ref[...], ln0_b_ref[...], eps)
    qkv = jnp.dot(xn.astype(jnp.bfloat16), wqkv_ref[...],
                  preferred_element_type=jnp.float32) + bqkv_ref[...]   # (L, 3D)
    q = (qkv[:, :d] * scale).astype(jnp.bfloat16)      # scale folded into Q once
    k = qkv[:, d:2 * d].astype(jnp.bfloat16)
    v = qkv[:, 2 * d:].astype(jnp.bfloat16)
    ctx = _mha_heads(q, k, v, tgt_bias, num_heads)
    x = x + _merge_heads_project(ctx, wo0_ref[...], bo0_ref[...])

    # ---- sublayer 1: source (cross) attention -------------------------------
    xn = _layernorm_f32(x, ln1_g_ref[...], ln1_b_ref[...], eps)
    q = jnp.dot(xn.astype(jnp.bfloat16), wq_ref[...],
                preferred_element_type=jnp.float32) + bq_ref[...]
    q = (q * scale).astype(jnp.bfloat16)
    mem = mem_ref[0].astype(jnp.bfloat16)              # memory is not layer-normed
    kv = jnp.dot(mem, wkv_ref[...],
                 preferred_element_type=jnp.float32) + bkv_ref[...]     # (Lm, 2D)
    k = kv[:, :d].astype(jnp.bfloat16)
    v = kv[:, d:].astype(jnp.bfloat16)
    ctx = _mha_heads(q, k, v, src_bias, num_heads)
    x = x + _merge_heads_project(ctx, wo1_ref[...], bo1_ref[...])

    # ---- sublayer 2: position-wise feed forward ------------------------------
    xn = _layernorm_f32(x, ln2_g_ref[...], ln2_b_ref[...], eps)
    h = jnp.dot(xn.astype(jnp.bfloat16), w1_ref[...],
                preferred_element_type=jnp.float32) + b1_ref[...]
    h = jnp.maximum(h, 0.0)
    # TODO(synk): dropout (sublayer connections and inside FFN) is identity in eval mode.
    out = jnp.dot(h.astype(jnp.bfloat16), w2_ref[...],
                  preferred_element_type=jnp.float32) + b2_ref[...]
    o_ref[0] = (x + out).astype(o_ref.dtype)


# ----------------------------------------------------------------------------
# Wrapper: one pallas_call per decoder layer
# ----------------------------------------------------------------------------
def decoder_layer(x, memory, src_mask, params, *, num_heads, eps=1e-6,
                  use_buffered_weights=True):
    B, L, D = x.shape
    Lm = memory.shape[1]
    F = params["ff"]["w1"].shape[1]
    dk = D // num_heads

    # Ship src_mask in its compact padding form (B, 1, Lm).
    src_mask = jnp.asarray(src_mask, jnp.float32).reshape(B, 1, Lm)

    # Head-major output-projection weights (free reshape, done outside kernel).
    wo0 = params["self_attn"]["wo"].reshape(num_heads, dk, D)
    wo1 = params["src_attn"]["wo"].reshape(num_heads, dk, D)

    kernel = functools.partial(_decoder_layer_kernel, num_heads=num_heads, eps=eps)

    def cspec(shape):
        return _const_spec(shape, use_buffered_weights)

    in_specs = [
        pl.BlockSpec((1, L, D), lambda b: (b, 0, 0)),     # x
        pl.BlockSpec((1, Lm, D), lambda b: (b, 0, 0)),    # memory
        pl.BlockSpec((1, 1, Lm), lambda b: (b, 0, 0)),    # src_mask (compact)
        cspec((1, D)), cspec((1, D)),                     # ln0 gamma / beta
        cspec((D, 3 * D)), cspec((1, 3 * D)),             # fused Wqkv / bqkv
        cspec((num_heads, dk, D)), cspec((1, D)),         # Wo (head-major) / bo
        cspec((1, D)), cspec((1, D)),                     # ln1 gamma / beta
        cspec((D, D)), cspec((1, D)),                     # Wq / bq
        cspec((D, 2 * D)), cspec((1, 2 * D)),             # fused Wkv / bkv
        cspec((num_heads, dk, D)), cspec((1, D)),         # Wo (head-major) / bo
        cspec((1, D)), cspec((1, D)),                     # ln2 gamma / beta
        cspec((D, F)), cspec((1, F)),                     # W1 / b1
        cspec((F, D)), cspec((1, D)),                     # W2 / b2
    ]

    return pl.pallas_call(
        kernel,
        grid=(B,),
        in_specs=in_specs,
        out_specs=pl.BlockSpec((1, L, D), lambda b: (b, 0, 0)),
        out_shape=jax.ShapeDtypeStruct((B, L, D), x.dtype),
        compiler_params=pltpu.CompilerParams(
            dimension_semantics=("parallel",),
            vmem_limit_bytes=48 * 1024 * 1024),
    )(x, memory, src_mask,
      params["ln0_g"], params["ln0_b"],
      params["self_attn"]["wqkv"], params["self_attn"]["bqkv"], wo0,
      params["self_attn"]["bo"],
      params["ln1_g"], params["ln1_b"],
      params["src_attn"]["wq"], params["src_attn"]["bq"],
      params["src_attn"]["wkv"], params["src_attn"]["bkv"], wo1,
      params["src_attn"]["bo"],
      params["ln2_g"], params["ln2_b"],
      params["ff"]["w1"], params["ff"]["b1"],
      params["ff"]["w2"], params["ff"]["b2"])


# ----------------------------------------------------------------------------
# Deterministic parameter init (weights stored bf16, biases / LN params f32)
# ----------------------------------------------------------------------------
def init_params(key, d_model, d_ff):
    keys = jax.random.split(key, 8)

    def w(k, shape):
        return (0.02 * jax.random.normal(k, shape, jnp.float32)).astype(jnp.bfloat16)

    def zeros(n):
        return jnp.zeros((1, n), jnp.float32)

    return {
        "self_attn": {
            "wqkv": w(keys[0], (d_model, 3 * d_model)), "bqkv": zeros(3 * d_model),
            "wo": w(keys[1], (d_model, d_model)), "bo": zeros(d_model),
        },
        "src_attn": {
            "wq": w(keys[2], (d_model, d_model)), "bq": zeros(d_model),
            "wkv": w(keys[3], (d_model, 2 * d_model)), "bkv": zeros(2 * d_model),
            "wo": w(keys[4], (d_model, d_model)), "bo": zeros(d_model),
        },
        "ff": {
            "w1": w(keys[5], (d_model, d_ff)), "b1": zeros(d_ff),
            "w2": w(keys[6], (d_ff, d_model)), "b2": zeros(d_model),
        },
        "ln0_g": jnp.ones((1, d_model), jnp.float32), "ln0_b": zeros(d_model),
        "ln1_g": jnp.ones((1, d_model), jnp.float32), "ln1_b": zeros(d_model),
        "ln2_g": jnp.ones((1, d_model), jnp.float32), "ln2_b": zeros(d_model),
    }


if __name__ == "__main__":
    B, L, D_MODEL, H, D_FF = 2, 8, 32, 4, 64

    root = jax.random.PRNGKey(0)
    k_params, k_x, k_mem = jax.random.split(root, 3)

    params = init_params(k_params, D_MODEL, D_FF)
    x = jax.random.normal(k_x, (B, L, D_MODEL), jnp.float32)
    memory = jax.random.normal(k_mem, (B, L, D_MODEL), jnp.float32)

    # Causal target mask is generated inside the kernel (no (B,L,L) array);
    # source mask ships in its compact padding form (B, 1, Lm).
    src_mask = jnp.ones((B, 1, L), jnp.float32)

    def run(use_buffered):
        fn = jax.jit(functools.partial(decoder_layer, num_heads=H,
                                       use_buffered_weights=use_buffered))
        return fn(x, memory, src_mask, params)

    try:
        out = jax.block_until_ready(run(True))
    except Exception:
        # Fall back to default double-buffered weight blocks if this JAX
        # version rejects pl.Buffered(1) at lowering time.
        out = jax.block_until_ready(run(False))

    assert out.shape == (B, L, D_MODEL)
    assert bool(jnp.all(jnp.isfinite(out)))
    print("KERNEL_OK")
</pallas_src>

<mosaic_0001>
module attributes {stable_mosaic.version = 11 : i64} {
  func.func @_decoder_layer_kernel(%arg0: i32, %arg1: memref<1x8x32xf32, #tpu.memory_space<vmem>>, %arg2: memref<1x8x32xf32, #tpu.memory_space<vmem>>, %arg3: memref<1x1x8xf32, #tpu.memory_space<vmem>>, %arg4: memref<1x32xf32, #tpu.memory_space<vmem>>, %arg5: memref<1x32xf32, #tpu.memory_space<vmem>>, %arg6: memref<32x96xbf16, #tpu.memory_space<vmem>>, %arg7: memref<1x96xf32, #tpu.memory_space<vmem>>, %arg8: memref<4x8x32xbf16, #tpu.memory_space<vmem>>, %arg9: memref<1x32xf32, #tpu.memory_space<vmem>>, %arg10: memref<1x32xf32, #tpu.memory_space<vmem>>, %arg11: memref<1x32xf32, #tpu.memory_space<vmem>>, %arg12: memref<32x32xbf16, #tpu.memory_space<vmem>>, %arg13: memref<1x32xf32, #tpu.memory_space<vmem>>, %arg14: memref<32x64xbf16, #tpu.memory_space<vmem>>, %arg15: memref<1x64xf32, #tpu.memory_space<vmem>>, %arg16: memref<4x8x32xbf16, #tpu.memory_space<vmem>>, %arg17: memref<1x32xf32, #tpu.memory_space<vmem>>, %arg18: memref<1x32xf32, #tpu.memory_space<vmem>>, %arg19: memref<1x32xf32, #tpu.memory_space<vmem>>, %arg20: memref<32x64xbf16, #tpu.memory_space<vmem>>, %arg21: memref<1x64xf32, #tpu.memory_space<vmem>>, %arg22: memref<64x32xbf16, #tpu.memory_space<vmem>>, %arg23: memref<1x32xf32, #tpu.memory_space<vmem>>, %arg24: memref<1x8x32xf32, #tpu.memory_space<vmem>>) attributes {dimension_semantics = [#tpu.dimension_semantics<parallel>], iteration_bounds = array<i64: 2>, scalar_prefetch = 0 : i64, scratch_operands = 0 : i64, tpu.core_type = #tpu.core_type<tc>, window_params = [{transform_indices = @transform_0, window_bounds = array<i64: 1, 8, 32>}, {transform_indices = @transform_1, window_bounds = array<i64: 1, 8, 32>}, {transform_indices = @transform_2, window_bounds = array<i64: 1, 1, 8>}, {pipeline_mode = #tpu.pipeline_mode<synchronous>, transform_indices = @transform_3, window_bounds = array<i64: 1, 32>}, {pipeline_mode = #tpu.pipeline_mode<synchronous>, transform_indices = @transform_4, window_bounds = array<i64: 1, 32>}, {pipeline_mode = #tpu.pipeline_mode<synchronous>, transform_indices = @transform_5, window_bounds = array<i64: 32, 96>}, {pipeline_mode = #tpu.pipeline_mode<synchronous>, transform_indices = @transform_6, window_bounds = array<i64: 1, 96>}, {pipeline_mode = #tpu.pipeline_mode<synchronous>, transform_indices = @transform_7, window_bounds = array<i64: 4, 8, 32>}, {pipeline_mode = #tpu.pipeline_mode<synchronous>, transform_indices = @transform_8, window_bounds = array<i64: 1, 32>}, {pipeline_mode = #tpu.pipeline_mode<synchronous>, transform_indices = @transform_9, window_bounds = array<i64: 1, 32>}, {pipeline_mode = #tpu.pipeline_mode<synchronous>, transform_indices = @transform_10, window_bounds = array<i64: 1, 32>}, {pipeline_mode = #tpu.pipeline_mode<synchronous>, transform_indices = @transform_11, window_bounds = array<i64: 32, 32>}, {pipeline_mode = #tpu.pipeline_mode<synchronous>, transform_indices = @transform_12, window_bounds = array<i64: 1, 32>}, {pipeline_mode = #tpu.pipeline_mode<synchronous>, transform_indices = @transform_13, window_bounds = array<i64: 32, 64>}, {pipeline_mode = #tpu.pipeline_mode<synchronous>, transform_indices = @transform_14, window_bounds = array<i64: 1, 64>}, {pipeline_mode = #tpu.pipeline_mode<synchronous>, transform_indices = @transform_15, window_bounds = array<i64: 4, 8, 32>}, {pipeline_mode = #tpu.pipeline_mode<synchronous>, transform_indices = @transform_16, window_bounds = array<i64: 1, 32>}, {pipeline_mode = #tpu.pipeline_mode<synchronous>, transform_indices = @transform_17, window_bounds = array<i64: 1, 32>}, {pipeline_mode = #tpu.pipeline_mode<synchronous>, transform_indices = @transform_18, window_bounds = array<i64: 1, 32>}, {pipeline_mode = #tpu.pipeline_mode<synchronous>, transform_indices = @transform_19, window_bounds = array<i64: 32, 64>}, {pipeline_mode = #tpu.pipeline_mode<synchronous>, transform_indices = @transform_20, window_bounds = array<i64: 1, 64>}, {pipeline_mode = #tpu.pipeline_mode<synchronous>, transform_indices = @transform_21, window_bounds = array<i64: 64, 32>}, {pipeline_mode = #tpu.pipeline_mode<synchronous>, transform_indices = @transform_22, window_bounds = array<i64: 1, 32>}, {transform_indices = @transform_23, window_bounds = array<i64: 1, 8, 32>}]} {
    %c0 = arith.constant 0 : index
    %c0_0 = arith.constant 0 : index
    %c0_1 = arith.constant 0 : index
    %0 = vector.load %arg1[%c0, %c0_0, %c0_1] : memref<1x8x32xf32, #tpu.memory_space<vmem>>, vector<1x8x32xf32>
    %1 = vector.shape_cast %0 : vector<1x8x32xf32> to vector<8x32xf32>
    %2 = tpu.iota {dimensions = array<i32: 0>} : vector<8x8xi32>
    %3 = tpu.iota {dimensions = array<i32: 1>} : vector<8x8xi32>
    %4 = arith.cmpi sle, %3, %2 : vector<8x8xi32>
    %cst = arith.constant 0.000000e+00 : f32
    %cst_2 = arith.constant -1.000000e+09 : f32
    %5 = vector.broadcast %cst : f32 to vector<8x8xf32>
    %6 = vector.broadcast %cst_2 : f32 to vector<8x8xf32>
    %7 = arith.select %4, %5, %6 : vector<8x8xi1>, vector<8x8xf32>
    %c0_3 = arith.constant 0 : index
    %c0_4 = arith.constant 0 : index
    %c0_5 = arith.constant 0 : index
    %8 = vector.load %arg3[%c0_3, %c0_4, %c0_5] : memref<1x1x8xf32, #tpu.memory_space<vmem>>, vector<1x1x8xf32>
    %9 = vector.shape_cast %8 : vector<1x1x8xf32> to vector<1x8xf32>
    %cst_6 = arith.constant 0.000000e+00 : f32
    %10 = vector.broadcast %cst_6 : f32 to vector<1x8xf32>
    %11 = arith.cmpf oeq, %9, %10 : vector<1x8xf32>
    %cst_7 = arith.constant -1.000000e+09 : f32
    %cst_8 = arith.constant 0.000000e+00 : f32
    %12 = vector.broadcast %cst_7 : f32 to vector<1x8xf32>
    %13 = vector.broadcast %cst_8 : f32 to vector<1x8xf32>
    %14 = arith.select %11, %12, %13 : vector<1x8xi1>, vector<1x8xf32>
    %c0_9 = arith.constant 0 : index
    %c0_10 = arith.constant 0 : index
    %15 = vector.load %arg4[%c0_9, %c0_10] : memref<1x32xf32, #tpu.memory_space<vmem>>, vector<1x32xf32>
    %c0_11 = arith.constant 0 : index
    %c0_12 = arith.constant 0 : index
    %16 = vector.load %arg5[%c0_11, %c0_12] : memref<1x32xf32, #tpu.memory_space<vmem>>, vector<1x32xf32>
    %cst_13 = arith.constant dense<0.000000e+00> : vector<8xf32>
    %17 = vector.multi_reduction <add>, %1, %cst_13 [1] : vector<8x32xf32> to vector<8xf32>
    %18 = vector.shape_cast %17 : vector<8xf32> to vector<8x1xf32>
    %cst_14 = arith.constant 3.200000e+01 : f32
    %19 = vector.broadcast %cst_14 : f32 to vector<8x1xf32>
    %20 = arith.divf %18, %19 : vector<8x1xf32>
    %21 = vector.broadcast %20 : vector<8x1xf32> to vector<8x32xf32>
    %22 = arith.subf %1, %21 : vector<8x32xf32>
    %23 = arith.mulf %22, %22 : vector<8x32xf32>
    %cst_15 = arith.constant dense<0.000000e+00> : vector<8xf32>
    %24 = vector.multi_reduction <add>, %23, %cst_15 [1] : vector<8x32xf32> to vector<8xf32>
    %25 = vector.shape_cast %24 : vector<8xf32> to vector<8x1xf32>
    %cst_16 = arith.constant 0.0322580636 : f32
    %26 = vector.broadcast %cst_16 : f32 to vector<8x1xf32>
    %27 = arith.mulf %25, %26 : vector<8x1xf32>
    %28 = math.sqrt %27 : vector<8x1xf32>
    %cst_17 = arith.constant 9.99999997E-7 : f32
    %29 = vector.broadcast %cst_17 : f32 to vector<8x1xf32>
    %30 = arith.addf %28, %29 : vector<8x1xf32>
    %cst_18 = arith.constant 1.000000e+00 : f32
    %31 = vector.broadcast %cst_18 : f32 to vector<8x1xf32>
    %32 = arith.divf %31, %30 : vector<8x1xf32>
    %33 = vector.broadcast %32 : vector<8x1xf32> to vector<8x32xf32>
    %34 = arith.mulf %22, %33 : vector<8x32xf32>
    %35 = vector.broadcast %15 : vector<1x32xf32> to vector<8x32xf32>
    %36 = arith.mulf %35, %34 : vector<8x32xf32>
    %37 = vector.broadcast %16 : vector<1x32xf32> to vector<8x32xf32>
    %38 = arith.addf %36, %37 : vector<8x32xf32>
    %39 = arith.truncf %38 : vector<8x32xf32> to vector<8x32xbf16>
    %c0_19 = arith.constant 0 : index
    %c0_20 = arith.constant 0 : index
    %40 = vector.load %arg6[%c0_19, %c0_20] : memref<32x96xbf16, #tpu.memory_space<vmem>>, vector<32x96xbf16>
    %cst_21 = arith.constant dense<0.000000e+00> : vector<8x96xf32>
    %41 = tpu.matmul %39, %40, %cst_21 {dimension_numbers = #tpu.dot_dimension_numbers<[1], [0], [0], [1], [0, 0, 1, 1], [], []>} : vector<8x32xbf16>, vector<32x96xbf16>, vector<8x96xf32> -> vector<8x96xf32>
    %c0_22 = arith.constant 0 : index
    %c0_23 = arith.constant 0 : index
    %42 = vector.load %arg7[%c0_22, %c0_23] : memref<1x96xf32, #tpu.memory_space<vmem>>, vector<1x96xf32>
    %43 = vector.broadcast %42 : vector<1x96xf32> to vector<8x96xf32>
    %44 = arith.addf %41, %43 : vector<8x96xf32>
    %45 = vector.extract_strided_slice %44 {offsets = [0, 0], sizes = [8, 32], strides = [1, 1]} : vector<8x96xf32> to vector<8x32xf32>
    %cst_24 = arith.constant 0.353553385 : f32
    %46 = vector.broadcast %cst_24 : f32 to vector<8x32xf32>
    %47 = arith.mulf %45, %46 : vector<8x32xf32>
    %48 = arith.truncf %47 : vector<8x32xf32> to vector<8x32xbf16>
    %49 = vector.extract_strided_slice %44 {offsets = [0, 32], sizes = [8, 32], strides = [1, 1]} : vector<8x96xf32> to vector<8x32xf32>
    %50 = arith.truncf %49 : vector<8x32xf32> to vector<8x32xbf16>
    %51 = vector.extract_strided_slice %44 {offsets = [0, 64], sizes = [8, 32], strides = [1, 1]} : vector<8x96xf32> to vector<8x32xf32>
    %52 = arith.truncf %51 : vector<8x32xf32> to vector<8x32xbf16>
    %53 = vector.extract_strided_slice %48 {offsets = [0, 0], sizes = [8, 8], strides = [1, 1]} : vector<8x32xbf16> to vector<8x8xbf16>
    %54 = vector.extract_strided_slice %48 {offsets = [0, 8], sizes = [8, 8], strides = [1, 1]} : vector<8x32xbf16> to vector<8x8xbf16>
    %55 = vector.extract_strided_slice %48 {offsets = [0, 16], sizes = [8, 8], strides = [1, 1]} : vector<8x32xbf16> to vector<8x8xbf16>
    %56 = vector.extract_strided_slice %48 {offsets = [0, 24], sizes = [8, 8], strides = [1, 1]} : vector<8x32xbf16> to vector<8x8xbf16>
    %57 = vector.shape_cast %53 : vector<8x8xbf16> to vector<1x8x8xbf16>
    %58 = vector.shape_cast %54 : vector<8x8xbf16> to vector<1x8x8xbf16>
    %59 = vector.shape_cast %55 : vector<8x8xbf16> to vector<1x8x8xbf16>
    %60 = vector.shape_cast %56 : vector<8x8xbf16> to vector<1x8x8xbf16>
    %61 = tpu.concatenate %57, %58, %59, %60 in 0 : vector<1x8x8xbf16>, vector<1x8x8xbf16>, vector<1x8x8xbf16>, vector<1x8x8xbf16> -> vector<4x8x8xbf16>
    %62 = vector.extract_strided_slice %50 {offsets = [0, 0], sizes = [8, 8], strides = [1, 1]} : vector<8x32xbf16> to vector<8x8xbf16>
    %63 = vector.extract_strided_slice %50 {offsets = [0, 8], sizes = [8, 8], strides = [1, 1]} : vector<8x32xbf16> to vector<8x8xbf16>
    %64 = vector.extract_strided_slice %50 {offsets = [0, 16], sizes = [8, 8], strides = [1, 1]} : vector<8x32xbf16> to vector<8x8xbf16>
    %65 = vector.extract_strided_slice %50 {offsets = [0, 24], sizes = [8, 8], strides = [1, 1]} : vector<8x32xbf16> to vector<8x8xbf16>
    %66 = vector.shape_cast %62 : vector<8x8xbf16> to vector<1x8x8xbf16>
    %67 = vector.shape_cast %63 : vector<8x8xbf16> to vector<1x8x8xbf16>
    %68 = vector.shape_cast %64 : vector<8x8xbf16> to vector<1x8x8xbf16>
    %69 = vector.shape_cast %65 : vector<8x8xbf16> to vector<1x8x8xbf16>
    %70 = tpu.concatenate %66, %67, %68, %69 in 0 : vector<1x8x8xbf16>, vector<1x8x8xbf16>, vector<1x8x8xbf16>, vector<1x8x8xbf16> -> vector<4x8x8xbf16>
    %71 = vector.extract_strided_slice %52 {offsets = [0, 0], sizes = [8, 8], strides = [1, 1]} : vector<8x32xbf16> to vector<8x8xbf16>
    %72 = vector.extract_strided_slice %52 {offsets = [0, 8], sizes = [8, 8], strides = [1, 1]} : vector<8x32xbf16> to vector<8x8xbf16>
    %73 = vector.extract_strided_slice %52 {offsets = [0, 16], sizes = [8, 8], strides = [1, 1]} : vector<8x32xbf16> to vector<8x8xbf16>
    %74 = vector.extract_strided_slice %52 {offsets = [0, 24], sizes = [8, 8], strides = [1, 1]} : vector<8x32xbf16> to vector<8x8xbf16>
    %75 = vector.shape_cast %71 : vector<8x8xbf16> to vector<1x8x8xbf16>
    %76 = vector.shape_cast %72 : vector<8x8xbf16> to vector<1x8x8xbf16>
    %77 = vector.shape_cast %73 : vector<8x8xbf16> to vector<1x8x8xbf16>
    %78 = vector.shape_cast %74 : vector<8x8xbf16> to vector<1x8x8xbf16>
    %79 = tpu.concatenate %75, %76, %77, %78 in 0 : vector<1x8x8xbf16>, vector<1x8x8xbf16>, vector<1x8x8xbf16>, vector<1x8x8xbf16> -> vector<4x8x8xbf16>
    %cst_25 = arith.constant dense<0.000000e+00> : vector<4x8x8xf32>
    %80 = tpu.matmul %61, %70, %cst_25 {dimension_numbers = #tpu.dot_dimension_numbers<[2], [2], [1], [1], [0, 0, 0, 1, 1, 1], [0], [0]>} : vector<4x8x8xbf16>, vector<4x8x8xbf16>, vector<4x8x8xf32> -> vector<4x8x8xf32>
    %81 = vector.shape_cast %7 : vector<8x8xf32> to vector<1x8x8xf32>
    %82 = vector.broadcast %81 : vector<1x8x8xf32> to vector<4x8x8xf32>
    %83 = arith.addf %80, %82 : vector<4x8x8xf32>
    %cst_26 = arith.constant dense<0xFF800000> : vector<4x8xf32>
    %84 = vector.multi_reduction <maximumf>, %83, %cst_26 [2] : vector<4x8x8xf32> to vector<4x8xf32>
    %85 = vector.shape_cast %84 : vector<4x8xf32> to vector<4x8x1xf32>
    %86 = vector.broadcast %85 : vector<4x8x1xf32> to vector<4x8x8xf32>
    %87 = arith.subf %83, %86 : vector<4x8x8xf32>
    %88 = math.exp %87 : vector<4x8x8xf32>
    %cst_27 = arith.constant dense<0.000000e+00> : vector<4x8xf32>
    %89 = vector.multi_reduction <add>, %88, %cst_27 [2] : vector<4x8x8xf32> to vector<4x8xf32>
    %90 = vector.shape_cast %89 : vector<4x8xf32> to vector<4x8x1xf32>
    %91 = tpu.reciprocal %90 {approx = true} : vector<4x8x1xf32> -> vector<4x8x1xf32>
    %92 = vector.broadcast %91 : vector<4x8x1xf32> to vector<4x8x8xf32>
    %93 = arith.mulf %88, %92 : vector<4x8x8xf32>
    %94 = arith.truncf %93 : vector<4x8x8xf32> to vector<4x8x8xbf16>
    %cst_28 = arith.constant dense<0.000000e+00> : vector<4x8x8xf32>
    %95 = tpu.matmul %94, %79, %cst_28 {dimension_numbers = #tpu.dot_dimension_numbers<[2], [1], [1], [2], [0, 0, 0, 1, 1, 2], [0], [0]>} : vector<4x8x8xbf16>, vector<4x8x8xbf16>, vector<4x8x8xf32> -> vector<4x8x8xf32>
    %c0_29 = arith.constant 0 : index
    %c0_30 = arith.constant 0 : index
    %c0_31 = arith.constant 0 : index
    %96 = vector.load %arg8[%c0_29, %c0_30, %c0_31] : memref<4x8x32xbf16, #tpu.memory_space<vmem>>, vector<4x8x32xbf16>
    %c0_32 = arith.constant 0 : index
    %c0_33 = arith.constant 0 : index
    %97 = vector.load %arg9[%c0_32, %c0_33] : memref<1x32xf32, #tpu.memory_space<vmem>>, vector<1x32xf32>
    %98 = arith.truncf %95 : vector<4x8x8xf32> to vector<4x8x8xbf16>
    %cst_34 = arith.constant dense<0.000000e+00> : vector<4x8x32xf32>
    %99 = tpu.matmul %98, %96, %cst_34 {dimension_numbers = #tpu.dot_dimension_numbers<[2], [1], [1], [2], [0, 0, 0, 1, 1, 2], [0], [0]>} : vector<4x8x8xbf16>, vector<4x8x32xbf16>, vector<4x8x32xf32> -> vector<4x8x32xf32>
    %cst_35 = arith.constant dense<0.000000e+00> : vector<8x32xf32>
    %100 = vector.multi_reduction <add>, %99, %cst_35 [0] : vector<4x8x32xf32> to vector<8x32xf32>
    %101 = vector.broadcast %97 : vector<1x32xf32> to vector<8x32xf32>
    %102 = arith.addf %100, %101 : vector<8x32xf32>
    %103 = arith.addf %1, %102 : vector<8x32xf32>
    %c0_36 = arith.constant 0 : index
    %c0_37 = arith.constant 0 : index
    %104 = vector.load %arg10[%c0_36, %c0_37] : memref<1x32xf32, #tpu.memory_space<vmem>>, vector<1x32xf32>
    %c0_38 = arith.constant 0 : index
    %c0_39 = arith.constant 0 : index
    %105 = vector.load %arg11[%c0_38, %c0_39] : memref<1x32xf32, #tpu.memory_space<vmem>>, vector<1x32xf32>
    %cst_40 = arith.constant dense<0.000000e+00> : vector<8xf32>
    %106 = vector.multi_reduction <add>, %103, %cst_40 [1] : vector<8x32xf32> to vector<8xf32>
    %107 = vector.shape_cast %106 : vector<8xf32> to vector<8x1xf32>
    %cst_41 = arith.constant 3.200000e+01 : f32
    %108 = vector.broadcast %cst_41 : f32 to vector<8x1xf32>
    %109 = arith.divf %107, %108 : vector<8x1xf32>
    %110 = vector.broadcast %109 : vector<8x1xf32> to vector<8x32xf32>
    %111 = arith.subf %103, %110 : vector<8x32xf32>
    %112 = arith.mulf %111, %111 : vector<8x32xf32>
    %cst_42 = arith.constant dense<0.000000e+00> : vector<8xf32>
    %113 = vector.multi_reduction <add>, %112, %cst_42 [1] : vector<8x32xf32> to vector<8xf32>
    %114 = vector.shape_cast %113 : vector<8xf32> to vector<8x1xf32>
    %cst_43 = arith.constant 0.0322580636 : f32
    %115 = vector.broadcast %cst_43 : f32 to vector<8x1xf32>
    %116 = arith.mulf %114, %115 : vector<8x1xf32>
    %117 = math.sqrt %116 : vector<8x1xf32>
    %cst_44 = arith.constant 9.99999997E-7 : f32
    %118 = vector.broadcast %cst_44 : f32 to vector<8x1xf32>
    %119 = arith.addf %117, %118 : vector<8x1xf32>
    %cst_45 = arith.constant 1.000000e+00 : f32
    %120 = vector.broadcast %cst_45 : f32 to vector<8x1xf32>
    %121 = arith.divf %120, %119 : vector<8x1xf32>
    %122 = vector.broadcast %121 : vector<8x1xf32> to vector<8x32xf32>
    %123 = arith.mulf %111, %122 : vector<8x32xf32>
    %124 = vector.broadcast %104 : vector<1x32xf32> to vector<8x32xf32>
    %125 = arith.mulf %124, %123 : vector<8x32xf32>
    %126 = vector.broadcast %105 : vector<1x32xf32> to vector<8x32xf32>
    %127 = arith.addf %125, %126 : vector<8x32xf32>
    %128 = arith.truncf %127 : vector<8x32xf32> to vector<8x32xbf16>
    %c0_46 = arith.constant 0 : index
    %c0_47 = arith.constant 0 : index
    %129 = vector.load %arg12[%c0_46, %c0_47] : memref<32x32xbf16, #tpu.memory_space<vmem>>, vector<32x32xbf16>
    %cst_48 = arith.constant dense<0.000000e+00> : vector<8x32xf32>
    %130 = tpu.matmul %128, %129, %cst_48 {dimension_numbers = #tpu.dot_dimension_numbers<[1], [0], [0], [1], [0, 0, 1, 1], [], []>} : vector<8x32xbf16>, vector<32x32xbf16>, vector<8x32xf32> -> vector<8x32xf32>
    %c0_49 = arith.constant 0 : index
    %c0_50 = arith.constant 0 : index
    %131 = vector.load %arg13[%c0_49, %c0_50] : memref<1x32xf32, #tpu.memory_space<vmem>>, vector<1x32xf32>
    %132 = vector.broadcast %131 : vector<1x32xf32> to vector<8x32xf32>
    %133 = arith.addf %130, %132 : vector<8x32xf32>
    %cst_51 = arith.constant 0.353553385 : f32
    %134 = vector.broadcast %cst_51 : f32 to vector<8x32xf32>
    %135 = arith.mulf %133, %134 : vector<8x32xf32>
    %136 = arith.truncf %135 : vector<8x32xf32> to vector<8x32xbf16>
    %c0_52 = arith.constant 0 : index
    %c0_53 = arith.constant 0 : index
    %c0_54 = arith.constant 0 : index
    %137 = vector.load %arg2[%c0_52, %c0_53, %c0_54] : memref<1x8x32xf32, #tpu.memory_space<vmem>>, vector<1x8x32xf32>
    %138 = vector.shape_cast %137 : vector<1x8x32xf32> to vector<8x32xf32>
    %139 = arith.truncf %138 : vector<8x32xf32> to vector<8x32xbf16>
    %c0_55 = arith.constant 0 : index
    %c0_56 = arith.constant 0 : index
    %140 = vector.load %arg14[%c0_55, %c0_56] : memref<32x64xbf16, #tpu.memory_space<vmem>>, vector<32x64xbf16>
    %cst_57 = arith.constant dense<0.000000e+00> : vector<8x64xf32>
    %141 = tpu.matmul %139, %140, %cst_57 {dimension_numbers = #tpu.dot_dimension_numbers<[1], [0], [0], [1], [0, 0, 1, 1], [], []>} : vector<8x32xbf16>, vector<32x64xbf16>, vector<8x64xf32> -> vector<8x64xf32>
    %c0_58 = arith.constant 0 : index
    %c0_59 = arith.constant 0 : index
    %142 = vector.load %arg15[%c0_58, %c0_59] : memref<1x64xf32, #tpu.memory_space<vmem>>, vector<1x64xf32>
    %143 = vector.broadcast %142 : vector<1x64xf32> to vector<8x64xf32>
    %144 = arith.addf %141, %143 : vector<8x64xf32>
    %145 = vector.extract_strided_slice %144 {offsets = [0, 0], sizes = [8, 32], strides = [1, 1]} : vector<8x64xf32> to vector<8x32xf32>
    %146 = arith.truncf %145 : vector<8x32xf32> to vector<8x32xbf16>
    %147 = vector.extract_strided_slice %144 {offsets = [0, 32], sizes = [8, 32], strides = [1, 1]} : vector<8x64xf32> to vector<8x32xf32>
    %148 = arith.truncf %147 : vector<8x32xf32> to vector<8x32xbf16>
    %149 = vector.extract_strided_slice %136 {offsets = [0, 0], sizes = [8, 8], strides = [1, 1]} : vector<8x32xbf16> to vector<8x8xbf16>
    %150 = vector.extract_strided_slice %136 {offsets = [0, 8], sizes = [8, 8], strides = [1, 1]} : vector<8x32xbf16> to vector<8x8xbf16>
    %151 = vector.extract_strided_slice %136 {offsets = [0, 16], sizes = [8, 8], strides = [1, 1]} : vector<8x32xbf16> to vector<8x8xbf16>
    %152 = vector.extract_strided_slice %136 {offsets = [0, 24], sizes = [8, 8], strides = [1, 1]} : vector<8x32xbf16> to vector<8x8xbf16>
    %153 = vector.shape_cast %149 : vector<8x8xbf16> to vector<1x8x8xbf16>
    %154 = vector.shape_cast %150 : vector<8x8xbf16> to vector<1x8x8xbf16>
    %155 = vector.shape_cast %151 : vector<8x8xbf16> to vector<1x8x8xbf16>
    %156 = vector.shape_cast %152 : vector<8x8xbf16> to vector<1x8x8xbf16>
    %157 = tpu.concatenate %153, %154, %155, %156 in 0 : vector<1x8x8xbf16>, vector<1x8x8xbf16>, vector<1x8x8xbf16>, vector<1x8x8xbf16> -> vector<4x8x8xbf16>
    %158 = vector.extract_strided_slice %146 {offsets = [0, 0], sizes = [8, 8], strides = [1, 1]} : vector<8x32xbf16> to vector<8x8xbf16>
    %159 = vector.extract_strided_slice %146 {offsets = [0, 8], sizes = [8, 8], strides = [1, 1]} : vector<8x32xbf16> to vector<8x8xbf16>
    %160 = vector.extract_strided_slice %146 {offsets = [0, 16], sizes = [8, 8], strides = [1, 1]} : vector<8x32xbf16> to vector<8x8xbf16>
    %161 = vector.extract_strided_slice %146 {offsets = [0, 24], sizes = [8, 8], strides = [1, 1]} : vector<8x32xbf16> to vector<8x8xbf16>
    %162 = vector.shape_cast %158 : vector<8x8xbf16> to vector<1x8x8xbf16>
    %163 = vector.shape_cast %159 : vector<8x8xbf16> to vector<1x8x8xbf16>
    %164 = vector.shape_cast %160 : vector<8x8xbf16> to vector<1x8x8xbf16>
    %165 = vector.shape_cast %161 : vector<8x8xbf16> to vector<1x8x8xbf16>
    %166 = tpu.concatenate %162, %163, %164, %165 in 0 : vector<1x8x8xbf16>, vector<1x8x8xbf16>, vector<1x8x8xbf16>, vector<1x8x8xbf16> -> vector<4x8x8xbf16>
    %167 = vector.extract_strided_slice %148 {offsets = [0, 0], sizes = [8, 8], strides = [1, 1]} : vector<8x32xbf16> to vector<8x8xbf16>
    %168 = vector.extract_strided_slice %148 {offsets = [0, 8], sizes = [8, 8], strides = [1, 1]} : vector<8x32xbf16> to vector<8x8xbf16>
    %169 = vector.extract_strided_slice %148 {offsets = [0, 16], sizes = [8, 8], strides = [1, 1]} : vector<8x32xbf16> to vector<8x8xbf16>
    %170 = vector.extract_strided_slice %148 {offsets = [0, 24], sizes = [8, 8], strides = [1, 1]} : vector<8x32xbf16> to vector<8x8xbf16>
    %171 = vector.shape_cast %167 : vector<8x8xbf16> to vector<1x8x8xbf16>
    %172 = vector.shape_cast %168 : vector<8x8xbf16> to vector<1x8x8xbf16>
    %173 = vector.shape_cast %169 : vector<8x8xbf16> to vector<1x8x8xbf16>
    %174 = vector.shape_cast %170 : vector<8x8xbf16> to vector<1x8x8xbf16>
    %175 = tpu.concatenate %171, %172, %173, %174 in 0 : vector<1x8x8xbf16>, vector<1x8x8xbf16>, vector<1x8x8xbf16>, vector<1x8x8xbf16> -> vector<4x8x8xbf16>
    %cst_60 = arith.constant dense<0.000000e+00> : vector<4x8x8xf32>
    %176 = tpu.matmul %157, %166, %cst_60 {dimension_numbers = #tpu.dot_dimension_numbers<[2], [2], [1], [1], [0, 0, 0, 1, 1, 1], [0], [0]>} : vector<4x8x8xbf16>, vector<4x8x8xbf16>, vector<4x8x8xf32> -> vector<4x8x8xf32>
    %177 = vector.shape_cast %14 : vector<1x8xf32> to vector<1x1x8xf32>
    %178 = vector.broadcast %177 : vector<1x1x8xf32> to vector<4x8x8xf32>
    %179 = arith.addf %176, %178 : vector<4x8x8xf32>
    %cst_61 = arith.constant dense<0xFF800000> : vector<4x8xf32>
    %180 = vector.multi_reduction <maximumf>, %179, %cst_61 [2] : vector<4x8x8xf32> to vector<4x8xf32>
    %181 = vector.shape_cast %180 : vector<4x8xf32> to vector<4x8x1xf32>
    %182 = vector.broadcast %181 : vector<4x8x1xf32> to vector<4x8x8xf32>
    %183 = arith.subf %179, %182 : vector<4x8x8xf32>
    %184 = math.exp %183 : vector<4x8x8xf32>
    %cst_62 = arith.constant dense<0.000000e+00> : vector<4x8xf32>
    %185 = vector.multi_reduction <add>, %184, %cst_62 [2] : vector<4x8x8xf32> to vector<4x8xf32>
    %186 = vector.shape_cast %185 : vector<4x8xf32> to vector<4x8x1xf32>
    %187 = tpu.reciprocal %186 {approx = true} : vector<4x8x1xf32> -> vector<4x8x1xf32>
    %188 = vector.broadcast %187 : vector<4x8x1xf32> to vector<4x8x8xf32>
    %189 = arith.mulf %184, %188 : vector<4x8x8xf32>
    %190 = arith.truncf %189 : vector<4x8x8xf32> to vector<4x8x8xbf16>
    %cst_63 = arith.constant dense<0.000000e+00> : vector<4x8x8xf32>
    %191 = tpu.matmul %190, %175, %cst_63 {dimension_numbers = #tpu.dot_dimension_numbers<[2], [1], [1], [2], [0, 0, 0, 1, 1, 2], [0], [0]>} : vector<4x8x8xbf16>, vector<4x8x8xbf16>, vector<4x8x8xf32> -> vector<4x8x8xf32>
    %c0_64 = arith.constant 0 : index
    %c0_65 = arith.constant 0 : index
    %c0_66 = arith.constant 0 : index
    %192 = vector.load %arg16[%c0_64, %c0_65, %c0_66] : memref<4x8x32xbf16, #tpu.memory_space<vmem>>, vector<4x8x32xbf16>
    %c0_67 = arith.constant 0 : index
    %c0_68 = arith.constant 0 : index
    %193 = vector.load %arg17[%c0_67, %c0_68] : memref<1x32xf32, #tpu.memory_space<vmem>>, vector<1x32xf32>
    %194 = arith.truncf %191 : vector<4x8x8xf32> to vector<4x8x8xbf16>
    %cst_69 = arith.constant dense<0.000000e+00> : vector<4x8x32xf32>
    %195 = tpu.matmul %194, %192, %cst_69 {dimension_numbers = #tpu.dot_dimension_numbers<[2], [1], [1], [2], [0, 0, 0, 1, 1, 2], [0], [0]>} : vector<4x8x8xbf16>, vector<4x8x32xbf16>, vector<4x8x32xf32> -> vector<4x8x32xf32>
    %cst_70 = arith.constant dense<0.000000e+00> : vector<8x32xf32>
    %196 = vector.multi_reduction <add>, %195, %cst_70 [0] : vector<4x8x32xf32> to vector<8x32xf32>
    %197 = vector.broadcast %193 : vector<1x32xf32> to vector<8x32xf32>
    %198 = arith.addf %196, %197 : vector<8x32xf32>
    %199 = arith.addf %103, %198 : vector<8x32xf32>
    %c0_71 = arith.constant 0 : index
    %c0_72 = arith.constant 0 : index
    %200 = vector.load %arg18[%c0_71, %c0_72] : memref<1x32xf32, #tpu.memory_space<vmem>>, vector<1x32xf32>
    %c0_73 = arith.constant 0 : index
    %c0_74 = arith.constant 0 : index
    %201 = vector.load %arg19[%c0_73, %c0_74] : memref<1x32xf32, #tpu.memory_space<vmem>>, vector<1x32xf32>
    %cst_75 = arith.constant dense<0.000000e+00> : vector<8xf32>
    %202 = vector.multi_reduction <add>, %199, %cst_75 [1] : vector<8x32xf32> to vector<8xf32>
    %203 = vector.shape_cast %202 : vector<8xf32> to vector<8x1xf32>
    %cst_76 = arith.constant 3.200000e+01 : f32
    %204 = vector.broadcast %cst_76 : f32 to vector<8x1xf32>
    %205 = arith.divf %203, %204 : vector<8x1xf32>
    %206 = vector.broadcast %205 : vector<8x1xf32> to vector<8x32xf32>
    %207 = arith.subf %199, %206 : vector<8x32xf32>
    %208 = arith.mulf %207, %207 : vector<8x32xf32>
    %cst_77 = arith.constant dense<0.000000e+00> : vector<8xf32>
    %209 = vector.multi_reduction <add>, %208, %cst_77 [1] : vector<8x32xf32> to vector<8xf32>
    %210 = vector.shape_cast %209 : vector<8xf32> to vector<8x1xf32>
    %cst_78 = arith.constant 0.0322580636 : f32
    %211 = vector.broadcast %cst_78 : f32 to vector<8x1xf32>
    %212 = arith.mulf %210, %211 : vector<8x1xf32>
    %213 = math.sqrt %212 : vector<8x1xf32>
    %cst_79 = arith.constant 9.99999997E-7 : f32
    %214 = vector.broadcast %cst_79 : f32 to vector<8x1xf32>
    %215 = arith.addf %213, %214 : vector<8x1xf32>
    %cst_80 = arith.constant 1.000000e+00 : f32
    %216 = vector.broadcast %cst_80 : f32 to vector<8x1xf32>
    %217 = arith.divf %216, %215 : vector<8x1xf32>
    %218 = vector.broadcast %217 : vector<8x1xf32> to vector<8x32xf32>
    %219 = arith.mulf %207, %218 : vector<8x32xf32>
    %220 = vector.broadcast %200 : vector<1x32xf32> to vector<8x32xf32>
    %221 = arith.mulf %220, %219 : vector<8x32xf32>
    %222 = vector.broadcast %201 : vector<1x32xf32> to vector<8x32xf32>
    %223 = arith.addf %221, %222 : vector<8x32xf32>
    %224 = arith.truncf %223 : vector<8x32xf32> to vector<8x32xbf16>
    %c0_81 = arith.constant 0 : index
    %c0_82 = arith.constant 0 : index
    %225 = vector.load %arg20[%c0_81, %c0_82] : memref<32x64xbf16, #tpu.memory_space<vmem>>, vector<32x64xbf16>
    %cst_83 = arith.constant dense<0.000000e+00> : vector<8x64xf32>
    %226 = tpu.matmul %224, %225, %cst_83 {dimension_numbers = #tpu.dot_dimension_numbers<[1], [0], [0], [1], [0, 0, 1, 1], [], []>} : vector<8x32xbf16>, vector<32x64xbf16>, vector<8x64xf32> -> vector<8x64xf32>
    %c0_84 = arith.constant 0 : index
    %c0_85 = arith.constant 0 : index
    %227 = vector.load %arg21[%c0_84, %c0_85] : memref<1x64xf32, #tpu.memory_space<vmem>>, vector<1x64xf32>
    %228 = vector.broadcast %227 : vector<1x64xf32> to vector<8x64xf32>
    %229 = arith.addf %226, %228 : vector<8x64xf32>
    %cst_86 = arith.constant 0.000000e+00 : f32
    %230 = vector.broadcast %cst_86 : f32 to vector<8x64xf32>
    %231 = arith.maximumf %229, %230 : vector<8x64xf32>
    %232 = arith.truncf %231 : vector<8x64xf32> to vector<8x64xbf16>
    %c0_87 = arith.constant 0 : index
    %c0_88 = arith.constant 0 : index
    %233 = vector.load %arg22[%c0_87, %c0_88] : memref<64x32xbf16, #tpu.memory_space<vmem>>, vector<64x32xbf16>
    %cst_89 = arith.constant dense<0.000000e+00> : vector<8x32xf32>
    %234 = tpu.matmul %232, %233, %cst_89 {dimension_numbers = #tpu.dot_dimension_numbers<[1], [0], [0], [1], [0, 0, 1, 1], [], []>} : vector<8x64xbf16>, vector<64x32xbf16>, vector<8x32xf32> -> vector<8x32xf32>
    %c0_90 = arith.constant 0 : index
    %c0_91 = arith.constant 0 : index
    %235 = vector.load %arg23[%c0_90, %c0_91] : memref<1x32xf32, #tpu.memory_space<vmem>>, vector<1x32xf32>
    %236 = vector.broadcast %235 : vector<1x32xf32> to vector<8x32xf32>
    %237 = arith.addf %234, %236 : vector<8x32xf32>
    %238 = arith.addf %199, %237 : vector<8x32xf32>
    %c0_92 = arith.constant 0 : index
    %c0_93 = arith.constant 0 : index
    %c0_94 = arith.constant 0 : index
    %239 = vector.load %arg24[%c0_92, %c0_93, %c0_94] : memref<1x8x32xf32, #tpu.memory_space<vmem>>, vector<1x8x32xf32>
    %240 = vector.shape_cast %239 : vector<1x8x32xf32> to vector<8x32xf32>
    %241 = vector.shape_cast %238 : vector<8x32xf32> to vector<1x8x32xf32>
    tpu.vector_store %arg24[%c0_92, %c0_93, %c0_94], %241 {strides = array<i32>} : memref<1x8x32xf32, #tpu.memory_space<vmem>>, vector<1x8x32xf32>,
    return
  }
  func.func @transform_0(%arg0: i32) -> (i32, i32, i32) {
    %c0_i32 = arith.constant 0 : i32
    %c0_i32_0 = arith.constant 0 : i32
    %c0_i32_1 = arith.constant 0 : i32
    return %arg0, %c0_i32, %c0_i32_0 : i32, i32, i32
  }
  func.func @transform_1(%arg0: i32) -> (i32, i32, i32) {
    %c0_i32 = arith.constant 0 : i32
    %c0_i32_0 = arith.constant 0 : i32
    %c0_i32_1 = arith.constant 0 : i32
    return %arg0, %c0_i32, %c0_i32_0 : i32, i32, i32
  }
  func.func @transform_2(%arg0: i32) -> (i32, i32, i32) {
    %c0_i32 = arith.constant 0 : i32
    %c0_i32_0 = arith.constant 0 : i32
    %c0_i32_1 = arith.constant 0 : i32
    return %arg0, %c0_i32, %c0_i32_0 : i32, i32, i32
  }
  func.func @transform_3(%arg0: i32) -> (i32, i32) {
    %c0_i32 = arith.constant 0 : i32
    %c0_i32_0 = arith.constant 0 : i32
    %c0_i32_1 = arith.constant 0 : i32
    return %c0_i32, %c0_i32_0 : i32, i32
  }
  func.func @transform_4(%arg0: i32) -> (i32, i32) {
    %c0_i32 = arith.constant 0 : i32
    %c0_i32_0 = arith.constant 0 : i32
    %c0_i32_1 = arith.constant 0 : i32
    return %c0_i32, %c0_i32_0 : i32, i32
  }
  func.func @transform_5(%arg0: i32) -> (i32, i32) {
    %c0_i32 = arith.constant 0 : i32
    %c0_i32_0 = arith.constant 0 : i32
    %c0_i32_1 = arith.constant 0 : i32
    return %c0_i32, %c0_i32_0 : i32, i32
  }
  func.func @transform_6(%arg0: i32) -> (i32, i32) {
    %c0_i32 = arith.constant 0 : i32
    %c0_i32_0 = arith.constant 0 : i32
    %c0_i32_1 = arith.constant 0 : i32
    return %c0_i32, %c0_i32_0 : i32, i32
  }
  func.func @transform_7(%arg0: i32) -> (i32, i32, i32) {
    %c0_i32 = arith.constant 0 : i32
    %c0_i32_0 = arith.constant 0 : i32
    %c0_i32_1 = arith.constant 0 : i32
    %c0_i32_2 = arith.constant 0 : i32
    return %c0_i32, %c0_i32_0, %c0_i32_1 : i32, i32, i32
  }
  func.func @transform_8(%arg0: i32) -> (i32, i32) {
    %c0_i32 = arith.constant 0 : i32
    %c0_i32_0 = arith.constant 0 : i32
    %c0_i32_1 = arith.constant 0 : i32
    return %c0_i32, %c0_i32_0 : i32, i32
  }
  func.func @transform_9(%arg0: i32) -> (i32, i32) {
    %c0_i32 = arith.constant 0 : i32
    %c0_i32_0 = arith.constant 0 : i32
    %c0_i32_1 = arith.constant 0 : i32
    return %c0_i32, %c0_i32_0 : i32, i32
  }
  func.func @transform_10(%arg0: i32) -> (i32, i32) {
    %c0_i32 = arith.constant 0 : i32
    %c0_i32_0 = arith.constant 0 : i32
    %c0_i32_1 = arith.constant 0 : i32
    return %c0_i32, %c0_i32_0 : i32, i32
  }
  func.func @transform_11(%arg0: i32) -> (i32, i32) {
    %c0_i32 = arith.constant 0 : i32
    %c0_i32_0 = arith.constant 0 : i32
    %c0_i32_1 = arith.constant 0 : i32
    return %c0_i32, %c0_i32_0 : i32, i32
  }
  func.func @transform_12(%arg0: i32) -> (i32, i32) {
    %c0_i32 = arith.constant 0 : i32
    %c0_i32_0 = arith.constant 0 : i32
    %c0_i32_1 = arith.constant 0 : i32
    return %c0_i32, %c0_i32_0 : i32, i32
  }
  func.func @transform_13(%arg0: i32) -> (i32, i32) {
    %c0_i32 = arith.constant 0 : i32
    %c0_i32_0 = arith.constant 0 : i32
    %c0_i32_1 = arith.constant 0 : i32
    return %c0_i32, %c0_i32_0 : i32, i32
  }
  func.func @transform_14(%arg0: i32) -> (i32, i32) {
    %c0_i32 = arith.constant 0 : i32
    %c0_i32_0 = arith.constant 0 : i32
    %c0_i32_1 = arith.constant 0 : i32
    return %c0_i32, %c0_i32_0 : i32, i32
  }
  func.func @transform_15(%arg0: i32) -> (i32, i32, i32) {
    %c0_i32 = arith.constant 0 : i32
    %c0_i32_0 = arith.constant 0 : i32
    %c0_i32_1 = arith.constant 0 : i32
    %c0_i32_2 = arith.constant 0 : i32
    return %c0_i32, %c0_i32_0, %c0_i32_1 : i32, i32, i32
  }
  func.func @transform_16(%arg0: i32) -> (i32, i32) {
    %c0_i32 = arith.constant 0 : i32
    %c0_i32_0 = arith.constant 0 : i32
    %c0_i32_1 = arith.constant 0 : i32
    return %c0_i32, %c0_i32_0 : i32, i32
  }
  func.func @transform_17(%arg0: i32) -> (i32, i32) {
    %c0_i32 = arith.constant 0 : i32
    %c0_i32_0 = arith.constant 0 : i32
    %c0_i32_1 = arith.constant 0 : i32
    return %c0_i32, %c0_i32_0 : i32, i32
  }
  func.func @transform_18(%arg0: i32) -> (i32, i32) {
    %c0_i32 = arith.constant 0 : i32
    %c0_i32_0 = arith.constant 0 : i32
    %c0_i32_1 = arith.constant 0 : i32
    return %c0_i32, %c0_i32_0 : i32, i32
  }
  func.func @transform_19(%arg0: i32) -> (i32, i32) {
    %c0_i32 = arith.constant 0 : i32
    %c0_i32_0 = arith.constant 0 : i32
    %c0_i32_1 = arith.constant 0 : i32
    return %c0_i32, %c0_i32_0 : i32, i32
  }
  func.func @transform_20(%arg0: i32) -> (i32, i32) {
    %c0_i32 = arith.constant 0 : i32
    %c0_i32_0 = arith.constant 0 : i32
    %c0_i32_1 = arith.constant 0 : i32
    return %c0_i32, %c0_i32_0 : i32, i32
  }
  func.func @transform_21(%arg0: i32) -> (i32, i32) {
    %c0_i32 = arith.constant 0 : i32
    %c0_i32_0 = arith.constant 0 : i32
    %c0_i32_1 = arith.constant 0 : i32
    return %c0_i32, %c0_i32_0 : i32, i32
  }
  func.func @transform_22(%arg0: i32) -> (i32, i32) {
    %c0_i32 = arith.constant 0 : i32
    %c0_i32_0 = arith.constant 0 : i32
    %c0_i32_1 = arith.constant 0 : i32
    return %c0_i32, %c0_i32_0 : i32, i32
  }
  func.func @transform_23(%arg0: i32) -> (i32, i32, i32) {
    %c0_i32 = arith.constant 0 : i32
    %c0_i32_0 = arith.constant 0 : i32
    %c0_i32_1 = arith.constant 0 : i32
    return %arg0, %c0_i32, %c0_i32_0 : i32, i32, i32
  }
}

module attributes {stable_mosaic.version = 11 : i64} {
  func.func @_decoder_layer_kernel(%arg0: i32, %arg1: memref<1x8x32xf32, #tpu.memory_space<vmem>>, %arg2: memref<1x8x32xf32, #tpu.memory_space<vmem>>, %arg3: memref<1x1x8xf32, #tpu.memory_space<vmem>>, %arg4: memref<1x32xf32, #tpu.memory_space<vmem>>, %arg5: memref<1x32xf32, #tpu.memory_space<vmem>>, %arg6: memref<32x96xbf16, #tpu.memory_space<vmem>>, %arg7: memref<1x96xf32, #tpu.memory_space<vmem>>, %arg8: memref<4x8x32xbf16, #tpu.memory_space<vmem>>, %arg9: memref<1x32xf32, #tpu.memory_space<vmem>>, %arg10: memref<1x32xf32, #tpu.memory_space<vmem>>, %arg11: memref<1x32xf32, #tpu.memory_space<vmem>>, %arg12: memref<32x32xbf16, #tpu.memory_space<vmem>>, %arg13: memref<1x32xf32, #tpu.memory_space<vmem>>, %arg14: memref<32x64xbf16, #tpu.memory_space<vmem>>, %arg15: memref<1x64xf32, #tpu.memory_space<vmem>>, %arg16: memref<4x8x32xbf16, #tpu.memory_space<vmem>>, %arg17: memref<1x32xf32, #tpu.memory_space<vmem>>, %arg18: memref<1x32xf32, #tpu.memory_space<vmem>>, %arg19: memref<1x32xf32, #tpu.memory_space<vmem>>, %arg20: memref<32x64xbf16, #tpu.memory_space<vmem>>, %arg21: memref<1x64xf32, #tpu.memory_space<vmem>>, %arg22: memref<64x32xbf16, #tpu.memory_space<vmem>>, %arg23: memref<1x32xf32, #tpu.memory_space<vmem>>, %arg24: memref<1x8x32xf32, #tpu.memory_space<vmem>>) attributes {dimension_semantics = [#tpu.dimension_semantics<parallel>], iteration_bounds = array<i64: 2>, scalar_prefetch = 0 : i64, scratch_operands = 0 : i64, tpu.core_type = #tpu.core_type<tc>, window_params = [{transform_indices = @transform_0, window_bounds = array<i64: 1, 8, 32>}, {transform_indices = @transform_1, window_bounds = array<i64: 1, 8, 32>}, {transform_indices = @transform_2, window_bounds = array<i64: 1, 1, 8>}, {pipeline_mode = #tpu.pipeline_mode<synchronous>, transform_indices = @transform_3, window_bounds = array<i64: 1, 32>}, {pipeline_mode = #tpu.pipeline_mode<synchronous>, transform_indices = @transform_4, window_bounds = array<i64: 1, 32>}, {pipeline_mode = #tpu.pipeline_mode<synchronous>, transform_indices = @transform_5, window_bounds = array<i64: 32, 96>}, {pipeline_mode = #tpu.pipeline_mode<synchronous>, transform_indices = @transform_6, window_bounds = array<i64: 1, 96>}, {pipeline_mode = #tpu.pipeline_mode<synchronous>, transform_indices = @transform_7, window_bounds = array<i64: 4, 8, 32>}, {pipeline_mode = #tpu.pipeline_mode<synchronous>, transform_indices = @transform_8, window_bounds = array<i64: 1, 32>}, {pipeline_mode = #tpu.pipeline_mode<synchronous>, transform_indices = @transform_9, window_bounds = array<i64: 1, 32>}, {pipeline_mode = #tpu.pipeline_mode<synchronous>, transform_indices = @transform_10, window_bounds = array<i64: 1, 32>}, {pipeline_mode = #tpu.pipeline_mode<synchronous>, transform_indices = @transform_11, window_bounds = array<i64: 32, 32>}, {pipeline_mode = #tpu.pipeline_mode<synchronous>, transform_indices = @transform_12, window_bounds = array<i64: 1, 32>}, {pipeline_mode = #tpu.pipeline_mode<synchronous>, transform_indices = @transform_13, window_bounds = array<i64: 32, 64>}, {pipeline_mode = #tpu.pipeline_mode<synchronous>, transform_indices = @transform_14, window_bounds = array<i64: 1, 64>}, {pipeline_mode = #tpu.pipeline_mode<synchronous>, transform_indices = @transform_15, window_bounds = array<i64: 4, 8, 32>}, {pipeline_mode = #tpu.pipeline_mode<synchronous>, transform_indices = @transform_16, window_bounds = array<i64: 1, 32>}, {pipeline_mode = #tpu.pipeline_mode<synchronous>, transform_indices = @transform_17, window_bounds = array<i64: 1, 32>}, {pipeline_mode = #tpu.pipeline_mode<synchronous>, transform_indices = @transform_18, window_bounds = array<i64: 1, 32>}, {pipeline_mode = #tpu.pipeline_mode<synchronous>, transform_indices = @transform_19, window_bounds = array<i64: 32, 64>}, {pipeline_mode = #tpu.pipeline_mode<synchronous>, transform_indices = @transform_20, window_bounds = array<i64: 1, 64>}, {pipeline_mode = #tpu.pipeline_mode<synchronous>, transform_indices = @transform_21, window_bounds = array<i64: 64, 32>}, {pipeline_mode = #tpu.pipeline_mode<synchronous>, transform_indices = @transform_22, window_bounds = array<i64: 1, 32>}, {transform_indices = @transform_23, window_bounds = array<i64: 1, 8, 32>}]} {
    %c0 = arith.constant 0 : index
    %c0_0 = arith.constant 0 : index
    %c0_1 = arith.constant 0 : index
    %0 = vector.load %arg1[%c0, %c0_0, %c0_1] : memref<1x8x32xf32, #tpu.memory_space<vmem>>, vector<1x8x32xf32>
    %1 = vector.shape_cast %0 : vector<1x8x32xf32> to vector<8x32xf32>
    %2 = tpu.iota {dimensions = array<i32: 0>} : vector<8x8xi32>
    %3 = tpu.iota {dimensions = array<i32: 1>} : vector<8x8xi32>
    %4 = arith.cmpi sle, %3, %2 : vector<8x8xi32>
    %cst = arith.constant 0.000000e+00 : f32
    %cst_2 = arith.constant -1.000000e+09 : f32
    %5 = vector.broadcast %cst : f32 to vector<8x8xf32>
    %6 = vector.broadcast %cst_2 : f32 to vector<8x8xf32>
    %7 = arith.select %4, %5, %6 : vector<8x8xi1>, vector<8x8xf32>
    %c0_3 = arith.constant 0 : index
    %c0_4 = arith.constant 0 : index
    %c0_5 = arith.constant 0 : index
    %8 = vector.load %arg3[%c0_3, %c0_4, %c0_5] : memref<1x1x8xf32, #tpu.memory_space<vmem>>, vector<1x1x8xf32>
    %9 = vector.shape_cast %8 : vector<1x1x8xf32> to vector<1x8xf32>
    %cst_6 = arith.constant 0.000000e+00 : f32
    %10 = vector.broadcast %cst_6 : f32 to vector<1x8xf32>
    %11 = arith.cmpf oeq, %9, %10 : vector<1x8xf32>
    %cst_7 = arith.constant -1.000000e+09 : f32
    %cst_8 = arith.constant 0.000000e+00 : f32
    %12 = vector.broadcast %cst_7 : f32 to vector<1x8xf32>
    %13 = vector.broadcast %cst_8 : f32 to vector<1x8xf32>
    %14 = arith.select %11, %12, %13 : vector<1x8xi1>, vector<1x8xf32>
    %c0_9 = arith.constant 0 : index
    %c0_10 = arith.constant 0 : index
    %15 = vector.load %arg4[%c0_9, %c0_10] : memref<1x32xf32, #tpu.memory_space<vmem>>, vector<1x32xf32>
    %c0_11 = arith.constant 0 : index
    %c0_12 = arith.constant 0 : index
    %16 = vector.load %arg5[%c0_11, %c0_12] : memref<1x32xf32, #tpu.memory_space<vmem>>, vector<1x32xf32>
    %cst_13 = arith.constant dense<0.000000e+00> : vector<8xf32>
    %17 = vector.multi_reduction <add>, %1, %cst_13 [1] : vector<8x32xf32> to vector<8xf32>
    %18 = vector.shape_cast %17 : vector<8xf32> to vector<8x1xf32>
    %cst_14 = arith.constant 3.200000e+01 : f32
    %19 = vector.broadcast %cst_14 : f32 to vector<8x1xf32>
    %20 = arith.divf %18, %19 : vector<8x1xf32>
    %21 = vector.broadcast %20 : vector<8x1xf32> to vector<8x32xf32>
    %22 = arith.subf %1, %21 : vector<8x32xf32>
    %23 = arith.mulf %22, %22 : vector<8x32xf32>
    %cst_15 = arith.constant dense<0.000000e+00> : vector<8xf32>
    %24 = vector.multi_reduction <add>, %23, %cst_15 [1] : vector<8x32xf32> to vector<8xf32>
    %25 = vector.shape_cast %24 : vector<8xf32> to vector<8x1xf32>
    %cst_16 = arith.constant 0.0322580636 : f32
    %26 = vector.broadcast %cst_16 : f32 to vector<8x1xf32>
    %27 = arith.mulf %25, %26 : vector<8x1xf32>
    %28 = math.sqrt %27 : vector<8x1xf32>
    %cst_17 = arith.constant 9.99999997E-7 : f32
    %29 = vector.broadcast %cst_17 : f32 to vector<8x1xf32>
    %30 = arith.addf %28, %29 : vector<8x1xf32>
    %cst_18 = arith.constant 1.000000e+00 : f32
    %31 = vector.broadcast %cst_18 : f32 to vector<8x1xf32>
    %32 = arith.divf %31, %30 : vector<8x1xf32>
    %33 = vector.broadcast %32 : vector<8x1xf32> to vector<8x32xf32>
    %34 = arith.mulf %22, %33 : vector<8x32xf32>
    %35 = vector.broadcast %15 : vector<1x32xf32> to vector<8x32xf32>
    %36 = arith.mulf %35, %34 : vector<8x32xf32>
    %37 = vector.broadcast %16 : vector<1x32xf32> to vector<8x32xf32>
    %38 = arith.addf %36, %37 : vector<8x32xf32>
    %39 = arith.truncf %38 : vector<8x32xf32> to vector<8x32xbf16>
    %c0_19 = arith.constant 0 : index
    %c0_20 = arith.constant 0 : index
    %40 = vector.load %arg6[%c0_19, %c0_20] : memref<32x96xbf16, #tpu.memory_space<vmem>>, vector<32x96xbf16>
    %cst_21 = arith.constant dense<0.000000e+00> : vector<8x96xf32>
    %41 = tpu.matmul %39, %40, %cst_21 {dimension_numbers = #tpu.dot_dimension_numbers<[1], [0], [0], [1], [0, 0, 1, 1], [], []>} : vector<8x32xbf16>, vector<32x96xbf16>, vector<8x96xf32> -> vector<8x96xf32>
    %c0_22 = arith.constant 0 : index
    %c0_23 = arith.constant 0 : index
    %42 = vector.load %arg7[%c0_22, %c0_23] : memref<1x96xf32, #tpu.memory_space<vmem>>, vector<1x96xf32>
    %43 = vector.broadcast %42 : vector<1x96xf32> to vector<8x96xf32>
    %44 = arith.addf %41, %43 : vector<8x96xf32>
    %45 = vector.extract_strided_slice %44 {offsets = [0, 0], sizes = [8, 32], strides = [1, 1]} : vector<8x96xf32> to vector<8x32xf32>
    %cst_24 = arith.constant 0.353553385 : f32
    %46 = vector.broadcast %cst_24 : f32 to vector<8x32xf32>
    %47 = arith.mulf %45, %46 : vector<8x32xf32>
    %48 = arith.truncf %47 : vector<8x32xf32> to vector<8x32xbf16>
    %49 = vector.extract_strided_slice %44 {offsets = [0, 32], sizes = [8, 32], strides = [1, 1]} : vector<8x96xf32> to vector<8x32xf32>
    %50 = arith.truncf %49 : vector<8x32xf32> to vector<8x32xbf16>
    %51 = vector.extract_strided_slice %44 {offsets = [0, 64], sizes = [8, 32], strides = [1, 1]} : vector<8x96xf32> to vector<8x32xf32>
    %52 = arith.truncf %51 : vector<8x32xf32> to vector<8x32xbf16>
    %53 = vector.extract_strided_slice %48 {offsets = [0, 0], sizes = [8, 8], strides = [1, 1]} : vector<8x32xbf16> to vector<8x8xbf16>
    %54 = vector.extract_strided_slice %48 {offsets = [0, 8], sizes = [8, 8], strides = [1, 1]} : vector<8x32xbf16> to vector<8x8xbf16>
    %55 = vector.extract_strided_slice %48 {offsets = [0, 16], sizes = [8, 8], strides = [1, 1]} : vector<8x32xbf16> to vector<8x8xbf16>
    %56 = vector.extract_strided_slice %48 {offsets = [0, 24], sizes = [8, 8], strides = [1, 1]} : vector<8x32xbf16> to vector<8x8xbf16>
    %57 = vector.shape_cast %53 : vector<8x8xbf16> to vector<1x8x8xbf16>
    %58 = vector.shape_cast %54 : vector<8x8xbf16> to vector<1x8x8xbf16>
    %59 = vector.shape_cast %55 : vector<8x8xbf16> to vector<1x8x8xbf16>
    %60 = vector.shape_cast %56 : vector<8x8xbf16> to vector<1x8x8xbf16>
    %61 = tpu.concatenate %57, %58, %59, %60 in 0 : vector<1x8x8xbf16>, vector<1x8x8xbf16>, vector<1x8x8xbf16>, vector<1x8x8xbf16> -> vector<4x8x8xbf16>
    %62 = vector.extract_strided_slice %50 {offsets = [0, 0], sizes = [8, 8], strides = [1, 1]} : vector<8x32xbf16> to vector<8x8xbf16>
    %63 = vector.extract_strided_slice %50 {offsets = [0, 8], sizes = [8, 8], strides = [1, 1]} : vector<8x32xbf16> to vector<8x8xbf16>
    %64 = vector.extract_strided_slice %50 {offsets = [0, 16], sizes = [8, 8], strides = [1, 1]} : vector<8x32xbf16> to vector<8x8xbf16>
    %65 = vector.extract_strided_slice %50 {offsets = [0, 24], sizes = [8, 8], strides = [1, 1]} : vector<8x32xbf16> to vector<8x8xbf16>
    %66 = vector.shape_cast %62 : vector<8x8xbf16> to vector<1x8x8xbf16>
    %67 = vector.shape_cast %63 : vector<8x8xbf16> to vector<1x8x8xbf16>
    %68 = vector.shape_cast %64 : vector<8x8xbf16> to vector<1x8x8xbf16>
    %69 = vector.shape_cast %65 : vector<8x8xbf16> to vector<1x8x8xbf16>
    %70 = tpu.concatenate %66, %67, %68, %69 in 0 : vector<1x8x8xbf16>, vector<1x8x8xbf16>, vector<1x8x8xbf16>, vector<1x8x8xbf16> -> vector<4x8x8xbf16>
    %71 = vector.extract_strided_slice %52 {offsets = [0, 0], sizes = [8, 8], strides = [1, 1]} : vector<8x32xbf16> to vector<8x8xbf16>
    %72 = vector.extract_strided_slice %52 {offsets = [0, 8], sizes = [8, 8], strides = [1, 1]} : vector<8x32xbf16> to vector<8x8xbf16>
    %73 = vector.extract_strided_slice %52 {offsets = [0, 16], sizes = [8, 8], strides = [1, 1]} : vector<8x32xbf16> to vector<8x8xbf16>
    %74 = vector.extract_strided_slice %52 {offsets = [0, 24], sizes = [8, 8], strides = [1, 1]} : vector<8x32xbf16> to vector<8x8xbf16>
    %75 = vector.shape_cast %71 : vector<8x8xbf16> to vector<1x8x8xbf16>
    %76 = vector.shape_cast %72 : vector<8x8xbf16> to vector<1x8x8xbf16>
    %77 = vector.shape_cast %73 : vector<8x8xbf16> to vector<1x8x8xbf16>
    %78 = vector.shape_cast %74 : vector<8x8xbf16> to vector<1x8x8xbf16>
    %79 = tpu.concatenate %75, %76, %77, %78 in 0 : vector<1x8x8xbf16>, vector<1x8x8xbf16>, vector<1x8x8xbf16>, vector<1x8x8xbf16> -> vector<4x8x8xbf16>
    %cst_25 = arith.constant dense<0.000000e+00> : vector<4x8x8xf32>
    %80 = tpu.matmul %61, %70, %cst_25 {dimension_numbers = #tpu.dot_dimension_numbers<[2], [2], [1], [1], [0, 0, 0, 1, 1, 1], [0], [0]>} : vector<4x8x8xbf16>, vector<4x8x8xbf16>, vector<4x8x8xf32> -> vector<4x8x8xf32>
    %81 = vector.shape_cast %7 : vector<8x8xf32> to vector<1x8x8xf32>
    %82 = vector.broadcast %81 : vector<1x8x8xf32> to vector<4x8x8xf32>
    %83 = arith.addf %80, %82 : vector<4x8x8xf32>
    %cst_26 = arith.constant dense<0xFF800000> : vector<4x8xf32>
    %84 = vector.multi_reduction <maximumf>, %83, %cst_26 [2] : vector<4x8x8xf32> to vector<4x8xf32>
    %85 = vector.shape_cast %84 : vector<4x8xf32> to vector<4x8x1xf32>
    %86 = vector.broadcast %85 : vector<4x8x1xf32> to vector<4x8x8xf32>
    %87 = arith.subf %83, %86 : vector<4x8x8xf32>
    %88 = math.exp %87 : vector<4x8x8xf32>
    %cst_27 = arith.constant dense<0.000000e+00> : vector<4x8xf32>
    %89 = vector.multi_reduction <add>, %88, %cst_27 [2] : vector<4x8x8xf32> to vector<4x8xf32>
    %90 = vector.shape_cast %89 : vector<4x8xf32> to vector<4x8x1xf32>
    %91 = tpu.reciprocal %90 {approx = true} : vector<4x8x1xf32> -> vector<4x8x1xf32>
    %92 = vector.broadcast %91 : vector<4x8x1xf32> to vector<4x8x8xf32>
    %93 = arith.mulf %88, %92 : vector<4x8x8xf32>
    %94 = arith.truncf %93 : vector<4x8x8xf32> to vector<4x8x8xbf16>
    %cst_28 = arith.constant dense<0.000000e+00> : vector<4x8x8xf32>
    %95 = tpu.matmul %94, %79, %cst_28 {dimension_numbers = #tpu.dot_dimension_numbers<[2], [1], [1], [2], [0, 0, 0, 1, 1, 2], [0], [0]>} : vector<4x8x8xbf16>, vector<4x8x8xbf16>, vector<4x8x8xf32> -> vector<4x8x8xf32>
    %c0_29 = arith.constant 0 : index
    %c0_30 = arith.constant 0 : index
    %c0_31 = arith.constant 0 : index
    %96 = vector.load %arg8[%c0_29, %c0_30, %c0_31] : memref<4x8x32xbf16, #tpu.memory_space<vmem>>, vector<4x8x32xbf16>
    %c0_32 = arith.constant 0 : index
    %c0_33 = arith.constant 0 : index
    %97 = vector.load %arg9[%c0_32, %c0_33] : memref<1x32xf32, #tpu.memory_space<vmem>>, vector<1x32xf32>
    %98 = arith.truncf %95 : vector<4x8x8xf32> to vector<4x8x8xbf16>
    %cst_34 = arith.constant dense<0.000000e+00> : vector<4x8x32xf32>
    %99 = tpu.matmul %98, %96, %cst_34 {dimension_numbers = #tpu.dot_dimension_numbers<[2], [1], [1], [2], [0, 0, 0, 1, 1, 2], [0], [0]>} : vector<4x8x8xbf16>, vector<4x8x32xbf16>, vector<4x8x32xf32> -> vector<4x8x32xf32>
    %cst_35 = arith.constant dense<0.000000e+00> : vector<8x32xf32>
    %100 = vector.multi_reduction <add>, %99, %cst_35 [0] : vector<4x8x32xf32> to vector<8x32xf32>
    %101 = vector.broadcast %97 : vector<1x32xf32> to vector<8x32xf32>
    %102 = arith.addf %100, %101 : vector<8x32xf32>
    %103 = arith.addf %1, %102 : vector<8x32xf32>
    %c0_36 = arith.constant 0 : index
    %c0_37 = arith.constant 0 : index
    %104 = vector.load %arg10[%c0_36, %c0_37] : memref<1x32xf32, #tpu.memory_space<vmem>>, vector<1x32xf32>
    %c0_38 = arith.constant 0 : index
    %c0_39 = arith.constant 0 : index
    %105 = vector.load %arg11[%c0_38, %c0_39] : memref<1x32xf32, #tpu.memory_space<vmem>>, vector<1x32xf32>
    %cst_40 = arith.constant dense<0.000000e+00> : vector<8xf32>
    %106 = vector.multi_reduction <add>, %103, %cst_40 [1] : vector<8x32xf32> to vector<8xf32>
    %107 = vector.shape_cast %106 : vector<8xf32> to vector<8x1xf32>
    %cst_41 = arith.constant 3.200000e+01 : f32
    %108 = vector.broadcast %cst_41 : f32 to vector<8x1xf32>
    %109 = arith.divf %107, %108 : vector<8x1xf32>
    %110 = vector.broadcast %109 : vector<8x1xf32> to vector<8x32xf32>
    %111 = arith.subf %103, %110 : vector<8x32xf32>
    %112 = arith.mulf %111, %111 : vector<8x32xf32>
    %cst_42 = arith.constant dense<0.000000e+00> : vector<8xf32>
    %113 = vector.multi_reduction <add>, %112, %cst_42 [1] : vector<8x32xf32> to vector<8xf32>
    %114 = vector.shape_cast %113 : vector<8xf32> to vector<8x1xf32>
    %cst_43 = arith.constant 0.0322580636 : f32
    %115 = vector.broadcast %cst_43 : f32 to vector<8x1xf32>
    %116 = arith.mulf %114, %115 : vector<8x1xf32>
    %117 = math.sqrt %116 : vector<8x1xf32>
    %cst_44 = arith.constant 9.99999997E-7 : f32
    %118 = vector.broadcast %cst_44 : f32 to vector<8x1xf32>
    %119 = arith.addf %117, %118 : vector<8x1xf32>
    %cst_45 = arith.constant 1.000000e+00 : f32
    %120 = vector.broadcast %cst_45 : f32 to vector<8x1xf32>
    %121 = arith.divf %120, %119 : vector<8x1xf32>
    %122 = vector.broadcast %121 : vector<8x1xf32> to vector<8x32xf32>
    %123 = arith.mulf %111, %122 : vector<8x32xf32>
    %124 = vector.broadcast %104 : vector<1x32xf32> to vector<8x32xf32>
    %125 = arith.mulf %124, %123 : vector<8x32xf32>
    %126 = vector.broadcast %105 : vector<1x32xf32> to vector<8x32xf32>
    %127 = arith.addf %125, %126 : vector<8x32xf32>
    %128 = arith.truncf %127 : vector<8x32xf32> to vector<8x32xbf16>
    %c0_46 = arith.constant 0 : index
    %c0_47 = arith.constant 0 : index
    %129 = vector.load %arg12[%c0_46, %c0_47] : memref<32x32xbf16, #tpu.memory_space<vmem>>, vector<32x32xbf16>
    %cst_48 = arith.constant dense<0.000000e+00> : vector<8x32xf32>
    %130 = tpu.matmul %128, %129, %cst_48 {dimension_numbers = #tpu.dot_dimension_numbers<[1], [0], [0], [1], [0, 0, 1, 1], [], []>} : vector<8x32xbf16>, vector<32x32xbf16>, vector<8x32xf32> -> vector<8x32xf32>
    %c0_49 = arith.constant 0 : index
    %c0_50 = arith.constant 0 : index
    %131 = vector.load %arg13[%c0_49, %c0_50] : memref<1x32xf32, #tpu.memory_space<vmem>>, vector<1x32xf32>
    %132 = vector.broadcast %131 : vector<1x32xf32> to vector<8x32xf32>
    %133 = arith.addf %130, %132 : vector<8x32xf32>
    %cst_51 = arith.constant 0.353553385 : f32
    %134 = vector.broadcast %cst_51 : f32 to vector<8x32xf32>
    %135 = arith.mulf %133, %134 : vector<8x32xf32>
    %136 = arith.truncf %135 : vector<8x32xf32> to vector<8x32xbf16>
    %c0_52 = arith.constant 0 : index
    %c0_53 = arith.constant 0 : index
    %c0_54 = arith.constant 0 : index
    %137 = vector.load %arg2[%c0_52, %c0_53, %c0_54] : memref<1x8x32xf32, #tpu.memory_space<vmem>>, vector<1x8x32xf32>
    %138 = vector.shape_cast %137 : vector<1x8x32xf32> to vector<8x32xf32>
    %139 = arith.truncf %138 : vector<8x32xf32> to vector<8x32xbf16>
    %c0_55 = arith.constant 0 : index
    %c0_56 = arith.constant 0 : index
    %140 = vector.load %arg14[%c0_55, %c0_56] : memref<32x64xbf16, #tpu.memory_space<vmem>>, vector<32x64xbf16>
    %cst_57 = arith.constant dense<0.000000e+00> : vector<8x64xf32>
    %141 = tpu.matmul %139, %140, %cst_57 {dimension_numbers = #tpu.dot_dimension_numbers<[1], [0], [0], [1], [0, 0, 1, 1], [], []>} : vector<8x32xbf16>, vector<32x64xbf16>, vector<8x64xf32> -> vector<8x64xf32>
    %c0_58 = arith.constant 0 : index
    %c0_59 = arith.constant 0 : index
    %142 = vector.load %arg15[%c0_58, %c0_59] : memref<1x64xf32, #tpu.memory_space<vmem>>, vector<1x64xf32>
    %143 = vector.broadcast %142 : vector<1x64xf32> to vector<8x64xf32>
    %144 = arith.addf %141, %143 : vector<8x64xf32>
    %145 = vector.extract_strided_slice %144 {offsets = [0, 0], sizes = [8, 32], strides = [1, 1]} : vector<8x64xf32> to vector<8x32xf32>
    %146 = arith.truncf %145 : vector<8x32xf32> to vector<8x32xbf16>
    %147 = vector.extract_strided_slice %144 {offsets = [0, 32], sizes = [8, 32], strides = [1, 1]} : vector<8x64xf32> to vector<8x32xf32>
    %148 = arith.truncf %147 : vector<8x32xf32> to vector<8x32xbf16>
    %149 = vector.extract_strided_slice %136 {offsets = [0, 0], sizes = [8, 8], strides = [1, 1]} : vector<8x32xbf16> to vector<8x8xbf16>
    %150 = vector.extract_strided_slice %136 {offsets = [0, 8], sizes = [8, 8], strides = [1, 1]} : vector<8x32xbf16> to vector<8x8xbf16>
    %151 = vector.extract_strided_slice %136 {offsets = [0, 16], sizes = [8, 8], strides = [1, 1]} : vector<8x32xbf16> to vector<8x8xbf16>
    %152 = vector.extract_strided_slice %136 {offsets = [0, 24], sizes = [8, 8], strides = [1, 1]} : vector<8x32xbf16> to vector<8x8xbf16>
    %153 = vector.shape_cast %149 : vector<8x8xbf16> to vector<1x8x8xbf16>
    %154 = vector.shape_cast %150 : vector<8x8xbf16> to vector<1x8x8xbf16>
    %155 = vector.shape_cast %151 : vector<8x8xbf16> to vector<1x8x8xbf16>
    %156 = vector.shape_cast %152 : vector<8x8xbf16> to vector<1x8x8xbf16>
    %157 = tpu.concatenate %153, %154, %155, %156 in 0 : vector<1x8x8xbf16>, vector<1x8x8xbf16>, vector<1x8x8xbf16>, vector<1x8x8xbf16> -> vector<4x8x8xbf16>
    %158 = vector.extract_strided_slice %146 {offsets = [0, 0], sizes = [8, 8], strides = [1, 1]} : vector<8x32xbf16> to vector<8x8xbf16>
    %159 = vector.extract_strided_slice %146 {offsets = [0, 8], sizes = [8, 8], strides = [1, 1]} : vector<8x32xbf16> to vector<8x8xbf16>
    %160 = vector.extract_strided_slice %146 {offsets = [0, 16], sizes = [8, 8], strides = [1, 1]} : vector<8x32xbf16> to vector<8x8xbf16>
    %161 = vector.extract_strided_slice %146 {offsets = [0, 24], sizes = [8, 8], strides = [1, 1]} : vector<8x32xbf16> to vector<8x8xbf16>
    %162 = vector.shape_cast %158 : vector<8x8xbf16> to vector<1x8x8xbf16>
    %163 = vector.shape_cast %159 : vector<8x8xbf16> to vector<1x8x8xbf16>
    %164 = vector.shape_cast %160 : vector<8x8xbf16> to vector<1x8x8xbf16>
    %165 = vector.shape_cast %161 : vector<8x8xbf16> to vector<1x8x8xbf16>
    %166 = tpu.concatenate %162, %163, %164, %165 in 0 : vector<1x8x8xbf16>, vector<1x8x8xbf16>, vector<1x8x8xbf16>, vector<1x8x8xbf16> -> vector<4x8x8xbf16>
    %167 = vector.extract_strided_slice %148 {offsets = [0, 0], sizes = [8, 8], strides = [1, 1]} : vector<8x32xbf16> to vector<8x8xbf16>
    %168 = vector.extract_strided_slice %148 {offsets = [0, 8], sizes = [8, 8], strides = [1, 1]} : vector<8x32xbf16> to vector<8x8xbf16>
    %169 = vector.extract_strided_slice %148 {offsets = [0, 16], sizes = [8, 8], strides = [1, 1]} : vector<8x32xbf16> to vector<8x8xbf16>
    %170 = vector.extract_strided_slice %148 {offsets = [0, 24], sizes = [8, 8], strides = [1, 1]} : vector<8x32xbf16> to vector<8x8xbf16>
    %171 = vector.shape_cast %167 : vector<8x8xbf16> to vector<1x8x8xbf16>
    %172 = vector.shape_cast %168 : vector<8x8xbf16> to vector<1x8x8xbf16>
    %173 = vector.shape_cast %169 : vector<8x8xbf16> to vector<1x8x8xbf16>
    %174 = vector.shape_cast %170 : vector<8x8xbf16> to vector<1x8x8xbf16>
    %175 = tpu.concatenate %171, %172, %173, %174 in 0 : vector<1x8x8xbf16>, vector<1x8x8xbf16>, vector<1x8x8xbf16>, vector<1x8x8xbf16> -> vector<4x8x8xbf16>
    %cst_60 = arith.constant dense<0.000000e+00> : vector<4x8x8xf32>
    %176 = tpu.matmul %157, %166, %cst_60 {dimension_numbers = #tpu.dot_dimension_numbers<[2], [2], [1], [1], [0, 0, 0, 1, 1, 1], [0], [0]>} : vector<4x8x8xbf16>, vector<4x8x8xbf16>, vector<4x8x8xf32> -> vector<4x8x8xf32>
    %177 = vector.shape_cast %14 : vector<1x8xf32> to vector<1x1x8xf32>
    %178 = vector.broadcast %177 : vector<1x1x8xf32> to vector<4x8x8xf32>
    %179 = arith.addf %176, %178 : vector<4x8x8xf32>
    %cst_61 = arith.constant dense<0xFF800000> : vector<4x8xf32>
    %180 = vector.multi_reduction <maximumf>, %179, %cst_61 [2] : vector<4x8x8xf32> to vector<4x8xf32>
    %181 = vector.shape_cast %180 : vector<4x8xf32> to vector<4x8x1xf32>
    %182 = vector.broadcast %181 : vector<4x8x1xf32> to vector<4x8x8xf32>
    %183 = arith.subf %179, %182 : vector<4x8x8xf32>
    %184 = math.exp %183 : vector<4x8x8xf32>
    %cst_62 = arith.constant dense<0.000000e+00> : vector<4x8xf32>
    %185 = vector.multi_reduction <add>, %184, %cst_62 [2] : vector<4x8x8xf32> to vector<4x8xf32>
    %186 = vector.shape_cast %185 : vector<4x8xf32> to vector<4x8x1xf32>
    %187 = tpu.reciprocal %186 {approx = true} : vector<4x8x1xf32> -> vector<4x8x1xf32>
    %188 = vector.broadcast %187 : vector<4x8x1xf32> to vector<4x8x8xf32>
    %189 = arith.mulf %184, %188 : vector<4x8x8xf32>
    %190 = arith.truncf %189 : vector<4x8x8xf32> to vector<4x8x8xbf16>
    %cst_63 = arith.constant dense<0.000000e+00> : vector<4x8x8xf32>
    %191 = tpu.matmul %190, %175, %cst_63 {dimension_numbers = #tpu.dot_dimension_numbers<[2], [1], [1], [2], [0, 0, 0, 1, 1, 2], [0], [0]>} : vector<4x8x8xbf16>, vector<4x8x8xbf16>, vector<4x8x8xf32> -> vector<4x8x8xf32>
    %c0_64 = arith.constant 0 : index
    %c0_65 = arith.constant 0 : index
    %c0_66 = arith.constant 0 : index
    %192 = vector.load %arg16[%c0_64, %c0_65, %c0_66] : memref<4x8x32xbf16, #tpu.memory_space<vmem>>, vector<4x8x32xbf16>
    %c0_67 = arith.constant 0 : index
    %c0_68 = arith.constant 0 : index
    %193 = vector.load %arg17[%c0_67, %c0_68] : memref<1x32xf32, #tpu.memory_space<vmem>>, vector<1x32xf32>
    %194 = arith.truncf %191 : vector<4x8x8xf32> to vector<4x8x8xbf16>
    %cst_69 = arith.constant dense<0.000000e+00> : vector<4x8x32xf32>
    %195 = tpu.matmul %194, %192, %cst_69 {dimension_numbers = #tpu.dot_dimension_numbers<[2], [1], [1], [2], [0, 0, 0, 1, 1, 2], [0], [0]>} : vector<4x8x8xbf16>, vector<4x8x32xbf16>, vector<4x8x32xf32> -> vector<4x8x32xf32>
    %cst_70 = arith.constant dense<0.000000e+00> : vector<8x32xf32>
    %196 = vector.multi_reduction <add>, %195, %cst_70 [0] : vector<4x8x32xf32> to vector<8x32xf32>
    %197 = vector.broadcast %193 : vector<1x32xf32> to vector<8x32xf32>
    %198 = arith.addf %196, %197 : vector<8x32xf32>
    %199 = arith.addf %103, %198 : vector<8x32xf32>
    %c0_71 = arith.constant 0 : index
    %c0_72 = arith.constant 0 : index
    %200 = vector.load %arg18[%c0_71, %c0_72] : memref<1x32xf32, #tpu.memory_space<vmem>>, vector<1x32xf32>
    %c0_73 = arith.constant 0 : index
    %c0_74 = arith.constant 0 : index
    %201 = vector.load %arg19[%c0_73, %c0_74] : memref<1x32xf32, #tpu.memory_space<vmem>>, vector<1x32xf32>
    %cst_75 = arith.constant dense<0.000000e+00> : vector<8xf32>
    %202 = vector.multi_reduction <add>, %199, %cst_75 [1] : vector<8x32xf32> to vector<8xf32>
    %203 = vector.shape_cast %202 : vector<8xf32> to vector<8x1xf32>
    %cst_76 = arith.constant 3.200000e+01 : f32
    %204 = vector.broadcast %cst_76 : f32 to vector<8x1xf32>
    %205 = arith.divf %203, %204 : vector<8x1xf32>
    %206 = vector.broadcast %205 : vector<8x1xf32> to vector<8x32xf32>
    %207 = arith.subf %199, %206 : vector<8x32xf32>
    %208 = arith.mulf %207, %207 : vector<8x32xf32>
    %cst_77 = arith.constant dense<0.000000e+00> : vector<8xf32>
    %209 = vector.multi_reduction <add>, %208, %cst_77 [1] : vector<8x32xf32> to vector<8xf32>
    %210 = vector.shape_cast %209 : vector<8xf32> to vector<8x1xf32>
    %cst_78 = arith.constant 0.0322580636 : f32
    %211 = vector.broadcast %cst_78 : f32 to vector<8x1xf32>
    %212 = arith.mulf %210, %211 : vector<8x1xf32>
    %213 = math.sqrt %212 : vector<8x1xf32>
    %cst_79 = arith.constant 9.99999997E-7 : f32
    %214 = vector.broadcast %cst_79 : f32 to vector<8x1xf32>
    %215 = arith.addf %213, %214 : vector<8x1xf32>
    %cst_80 = arith.constant 1.000000e+00 : f32
    %216 = vector.broadcast %cst_80 : f32 to vector<8x1xf32>
    %217 = arith.divf %216, %215 : vector<8x1xf32>
    %218 = vector.broadcast %217 : vector<8x1xf32> to vector<8x32xf32>
    %219 = arith.mulf %207, %218 : vector<8x32xf32>
    %220 = vector.broadcast %200 : vector<1x32xf32> to vector<8x32xf32>
    %221 = arith.mulf %220, %219 : vector<8x32xf32>
    %222 = vector.broadcast %201 : vector<1x32xf32> to vector<8x32xf32>
    %223 = arith.addf %221, %222 : vector<8x32xf32>
    %224 = arith.truncf %223 : vector<8x32xf32> to vector<8x32xbf16>
    %c0_81 = arith.constant 0 : index
    %c0_82 = arith.constant 0 : index
    %225 = vector.load %arg20[%c0_81, %c0_82] : memref<32x64xbf16, #tpu.memory_space<vmem>>, vector<32x64xbf16>
    %cst_83 = arith.constant dense<0.000000e+00> : vector<8x64xf32>
    %226 = tpu.matmul %224, %225, %cst_83 {dimension_numbers = #tpu.dot_dimension_numbers<[1], [0], [0], [1], [0, 0, 1, 1], [], []>} : vector<8x32xbf16>, vector<32x64xbf16>, vector<8x64xf32> -> vector<8x64xf32>
    %c0_84 = arith.constant 0 : index
    %c0_85 = arith.constant 0 : index
    %227 = vector.load %arg21[%c0_84, %c0_85] : memref<1x64xf32, #tpu.memory_space<vmem>>, vector<1x64xf32>
    %228 = vector.broadcast %227 : vector<1x64xf32> to vector<8x64xf32>
    %229 = arith.addf %226, %228 : vector<8x64xf32>
    %cst_86 = arith.constant 0.000000e+00 : f32
    %230 = vector.broadcast %cst_86 : f32 to vector<8x64xf32>
    %231 = arith.maximumf %229, %230 : vector<8x64xf32>
    %232 = arith.truncf %231 : vector<8x64xf32> to vector<8x64xbf16>
    %c0_87 = arith.constant 0 : index
    %c0_88 = arith.constant 0 : index
    %233 = vector.load %arg22[%c0_87, %c0_88] : memref<64x32xbf16, #tpu.memory_space<vmem>>, vector<64x32xbf16>
    %cst_89 = arith.constant dense<0.000000e+00> : vector<8x32xf32>
    %234 = tpu.matmul %232, %233, %cst_89 {dimension_numbers = #tpu.dot_dimension_numbers<[1], [0], [0], [1], [0, 0, 1, 1], [], []>} : vector<8x64xbf16>, vector<64x32xbf16>, vector<8x32xf32> -> vector<8x32xf32>
    %c0_90 = arith.constant 0 : index
    %c0_91 = arith.constant 0 : index
    %235 = vector.load %arg23[%c0_90, %c0_91] : memref<1x32xf32, #tpu.memory_space<vmem>>, vector<1x32xf32>
    %236 = vector.broadcast %235 : vector<1x32xf32> to vector<8x32xf32>
    %237 = arith.addf %234, %236 : vector<8x32xf32>
    %238 = arith.addf %199, %237 : vector<8x32xf32>
    %c0_92 = arith.constant 0 : index
    %c0_93 = arith.constant 0 : index
    %c0_94 = arith.constant 0 : index
    %239 = vector.load %arg24[%c0_92, %c0_93, %c0_94] : memref<1x8x32xf32, #tpu.memory_space<vmem>>, vector<1x8x32xf32>
    %240 = vector.shape_cast %239 : vector<1x8x32xf32> to vector<8x32xf32>
    %241 = vector.shape_cast %238 : vector<8x32xf32> to vector<1x8x32xf32>
    tpu.vector_store %arg24[%c0_92, %c0_93, %c0_94], %241 {strides = array<i32>} : memref<1x8x32xf32, #tpu.memory_space<vmem>>, vector<1x8x32xf32>,
    return
  }
  func.func @transform_0(%arg0: i32) -> (i32, i32, i32) {
    %c0_i32 = arith.constant 0 : i32
    %c0_i32_0 = arith.constant 0 : i32
    %c0_i32_1 = arith.constant 0 : i32
    return %arg0, %c0_i32, %c0_i32_0 : i32, i32, i32
  }
  func.func @transform_1(%arg0: i32) -> (i32, i32, i32) {
    %c0_i32 = arith.constant 0 : i32
    %c0_i32_0 = arith.constant 0 : i32
    %c0_i32_1 = arith.constant 0 : i32
    return %arg0, %c0_i32, %c0_i32_0 : i32, i32, i32
  }
  func.func @transform_2(%arg0: i32) -> (i32, i32, i32) {
    %c0_i32 = arith.constant 0 : i32
    %c0_i32_0 = arith.constant 0 : i32
    %c0_i32_1 = arith.constant 0 : i32
    return %arg0, %c0_i32, %c0_i32_0 : i32, i32, i32
  }
  func.func @transform_3(%arg0: i32) -> (i32, i32) {
    %c0_i32 = arith.constant 0 : i32
    %c0_i32_0 = arith.constant 0 : i32
    %c0_i32_1 = arith.constant 0 : i32
    return %c0_i32, %c0_i32_0 : i32, i32
  }
  func.func @transform_4(%arg0: i32) -> (i32, i32) {
    %c0_i32 = arith.constant 0 : i32
    %c0_i32_0 = arith.constant 0 : i32
    %c0_i32_1 = arith.constant 0 : i32
    return %c0_i32, %c0_i32_0 : i32, i32
  }
  func.func @transform_5(%arg0: i32) -> (i32, i32) {
    %c0_i32 = arith.constant 0 : i32
    %c0_i32_0 = arith.constant 0 : i32
    %c0_i32_1 = arith.constant 0 : i32
    return %c0_i32, %c0_i32_0 : i32, i32
  }
  func.func @transform_6(%arg0: i32) -> (i32, i32) {
    %c0_i32 = arith.constant 0 : i32
    %c0_i32_0 = arith.constant 0 : i32
    %c0_i32_1 = arith.constant 0 : i32
    return %c0_i32, %c0_i32_0 : i32, i32
  }
  func.func @transform_7(%arg0: i32) -> (i32, i32, i32) {
    %c0_i32 = arith.constant 0 : i32
    %c0_i32_0 = arith.constant 0 : i32
    %c0_i32_1 = arith.constant 0 : i32
    %c0_i32_2 = arith.constant 0 : i32
    return %c0_i32, %c0_i32_0, %c0_i32_1 : i32, i32, i32
  }
  func.func @transform_8(%arg0: i32) -> (i32, i32) {
    %c0_i32 = arith.constant 0 : i32
    %c0_i32_0 = arith.constant 0 : i32
    %c0_i32_1 = arith.constant 0 : i32
    return %c0_i32, %c0_i32_0 : i32, i32
  }
  func.func @transform_9(%arg0: i32) -> (i32, i32) {
    %c0_i32 = arith.constant 0 : i32
    %c0_i32_0 = arith.constant 0 : i32
    %c0_i32_1 = arith.constant 0 : i32
    return %c0_i32, %c0_i32_0 : i32, i32
  }
  func.func @transform_10(%arg0: i32) -> (i32, i32) {
    %c0_i32 = arith.constant 0 : i32
    %c0_i32_0 = arith.constant 0 : i32
    %c0_i32_1 = arith.constant 0 : i32
    return %c0_i32, %c0_i32_0 : i32, i32
  }
  func.func @transform_11(%arg0: i32) -> (i32, i32) {
    %c0_i32 = arith.constant 0 : i32
    %c0_i32_0 = arith.constant 0 : i32
    %c0_i32_1 = arith.constant 0 : i32
    return %c0_i32, %c0_i32_0 : i32, i32
  }
  func.func @transform_12(%arg0: i32) -> (i32, i32) {
    %c0_i32 = arith.constant 0 : i32
    %c0_i32_0 = arith.constant 0 : i32
    %c0_i32_1 = arith.constant 0 : i32
    return %c0_i32, %c0_i32_0 : i32, i32
  }
  func.func @transform_13(%arg0: i32) -> (i32, i32) {
    %c0_i32 = arith.constant 0 : i32
    %c0_i32_0 = arith.constant 0 : i32
    %c0_i32_1 = arith.constant 0 : i32
    return %c0_i32, %c0_i32_0 : i32, i32
  }
  func.func @transform_14(%arg0: i32) -> (i32, i32) {
    %c0_i32 = arith.constant 0 : i32
    %c0_i32_0 = arith.constant 0 : i32
    %c0_i32_1 = arith.constant 0 : i32
    return %c0_i32, %c0_i32_0 : i32, i32
  }
  func.func @transform_15(%arg0: i32) -> (i32, i32, i32) {
    %c0_i32 = arith.constant 0 : i32
    %c0_i32_0 = arith.constant 0 : i32
    %c0_i32_1 = arith.constant 0 : i32
    %c0_i32_2 = arith.constant 0 : i32
    return %c0_i32, %c0_i32_0, %c0_i32_1 : i32, i32, i32
  }
  func.func @transform_16(%arg0: i32) -> (i32, i32) {
    %c0_i32 = arith.constant 0 : i32
    %c0_i32_0 = arith.constant 0 : i32
    %c0_i32_1 = arith.constant 0 : i32
    return %c0_i32, %c0_i32_0 : i32, i32
  }
  func.func @transform_17(%arg0: i32) -> (i32, i32) {
    %c0_i32 = arith.constant 0 : i32
    %c0_i32_0 = arith.constant 0 : i32
    %c0_i32_1 = arith.constant 0 : i32
    return %c0_i32, %c0_i32_0 : i32, i32
  }
  func.func @transform_18(%arg0: i32) -> (i32, i32) {
    %c0_i32 = arith.constant 0 : i32
    %c0_i32_0 = arith.constant 0 : i32
    %c0_i32_1 = arith.constant 0 : i32
    return %c0_i32, %c0_i32_0 : i32, i32
  }
  func.func @transform_19(%arg0: i32) -> (i32, i32) {
    %c0_i32 = arith.constant 0 : i32
    %c0_i32_0 = arith.constant 0 : i32
    %c0_i32_1 = arith.constant 0 : i32
    return %c0_i32, %c0_i32_0 : i32, i32
  }
  func.func @transform_20(%arg0: i32) -> (i32, i32) {
    %c0_i32 = arith.constant 0 : i32
    %c0_i32_0 = arith.constant 0 : i32
    %c0_i32_1 = arith.constant 0 : i32
    return %c0_i32, %c0_i32_0 : i32, i32
  }
  func.func @transform_21(%arg0: i32) -> (i32, i32) {
    %c0_i32 = arith.constant 0 : i32
    %c0_i32_0 = arith.constant 0 : i32
    %c0_i32_1 = arith.constant 0 : i32
    return %c0_i32, %c0_i32_0 : i32, i32
  }
  func.func @transform_22(%arg0: i32) -> (i32, i32) {
    %c0_i32 = arith.constant 0 : i32
    %c0_i32_0 = arith.constant 0 : i32
    %c0_i32_1 = arith.constant 0 : i32
    return %c0_i32, %c0_i32_0 : i32, i32
  }
  func.func @transform_23(%arg0: i32) -> (i32, i32, i32) {
    %c0_i32 = arith.constant 0 : i32
    %c0_i32_0 = arith.constant 0 : i32
    %c0_i32_1 = arith.constant 0 : i32
    return %arg0, %c0_i32, %c0_i32_0 : i32, i32, i32
  }
}

</mosaic_0001>

<llo_original>
// kernel: decoder_layer.1
$region0: #{decoder_layer.1}
  #allocation0 [shape = 'u32[]', space=smem, size = 0x4, offset = 0x4, fixed_abs, tag = 'smem constant byte address 0x4 - core index']
  #allocation1 [shape = 'u32[144,128]{1,0:T(1,128)}', space=vmem, size = 0x12000, scoped, tag = 'internal scratch']
  %s0 = inlined_call_operand.vmem [shape: f32[2,8,32], index: 0, kind: input, shape index: {}]
  %s1 = inlined_call_operand.vmem [shape: f32[2,8,32], index: 1, kind: input, shape index: {}]
  %s2 = inlined_call_operand.hbm [shape: f32[2,1,8], index: 2, kind: input, shape index: {}]
  %s3 = inlined_call_operand.hbm [shape: f32[1,32], index: 3, kind: input, shape index: {}]
  %s4 = inlined_call_operand.hbm [shape: f32[1,32], index: 4, kind: input, shape index: {}]
  %s5 = inlined_call_operand.vmem [shape: bf16[32,96], index: 5, kind: input, shape index: {}]
  %s6 = inlined_call_operand.hbm [shape: f32[1,96], index: 6, kind: input, shape index: {}]
  %s7 = inlined_call_operand.vmem [shape: bf16[4,8,32], index: 7, kind: input, shape index: {}]
  %s8 = inlined_call_operand.hbm [shape: f32[1,32], index: 8, kind: input, shape index: {}]
  %s9 = inlined_call_operand.hbm [shape: f32[1,32], index: 9, kind: input, shape index: {}]
  %s10 = inlined_call_operand.hbm [shape: f32[1,32], index: 10, kind: input, shape index: {}]
  %s11 = inlined_call_operand.vmem [shape: bf16[32,32], index: 11, kind: input, shape index: {}]
  %s12 = inlined_call_operand.vmem [shape: f32[1,32], index: 12, kind: input, shape index: {}]
  %s13 = inlined_call_operand.vmem [shape: bf16[32,64], index: 13, kind: input, shape index: {}]
  %s14 = inlined_call_operand.vmem [shape: f32[1,64], index: 14, kind: input, shape index: {}]
  %s15 = inlined_call_operand.vmem [shape: bf16[4,8,32], index: 15, kind: input, shape index: {}]
  %s16 = inlined_call_operand.vmem [shape: f32[1,32], index: 16, kind: input, shape index: {}]
  %s17 = inlined_call_operand.hbm [shape: f32[1,32], index: 17, kind: input, shape index: {}]
  %s18 = inlined_call_operand.hbm [shape: f32[1,32], index: 18, kind: input, shape index: {}]
  %s19 = inlined_call_operand.hbm [shape: bf16[32,64], index: 19, kind: input, shape index: {}]
  %s20 = inlined_call_operand.hbm [shape: f32[1,64], index: 20, kind: input, shape index: {}]
  %s21 = inlined_call_operand.vmem [shape: bf16[64,32], index: 21, kind: input, shape index: {}]
  %s22 = inlined_call_operand.hbm [shape: f32[1,32], index: 22, kind: input, shape index: {}]
  %s23 = inlined_call_operand.hbm [shape: f32[2,8,32], index: 23, kind: output, shape index: {}]
  %s24 = sld [smem:[#allocation0]]
  $region173: #{decoder_layer.1} parent=0
    _
  %s26 = ssub.s32 1, %s24
  %s27 = scalar_select 0, %s26, %s24
  $region1: #{decoder_layer.1} parent=0
    #allocation2 [shape = 'u8[1024]{0}', space=vmem, size = 0x400, scoped, tag = 'input window, operand 2']
    #allocation3 [shape = 's32[2]{0}', space=sflag, size = 0x8, scoped, tag = 'scoped memory for decoder_layer.1']
    #allocation4 [shape = 's32[2]{0}', space=sflag, size = 0x8, scoped, tag = 'scoped memory for decoder_layer.1']
    #allocation5 [shape = 'u8[512]{0}', space=vmem, size = 0x400, scoped, tag = 'input window, operand 3, single buffered']
    #allocation6 [shape = 's32[1]{0}', space=sflag, size = 0x4, scoped, tag = 'scoped memory for decoder_layer.1']
    #allocation7 [shape = 'u8[512]{0}', space=vmem, size = 0x400, scoped, tag = 'input window, operand 4, single buffered']
    #allocation8 [shape = 'u8[512]{0}', space=vmem, size = 0x400, scoped, tag = 'input window, operand 6, single buffered']
    #allocation9 [shape = 's32[1]{0}', space=sflag, size = 0x4, scoped, tag = 'scoped memory for decoder_layer.1']
    #allocation10 [shape = 'u8[512]{0}', space=vmem, size = 0x400, scoped, tag = 'input window, operand 8, single buffered']
    #allocation11 [shape = 'u8[512]{0}', space=vmem, size = 0x400, scoped, tag = 'input window, operand 9, single buffered']
    #allocation12 [shape = 's32[1]{0}', space=sflag, size = 0x4, scoped, tag = 'scoped memory for decoder_layer.1']
    #allocation13 [shape = 'u8[512]{0}', space=vmem, size = 0x400, scoped, tag = 'input window, operand 10, single buffered']
    #allocation14 [shape = 'u8[512]{0}', space=vmem, size = 0x400, scoped, tag = 'input window, operand 17, single buffered']
    #allocation15 [shape = 's32[1]{0}', space=sflag, size = 0x4, scoped, tag = 'scoped memory for decoder_layer.1']
    #allocation16 [shape = 'u8[512]{0}', space=vmem, size = 0x400, scoped, tag = 'input window, operand 18, single buffered']
    #allocation17 [shape = 'u8[8192]{0}', space=vmem, size = 0x2000, scoped, tag = 'input window, operand 19, single buffered']
    #allocation18 [shape = 's32[1]{0}', space=sflag, size = 0x4, scoped, tag = 'scoped memory for decoder_layer.1']
    #allocation19 [shape = 'u8[512]{0}', space=vmem, size = 0x400, scoped, tag = 'input window, operand 20, single buffered']
    #allocation20 [shape = 'u8[512]{0}', space=vmem, size = 0x400, scoped, tag = 'input window, operand 22, single buffered']
    #allocation21 [shape = 's32[1]{0}', space=sflag, size = 0x4, scoped, tag = 'scoped memory for decoder_layer.1']
    #allocation22 [shape = 'u8[8192]{0}', space=vmem, size = 0x2000, scoped, tag = 'output window, operand 0']
    %28 = vsyncpa [#allocation3], 0
    %s29 = scalar_lea.sflag [#allocation3], 1
    %30 = vsyncpa %s29, 0
    %31 = vsyncpa [#allocation6], 0
    %32 = vsyncpa [#allocation9], 0
    %33 = vsyncpa [#allocation12], 0
    %34 = vsyncpa [#allocation15], 0
    %35 = vsyncpa [#allocation18], 0
    %36 = vsyncpa [#allocation21], 0
    %37 = vsyncpa [#allocation4], 0
    %s38 = scalar_lea.sflag [#allocation4], 1
    %39 = vsyncpa %s38, 0
    loop: start=0, step=1, limit=4
    $region2: #{decoder_layer.1} parent=1 // loop_pre_header
      _
    $region3: #{decoder_layer.1} parent=1 // loop_header
      %s41 = sphi 0, %s45
      %p42 = scmp.ge.s32.totalorder %s41, 4
      %s51 = sphi 0, %s53
      %s54 = sphi 0, %s51
      %s55 = sphi 0, %s54
      %s71 = sphi 0, %s55
      %s77 = sphi 0, %s79
      %s80 = sphi 0, %s77
      %s81 = sphi 0, %s80
      %s97 = sphi 0, %s81
      %s103 = sphi 0, %s105
      %s106 = sphi 0, %s103
      %s107 = sphi 0, %s106
      %s123 = sphi 0, %s107
      %s127 = sphi 0, %s127
      %s129 = sphi 0, %s127
      %s130 = sphi 0, %s129
      %s144 = sphi 0, %s130
      %s148 = sphi 0, %s148
      %s150 = sphi 0, %s148
      %s151 = sphi 0, %s150
      %s165 = sphi 0, %s151
      %s169 = sphi 0, %s169
      %s171 = sphi 0, %s169
      %s172 = sphi 0, %s171
      %s186 = sphi 0, %s172
      %s190 = sphi 0, %s190
      %s192 = sphi 0, %s190
      %s193 = sphi 0, %s192
      %s207 = sphi 0, %s193
      %s211 = sphi 0, %s211
      %s213 = sphi 0, %s211
      %s214 = sphi 0, %s213
      %s228 = sphi 0, %s214
      %s232 = sphi 0, %s232
      %s234 = sphi 0, %s232
      %s235 = sphi 0, %s234
      %s249 = sphi 0, %s235
      %s253 = sphi 0, %s253
      %s255 = sphi 0, %s253
      %s256 = sphi 0, %s255
      %s270 = sphi 0, %s256
      %s274 = sphi 0, %s274
      %s276 = sphi 0, %s274
      %s277 = sphi 0, %s276
      %s291 = sphi 0, %s277
      %s295 = sphi 0, %s295
      %s297 = sphi 0, %s295
      %s298 = sphi 0, %s297
      %s312 = sphi 0, %s298
      %s316 = sphi 0, %s316
      %s318 = sphi 0, %s316
      %s319 = sphi 0, %s318
      %s333 = sphi 0, %s319
      %s337 = sphi 0, %s337
      %s339 = sphi 0, %s337
      %s340 = sphi 0, %s339
      %s354 = sphi 0, %s340
      %s358 = sphi 0, %s358
      %s360 = sphi 0, %s358
      %s361 = sphi 0, %s360
      %s375 = sphi 0, %s361
      %s379 = sphi 0, %s379
      %s381 = sphi 0, %s379
      %s382 = sphi 0, %s381
      %s396 = sphi 0, %s382
      %s400 = sphi 0, %s400
      %s402 = sphi 0, %s400
      %s403 = sphi 0, %s402
      %s417 = sphi 0, %s403
      %s421 = sphi 0, %s421
      %s423 = sphi 0, %s421
      %s424 = sphi 0, %s423
      %s438 = sphi 0, %s424
      %s442 = sphi 0, %s442
      %s444 = sphi 0, %s442
      %s445 = sphi 0, %s444
      %s459 = sphi 0, %s445
      %s463 = sphi 0, %s463
      %s465 = sphi 0, %s463
      %s466 = sphi 0, %s465
      %s480 = sphi 0, %s466
      %s484 = sphi 0, %s484
      %s486 = sphi 0, %s484
      %s487 = sphi 0, %s486
      %s501 = sphi 0, %s487
      %s505 = sphi 0, %s505
      %s507 = sphi 0, %s505
      %s508 = sphi 0, %s507
      %s522 = sphi 0, %s508
      %s526 = sphi 0, %s526
      %s528 = sphi 0, %s526
      %s529 = sphi 0, %s528
      %s543 = sphi 0, %s529
      %s549 = sphi 0, %s551
      %s552 = sphi 0, %s549
      %s553 = sphi 0, %s552
      %s569 = sphi 0, %s553
    $region4: #{decoder_layer.1} parent=1 // loop_header_branch
      %44 = sbr.rel (%p42) target = $region8
    $region5: #{decoder_layer.1} parent=1 // loop_body
      %s46 = ssub.s32 %s41, 1
      %s47 = ssub.s32 %s41, 2
      %s48 = sadd.s32 %s41, 1
      %s49 = ssub.s32 %s41, %s48
      %p50 = scmp.eq.s32.totalorder %s49, 0
      %s52 = sadd.s32 %s51, 1
      %s53 = scalar_select %p50, %s51, %s52
      %p56 = pneg %p50
      %p57 = scmp.eq.s32.totalorder %s41, 1
      %p58 = por %p56, %p57
      %p59 = scmp.ne.s32.totalorder %s51, %s54
      %p60 = scmp.eq.s32.totalorder %s41, 0
      %p61 = por %p59, %p60
      %p62 = scmp.ne.s32.totalorder %s51, %s54
      %p63 = scmp.eq.s32.totalorder %s46, 1
      %p64 = por %p62, %p63
      %p65 = scmp.ne.s32.totalorder %s54, %s55
      %p66 = scmp.eq.s32.totalorder %s46, 0
      %p67 = por %p65, %p66
      %p68 = scmp.ne.s32.totalorder %s54, %s55
      %p69 = scmp.eq.s32.totalorder %s47, 1
      %p70 = por %p68, %p69
      %p72 = scmp.ne.s32.totalorder %s55, %s71
      %p73 = scmp.eq.s32.totalorder %s47, 0
      %p74 = por %p72, %p73
      %s75 = ssub.s32 %s41, %s48
      %p76 = scmp.eq.s32.totalorder %s75, 0
      %s78 = sadd.s32 %s77, 1
      %s79 = scalar_select %p76, %s77, %s78
      %p82 = pneg %p76
      %p83 = scmp.eq.s32.totalorder %s41, 1
      %p84 = por %p82, %p83
      %p85 = scmp.ne.s32.totalorder %s77, %s80
      %p86 = scmp.eq.s32.totalorder %s41, 0
      %p87 = por %p85, %p86
      %p88 = scmp.ne.s32.totalorder %s77, %s80
      %p89 = scmp.eq.s32.totalorder %s46, 1
      %p90 = por %p88, %p89
      %p91 = scmp.ne.s32.totalorder %s80, %s81
      %p92 = scmp.eq.s32.totalorder %s46, 0
      %p93 = por %p91, %p92
      %p94 = scmp.ne.s32.totalorder %s80, %s81
      %p95 = scmp.eq.s32.totalorder %s47, 1
      %p96 = por %p94, %p95
      %p98 = scmp.ne.s32.totalorder %s81, %s97
      %p99 = scmp.eq.s32.totalorder %s47, 0
      %p100 = por %p98, %p99
      %s101 = ssub.s32 %s41, %s48
      %p102 = scmp.eq.s32.totalorder %s101, 0
      %s104 = sadd.s32 %s103, 1
      %s105 = scalar_select %p102, %s103, %s104
      %p108 = pneg %p102
      %p109 = scmp.eq.s32.totalorder %s41, 1
      %p110 = por %p108, %p109
      %p111 = scmp.ne.s32.totalorder %s103, %s106
      %p112 = scmp.eq.s32.totalorder %s41, 0
      %p113 = por %p111, %p112
      %p114 = scmp.ne.s32.totalorder %s103, %s106
      %p115 = scmp.eq.s32.totalorder %s46, 1
      %p116 = por %p114, %p115
      %p117 = scmp.ne.s32.totalorder %s106, %s107
      %p118 = scmp.eq.s32.totalorder %s46, 0
      %p119 = por %p117, %p118
      %p120 = scmp.ne.s32.totalorder %s106, %s107
      %p121 = scmp.eq.s32.totalorder %s47, 1
      %p122 = por %p120, %p121
      %p124 = scmp.ne.s32.totalorder %s107, %s123
      %p125 = scmp.eq.s32.totalorder %s47, 0
      %p126 = por %p124, %p125
      %s128 = sadd.s32 %s127, 1
      %p131 = scmp.eq.s32.totalorder %s41, 1
      %p132 = scmp.ne.s32.totalorder %s127, %s129
      %p133 = scmp.eq.s32.totalorder %s41, 0
      %p134 = por %p132, %p133
      %p135 = scmp.ne.s32.totalorder %s127, %s129
      %p136 = scmp.eq.s32.totalorder %s46, 1
      %p137 = por %p135, %p136
      %p138 = scmp.ne.s32.totalorder %s129, %s130
      %p139 = scmp.eq.s32.totalorder %s46, 0
      %p140 = por %p138, %p139
      %p141 = scmp.ne.s32.totalorder %s129, %s130
      %p142 = scmp.eq.s32.totalorder %s47, 1
      %p143 = por %p141, %p142
      %p145 = scmp.ne.s32.totalorder %s130, %s144
      %p146 = scmp.eq.s32.totalorder %s47, 0
      %p147 = por %p145, %p146
      %s149 = sadd.s32 %s148, 1
      %p152 = scmp.eq.s32.totalorder %s41, 1
      %p153 = scmp.ne.s32.totalorder %s148, %s150
      %p154 = scmp.eq.s32.totalorder %s41, 0
      %p155 = por %p153, %p154
      %p156 = scmp.ne.s32.totalorder %s148, %s150
      %p157 = scmp.eq.s32.totalorder %s46, 1
      %p158 = por %p156, %p157
      %p159 = scmp.ne.s32.totalorder %s150, %s151
      %p160 = scmp.eq.s32.totalorder %s46, 0
      %p161 = por %p159, %p160
      %p162 = scmp.ne.s32.totalorder %s150, %s151
      %p163 = scmp.eq.s32.totalorder %s47, 1
      %p164 = por %p162, %p163
      %p166 = scmp.ne.s32.totalorder %s151, %s165
      %p167 = scmp.eq.s32.totalorder %s47, 0
      %p168 = por %p166, %p167
      %s170 = sadd.s32 %s169, 1
      %p173 = scmp.eq.s32.totalorder %s41, 1
      %p174 = scmp.ne.s32.totalorder %s169, %s171
      %p175 = scmp.eq.s32.totalorder %s41, 0
      %p176 = por %p174, %p175
      %p177 = scmp.ne.s32.totalorder %s169, %s171
      %p178 = scmp.eq.s32.totalorder %s46, 1
      %p179 = por %p177, %p178
      %p180 = scmp.ne.s32.totalorder %s171, %s172
      %p181 = scmp.eq.s32.totalorder %s46, 0
      %p182 = por %p180, %p181
      %p183 = scmp.ne.s32.totalorder %s171, %s172
      %p184 = scmp.eq.s32.totalorder %s47, 1
      %p185 = por %p183, %p184
      %p187 = scmp.ne.s32.totalorder %s172, %s186
      %p188 = scmp.eq.s32.totalorder %s47, 0
      %p189 = por %p187, %p188
      %s191 = sadd.s32 %s190, 1
      %p194 = scmp.eq.s32.totalorder %s41, 1
      %p195 = scmp.ne.s32.totalorder %s190, %s192
      %p196 = scmp.eq.s32.totalorder %s41, 0
      %p197 = por %p195, %p196
      %p198 = scmp.ne.s32.totalorder %s190, %s192
      %p199 = scmp.eq.s32.totalorder %s46, 1
      %p200 = por %p198, %p199
      %p201 = scmp.ne.s32.totalorder %s192, %s193
      %p202 = scmp.eq.s32.totalorder %s46, 0
      %p203 = por %p201, %p202
      %p204 = scmp.ne.s32.totalorder %s192, %s193
      %p205 = scmp.eq.s32.totalorder %s47, 1
      %p206 = por %p204, %p205
      %p208 = scmp.ne.s32.totalorder %s193, %s207
      %p209 = scmp.eq.s32.totalorder %s47, 0
      %p210 = por %p208, %p209
      %s212 = sadd.s32 %s211, 1
      %p215 = scmp.eq.s32.totalorder %s41, 1
      %p216 = scmp.ne.s32.totalorder %s211, %s213
      %p217 = scmp.eq.s32.totalorder %s41, 0
      %p218 = por %p216, %p217
      %p219 = scmp.ne.s32.totalorder %s211, %s213
      %p220 = scmp.eq.s32.totalorder %s46, 1
      %p221 = por %p219, %p220
      %p222 = scmp.ne.s32.totalorder %s213, %s214
      %p223 = scmp.eq.s32.totalorder %s46, 0
      %p224 = por %p222, %p223
      %p225 = scmp.ne.s32.totalorder %s213, %s214
      %p226 = scmp.eq.s32.totalorder %s47, 1
      %p227 = por %p225, %p226
      %p229 = scmp.ne.s32.totalorder %s214, %s228
      %p230 = scmp.eq.s32.totalorder %s47, 0
      %p231 = por %p229, %p230
      %s233 = sadd.s32 %s232, 1
      %p236 = scmp.eq.s32.totalorder %s41, 1
      %p237 = scmp.ne.s32.totalorder %s232, %s234
      %p238 = scmp.eq.s32.totalorder %s41, 0
      %p239 = por %p237, %p238
      %p240 = scmp.ne.s32.totalorder %s232, %s234
      %p241 = scmp.eq.s32.totalorder %s46, 1
      %p242 = por %p240, %p241
      %p243 = scmp.ne.s32.totalorder %s234, %s235
      %p244 = scmp.eq.s32.totalorder %s46, 0
      %p245 = por %p243, %p244
      %p246 = scmp.ne.s32.totalorder %s234, %s235
      %p247 = scmp.eq.s32.totalorder %s47, 1
      %p248 = por %p246, %p247
      %p250 = scmp.ne.s32.totalorder %s235, %s249
      %p251 = scmp.eq.s32.totalorder %s47, 0
      %p252 = por %p250, %p251
      %s254 = sadd.s32 %s253, 1
      %p257 = scmp.eq.s32.totalorder %s41, 1
      %p258 = scmp.ne.s32.totalorder %s253, %s255
      %p259 = scmp.eq.s32.totalorder %s41, 0
      %p260 = por %p258, %p259
      %p261 = scmp.ne.s32.totalorder %s253, %s255
      %p262 = scmp.eq.s32.totalorder %s46, 1
      %p263 = por %p261, %p262
      %p264 = scmp.ne.s32.totalorder %s255, %s256
      %p265 = scmp.eq.s32.totalorder %s46, 0
      %p266 = por %p264, %p265
      %p267 = scmp.ne.s32.totalorder %s255, %s256
      %p268 = scmp.eq.s32.totalorder %s47, 1
      %p269 = por %p267, %p268
      %p271 = scmp.ne.s32.totalorder %s256, %s270
      %p272 = scmp.eq.s32.totalorder %s47, 0
      %p273 = por %p271, %p272
      %s275 = sadd.s32 %s274, 1
      %p278 = scmp.eq.s32.totalorder %s41, 1
      %p279 = scmp.ne.s32.totalorder %s274, %s276
      %p280 = scmp.eq.s32.totalorder %s41, 0
      %p281 = por %p279, %p280
      %p282 = scmp.ne.s32.totalorder %s274, %s276
      %p283 = scmp.eq.s32.totalorder %s46, 1
      %p284 = por %p282, %p283
      %p285 = scmp.ne.s32.totalorder %s276, %s277
      %p286 = scmp.eq.s32.totalorder %s46, 0
      %p287 = por %p285, %p286
      %p288 = scmp.ne.s32.totalorder %s276, %s277
      %p289 = scmp.eq.s32.totalorder %s47, 1
      %p290 = por %p288, %p289
      %p292 = scmp.ne.s32.totalorder %s277, %s291
      %p293 = scmp.eq.s32.totalorder %s47, 0
      %p294 = por %p292, %p293
      %s296 = sadd.s32 %s295, 1
      %p299 = scmp.eq.s32.totalorder %s41, 1
      %p300 = scmp.ne.s32.totalorder %s295, %s297
      %p301 = scmp.eq.s32.totalorder %s41, 0
      %p302 = por %p300, %p301
      %p303 = scmp.ne.s32.totalorder %s295, %s297
      %p304 = scmp.eq.s32.totalorder %s46, 1
      %p305 = por %p303, %p304
      %p306 = scmp.ne.s32.totalorder %s297, %s298
      %p307 = scmp.eq.s32.totalorder %s46, 0
      %p308 = por %p306, %p307
      %p309 = scmp.ne.s32.totalorder %s297, %s298
      %p310 = scmp.eq.s32.totalorder %s47, 1
      %p311 = por %p309, %p310
      %p313 = scmp.ne.s32.totalorder %s298, %s312
      %p314 = scmp.eq.s32.totalorder %s47, 0
      %p315 = por %p313, %p314
      %s317 = sadd.s32 %s316, 1
      %p320 = scmp.eq.s32.totalorder %s41, 1
      %p321 = scmp.ne.s32.totalorder %s316, %s318
      %p322 = scmp.eq.s32.totalorder %s41, 0
      %p323 = por %p321, %p322
      %p324 = scmp.ne.s32.totalorder %s316, %s318
      %p325 = scmp.eq.s32.totalorder %s46, 1
      %p326 = por %p324, %p325
      %p327 = scmp.ne.s32.totalorder %s318, %s319
      %p328 = scmp.eq.s32.totalorder %s46, 0
      %p329 = por %p327, %p328
      %p330 = scmp.ne.s32.totalorder %s318, %s319
      %p331 = scmp.eq.s32.totalorder %s47, 1
      %p332 = por %p330, %p331
      %p334 = scmp.ne.s32.totalorder %s319, %s333
      %p335 = scmp.eq.s32.totalorder %s47, 0
      %p336 = por %p334, %p335
      %s338 = sadd.s32 %s337, 1
      %p341 = scmp.eq.s32.totalorder %s41, 1
      %p342 = scmp.ne.s32.totalorder %s337, %s339
      %p343 = scmp.eq.s32.totalorder %s41, 0
      %p344 = por %p342, %p343
      %p345 = scmp.ne.s32.totalorder %s337, %s339
      %p346 = scmp.eq.s32.totalorder %s46, 1
      %p347 = por %p345, %p346
      %p348 = scmp.ne.s32.totalorder %s339, %s340
      %p349 = scmp.eq.s32.totalorder %s46, 0
      %p350 = por %p348, %p349
      %p351 = scmp.ne.s32.totalorder %s339, %s340
      %p352 = scmp.eq.s32.totalorder %s47, 1
      %p353 = por %p351, %p352
      %p355 = scmp.ne.s32.totalorder %s340, %s354
      %p356 = scmp.eq.s32.totalorder %s47, 0
      %p357 = por %p355, %p356
      %s359 = sadd.s32 %s358, 1
      %p362 = scmp.eq.s32.totalorder %s41, 1
      %p363 = scmp.ne.s32.totalorder %s358, %s360
      %p364 = scmp.eq.s32.totalorder %s41, 0
      %p365 = por %p363, %p364
      %p366 = scmp.ne.s32.totalorder %s358, %s360
      %p367 = scmp.eq.s32.totalorder %s46, 1
      %p368 = por %p366, %p367
      %p369 = scmp.ne.s32.totalorder %s360, %s361
      %p370 = scmp.eq.s32.totalorder %s46, 0
      %p371 = por %p369, %p370
      %p372 = scmp.ne.s32.totalorder %s360, %s361
      %p373 = scmp.eq.s32.totalorder %s47, 1
      %p374 = por %p372, %p373
      %p376 = scmp.ne.s32.totalorder %s361, %s375
      %p377 = scmp.eq.s32.totalorder %s47, 0
      %p378 = por %p376, %p377
      %s380 = sadd.s32 %s379, 1
      %p383 = scmp.eq.s32.totalorder %s41, 1
      %p384 = scmp.ne.s32.totalorder %s379, %s381
      %p385 = scmp.eq.s32.totalorder %s41, 0
      %p386 = por %p384, %p385
      %p387 = scmp.ne.s32.totalorder %s379, %s381
      %p388 = scmp.eq.s32.totalorder %s46, 1
      %p389 = por %p387, %p388
      %p390 = scmp.ne.s32.totalorder %s381, %s382
      %p391 = scmp.eq.s32.totalorder %s46, 0
      %p392 = por %p390, %p391
      %p393 = scmp.ne.s32.totalorder %s381, %s382
      %p394 = scmp.eq.s32.totalorder %s47, 1
      %p395 = por %p393, %p394
      %p397 = scmp.ne.s32.totalorder %s382, %s396
      %p398 = scmp.eq.s32.totalorder %s47, 0
      %p399 = por %p397, %p398
      %s401 = sadd.s32 %s400, 1
      %p404 = scmp.eq.s32.totalorder %s41, 1
      %p405 = scmp.ne.s32.totalorder %s400, %s402
      %p406 = scmp.eq.s32.totalorder %s41, 0
      %p407 = por %p405, %p406
      %p408 = scmp.ne.s32.totalorder %s400, %s402
      %p409 = scmp.eq.s32.totalorder %s46, 1
      %p410 = por %p408, %p409
      %p411 = scmp.ne.s32.totalorder %s402, %s403
      %p412 = scmp.eq.s32.totalorder %s46, 0
      %p413 = por %p411, %p412
      %p414 = scmp.ne.s32.totalorder %s402, %s403
      %p415 = scmp.eq.s32.totalorder %s47, 1
      %p416 = por %p414, %p415
      %p418 = scmp.ne.s32.totalorder %s403, %s417
      %p419 = scmp.eq.s32.totalorder %s47, 0
      %p420 = por %p418, %p419
      %s422 = sadd.s32 %s421, 1
      %p425 = scmp.eq.s32.totalorder %s41, 1
      %p426 = scmp.ne.s32.totalorder %s421, %s423
      %p427 = scmp.eq.s32.totalorder %s41, 0
      %p428 = por %p426, %p427
      %p429 = scmp.ne.s32.totalorder %s421, %s423
      %p430 = scmp.eq.s32.totalorder %s46, 1
      %p431 = por %p429, %p430
      %p432 = scmp.ne.s32.totalorder %s423, %s424
      %p433 = scmp.eq.s32.totalorder %s46, 0
      %p434 = por %p432, %p433
      %p435 = scmp.ne.s32.totalorder %s423, %s424
      %p436 = scmp.eq.s32.totalorder %s47, 1
      %p437 = por %p435, %p436
      %p439 = scmp.ne.s32.totalorder %s424, %s438
      %p440 = scmp.eq.s32.totalorder %s47, 0
      %p441 = por %p439, %p440
      %s443 = sadd.s32 %s442, 1
      %p446 = scmp.eq.s32.totalorder %s41, 1
      %p447 = scmp.ne.s32.totalorder %s442, %s444
      %p448 = scmp.eq.s32.totalorder %s41, 0
      %p449 = por %p447, %p448
      %p450 = scmp.ne.s32.totalorder %s442, %s444
      %p451 = scmp.eq.s32.totalorder %s46, 1
      %p452 = por %p450, %p451
      %p453 = scmp.ne.s32.totalorder %s444, %s445
      %p454 = scmp.eq.s32.totalorder %s46, 0
      %p455 = por %p453, %p454
      %p456 = scmp.ne.s32.totalorder %s444, %s445
      %p457 = scmp.eq.s32.totalorder %s47, 1
      %p458 = por %p456, %p457
      %p460 = scmp.ne.s32.totalorder %s445, %s459
      %p461 = scmp.eq.s32.totalorder %s47, 0
      %p462 = por %p460, %p461
      %s464 = sadd.s32 %s463, 1
      %p467 = scmp.eq.s32.totalorder %s41, 1
      %p468 = scmp.ne.s32.totalorder %s463, %s465
      %p469 = scmp.eq.s32.totalorder %s41, 0
      %p470 = por %p468, %p469
      %p471 = scmp.ne.s32.totalorder %s463, %s465
      %p472 = scmp.eq.s32.totalorder %s46, 1
      %p473 = por %p471, %p472
      %p474 = scmp.ne.s32.totalorder %s465, %s466
      %p475 = scmp.eq.s32.totalorder %s46, 0
      %p476 = por %p474, %p475
      %p477 = scmp.ne.s32.totalorder %s465, %s466
      %p478 = scmp.eq.s32.totalorder %s47, 1
      %p479 = por %p477, %p478
      %p481 = scmp.ne.s32.totalorder %s466, %s480
      %p482 = scmp.eq.s32.totalorder %s47, 0
      %p483 = por %p481, %p482
      %s485 = sadd.s32 %s484, 1
      %p488 = scmp.eq.s32.totalorder %s41, 1
      %p489 = scmp.ne.s32.totalorder %s484, %s486
      %p490 = scmp.eq.s32.totalorder %s41, 0
      %p491 = por %p489, %p490
      %p492 = scmp.ne.s32.totalorder %s484, %s486
      %p493 = scmp.eq.s32.totalorder %s46, 1
      %p494 = por %p492, %p493
      %p495 = scmp.ne.s32.totalorder %s486, %s487
      %p496 = scmp.eq.s32.totalorder %s46, 0
      %p497 = por %p495, %p496
      %p498 = scmp.ne.s32.totalorder %s486, %s487
      %p499 = scmp.eq.s32.totalorder %s47, 1
      %p500 = por %p498, %p499
      %p502 = scmp.ne.s32.totalorder %s487, %s501
      %p503 = scmp.eq.s32.totalorder %s47, 0
      %p504 = por %p502, %p503
      %s506 = sadd.s32 %s505, 1
      %p509 = scmp.eq.s32.totalorder %s41, 1
      %p510 = scmp.ne.s32.totalorder %s505, %s507
      %p511 = scmp.eq.s32.totalorder %s41, 0
      %p512 = por %p510, %p511
      %p513 = scmp.ne.s32.totalorder %s505, %s507
      %p514 = scmp.eq.s32.totalorder %s46, 1
      %p515 = por %p513, %p514
      %p516 = scmp.ne.s32.totalorder %s507, %s508
      %p517 = scmp.eq.s32.totalorder %s46, 0
      %p518 = por %p516, %p517
      %p519 = scmp.ne.s32.totalorder %s507, %s508
      %p520 = scmp.eq.s32.totalorder %s47, 1
      %p521 = por %p519, %p520
      %p523 = scmp.ne.s32.totalorder %s508, %s522
      %p524 = scmp.eq.s32.totalorder %s47, 0
      %p525 = por %p523, %p524
      %s527 = sadd.s32 %s526, 1
      %p530 = scmp.eq.s32.totalorder %s41, 1
      %p531 = scmp.ne.s32.totalorder %s526, %s528
      %p532 = scmp.eq.s32.totalorder %s41, 0
      %p533 = por %p531, %p532
      %p534 = scmp.ne.s32.totalorder %s526, %s528
      %p535 = scmp.eq.s32.totalorder %s46, 1
      %p536 = por %p534, %p535
      %p537 = scmp.ne.s32.totalorder %s528, %s529
      %p538 = scmp.eq.s32.totalorder %s46, 0
      %p539 = por %p537, %p538
      %p540 = scmp.ne.s32.totalorder %s528, %s529
      %p541 = scmp.eq.s32.totalorder %s47, 1
      %p542 = por %p540, %p541
      %p544 = scmp.ne.s32.totalorder %s529, %s543
      %p545 = scmp.eq.s32.totalorder %s47, 0
      %p546 = por %p544, %p545
      %s547 = ssub.s32 %s41, %s48
      %p548 = scmp.eq.s32.totalorder %s547, 0
      %s550 = sadd.s32 %s549, 1
      %s551 = scalar_select %p548, %s549, %s550
      %p554 = pneg %p548
      %p555 = scmp.eq.s32.totalorder %s41, 1
      %p556 = por %p554, %p555
      %p557 = scmp.ne.s32.totalorder %s549, %s552
      %p558 = scmp.eq.s32.totalorder %s41, 0
      %p559 = por %p557, %p558
      %p560 = scmp.ne.s32.totalorder %s549, %s552
      %p561 = scmp.eq.s32.totalorder %s46, 1
      %p562 = por %p560, %p561
      %p563 = scmp.ne.s32.totalorder %s552, %s553
      %p564 = scmp.eq.s32.totalorder %s46, 0
      %p565 = por %p563, %p564
      %p566 = scmp.ne.s32.totalorder %s552, %s553
      %p567 = scmp.eq.s32.totalorder %s47, 1
      %p568 = por %p566, %p567
      %p570 = scmp.ne.s32.totalorder %s553, %s569
      %p571 = scmp.eq.s32.totalorder %s47, 0
      %p572 = por %p570, %p571
      %p573 = scmp.le.s32.totalorder 1, %s41
      %p574 = scmp.lt.s32.totalorder %s41, 3
      %p575 = pnand %p573, %p574
      %p576 = pneg %p575
      // Predicated region
      $region9: #{decoder_layer.1} parent=5 // pred_check
        _
      $region10: #{decoder_layer.1} parent=5 // pred_check_branch
        %578 = sbr.rel (%p575) target = $region12
      $region11: #{decoder_layer.1} parent=5 // pred_region
        %s579 = ssub.s32 %s41, 1
        // Predicated region
        $region13: #{decoder_layer.1} parent=11 // pred_check
          %p580 = pneg %p140
        $region14: #{decoder_layer.1} parent=11 // pred_check_branch
          %582 = sbr.rel (%p580) target = $region16
        $region15: #{decoder_layer.1} parent=11 // pred_region
          %s584 = ssub.s32 16, 16
          %585 = vsyncadd [#allocation6], %s584
          %s587 = sshll.u32 [#allocation5], 4
          %s588 = int_to_ptr.vmem [resolvable:$true] %s587
          %590 = dma.hbm_to_vmem [thread:$0]  %s3, 16, %s588, [#allocation6]
        $region16: #{decoder_layer.1} parent=11 // pred_fallthru
          _
        // Predicated region
        $region17: #{decoder_layer.1} parent=11 // pred_check
          %p591 = pneg %p161
        $region18: #{decoder_layer.1} parent=11 // pred_check_branch
          %593 = sbr.rel (%p591) target = $region20
        $region19: #{decoder_layer.1} parent=11 // pred_region
          %s595 = ssub.s32 16, 16
          %596 = vsyncadd [#allocation6], %s595
          %s598 = sshll.u32 [#allocation7], 4
          %s599 = int_to_ptr.vmem [resolvable:$true] %s598
          %601 = dma.hbm_to_vmem [thread:$0]  %s4, 16, %s599, [#allocation6]
        $region20: #{decoder_layer.1} parent=11 // pred_fallthru
          _
        // Predicated region
        $region21: #{decoder_layer.1} parent=11 // pred_check
          %p602 = pneg %p182
        $region22: #{decoder_layer.1} parent=11 // pred_check_branch
          %604 = sbr.rel (%p602) target = $region24
        $region23: #{decoder_layer.1} parent=11 // pred_region
          _
        $region24: #{decoder_layer.1} parent=11 // pred_fallthru
          _
        // Predicated region
        $region25: #{decoder_layer.1} parent=11 // pred_check
          %p605 = pneg %p203
        $region26: #{decoder_layer.1} parent=11 // pred_check_branch
          %607 = sbr.rel (%p605) target = $region28
        $region27: #{decoder_layer.1} parent=11 // pred_region
          %s609 = ssub.s32 16, 16
          %610 = vsyncadd [#allocation9], %s609
          %s612 = sshll.u32 [#allocation8], 4
          %s613 = int_to_ptr.vmem [resolvable:$true] %s612
          %615 = dma.hbm_to_vmem [thread:$0]  %s6, 16, %s613, [#allocation9]
        $region28: #{decoder_layer.1} parent=11 // pred_fallthru
          _
        // Predicated region
        $region29: #{decoder_layer.1} parent=11 // pred_check
          %p616 = pneg %p224
        $region30: #{decoder_layer.1} parent=11 // pred_check_branch
          %618 = sbr.rel (%p616) target = $region32
        $region31: #{decoder_layer.1} parent=11 // pred_region
          _
        $region32: #{decoder_layer.1} parent=11 // pred_fallthru
          _
        // Predicated region
        $region33: #{decoder_layer.1} parent=11 // pred_check
          %p619 = pneg %p245
        $region34: #{decoder_layer.1} parent=11 // pred_check_branch
          %621 = sbr.rel (%p619) target = $region36
        $region35: #{decoder_layer.1} parent=11 // pred_region
          %s623 = ssub.s32 16, 16
          %624 = vsyncadd [#allocation9], %s623
          %s626 = sshll.u32 [#allocation10], 4
          %s627 = int_to_ptr.vmem [resolvable:$true] %s626
          %629 = dma.hbm_to_vmem [thread:$0]  %s8, 16, %s627, [#allocation9]
        $region36: #{decoder_layer.1} parent=11 // pred_fallthru
          _
        // Predicated region
        $region37: #{decoder_layer.1} parent=11 // pred_check
          %p630 = pneg %p266
        $region38: #{decoder_layer.1} parent=11 // pred_check_branch
          %632 = sbr.rel (%p630) target = $region40
        $region39: #{decoder_layer.1} parent=11 // pred_region
          %s634 = ssub.s32 16, 16
          %635 = vsyncadd [#allocation12], %s634
          %s637 = sshll.u32 [#allocation11], 4
          %s638 = int_to_ptr.vmem [resolvable:$true] %s637
          %640 = dma.hbm_to_vmem [thread:$0]  %s9, 16, %s638, [#allocation12]
        $region40: #{decoder_layer.1} parent=11 // pred_fallthru
          _
        // Predicated region
        $region41: #{decoder_layer.1} parent=11 // pred_check
          %p641 = pneg %p287
        $region42: #{decoder_layer.1} parent=11 // pred_check_branch
          %643 = sbr.rel (%p641) target = $region44
        $region43: #{decoder_layer.1} parent=11 // pred_region
          %s645 = ssub.s32 16, 16
          %646 = vsyncadd [#allocation12], %s645
          %s648 = sshll.u32 [#allocation13], 4
          %s649 = int_to_ptr.vmem [resolvable:$true] %s648
          %651 = dma.hbm_to_vmem [thread:$0]  %s10, 16, %s649, [#allocation12]
        $region44: #{decoder_layer.1} parent=11 // pred_fallthru
          _
        // Predicated region
        $region45: #{decoder_layer.1} parent=11 // pred_check
          %p652 = pneg %p308
        $region46: #{decoder_layer.1} parent=11 // pred_check_branch
          %654 = sbr.rel (%p652) target = $region48
        $region47: #{decoder_layer.1} parent=11 // pred_region
          _
        $region48: #{decoder_layer.1} parent=11 // pred_fallthru
          _
        // Predicated region
        $region49: #{decoder_layer.1} parent=11 // pred_check
          %p655 = pneg %p329
        $region50: #{decoder_layer.1} parent=11 // pred_check_branch
          %657 = sbr.rel (%p655) target = $region52
        $region51: #{decoder_layer.1} parent=11 // pred_region
          _
        $region52: #{decoder_layer.1} parent=11 // pred_fallthru
          _
        // Predicated region
        $region53: #{decoder_layer.1} parent=11 // pred_check
          %p658 = pneg %p350
        $region54: #{decoder_layer.1} parent=11 // pred_check_branch
          %660 = sbr.rel (%p658) target = $region56
        $region55: #{decoder_layer.1} parent=11 // pred_region
          _
        $region56: #{decoder_layer.1} parent=11 // pred_fallthru
          _
        // Predicated region
        $region57: #{decoder_layer.1} parent=11 // pred_check
          %p661 = pneg %p371
        $region58: #{decoder_layer.1} parent=11 // pred_check_branch
          %663 = sbr.rel (%p661) target = $region60
        $region59: #{decoder_layer.1} parent=11 // pred_region
          _
        $region60: #{decoder_layer.1} parent=11 // pred_fallthru
          _
        // Predicated region
        $region61: #{decoder_layer.1} parent=11 // pred_check
          %p664 = pneg %p392
        $region62: #{decoder_layer.1} parent=11 // pred_check_branch
          %666 = sbr.rel (%p664) target = $region64
        $region63: #{decoder_layer.1} parent=11 // pred_region
          _
        $region64: #{decoder_layer.1} parent=11 // pred_fallthru
          _
        // Predicated region
        $region65: #{decoder_layer.1} parent=11 // pred_check
          %p667 = pneg %p413
        $region66: #{decoder_layer.1} parent=11 // pred_check_branch
          %669 = sbr.rel (%p667) target = $region68
        $region67: #{decoder_layer.1} parent=11 // pred_region
          _
        $region68: #{decoder_layer.1} parent=11 // pred_fallthru
          _
        // Predicated region
        $region69: #{decoder_layer.1} parent=11 // pred_check
          %p670 = pneg %p434
        $region70: #{decoder_layer.1} parent=11 // pred_check_branch
          %672 = sbr.rel (%p670) target = $region72
        $region71: #{decoder_layer.1} parent=11 // pred_region
          %s674 = ssub.s32 16, 16
          %675 = vsyncadd [#allocation15], %s674
          %s677 = sshll.u32 [#allocation14], 4
          %s678 = int_to_ptr.vmem [resolvable:$true] %s677
          %680 = dma.hbm_to_vmem [thread:$0]  %s17, 16, %s678, [#allocation15]
        $region72: #{decoder_layer.1} parent=11 // pred_fallthru
          _
        // Predicated region
        $region73: #{decoder_layer.1} parent=11 // pred_check
          %p681 = pneg %p455
        $region74: #{decoder_layer.1} parent=11 // pred_check_branch
          %683 = sbr.rel (%p681) target = $region76
        $region75: #{decoder_layer.1} parent=11 // pred_region
          %s685 = ssub.s32 16, 16
          %686 = vsyncadd [#allocation15], %s685
          %s688 = sshll.u32 [#allocation16], 4
          %s689 = int_to_ptr.vmem [resolvable:$true] %s688
          %691 = dma.hbm_to_vmem [thread:$0]  %s18, 16, %s689, [#allocation15]
        $region76: #{decoder_layer.1} parent=11 // pred_fallthru
          _
        // Predicated region
        $region77: #{decoder_layer.1} parent=11 // pred_check
          %p692 = pneg %p476
        $region78: #{decoder_layer.1} parent=11 // pred_check_branch
          %694 = sbr.rel (%p692) target = $region80
        $region79: #{decoder_layer.1} parent=11 // pred_region
          %s696 = ssub.s32 256, 256
          %697 = vsyncadd [#allocation18], %s696
          %s698 = sshll.u32 [#allocation17], 4
          %s699 = int_to_ptr.vmem [resolvable:$true] %s698
          %704 = dma.hbm_to_vmem [thread:$0]  %s19, 256, %s699, [#allocation18], 64, 64, 4
        $region80: #{decoder_layer.1} parent=11 // pred_fallthru
          _
        // Predicated region
        $region81: #{decoder_layer.1} parent=11 // pred_check
          %p705 = pneg %p497
        $region82: #{decoder_layer.1} parent=11 // pred_check_branch
          %707 = sbr.rel (%p705) target = $region84
        $region83: #{decoder_layer.1} parent=11 // pred_region
          %s709 = ssub.s32 16, 16
          %710 = vsyncadd [#allocation18], %s709
          %s712 = sshll.u32 [#allocation19], 4
          %s713 = int_to_ptr.vmem [resolvable:$true] %s712
          %715 = dma.hbm_to_vmem [thread:$0]  %s20, 16, %s713, [#allocation18]
        $region84: #{decoder_layer.1} parent=11 // pred_fallthru
          _
        // Predicated region
        $region85: #{decoder_layer.1} parent=11 // pred_check
          %p716 = pneg %p518
        $region86: #{decoder_layer.1} parent=11 // pred_check_branch
          %718 = sbr.rel (%p716) target = $region88
        $region87: #{decoder_layer.1} parent=11 // pred_region
          _
        $region88: #{decoder_layer.1} parent=11 // pred_fallthru
          _
        // Predicated region
        $region89: #{decoder_layer.1} parent=11 // pred_check
          %p719 = pneg %p539
        $region90: #{decoder_layer.1} parent=11 // pred_check_branch
          %721 = sbr.rel (%p719) target = $region92
        $region91: #{decoder_layer.1} parent=11 // pred_region
          %s723 = ssub.s32 16, 16
          %724 = vsyncadd [#allocation21], %s723
          %s726 = sshll.u32 [#allocation20], 4
          %s727 = int_to_ptr.vmem [resolvable:$true] %s726
          %729 = dma.hbm_to_vmem [thread:$0]  %s22, 16, %s727, [#allocation21]
        $region92: #{decoder_layer.1} parent=11 // pred_fallthru
          _
      $region12: #{decoder_layer.1} parent=5 // pred_fallthru
        _
      %p730 = scmp.lt.s32.totalorder %s41, 2
      // Predicated region
      $region93: #{decoder_layer.1} parent=5 // pred_check
        %p731 = pneg %p730
      $region94: #{decoder_layer.1} parent=5 // pred_check_branch
        %733 = sbr.rel (%p731) target = $region96
      $region95: #{decoder_layer.1} parent=5 // pred_region
        // Predicated region
        $region97: #{decoder_layer.1} parent=95 // pred_check
          %p734 = pneg %p61
        $region98: #{decoder_layer.1} parent=95 // pred_check_branch
          %736 = sbr.rel (%p734) target = $region100
        $region99: #{decoder_layer.1} parent=95 // pred_region
          %p737 = scmp.lt.s32.totalorder %s41, 1
          %s738 = scalar_select %p737, %s41, 1
          %s739 = smul.addr %s738, 8
          %s740 = scalar_lea.vmem %s0, %s739
        $region100: #{decoder_layer.1} parent=95 // pred_fallthru
          _
        // Predicated region
        $region101: #{decoder_layer.1} parent=95 // pred_check
          %p741 = pneg %p87
        $region102: #{decoder_layer.1} parent=95 // pred_check_branch
          %743 = sbr.rel (%p741) target = $region104
        $region103: #{decoder_layer.1} parent=95 // pred_region
          %p744 = scmp.lt.s32.totalorder %s41, 1
          %s745 = scalar_select %p744, %s41, 1
          %s746 = smul.addr %s745, 8
          %s747 = scalar_lea.vmem %s1, %s746
        $region104: #{decoder_layer.1} parent=95 // pred_fallthru
          _
        // Predicated region
        $region105: #{decoder_layer.1} parent=95 // pred_check
          %p748 = pneg %p113
        $region106: #{decoder_layer.1} parent=95 // pred_check_branch
          %750 = sbr.rel (%p748) target = $region108
        $region107: #{decoder_layer.1} parent=95 // pred_region
          %s751 = sand.u32 %s103, 1
          %s752 = scalar_lea.sflag [#allocation3], %s751
          %s753 = sand.u32 %s103, 1
          %s754 = scalar_lea.vmem [#allocation2], %s753
          %s756 = ssub.s32 16, 16
          %757 = vsyncadd %s752, %s756
          %s758 = smul.addr %s41, 16
          %s759 = scalar_lea.hbm %s2, %s758
          %s761 = sshll.u32 %s754, 4
          %s762 = int_to_ptr.vmem [resolvable:$true] %s761
          %764 = dma.hbm_to_vmem [thread:$0]  %s759, 16, %s762, %s752
        $region108: #{decoder_layer.1} parent=95 // pred_fallthru
          _
      $region96: #{decoder_layer.1} parent=5 // pred_fallthru
        _
      %p765 = scmp.le.s32.totalorder 1, %s41
      %p766 = scmp.lt.s32.totalorder %s41, 3
      %p767 = pnand %p765, %p766
      %p768 = pneg %p767
      // Predicated region
      $region109: #{decoder_layer.1} parent=5 // pred_check
        _
      $region110: #{decoder_layer.1} parent=5 // pred_check_branch
        %770 = sbr.rel (%p767) target = $region112
      $region111: #{decoder_layer.1} parent=5 // pred_region
        %s771 = ssub.s32 %s41, 1
        %s772 = sand.u32 %s106, 1
        %s773 = scalar_lea.sflag [#allocation3], %s772
        %s774 = sand.u32 %s106, 1
        %s775 = scalar_lea.vmem [#allocation2], %s774
        // Predicated region
        $region113: #{decoder_layer.1} parent=111 // pred_check
          %p776 = pneg %p119
        $region114: #{decoder_layer.1} parent=111 // pred_check_branch
          %778 = sbr.rel (%p776) target = $region116
        $region115: #{decoder_layer.1} parent=111 // pred_region
          %779 = dma.done %s773, 16
        $region116: #{decoder_layer.1} parent=111 // pred_fallthru
          _
        // Predicated region
        $region117: #{decoder_layer.1} parent=111 // pred_check
          %p780 = pneg %p140
        $region118: #{decoder_layer.1} parent=111 // pred_check_branch
          %782 = sbr.rel (%p780) target = $region120
        $region119: #{decoder_layer.1} parent=111 // pred_region
          %783 = dma.done [#allocation6], 16
        $region120: #{decoder_layer.1} parent=111 // pred_fallthru
          _
        // Predicated region
        $region121: #{decoder_layer.1} parent=111 // pred_check
          %p784 = pneg %p161
        $region122: #{decoder_layer.1} parent=111 // pred_check_branch
          %786 = sbr.rel (%p784) target = $region124
        $region123: #{decoder_layer.1} parent=111 // pred_region
          %787 = dma.done [#allocation6], 16
        $region124: #{decoder_layer.1} parent=111 // pred_fallthru
          _
        // Predicated region
        $region125: #{decoder_layer.1} parent=111 // pred_check
          %p788 = pneg %p203
        $region126: #{decoder_layer.1} parent=111 // pred_check_branch
          %790 = sbr.rel (%p788) target = $region128
        $region127: #{decoder_layer.1} parent=111 // pred_region
          %791 = dma.done [#allocation9], 16
        $region128: #{decoder_layer.1} parent=111 // pred_fallthru
          _
        // Predicated region
        $region129: #{decoder_layer.1} parent=111 // pred_check
          %p792 = pneg %p245
        $region130: #{decoder_layer.1} parent=111 // pred_check_branch
          %794 = sbr.rel (%p792) target = $region132
        $region131: #{decoder_layer.1} parent=111 // pred_region
          %795 = dma.done [#allocation9], 16
        $region132: #{decoder_layer.1} parent=111 // pred_fallthru
          _
        // Predicated region
        $region133: #{decoder_layer.1} parent=111 // pred_check
          %p796 = pneg %p266
        $region134: #{decoder_layer.1} parent=111 // pred_check_branch
          %798 = sbr.rel (%p796) target = $region136
        $region135: #{decoder_layer.1} parent=111 // pred_region
          %799 = dma.done [#allocation12], 16
        $region136: #{decoder_layer.1} parent=111 // pred_fallthru
          _
        // Predicated region
        $region137: #{decoder_layer.1} parent=111 // pred_check
          %p800 = pneg %p287
        $region138: #{decoder_layer.1} parent=111 // pred_check_branch
          %802 = sbr.rel (%p800) target = $region140
        $region139: #{decoder_layer.1} parent=111 // pred_region
          %803 = dma.done [#allocation12], 16
        $region140: #{decoder_layer.1} parent=111 // pred_fallthru
          _
        // Predicated region
        $region141: #{decoder_layer.1} parent=111 // pred_check
          %p804 = pneg %p434
        $region142: #{decoder_layer.1} parent=111 // pred_check_branch
          %806 = sbr.rel (%p804) target = $region144
        $region143: #{decoder_layer.1} parent=111 // pred_region
          %807 = dma.done [#allocation15], 16
        $region144: #{decoder_layer.1} parent=111 // pred_fallthru
          _
        // Predicated region
        $region145: #{decoder_layer.1} parent=111 // pred_check
          %p808 = pneg %p455
        $region146: #{decoder_layer.1} parent=111 // pred_check_branch
          %810 = sbr.rel (%p808) target = $region148
        $region147: #{decoder_layer.1} parent=111 // pred_region
          %811 = dma.done [#allocation15], 16
        $region148: #{decoder_layer.1} parent=111 // pred_fallthru
          _
        // Predicated region
        $region149: #{decoder_layer.1} parent=111 // pred_check
          %p812 = pneg %p476
        $region150: #{decoder_layer.1} parent=111 // pred_check_branch
          %814 = sbr.rel (%p812) target = $region152
        $region151: #{decoder_layer.1} parent=111 // pred_region
          %815 = dma.done [#allocation18], 256
        $region152: #{decoder_layer.1} parent=111 // pred_fallthru
          _
        // Predicated region
        $region153: #{decoder_layer.1} parent=111 // pred_check
          %p816 = pneg %p497
        $region154: #{decoder_layer.1} parent=111 // pred_check_branch
          %818 = sbr.rel (%p816) target = $region156
        $region155: #{decoder_layer.1} parent=111 // pred_region
          %819 = dma.done [#allocation18], 16
        $region156: #{decoder_layer.1} parent=111 // pred_fallthru
          _
        // Predicated region
        $region157: #{decoder_layer.1} parent=111 // pred_check
          %p820 = pneg %p539
        $region158: #{decoder_layer.1} parent=111 // pred_check_branch
          %822 = sbr.rel (%p820) target = $region160
        $region159: #{decoder_layer.1} parent=111 // pred_region
          %823 = dma.done [#allocation21], 16
        $region160: #{decoder_layer.1} parent=111 // pred_fallthru
          _
        %p824 = scmp.lt.s32.totalorder %s46, 1
        %s825 = scalar_select %p824, %s46, 1
        %s826 = smul.addr %s825, 8
        %s827 = scalar_lea.vmem %s0, %s826
        %p828 = pneg %p67
        %p829 = pneg %p64
        %p830 = scmp.lt.s32.totalorder %s46, 1
        %s831 = scalar_select %p830, %s46, 1
        %s832 = smul.addr %s831, 8
        %s833 = scalar_lea.vmem %s1, %s832
        %p834 = pneg %p93
        %p835 = pneg %p90
        %s836 = sand.u32 %s106, 1
        %s837 = scalar_lea.sflag [#allocation3], %s836
        %s838 = sand.u32 %s106, 1
        %s839 = scalar_lea.vmem [#allocation2], %s838
        %p840 = pneg %p119
        %p841 = pneg %p116
        %p842 = pneg %p140
        %p843 = pneg %p137
        %p844 = pneg %p161
        %p845 = pneg %p158
        %p846 = pneg %p182
        %p847 = pneg %p179
        %p848 = pneg %p203
        %p849 = pneg %p200
        %p850 = pneg %p224
        %p851 = pneg %p221
        %p852 = pneg %p245
        %p853 = pneg %p242
        %p854 = pneg %p266
        %p855 = pneg %p263
        %p856 = pneg %p287
        %p857 = pneg %p284
        %p858 = pneg %p308
        %p859 = pneg %p305
        %p860 = pneg %p329
        %p861 = pneg %p326
        %p862 = pneg %p350
        %p863 = pneg %p347
        %p864 = pneg %p371
        %p865 = pneg %p368
        %p866 = pneg %p392
        %p867 = pneg %p389
        %p868 = pneg %p413
        %p869 = pneg %p410
        %p870 = pneg %p434
        %p871 = pneg %p431
        %p872 = pneg %p455
        %p873 = pneg %p452
        %p874 = pneg %p476
        %p875 = pneg %p473
        %p876 = pneg %p497
        %p877 = pneg %p494
        %p878 = pneg %p518
        %p879 = pneg %p515
        %p880 = pneg %p539
        %p881 = pneg %p536
        %p882 = pneg %p565
        %p883 = pneg %p562
        %s884 = sand.u32 %s552, 1
        %s885 = scalar_lea.sflag [#allocation4], %s884
        %s886 = sand.u32 %s552, 1
        %s887 = smul.addr %s886, 8
        %s888 = scalar_lea.vmem [#allocation22], %s887
        %p889 = scmp.lt.s32.totalorder %s46, 1
        %s890 = scalar_select %p889, %s46, 1
        %s891 = smul.addr %s890, 8
        %s892 = scalar_lea.vmem %s0, %s891
        %p893 = scmp.lt.s32.totalorder %s46, 1
        %s894 = scalar_select %p893, %s46, 1
        %s895 = smul.addr %s894, 8
        %s896 = scalar_lea.vmem %s1, %s895
        %v898 = vld [vmem:[%s892] sm:$0xff]
        %v899 = vlaneseq
        %v900 = vshrl.u32 %v899, 7
        %v901 = vlaneseq
        %v902 = vand.u32 %v901, 127
        %vm903 = vcmp.le.s32.totalorder %v902, %v900
        %v904 = vsel %vm903, 0.0, -1e+09
        %v905 = vld [vmem:[%s775] sm:$0x1]
        %vm906 = vcmp.eq.f32.partialorder %v905, 0.0
        %v907 = vsel %vm906, -1e+09, 0.0
        %v908 = vld [vmem:[#allocation5] sm:$0x1]
        %v909 = vld [vmem:[#allocation7] sm:$0x1]
        %vm910 = vcmask 261120
        %v911 = vsel %vm910, %v898, 0.0
        %912 = vadd.xlane.f32.xlu0 %v911
        %v913 = vpop.xlane.xlu0 %912
        %v914 = vrcp.pop 32.0
        %v915 = vmul.f32 %v913, %v914
        %v916 = vsub.f32 %v898, %v915
        %v917 = vmul.f32 %v916, %v916
        %v918 = vsel %vm910, %v917, 0.0
        %919 = vadd.xlane.f32.xlu0 %v918
        %v920 = vpop.xlane.xlu0 %919
        %v921 = vmul.f32 %v920, 0.032258064
        %v922 = vrsqrt.pop %v921
        %v923 = vmul.f32 %v921, %v922
        %vm924 = vcmp.eq.f32.partialorder %v921, inf
        %v925 = vsel %vm924, %v921, %v923
        %vm926 = vcmp.eq.f32.partialorder %v921, 0.0
        %v927 = vand.u32 %v921, 2147483648
        %v928 = vsel %vm926, %v927, %v925
        %v929 = vadd.f32 %v928, 1e-06
        %v930 = vrcp.pop %v929
        %v931 = vmul.f32 1.0, %v930
        %v932 = vmul.f32 %v916, %v931
        %v934 = vlaneseq
        %v935 = vshrl.u32 %v934, 7
        %v936 = vsub.s32 0, %v935
        %v937 = vrot.slane %v908, %v936
        %v939 = vmul.f32 %v937, %v932
        %v941 = vlaneseq
        %v942 = vshrl.u32 %v941, 7
        %v943 = vsub.s32 0, %v942
        %v944 = vrot.slane %v909, %v943
        %v946 = vadd.f32 %v939, %v944
        %v947 = vpack.c.bf16 %v946, %v946
        %v948 = vld [vmem:[%s5] sm:$0xf]
        %v949 = vld [vmem:[%s5 + $0x4] sm:$0xf]
        %v950 = vld [vmem:[%s5 + $0x8] sm:$0xf]
        %v951 = vld [vmem:[%s5 + $0xc] sm:$0xf]
        %v952 = vld [vmem:[#allocation8] sm:$0x1]
        %v954 = vlaneseq
        %v955 = vshrl.u32 %v954, 7
        %v956 = vsub.s32 0, %v955
        %v957 = vrot.slane %v952, %v956
        %v963 = vunpack.c.l.b16 %v948
        %v964 = vunpack.c.l.b16 %v949
        %v965 = vunpack.c.l.b16 %v950
        %v966 = vunpack.c.l.b16 %v951
        %v967 = vpack.c.b16 %v964, %v963
        %v968 = vpack.c.b16 %v966, %v965
        %v972 = vsel %vm910, %v947, 0
        %974 = vmatprep.subr.bf16.mxu0 0
        %975 = vmatpush1.bf16.msra.mxu0 %v967
        %976 = vmatprep.subr.bf16.mxu0 0
        %977 = vmatpush1.bf16.msra.mxu0 %v968
        %978 = vmatprep.subr.bf16.mxu0 0
        %979 = vmatpush1.bf16.msra.mxu0 0
        %980 = vmatprep.subr.bf16.mxu0 0
        %981 = vmatpush1.bf16.msra.mxu0 0
        %982 = vmatprep.subr.bf16.mxu0 0
        %983 = vmatpush1.bf16.msra.mxu0 0
        %984 = vmatprep.subr.bf16.mxu0 0
        %985 = vmatpush1.bf16.msra.mxu0 0
        %986 = vmatprep.subr.bf16.mxu0 0
        %987 = vmatpush1.bf16.msra.mxu0 0
        %988 = vmatprep.subr.bf16.mxu0 0
        %989 = vmatpush1.bf16.msra.mxu0 0
        %990 = vmatprep.subr.bf16.mxu0 0
        %991 = vmatpush1.bf16.msra.mxu0 0
        %992 = vmatprep.subr.bf16.mxu0 0
        %993 = vmatpush1.bf16.msra.mxu0 0
        %994 = vmatprep.subr.bf16.mxu0 0
        %995 = vmatpush1.bf16.msra.mxu0 0
        %996 = vmatprep.subr.bf16.mxu0 0
        %997 = vmatpush1.bf16.msra.mxu0 0
        %998 = vmatprep.subr.bf16.mxu0 0
        %999 = vmatpush1.bf16.msra.mxu0 0
        %1000 = vmatprep.subr.bf16.mxu0 0
        %1001 = vmatpush1.bf16.msra.mxu0 0
        %1002 = vmatprep.subr.bf16.mxu0 0
        %1003 = vmatpush1.bf16.msra.mxu0 0
        %1004 = vmatprep.subr.bf16.mxu0 0
        %1005 = vmatpush1.bf16.msra.mxu0 0
        %1006 = vmatprep.mubr.bf16.mxu0 0
        %1007 = vmatmul.mubr.bf16.gmra.mrb[0].mxu0 %v972
        %v1008 = vpop.f32.mrb[0].mxu0
        %v1009 = vadd.f32 %v957, %v1008
        %v1010 = vpop.f32.mrb[0].mxu0
        %v1011 = vpop.f32.mrb[0].mxu0
        %v1012 = vpop.f32.mrb[0].mxu0
        %1013 = vdwg.mxu0
        %v1014 = vmul.f32 %v1009, 0.35355338
        %v1015 = vpack.c.bf16 %v1014, %v1014
        %v1016 = vpack.c.bf16 %v1009, %v1009
        %1018 = vrot.lane.b32.xlu0 %v1015, 120
        %v1019 = vpop.permute.xlu0 %1018
        %1020 = vrot.lane.b32.xlu0 %v1015, 112
        %v1021 = vpop.permute.xlu0 %1020
        %1022 = vrot.lane.b32.xlu0 %v1015, 104
        %v1023 = vpop.permute.xlu0 %1022
        %1025 = vrot.lane.b32.xlu0 %v1016, 120
        %v1026 = vpop.permute.xlu0 %1025
        %1027 = vrot.lane.b32.xlu0 %v1016, 112
        %v1028 = vpop.permute.xlu0 %1027
        %1029 = vrot.lane.b32.xlu0 %v1016, 104
        %v1030 = vpop.permute.xlu0 %1029
        %1031 = vrot.lane.b32.xlu0 %v1016, 96
        %v1032 = vpop.permute.xlu0 %1031
        %vm1033 = vcmask 64512
        %v1035 = vsel %vm1033, %v1015, 0
        %v1038 = vsel %vm1033, %v1032, 0
        %1040 = vmatprep.subr.bf16.mxu0 0
        %1041 = vmatpush1.bf16.xpose.msra.mxu0 %v1038
        %1042 = vmatprep.subr.bf16.mxu0 0
        %1043 = vmatpush1.bf16.xpose.msra.mxu0 0
        %1044 = vmatprep.subr.bf16.mxu0 0
        %1045 = vmatpush1.bf16.xpose.msra.mxu0 0
        %1046 = vmatprep.subr.bf16.mxu0 0
        %1047 = vmatpush1.bf16.xpose.msra.mxu0 0
        %1048 = vmatprep.subr.bf16.mxu0 0
        %1049 = vmatpush1.bf16.xpose.msra.mxu0 0
        %1050 = vmatprep.subr.bf16.mxu0 0
        %1051 = vmatpush1.bf16.xpose.msra.mxu0 0
        %1052 = vmatprep.subr.bf16.mxu0 0
        %1053 = vmatpush1.bf16.xpose.msra.mxu0 0
        %1054 = vmatprep.subr.bf16.mxu0 0
        %1055 = vmatpush1.bf16.xpose.msra.mxu0 0
        %1056 = vmatprep.subr.bf16.mxu0 0
        %1057 = vmatpush1.bf16.xpose.msra.mxu0 0
        %1058 = vmatprep.subr.bf16.mxu0 0
        %1059 = vmatpush1.bf16.xpose.msra.mxu0 0
        %1060 = vmatprep.subr.bf16.mxu0 0
        %1061 = vmatpush1.bf16.xpose.msra.mxu0 0
        %1062 = vmatprep.subr.bf16.mxu0 0
        %1063 = vmatpush1.bf16.xpose.msra.mxu0 0
        %1064 = vmatprep.subr.bf16.mxu0 0
        %1065 = vmatpush1.bf16.xpose.msra.mxu0 0
        %1066 = vmatprep.subr.bf16.mxu0 0
        %1067 = vmatpush1.bf16.xpose.msra.mxu0 0
        %1068 = vmatprep.subr.bf16.mxu0 0
        %1069 = vmatpush1.bf16.xpose.msra.mxu0 0
        %1070 = vmatprep.subr.bf16.mxu0 0
        %1071 = vmatpush1.bf16.xpose.msra.mxu0 0
        %1072 = vmatprep.mubr.bf16.mxu0 0
        %1073 = vmatmul.mubr.bf16.gmra.mrb[0].mxu0 %v1035
        %v1074 = vpop.f32.mrb[0].mxu0
        %v1075 = vadd.f32 %v904, %v1074
        %v1076 = vpop.f32.mrb[0].mxu0
        %v1077 = vpop.f32.mrb[0].mxu0
        %v1078 = vpop.f32.mrb[0].mxu0
        %1079 = vdwg.mxu0
        %1080 = vrot.lane.b32.xlu0 %v1026, 96
        %v1081 = vpop.permute.xlu0 %1080
        %v1083 = vsel %vm1033, %v1019, 0
        %v1086 = vsel %vm1033, %v1081, 0
        %1088 = vmatprep.subr.bf16.mxu0 0
        %1089 = vmatpush1.bf16.xpose.msra.mxu0 %v1086
        %1090 = vmatprep.subr.bf16.mxu0 0
        %1091 = vmatpush1.bf16.xpose.msra.mxu0 0
        %1092 = vmatprep.subr.bf16.mxu0 0
        %1093 = vmatpush1.bf16.xpose.msra.mxu0 0
        %1094 = vmatprep.subr.bf16.mxu0 0
        %1095 = vmatpush1.bf16.xpose.msra.mxu0 0
        %1096 = vmatprep.subr.bf16.mxu0 0
        %1097 = vmatpush1.bf16.xpose.msra.mxu0 0
        %1098 = vmatprep.subr.bf16.mxu0 0
        %1099 = vmatpush1.bf16.xpose.msra.mxu0 0
        %1100 = vmatprep.subr.bf16.mxu0 0
        %1101 = vmatpush1.bf16.xpose.msra.mxu0 0
        %1102 = vmatprep.subr.bf16.mxu0 0
        %1103 = vmatpush1.bf16.xpose.msra.mxu0 0
        %1104 = vmatprep.subr.bf16.mxu0 0
        %1105 = vmatpush1.bf16.xpose.msra.mxu0 0
        %1106 = vmatprep.subr.bf16.mxu0 0
        %1107 = vmatpush1.bf16.xpose.msra.mxu0 0
        %1108 = vmatprep.subr.bf16.mxu0 0
        %1109 = vmatpush1.bf16.xpose.msra.mxu0 0
        %1110 = vmatprep.subr.bf16.mxu0 0
        %1111 = vmatpush1.bf16.xpose.msra.mxu0 0
        %1112 = vmatprep.subr.bf16.mxu0 0
        %1113 = vmatpush1.bf16.xpose.msra.mxu0 0
        %1114 = vmatprep.subr.bf16.mxu0 0
        %1115 = vmatpush1.bf16.xpose.msra.mxu0 0
        %1116 = vmatprep.subr.bf16.mxu0 0
        %1117 = vmatpush1.bf16.xpose.msra.mxu0 0
        %1118 = vmatprep.subr.bf16.mxu0 0
        %1119 = vmatpush1.bf16.xpose.msra.mxu0 0
        %1120 = vmatprep.mubr.bf16.mxu0 0
        %1121 = vmatmul.mubr.bf16.gmra.mrb[0].mxu0 %v1083
        %v1122 = vpop.f32.mrb[0].mxu0
        %v1123 = vadd.f32 %v904, %v1122
        %v1124 = vpop.f32.mrb[0].mxu0
        %v1125 = vpop.f32.mrb[0].mxu0
        %v1126 = vpop.f32.mrb[0].mxu0
        %1127 = vdwg.mxu0
        %1128 = vrot.lane.b32.xlu0 %v1028, 96
        %v1129 = vpop.permute.xlu0 %1128
        %v1131 = vsel %vm1033, %v1021, 0
        %v1134 = vsel %vm1033, %v1129, 0
        %1136 = vmatprep.subr.bf16.mxu0 0
        %1137 = vmatpush1.bf16.xpose.msra.mxu0 %v1134
        %1138 = vmatprep.subr.bf16.mxu0 0
        %1139 = vmatpush1.bf16.xpose.msra.mxu0 0
        %1140 = vmatprep.subr.bf16.mxu0 0
        %1141 = vmatpush1.bf16.xpose.msra.mxu0 0
        %1142 = vmatprep.subr.bf16.mxu0 0
        %1143 = vmatpush1.bf16.xpose.msra.mxu0 0
        %1144 = vmatprep.subr.bf16.mxu0 0
        %1145 = vmatpush1.bf16.xpose.msra.mxu0 0
        %1146 = vmatprep.subr.bf16.mxu0 0
        %1147 = vmatpush1.bf16.xpose.msra.mxu0 0
        %1148 = vmatprep.subr.bf16.mxu0 0
        %1149 = vmatpush1.bf16.xpose.msra.mxu0 0
        %1150 = vmatprep.subr.bf16.mxu0 0
        %1151 = vmatpush1.bf16.xpose.msra.mxu0 0
        %1152 = vmatprep.subr.bf16.mxu0 0
        %1153 = vmatpush1.bf16.xpose.msra.mxu0 0
        %1154 = vmatprep.subr.bf16.mxu0 0
        %1155 = vmatpush1.bf16.xpose.msra.mxu0 0
        %1156 = vmatprep.subr.bf16.mxu0 0
        %1157 = vmatpush1.bf16.xpose.msra.mxu0 0
        %1158 = vmatprep.subr.bf16.mxu0 0
        %1159 = vmatpush1.bf16.xpose.msra.mxu0 0
        %1160 = vmatprep.subr.bf16.mxu0 0
        %1161 = vmatpush1.bf16.xpose.msra.mxu0 0
        %1162 = vmatprep.subr.bf16.mxu0 0
        %1163 = vmatpush1.bf16.xpose.msra.mxu0 0
        %1164 = vmatprep.subr.bf16.mxu0 0
        %1165 = vmatpush1.bf16.xpose.msra.mxu0 0
        %1166 = vmatprep.subr.bf16.mxu0 0
        %1167 = vmatpush1.bf16.xpose.msra.mxu0 0
        %1168 = vmatprep.mubr.bf16.mxu0 0
        %1169 = vmatmul.mubr.bf16.gmra.mrb[0].mxu0 %v1131
        %v1170 = vpop.f32.mrb[0].mxu0
        %v1171 = vadd.f32 %v904, %v1170
        %v1172 = vpop.f32.mrb[0].mxu0
        %v1173 = vpop.f32.mrb[0].mxu0
        %v1174 = vpop.f32.mrb[0].mxu0
        %1175 = vdwg.mxu0
        %1176 = vrot.lane.b32.xlu0 %v1030, 96
        %v1177 = vpop.permute.xlu0 %1176
        %v1179 = vsel %vm1033, %v1023, 0
        %v1182 = vsel %vm1033, %v1177, 0
        %1184 = vmatprep.subr.bf16.mxu0 0
        %1185 = vmatpush1.bf16.xpose.msra.mxu0 %v1182
        %1186 = vmatprep.subr.bf16.mxu0 0
        %1187 = vmatpush1.bf16.xpose.msra.mxu0 0
        %1188 = vmatprep.subr.bf16.mxu0 0
        %1189 = vmatpush1.bf16.xpose.msra.mxu0 0
        %1190 = vmatprep.subr.bf16.mxu0 0
        %1191 = vmatpush1.bf16.xpose.msra.mxu0 0
        %1192 = vmatprep.subr.bf16.mxu0 0
        %1193 = vmatpush1.bf16.xpose.msra.mxu0 0
        %1194 = vmatprep.subr.bf16.mxu0 0
        %1195 = vmatpush1.bf16.xpose.msra.mxu0 0
        %1196 = vmatprep.subr.bf16.mxu0 0
        %1197 = vmatpush1.bf16.xpose.msra.mxu0 0
        %1198 = vmatprep.subr.bf16.mxu0 0
        %1199 = vmatpush1.bf16.xpose.msra.mxu0 0
        %1200 = vmatprep.subr.bf16.mxu0 0
        %1201 = vmatpush1.bf16.xpose.msra.mxu0 0
        %1202 = vmatprep.subr.bf16.mxu0 0
        %1203 = vmatpush1.bf16.xpose.msra.mxu0 0
        %1204 = vmatprep.subr.bf16.mxu0 0
        %1205 = vmatpush1.bf16.xpose.msra.mxu0 0
        %1206 = vmatprep.subr.bf16.mxu0 0
        %1207 = vmatpush1.bf16.xpose.msra.mxu0 0
        %1208 = vmatprep.subr.bf16.mxu0 0
        %1209 = vmatpush1.bf16.xpose.msra.mxu0 0
        %1210 = vmatprep.subr.bf16.mxu0 0
        %1211 = vmatpush1.bf16.xpose.msra.mxu0 0
        %1212 = vmatprep.subr.bf16.mxu0 0
        %1213 = vmatpush1.bf16.xpose.msra.mxu0 0
        %1214 = vmatprep.subr.bf16.mxu0 0
        %1215 = vmatpush1.bf16.xpose.msra.mxu0 0
        %1216 = vmatprep.mubr.bf16.mxu0 0
        %1217 = vmatmul.mubr.bf16.gmra.mrb[0].mxu0 %v1179
        %v1218 = vpop.f32.mrb[0].mxu0
        %v1219 = vadd.f32 %v904, %v1218
        %v1220 = vpop.f32.mrb[0].mxu0
        %v1221 = vpop.f32.mrb[0].mxu0
        %v1222 = vpop.f32.mrb[0].mxu0
        %1223 = vdwg.mxu0
        %v1224 = vsel %vm1033, %v1075, -inf
        %1225 = vmax.xlane.f32.xlu0 %v1224
        %v1226 = vpop.xlane.xlu0 %1225
        %v1227 = vsel %vm1033, %v1123, -inf
        %1228 = vmax.xlane.f32.xlu0 %v1227
        %v1229 = vpop.xlane.xlu0 %1228
        %v1230 = vsel %vm1033, %v1171, -inf
        %1231 = vmax.xlane.f32.xlu0 %v1230
        %v1232 = vpop.xlane.xlu0 %1231
        %v1233 = vsel %vm1033, %v1219, -inf
        %1234 = vmax.xlane.f32.xlu0 %v1233
        %v1235 = vpop.xlane.xlu0 %1234
        %v1236 = vsub.f32 %v1075, %v1226
        %v1237 = vsub.f32 %v1123, %v1229
        %v1238 = vsub.f32 %v1171, %v1232
        %v1239 = vsub.f32 %v1219, %v1235
        %v1240 = vmul.f32 %v1236, 1.442695
        %v1241 = vpow.pop %v1240
        %v1242 = vmul.f32 %v1237, 1.442695
        %v1243 = vpow.pop %v1242
        %v1244 = vmul.f32 %v1238, 1.442695
        %v1245 = vpow.pop %v1244
        %v1246 = vmul.f32 %v1239, 1.442695
        %v1247 = vpow.pop %v1246
        %v1248 = vsel %vm1033, %v1241, 0.0
        %1249 = vadd.xlane.f32.xlu0 %v1248
        %v1250 = vpop.xlane.xlu0 %1249
        %v1251 = vsel %vm1033, %v1243, 0.0
        %1252 = vadd.xlane.f32.xlu0 %v1251
        %v1253 = vpop.xlane.xlu0 %1252
        %v1254 = vsel %vm1033, %v1245, 0.0
        %1255 = vadd.xlane.f32.xlu0 %v1254
        %v1256 = vpop.xlane.xlu0 %1255
        %v1257 = vsel %vm1033, %v1247, 0.0
        %1258 = vadd.xlane.f32.xlu0 %v1257
        %v1259 = vpop.xlane.xlu0 %1258
        %v1260 = vrcp.pop %v1250
        %v1261 = vrcp.pop %v1253
        %v1262 = vrcp.pop %v1256
        %v1263 = vrcp.pop %v1259
        %v1264 = vmul.f32 %v1241, %v1260
        %v1265 = vmul.f32 %v1243, %v1261
        %v1266 = vmul.f32 %v1245, %v1262
        %v1267 = vmul.f32 %v1247, %v1263
        %v1268 = vpack.c.bf16 %v1264, %v1264
        %v1269 = vpack.c.bf16 %v1265, %v1265
        %v1270 = vpack.c.bf16 %v1266, %v1266
        %v1271 = vpack.c.bf16 %v1267, %v1267
        %1272 = vrot.lane.b32.xlu0 %v1016, 64
        %v1273 = vpop.permute.xlu0 %1272
        %v1275 = vsel %vm1033, %v1268, 0
        %vm1277 = vcmask 1043456
        %v1279 = vsel %vm1277, %v1273, 0
        %1281 = vmatprep.subr.bf16.mxu0 0
        %1282 = vmatpush1.bf16.msra.mxu0 %v1279
        %1283 = vmatprep.subr.bf16.mxu0 0
        %1284 = vmatpush1.bf16.msra.mxu0 0
        %1285 = vmatprep.subr.bf16.mxu0 0
        %1286 = vmatpush1.bf16.msra.mxu0 0
        %1287 = vmatprep.subr.bf16.mxu0 0
        %1288 = vmatpush1.bf16.msra.mxu0 0
        %1289 = vmatprep.subr.bf16.mxu0 0
        %1290 = vmatpush1.bf16.msra.mxu0 0
        %1291 = vmatprep.subr.bf16.mxu0 0
        %1292 = vmatpush1.bf16.msra.mxu0 0
        %1293 = vmatprep.subr.bf16.mxu0 0
        %1294 = vmatpush1.bf16.msra.mxu0 0
        %1295 = vmatprep.subr.bf16.mxu0 0
        %1296 = vmatpush1.bf16.msra.mxu0 0
        %1297 = vmatprep.subr.bf16.mxu0 0
        %1298 = vmatpush1.bf16.msra.mxu0 0
        %1299 = vmatprep.subr.bf16.mxu0 0
        %1300 = vmatpush1.bf16.msra.mxu0 0
        %1301 = vmatprep.subr.bf16.mxu0 0
        %1302 = vmatpush1.bf16.msra.mxu0 0
        %1303 = vmatprep.subr.bf16.mxu0 0
        %1304 = vmatpush1.bf16.msra.mxu0 0
        %1305 = vmatprep.subr.bf16.mxu0 0
        %1306 = vmatpush1.bf16.msra.mxu0 0
        %1307 = vmatprep.subr.bf16.mxu0 0
        %1308 = vmatpush1.bf16.msra.mxu0 0
        %1309 = vmatprep.subr.bf16.mxu0 0
        %1310 = vmatpush1.bf16.msra.mxu0 0
        %1311 = vmatprep.subr.bf16.mxu0 0
        %1312 = vmatpush1.bf16.msra.mxu0 0
        %1313 = vmatprep.mubr.bf16.mxu0 0
        %1314 = vmatmul.mubr.bf16.gmra.mrb[0].mxu0 %v1275
        %v1315 = vpop.f32.mrb[0].mxu0
        %v1316 = vadd.f32 0.0, %v1315
        %v1317 = vpop.f32.mrb[0].mxu0
        %v1318 = vpop.f32.mrb[0].mxu0
        %v1319 = vpop.f32.mrb[0].mxu0
        %1320 = vdwg.mxu0
        %1321 = vrot.lane.b32.xlu0 %v1026, 64
        %v1322 = vpop.permute.xlu0 %1321
        %v1324 = vsel %vm1033, %v1269, 0
        %v1327 = vsel %vm1277, %v1322, 0
        %1329 = vmatprep.subr.bf16.mxu0 0
        %1330 = vmatpush1.bf16.msra.mxu0 %v1327
        %1331 = vmatprep.subr.bf16.mxu0 0
        %1332 = vmatpush1.bf16.msra.mxu0 0
        %1333 = vmatprep.subr.bf16.mxu0 0
        %1334 = vmatpush1.bf16.msra.mxu0 0
        %1335 = vmatprep.subr.bf16.mxu0 0
        %1336 = vmatpush1.bf16.msra.mxu0 0
        %1337 = vmatprep.subr.bf16.mxu0 0
        %1338 = vmatpush1.bf16.msra.mxu0 0
        %1339 = vmatprep.subr.bf16.mxu0 0
        %1340 = vmatpush1.bf16.msra.mxu0 0
        %1341 = vmatprep.subr.bf16.mxu0 0
        %1342 = vmatpush1.bf16.msra.mxu0 0
        %1343 = vmatprep.subr.bf16.mxu0 0
        %1344 = vmatpush1.bf16.msra.mxu0 0
        %1345 = vmatprep.subr.bf16.mxu0 0
        %1346 = vmatpush1.bf16.msra.mxu0 0
        %1347 = vmatprep.subr.bf16.mxu0 0
        %1348 = vmatpush1.bf16.msra.mxu0 0
        %1349 = vmatprep.subr.bf16.mxu0 0
        %1350 = vmatpush1.bf16.msra.mxu0 0
        %1351 = vmatprep.subr.bf16.mxu0 0
        %1352 = vmatpush1.bf16.msra.mxu0 0
        %1353 = vmatprep.subr.bf16.mxu0 0
        %1354 = vmatpush1.bf16.msra.mxu0 0
        %1355 = vmatprep.subr.bf16.mxu0 0
        %1356 = vmatpush1.bf16.msra.mxu0 0
        %1357 = vmatprep.subr.bf16.mxu0 0
        %1358 = vmatpush1.bf16.msra.mxu0 0
        %1359 = vmatprep.subr.bf16.mxu0 0
        %1360 = vmatpush1.bf16.msra.mxu0 0
        %1361 = vmatprep.mubr.bf16.mxu0 0
        %1362 = vmatmul.mubr.bf16.gmra.mrb[0].mxu0 %v1324
        %v1363 = vpop.f32.mrb[0].mxu0
        %v1364 = vadd.f32 0.0, %v1363
        %v1365 = vpop.f32.mrb[0].mxu0
        %v1366 = vpop.f32.mrb[0].mxu0
        %v1367 = vpop.f32.mrb[0].mxu0
        %1368 = vdwg.mxu0
        %1369 = vrot.lane.b32.xlu0 %v1028, 64
        %v1370 = vpop.permute.xlu0 %1369
        %v1372 = vsel %vm1033, %v1270, 0
        %v1375 = vsel %vm1277, %v1370, 0
        %1377 = vmatprep.subr.bf16.mxu0 0
        %1378 = vmatpush1.bf16.msra.mxu0 %v1375
        %1379 = vmatprep.subr.bf16.mxu0 0
        %1380 = vmatpush1.bf16.msra.mxu0 0
        %1381 = vmatprep.subr.bf16.mxu0 0
        %1382 = vmatpush1.bf16.msra.mxu0 0
        %1383 = vmatprep.subr.bf16.mxu0 0
        %1384 = vmatpush1.bf16.msra.mxu0 0
        %1385 = vmatprep.subr.bf16.mxu0 0
        %1386 = vmatpush1.bf16.msra.mxu0 0
        %1387 = vmatprep.subr.bf16.mxu0 0
        %1388 = vmatpush1.bf16.msra.mxu0 0
        %1389 = vmatprep.subr.bf16.mxu0 0
        %1390 = vmatpush1.bf16.msra.mxu0 0
        %1391 = vmatprep.subr.bf16.mxu0 0
        %1392 = vmatpush1.bf16.msra.mxu0 0
        %1393 = vmatprep.subr.bf16.mxu0 0
        %1394 = vmatpush1.bf16.msra.mxu0 0
        %1395 = vmatprep.subr.bf16.mxu0 0
        %1396 = vmatpush1.bf16.msra.mxu0 0
        %1397 = vmatprep.subr.bf16.mxu0 0
        %1398 = vmatpush1.bf16.msra.mxu0 0
        %1399 = vmatprep.subr.bf16.mxu0 0
        %1400 = vmatpush1.bf16.msra.mxu0 0
        %1401 = vmatprep.subr.bf16.mxu0 0
        %1402 = vmatpush1.bf16.msra.mxu0 0
        %1403 = vmatprep.subr.bf16.mxu0 0
        %1404 = vmatpush1.bf16.msra.mxu0 0
        %1405 = vmatprep.subr.bf16.mxu0 0
        %1406 = vmatpush1.bf16.msra.mxu0 0
        %1407 = vmatprep.subr.bf16.mxu0 0
        %1408 = vmatpush1.bf16.msra.mxu0 0
        %1409 = vmatprep.mubr.bf16.mxu0 0
        %1410 = vmatmul.mubr.bf16.gmra.mrb[0].mxu0 %v1372
        %v1411 = vpop.f32.mrb[0].mxu0
        %v1412 = vadd.f32 0.0, %v1411
        %v1413 = vpop.f32.mrb[0].mxu0
        %v1414 = vpop.f32.mrb[0].mxu0
        %v1415 = vpop.f32.mrb[0].mxu0
        %1416 = vdwg.mxu0
        %1417 = vrot.lane.b32.xlu0 %v1030, 64
        %v1418 = vpop.permute.xlu0 %1417
        %v1420 = vsel %vm1033, %v1271, 0
        %v1423 = vsel %vm1277, %v1418, 0
        %1425 = vmatprep.subr.bf16.mxu0 0
        %1426 = vmatpush1.bf16.msra.mxu0 %v1423
        %1427 = vmatprep.subr.bf16.mxu0 0
        %1428 = vmatpush1.bf16.msra.mxu0 0
        %1429 = vmatprep.subr.bf16.mxu0 0
        %1430 = vmatpush1.bf16.msra.mxu0 0
        %1431 = vmatprep.subr.bf16.mxu0 0
        %1432 = vmatpush1.bf16.msra.mxu0 0
        %1433 = vmatprep.subr.bf16.mxu0 0
        %1434 = vmatpush1.bf16.msra.mxu0 0
        %1435 = vmatprep.subr.bf16.mxu0 0
        %1436 = vmatpush1.bf16.msra.mxu0 0
        %1437 = vmatprep.subr.bf16.mxu0 0
        %1438 = vmatpush1.bf16.msra.mxu0 0
        %1439 = vmatprep.subr.bf16.mxu0 0
        %1440 = vmatpush1.bf16.msra.mxu0 0
        %1441 = vmatprep.subr.bf16.mxu0 0
        %1442 = vmatpush1.bf16.msra.mxu0 0
        %1443 = vmatprep.subr.bf16.mxu0 0
        %1444 = vmatpush1.bf16.msra.mxu0 0
        %1445 = vmatprep.subr.bf16.mxu0 0
        %1446 = vmatpush1.bf16.msra.mxu0 0
        %1447 = vmatprep.subr.bf16.mxu0 0
        %1448 = vmatpush1.bf16.msra.mxu0 0
        %1449 = vmatprep.subr.bf16.mxu0 0
        %1450 = vmatpush1.bf16.msra.mxu0 0
        %1451 = vmatprep.subr.bf16.mxu0 0
        %1452 = vmatpush1.bf16.msra.mxu0 0
        %1453 = vmatprep.subr.bf16.mxu0 0
        %1454 = vmatpush1.bf16.msra.mxu0 0
        %1455 = vmatprep.subr.bf16.mxu0 0
        %1456 = vmatpush1.bf16.msra.mxu0 0
        %1457 = vmatprep.mubr.bf16.mxu0 0
        %1458 = vmatmul.mubr.bf16.gmra.mrb[0].mxu0 %v1420
        %v1459 = vpop.f32.mrb[0].mxu0
        %v1460 = vadd.f32 0.0, %v1459
        %v1461 = vpop.f32.mrb[0].mxu0
        %v1462 = vpop.f32.mrb[0].mxu0
        %v1463 = vpop.f32.mrb[0].mxu0
        %1464 = vdwg.mxu0
        %v1465 = vld [vmem:[%s7] sm:$0xf]
        %v1466 = vld [vmem:[%s7 + $0x4] sm:$0xf]
        %v1467 = vld [vmem:[%s7 + $0x8] sm:$0xf]
        %v1468 = vld [vmem:[%s7 + $0xc] sm:$0xf]
        %v1469 = vld [vmem:[#allocation10] sm:$0x1]
        %v1470 = vpack.c.bf16 %v1316, %v1316
        %v1471 = vpack.c.bf16 %v1364, %v1364
        %v1472 = vpack.c.bf16 %v1412, %v1412
        %v1473 = vpack.c.bf16 %v1460, %v1460
        %v1475 = vsel %vm1033, %v1470, 0
        %v1478 = vsel %vm1277, %v1465, 0
        %1480 = vmatprep.subr.bf16.mxu0 0
        %1481 = vmatpush1.bf16.msra.mxu0 %v1478
        %1482 = vmatprep.subr.bf16.mxu0 0
        %1483 = vmatpush1.bf16.msra.mxu0 0
        %1484 = vmatprep.subr.bf16.mxu0 0
        %1485 = vmatpush1.bf16.msra.mxu0 0
        %1486 = vmatprep.subr.bf16.mxu0 0
        %1487 = vmatpush1.bf16.msra.mxu0 0
        %1488 = vmatprep.subr.bf16.mxu0 0
        %1489 = vmatpush1.bf16.msra.mxu0 0
        %1490 = vmatprep.subr.bf16.mxu0 0
        %1491 = vmatpush1.bf16.msra.mxu0 0
        %1492 = vmatprep.subr.bf16.mxu0 0
        %1493 = vmatpush1.bf16.msra.mxu0 0
        %1494 = vmatprep.subr.bf16.mxu0 0
        %1495 = vmatpush1.bf16.msra.mxu0 0
        %1496 = vmatprep.subr.bf16.mxu0 0
        %1497 = vmatpush1.bf16.msra.mxu0 0
        %1498 = vmatprep.subr.bf16.mxu0 0
        %1499 = vmatpush1.bf16.msra.mxu0 0
        %1500 = vmatprep.subr.bf16.mxu0 0
        %1501 = vmatpush1.bf16.msra.mxu0 0
        %1502 = vmatprep.subr.bf16.mxu0 0
        %1503 = vmatpush1.bf16.msra.mxu0 0
        %1504 = vmatprep.subr.bf16.mxu0 0
        %1505 = vmatpush1.bf16.msra.mxu0 0
        %1506 = vmatprep.subr.bf16.mxu0 0
        %1507 = vmatpush1.bf16.msra.mxu0 0
        %1508 = vmatprep.subr.bf16.mxu0 0
        %1509 = vmatpush1.bf16.msra.mxu0 0
        %1510 = vmatprep.subr.bf16.mxu0 0
        %1511 = vmatpush1.bf16.msra.mxu0 0
        %1512 = vmatprep.mubr.bf16.mxu0 0
        %1513 = vmatmul.mubr.bf16.gmra.mrb[0].mxu0 %v1475
        %v1514 = vpop.f32.mrb[0].mxu0
        %v1515 = vadd.f32 0.0, %v1514
        %v1516 = vpop.f32.mrb[0].mxu0
        %v1517 = vpop.f32.mrb[0].mxu0
        %v1518 = vpop.f32.mrb[0].mxu0
        %1519 = vdwg.mxu0
        %v1521 = vsel %vm1033, %v1471, 0
        %v1524 = vsel %vm1277, %v1466, 0
        %1526 = vmatprep.subr.bf16.mxu0 0
        %1527 = vmatpush1.bf16.msra.mxu0 %v1524
        %1528 = vmatprep.subr.bf16.mxu0 0
        %1529 = vmatpush1.bf16.msra.mxu0 0
        %1530 = vmatprep.subr.bf16.mxu0 0
        %1531 = vmatpush1.bf16.msra.mxu0 0
        %1532 = vmatprep.subr.bf16.mxu0 0
        %1533 = vmatpush1.bf16.msra.mxu0 0
        %1534 = vmatprep.subr.bf16.mxu0 0
        %1535 = vmatpush1.bf16.msra.mxu0 0
        %1536 = vmatprep.subr.bf16.mxu0 0
        %1537 = vmatpush1.bf16.msra.mxu0 0
        %1538 = vmatprep.subr.bf16.mxu0 0
        %1539 = vmatpush1.bf16.msra.mxu0 0
        %1540 = vmatprep.subr.bf16.mxu0 0
        %1541 = vmatpush1.bf16.msra.mxu0 0
        %1542 = vmatprep.subr.bf16.mxu0 0
        %1543 = vmatpush1.bf16.msra.mxu0 0
        %1544 = vmatprep.subr.bf16.mxu0 0
        %1545 = vmatpush1.bf16.msra.mxu0 0
        %1546 = vmatprep.subr.bf16.mxu0 0
        %1547 = vmatpush1.bf16.msra.mxu0 0
        %1548 = vmatprep.subr.bf16.mxu0 0
        %1549 = vmatpush1.bf16.msra.mxu0 0
        %1550 = vmatprep.subr.bf16.mxu0 0
        %1551 = vmatpush1.bf16.msra.mxu0 0
        %1552 = vmatprep.subr.bf16.mxu0 0
        %1553 = vmatpush1.bf16.msra.mxu0 0
        %1554 = vmatprep.subr.bf16.mxu0 0
        %1555 = vmatpush1.bf16.msra.mxu0 0
        %1556 = vmatprep.subr.bf16.mxu0 0
        %1557 = vmatpush1.bf16.msra.mxu0 0
        %1558 = vmatprep.mubr.bf16.mxu0 0
        %1559 = vmatmul.mubr.bf16.gmra.mrb[0].mxu0 %v1521
        %v1560 = vpop.f32.mrb[0].mxu0
        %v1561 = vadd.f32 0.0, %v1560
        %v1562 = vpop.f32.mrb[0].mxu0
        %v1563 = vpop.f32.mrb[0].mxu0
        %v1564 = vpop.f32.mrb[0].mxu0
        %1565 = vdwg.mxu0
        %v1567 = vsel %vm1033, %v1472, 0
        %v1570 = vsel %vm1277, %v1467, 0
        %1572 = vmatprep.subr.bf16.mxu0 0
        %1573 = vmatpush1.bf16.msra.mxu0 %v1570
        %1574 = vmatprep.subr.bf16.mxu0 0
        %1575 = vmatpush1.bf16.msra.mxu0 0
        %1576 = vmatprep.subr.bf16.mxu0 0
        %1577 = vmatpush1.bf16.msra.mxu0 0
        %1578 = vmatprep.subr.bf16.mxu0 0
        %1579 = vmatpush1.bf16.msra.mxu0 0
        %1580 = vmatprep.subr.bf16.mxu0 0
        %1581 = vmatpush1.bf16.msra.mxu0 0
        %1582 = vmatprep.subr.bf16.mxu0 0
        %1583 = vmatpush1.bf16.msra.mxu0 0
        %1584 = vmatprep.subr.bf16.mxu0 0
        %1585 = vmatpush1.bf16.msra.mxu0 0
        %1586 = vmatprep.subr.bf16.mxu0 0
        %1587 = vmatpush1.bf16.msra.mxu0 0
        %1588 = vmatprep.subr.bf16.mxu0 0
        %1589 = vmatpush1.bf16.msra.mxu0 0
        %1590 = vmatprep.subr.bf16.mxu0 0
        %1591 = vmatpush1.bf16.msra.mxu0 0
        %1592 = vmatprep.subr.bf16.mxu0 0
        %1593 = vmatpush1.bf16.msra.mxu0 0
        %1594 = vmatprep.subr.bf16.mxu0 0
        %1595 = vmatpush1.bf16.msra.mxu0 0
        %1596 = vmatprep.subr.bf16.mxu0 0
        %1597 = vmatpush1.bf16.msra.mxu0 0
        %1598 = vmatprep.subr.bf16.mxu0 0
        %1599 = vmatpush1.bf16.msra.mxu0 0
        %1600 = vmatprep.subr.bf16.mxu0 0
        %1601 = vmatpush1.bf16.msra.mxu0 0
        %1602 = vmatprep.subr.bf16.mxu0 0
        %1603 = vmatpush1.bf16.msra.mxu0 0
        %1604 = vmatprep.mubr.bf16.mxu0 0
        %1605 = vmatmul.mubr.bf16.gmra.mrb[0].mxu0 %v1567
        %v1606 = vpop.f32.mrb[0].mxu0
        %v1607 = vadd.f32 0.0, %v1606
        %v1608 = vpop.f32.mrb[0].mxu0
        %v1609 = vpop.f32.mrb[0].mxu0
        %v1610 = vpop.f32.mrb[0].mxu0
        %1611 = vdwg.mxu0
        %v1613 = vsel %vm1033, %v1473, 0
        %v1616 = vsel %vm1277, %v1468, 0
        %1618 = vmatprep.subr.bf16.mxu0 0
        %1619 = vmatpush1.bf16.msra.mxu0 %v1616
        %1620 = vmatprep.subr.bf16.mxu0 0
        %1621 = vmatpush1.bf16.msra.mxu0 0
        %1622 = vmatprep.subr.bf16.mxu0 0
        %1623 = vmatpush1.bf16.msra.mxu0 0
        %1624 = vmatprep.subr.bf16.mxu0 0
        %1625 = vmatpush1.bf16.msra.mxu0 0
        %1626 = vmatprep.subr.bf16.mxu0 0
        %1627 = vmatpush1.bf16.msra.mxu0 0
        %1628 = vmatprep.subr.bf16.mxu0 0
        %1629 = vmatpush1.bf16.msra.mxu0 0
        %1630 = vmatprep.subr.bf16.mxu0 0
        %1631 = vmatpush1.bf16.msra.mxu0 0
        %1632 = vmatprep.subr.bf16.mxu0 0
        %1633 = vmatpush1.bf16.msra.mxu0 0
        %1634 = vmatprep.subr.bf16.mxu0 0
        %1635 = vmatpush1.bf16.msra.mxu0 0
        %1636 = vmatprep.subr.bf16.mxu0 0
        %1637 = vmatpush1.bf16.msra.mxu0 0
        %1638 = vmatprep.subr.bf16.mxu0 0
        %1639 = vmatpush1.bf16.msra.mxu0 0
        %1640 = vmatprep.subr.bf16.mxu0 0
        %1641 = vmatpush1.bf16.msra.mxu0 0
        %1642 = vmatprep.subr.bf16.mxu0 0
        %1643 = vmatpush1.bf16.msra.mxu0 0
        %1644 = vmatprep.subr.bf16.mxu0 0
        %1645 = vmatpush1.bf16.msra.mxu0 0
        %1646 = vmatprep.subr.bf16.mxu0 0
        %1647 = vmatpush1.bf16.msra.mxu0 0
        %1648 = vmatprep.subr.bf16.mxu0 0
        %1649 = vmatpush1.bf16.msra.mxu0 0
        %1650 = vmatprep.mubr.bf16.mxu0 0
        %1651 = vmatmul.mubr.bf16.gmra.mrb[0].mxu0 %v1613
        %v1652 = vpop.f32.mrb[0].mxu0
        %v1653 = vadd.f32 0.0, %v1652
        %v1654 = vpop.f32.mrb[0].mxu0
        %v1655 = vpop.f32.mrb[0].mxu0
        %v1656 = vpop.f32.mrb[0].mxu0
        %1657 = vdwg.mxu0
        %v1658 = vsel %vm910, %v1515, 0.0
        %v1659 = vsel %vm910, %v1561, 0.0
        %v1660 = vadd.f32 %v1658, %v1659
        %v1661 = vsel %vm910, %v1607, 0.0
        %v1662 = vadd.f32 %v1660, %v1661
        %v1663 = vsel %vm910, %v1653, 0.0
        %v1664 = vadd.f32 %v1662, %v1663
        %v1666 = vlaneseq
        %v1667 = vshrl.u32 %v1666, 7
        %v1668 = vsub.s32 0, %v1667
        %v1669 = vrot.slane %v1469, %v1668
        %v1671 = vadd.f32 %v1664, %v1669
        %v1672 = vadd.f32 %v898, %v1671
        %v1673 = vld [vmem:[#allocation11] sm:$0x1]
        %v1674 = vld [vmem:[#allocation13] sm:$0x1]
        %v1675 = vsel %vm910, %v1672, 0.0
        %1676 = vadd.xlane.f32.xlu0 %v1675
        %v1677 = vpop.xlane.xlu0 %1676
        %v1678 = vmul.f32 %v1677, %v914
        %v1679 = vsub.f32 %v1672, %v1678
        %v1680 = vmul.f32 %v1679, %v1679
        %v1681 = vsel %vm910, %v1680, 0.0
        %1682 = vadd.xlane.f32.xlu0 %v1681
        %v1683 = vpop.xlane.xlu0 %1682
        %v1684 = vmul.f32 %v1683, 0.032258064
        %v1685 = vrsqrt.pop %v1684
        %v1686 = vmul.f32 %v1684, %v1685
        %vm1687 = vcmp.eq.f32.partialorder %v1684, inf
        %v1688 = vsel %vm1687, %v1684, %v1686
        %vm1689 = vcmp.eq.f32.partialorder %v1684, 0.0
        %v1690 = vand.u32 %v1684, 2147483648
        %v1691 = vsel %vm1689, %v1690, %v1688
        %v1692 = vadd.f32 %v1691, 1e-06
        %v1693 = vrcp.pop %v1692
        %v1694 = vmul.f32 1.0, %v1693
        %v1695 = vmul.f32 %v1679, %v1694
        %v1697 = vlaneseq
        %v1698 = vshrl.u32 %v1697, 7
        %v1699 = vsub.s32 0, %v1698
        %v1700 = vrot.slane %v1673, %v1699
        %v1702 = vmul.f32 %v1700, %v1695
        %v1704 = vlaneseq
        %v1705 = vshrl.u32 %v1704, 7
        %v1706 = vsub.s32 0, %v1705
        %v1707 = vrot.slane %v1674, %v1706
        %v1709 = vadd.f32 %v1702, %v1707
        %v1710 = vpack.c.bf16 %v1709, %v1709
        %v1711 = vld [vmem:[%s11] sm:$0xf]
        %v1712 = vld [vmem:[%s11 + $0x4] sm:$0xf]
        %v1713 = vld [vmem:[%s11 + $0x8] sm:$0xf]
        %v1714 = vld [vmem:[%s11 + $0xc] sm:$0xf]
        %v1715 = vld [vmem:[%s12] sm:$0x1]
        %v1717 = vlaneseq
        %v1718 = vshrl.u32 %v1717, 7
        %v1719 = vsub.s32 0, %v1718
        %v1720 = vrot.slane %v1715, %v1719
        %v1726 = vunpack.c.l.b16 %v1711
        %v1727 = vunpack.c.l.b16 %v1712
        %v1728 = vunpack.c.l.b16 %v1713
        %v1729 = vunpack.c.l.b16 %v1714
        %v1730 = vpack.c.b16 %v1727, %v1726
        %v1731 = vpack.c.b16 %v1729, %v1728
        %v1735 = vsel %vm910, %v1710, 0
        %1737 = vmatprep.subr.bf16.mxu0 0
        %1738 = vmatpush1.bf16.msra.mxu0 %v1730
        %1739 = vmatprep.subr.bf16.mxu0 0
        %1740 = vmatpush1.bf16.msra.mxu0 %v1731
        %1741 = vmatprep.subr.bf16.mxu0 0
        %1742 = vmatpush1.bf16.msra.mxu0 0
        %1743 = vmatprep.subr.bf16.mxu0 0
        %1744 = vmatpush1.bf16.msra.mxu0 0
        %1745 = vmatprep.subr.bf16.mxu0 0
        %1746 = vmatpush1.bf16.msra.mxu0 0
        %1747 = vmatprep.subr.bf16.mxu0 0
        %1748 = vmatpush1.bf16.msra.mxu0 0
        %1749 = vmatprep.subr.bf16.mxu0 0
        %1750 = vmatpush1.bf16.msra.mxu0 0
        %1751 = vmatprep.subr.bf16.mxu0 0
        %1752 = vmatpush1.bf16.msra.mxu0 0
        %1753 = vmatprep.subr.bf16.mxu0 0
        %1754 = vmatpush1.bf16.msra.mxu0 0
        %1755 = vmatprep.subr.bf16.mxu0 0
        %1756 = vmatpush1.bf16.msra.mxu0 0
        %1757 = vmatprep.subr.bf16.mxu0 0
        %1758 = vmatpush1.bf16.msra.mxu0 0
        %1759 = vmatprep.subr.bf16.mxu0 0
        %1760 = vmatpush1.bf16.msra.mxu0 0
        %1761 = vmatprep.subr.bf16.mxu0 0
        %1762 = vmatpush1.bf16.msra.mxu0 0
        %1763 = vmatprep.subr.bf16.mxu0 0
        %1764 = vmatpush1.bf16.msra.mxu0 0
        %1765 = vmatprep.subr.bf16.mxu0 0
        %1766 = vmatpush1.bf16.msra.mxu0 0
        %1767 = vmatprep.subr.bf16.mxu0 0
        %1768 = vmatpush1.bf16.msra.mxu0 0
        %1769 = vmatprep.mubr.bf16.mxu0 0
        %1770 = vmatmul.mubr.bf16.gmra.mrb[0].mxu0 %v1735
        %v1771 = vpop.f32.mrb[0].mxu0
        %v1772 = vadd.f32 %v1720, %v1771
        %v1773 = vpop.f32.mrb[0].mxu0
        %v1774 = vpop.f32.mrb[0].mxu0
        %v1775 = vpop.f32.mrb[0].mxu0
        %1776 = vdwg.mxu0
        %v1777 = vmul.f32 %v1772, 0.35355338
        %v1778 = vpack.c.bf16 %v1777, %v1777
        %v1779 = vld [vmem:[%s896] sm:$0xff]
        %v1780 = vpack.c.bf16 %v1779, %v1779
        %v1781 = vld [vmem:[%s13] sm:$0xf]
        %v1782 = vld [vmem:[%s13 + $0x4] sm:$0xf]
        %v1783 = vld [vmem:[%s13 + $0x8] sm:$0xf]
        %v1784 = vld [vmem:[%s13 + $0xc] sm:$0xf]
        %v1785 = vld [vmem:[%s14] sm:$0x1]
        %v1787 = vlaneseq
        %v1788 = vshrl.u32 %v1787, 7
        %v1789 = vsub.s32 0, %v1788
        %v1790 = vrot.slane %v1785, %v1789
        %v1796 = vunpack.c.l.b16 %v1781
        %v1797 = vunpack.c.l.b16 %v1782
        %v1798 = vunpack.c.l.b16 %v1783
        %v1799 = vunpack.c.l.b16 %v1784
        %v1800 = vpack.c.b16 %v1797, %v1796
        %v1801 = vpack.c.b16 %v1799, %v1798
        %v1805 = vsel %vm910, %v1780, 0
        %1807 = vmatprep.subr.bf16.mxu0 0
        %1808 = vmatpush1.bf16.msra.mxu0 %v1800
        %1809 = vmatprep.subr.bf16.mxu0 0
        %1810 = vmatpush1.bf16.msra.mxu0 %v1801
        %1811 = vmatprep.subr.bf16.mxu0 0
        %1812 = vmatpush1.bf16.msra.mxu0 0
        %1813 = vmatprep.subr.bf16.mxu0 0
        %1814 = vmatpush1.bf16.msra.mxu0 0
        %1815 = vmatprep.subr.bf16.mxu0 0
        %1816 = vmatpush1.bf16.msra.mxu0 0
        %1817 = vmatprep.subr.bf16.mxu0 0
        %1818 = vmatpush1.bf16.msra.mxu0 0
        %1819 = vmatprep.subr.bf16.mxu0 0
        %1820 = vmatpush1.bf16.msra.mxu0 0
        %1821 = vmatprep.subr.bf16.mxu0 0
        %1822 = vmatpush1.bf16.msra.mxu0 0
        %1823 = vmatprep.subr.bf16.mxu0 0
        %1824 = vmatpush1.bf16.msra.mxu0 0
        %1825 = vmatprep.subr.bf16.mxu0 0
        %1826 = vmatpush1.bf16.msra.mxu0 0
        %1827 = vmatprep.subr.bf16.mxu0 0
        %1828 = vmatpush1.bf16.msra.mxu0 0
        %1829 = vmatprep.subr.bf16.mxu0 0
        %1830 = vmatpush1.bf16.msra.mxu0 0
        %1831 = vmatprep.subr.bf16.mxu0 0
        %1832 = vmatpush1.bf16.msra.mxu0 0
        %1833 = vmatprep.subr.bf16.mxu0 0
        %1834 = vmatpush1.bf16.msra.mxu0 0
        %1835 = vmatprep.subr.bf16.mxu0 0
        %1836 = vmatpush1.bf16.msra.mxu0 0
        %1837 = vmatprep.subr.bf16.mxu0 0
        %1838 = vmatpush1.bf16.msra.mxu0 0
        %1839 = vmatprep.mubr.bf16.mxu0 0
        %1840 = vmatmul.mubr.bf16.gmra.mrb[0].mxu0 %v1805
        %v1841 = vpop.f32.mrb[0].mxu0
        %v1842 = vadd.f32 %v1790, %v1841
        %v1843 = vpop.f32.mrb[0].mxu0
        %v1844 = vpop.f32.mrb[0].mxu0
        %v1845 = vpop.f32.mrb[0].mxu0
        %1846 = vdwg.mxu0
        %v1847 = vpack.c.bf16 %v1842, %v1842
        %1849 = vrot.lane.b32.xlu0 %v1778, 120
        %v1850 = vpop.permute.xlu0 %1849
        %1851 = vrot.lane.b32.xlu0 %v1778, 112
        %v1852 = vpop.permute.xlu0 %1851
        %1853 = vrot.lane.b32.xlu0 %v1778, 104
        %v1854 = vpop.permute.xlu0 %1853
        %1856 = vrot.lane.b32.xlu0 %v1847, 120
        %v1857 = vpop.permute.xlu0 %1856
        %1858 = vrot.lane.b32.xlu0 %v1847, 112
        %v1859 = vpop.permute.xlu0 %1858
        %1860 = vrot.lane.b32.xlu0 %v1847, 104
        %v1861 = vpop.permute.xlu0 %1860
        %v1863 = vlaneseq
        %v1864 = vshrl.u32 %v1863, 7
        %v1865 = vsub.s32 0, %v1864
        %v1866 = vrot.slane %v907, %v1865
        %v1869 = vsel %vm1033, %v1778, 0
        %v1872 = vsel %vm1033, %v1847, 0
        %1874 = vmatprep.subr.bf16.mxu0 0
        %1875 = vmatpush1.bf16.xpose.msra.mxu0 %v1872
        %1876 = vmatprep.subr.bf16.mxu0 0
        %1877 = vmatpush1.bf16.xpose.msra.mxu0 0
        %1878 = vmatprep.subr.bf16.mxu0 0
        %1879 = vmatpush1.bf16.xpose.msra.mxu0 0
        %1880 = vmatprep.subr.bf16.mxu0 0
        %1881 = vmatpush1.bf16.xpose.msra.mxu0 0
        %1882 = vmatprep.subr.bf16.mxu0 0
        %1883 = vmatpush1.bf16.xpose.msra.mxu0 0
        %1884 = vmatprep.subr.bf16.mxu0 0
        %1885 = vmatpush1.bf16.xpose.msra.mxu0 0
        %1886 = vmatprep.subr.bf16.mxu0 0
        %1887 = vmatpush1.bf16.xpose.msra.mxu0 0
        %1888 = vmatprep.subr.bf16.mxu0 0
        %1889 = vmatpush1.bf16.xpose.msra.mxu0 0
        %1890 = vmatprep.subr.bf16.mxu0 0
        %1891 = vmatpush1.bf16.xpose.msra.mxu0 0
        %1892 = vmatprep.subr.bf16.mxu0 0
        %1893 = vmatpush1.bf16.xpose.msra.mxu0 0
        %1894 = vmatprep.subr.bf16.mxu0 0
        %1895 = vmatpush1.bf16.xpose.msra.mxu0 0
        %1896 = vmatprep.subr.bf16.mxu0 0
        %1897 = vmatpush1.bf16.xpose.msra.mxu0 0
        %1898 = vmatprep.subr.bf16.mxu0 0
        %1899 = vmatpush1.bf16.xpose.msra.mxu0 0
        %1900 = vmatprep.subr.bf16.mxu0 0
        %1901 = vmatpush1.bf16.xpose.msra.mxu0 0
        %1902 = vmatprep.subr.bf16.mxu0 0
        %1903 = vmatpush1.bf16.xpose.msra.mxu0 0
        %1904 = vmatprep.subr.bf16.mxu0 0
        %1905 = vmatpush1.bf16.xpose.msra.mxu0 0
        %1906 = vmatprep.mubr.bf16.mxu0 0
        %1907 = vmatmul.mubr.bf16.gmra.mrb[0].mxu0 %v1869
        %v1908 = vpop.f32.mrb[0].mxu0
        %v1909 = vadd.f32 %v1866, %v1908
        %v1910 = vpop.f32.mrb[0].mxu0
        %v1911 = vpop.f32.mrb[0].mxu0
        %v1912 = vpop.f32.mrb[0].mxu0
        %1913 = vdwg.mxu0
        %v1915 = vsel %vm1033, %v1850, 0
        %v1918 = vsel %vm1033, %v1857, 0
        %1920 = vmatprep.subr.bf16.mxu0 0
        %1921 = vmatpush1.bf16.xpose.msra.mxu0 %v1918
        %1922 = vmatprep.subr.bf16.mxu0 0
        %1923 = vmatpush1.bf16.xpose.msra.mxu0 0
        %1924 = vmatprep.subr.bf16.mxu0 0
        %1925 = vmatpush1.bf16.xpose.msra.mxu0 0
        %1926 = vmatprep.subr.bf16.mxu0 0
        %1927 = vmatpush1.bf16.xpose.msra.mxu0 0
        %1928 = vmatprep.subr.bf16.mxu0 0
        %1929 = vmatpush1.bf16.xpose.msra.mxu0 0
        %1930 = vmatprep.subr.bf16.mxu0 0
        %1931 = vmatpush1.bf16.xpose.msra.mxu0 0
        %1932 = vmatprep.subr.bf16.mxu0 0
        %1933 = vmatpush1.bf16.xpose.msra.mxu0 0
        %1934 = vmatprep.subr.bf16.mxu0 0
        %1935 = vmatpush1.bf16.xpose.msra.mxu0 0
        %1936 = vmatprep.subr.bf16.mxu0 0
        %1937 = vmatpush1.bf16.xpose.msra.mxu0 0
        %1938 = vmatprep.subr.bf16.mxu0 0
        %1939 = vmatpush1.bf16.xpose.msra.mxu0 0
        %1940 = vmatprep.subr.bf16.mxu0 0
        %1941 = vmatpush1.bf16.xpose.msra.mxu0 0
        %1942 = vmatprep.subr.bf16.mxu0 0
        %1943 = vmatpush1.bf16.xpose.msra.mxu0 0
        %1944 = vmatprep.subr.bf16.mxu0 0
        %1945 = vmatpush1.bf16.xpose.msra.mxu0 0
        %1946 = vmatprep.subr.bf16.mxu0 0
        %1947 = vmatpush1.bf16.xpose.msra.mxu0 0
        %1948 = vmatprep.subr.bf16.mxu0 0
        %1949 = vmatpush1.bf16.xpose.msra.mxu0 0
        %1950 = vmatprep.subr.bf16.mxu0 0
        %1951 = vmatpush1.bf16.xpose.msra.mxu0 0
        %1952 = vmatprep.mubr.bf16.mxu0 0
        %1953 = vmatmul.mubr.bf16.gmra.mrb[0].mxu0 %v1915
        %v1954 = vpop.f32.mrb[0].mxu0
        %v1955 = vadd.f32 %v1866, %v1954
        %v1956 = vpop.f32.mrb[0].mxu0
        %v1957 = vpop.f32.mrb[0].mxu0
        %v1958 = vpop.f32.mrb[0].mxu0
        %1959 = vdwg.mxu0
        %v1961 = vsel %vm1033, %v1852, 0
        %v1964 = vsel %vm1033, %v1859, 0
        %1966 = vmatprep.subr.bf16.mxu0 0
        %1967 = vmatpush1.bf16.xpose.msra.mxu0 %v1964
        %1968 = vmatprep.subr.bf16.mxu0 0
        %1969 = vmatpush1.bf16.xpose.msra.mxu0 0
        %1970 = vmatprep.subr.bf16.mxu0 0
        %1971 = vmatpush1.bf16.xpose.msra.mxu0 0
        %1972 = vmatprep.subr.bf16.mxu0 0
        %1973 = vmatpush1.bf16.xpose.msra.mxu0 0
        %1974 = vmatprep.subr.bf16.mxu0 0
        %1975 = vmatpush1.bf16.xpose.msra.mxu0 0
        %1976 = vmatprep.subr.bf16.mxu0 0
        %1977 = vmatpush1.bf16.xpose.msra.mxu0 0
        %1978 = vmatprep.subr.bf16.mxu0 0
        %1979 = vmatpush1.bf16.xpose.msra.mxu0 0
        %1980 = vmatprep.subr.bf16.mxu0 0
        %1981 = vmatpush1.bf16.xpose.msra.mxu0 0
        %1982 = vmatprep.subr.bf16.mxu0 0
        %1983 = vmatpush1.bf16.xpose.msra.mxu0 0
        %1984 = vmatprep.subr.bf16.mxu0 0
        %1985 = vmatpush1.bf16.xpose.msra.mxu0 0
        %1986 = vmatprep.subr.bf16.mxu0 0
        %1987 = vmatpush1.bf16.xpose.msra.mxu0 0
        %1988 = vmatprep.subr.bf16.mxu0 0
        %1989 = vmatpush1.bf16.xpose.msra.mxu0 0
        %1990 = vmatprep.subr.bf16.mxu0 0
        %1991 = vmatpush1.bf16.xpose.msra.mxu0 0
        %1992 = vmatprep.subr.bf16.mxu0 0
        %1993 = vmatpush1.bf16.xpose.msra.mxu0 0
        %1994 = vmatprep.subr.bf16.mxu0 0
        %1995 = vmatpush1.bf16.xpose.msra.mxu0 0
        %1996 = vmatprep.subr.bf16.mxu0 0
        %1997 = vmatpush1.bf16.xpose.msra.mxu0 0
        %1998 = vmatprep.mubr.bf16.mxu0 0
        %1999 = vmatmul.mubr.bf16.gmra.mrb[0].mxu0 %v1961
        %v2000 = vpop.f32.mrb[0].mxu0
        %v2001 = vadd.f32 %v1866, %v2000
        %v2002 = vpop.f32.mrb[0].mxu0
        %v2003 = vpop.f32.mrb[0].mxu0
        %v2004 = vpop.f32.mrb[0].mxu0
        %2005 = vdwg.mxu0
        %v2007 = vsel %vm1033, %v1854, 0
        %v2010 = vsel %vm1033, %v1861, 0
        %2012 = vmatprep.subr.bf16.mxu0 0
        %2013 = vmatpush1.bf16.xpose.msra.mxu0 %v2010
        %2014 = vmatprep.subr.bf16.mxu0 0
        %2015 = vmatpush1.bf16.xpose.msra.mxu0 0
        %2016 = vmatprep.subr.bf16.mxu0 0
        %2017 = vmatpush1.bf16.xpose.msra.mxu0 0
        %2018 = vmatprep.subr.bf16.mxu0 0
        %2019 = vmatpush1.bf16.xpose.msra.mxu0 0
        %2020 = vmatprep.subr.bf16.mxu0 0
        %2021 = vmatpush1.bf16.xpose.msra.mxu0 0
        %2022 = vmatprep.subr.bf16.mxu0 0
        %2023 = vmatpush1.bf16.xpose.msra.mxu0 0
        %2024 = vmatprep.subr.bf16.mxu0 0
        %2025 = vmatpush1.bf16.xpose.msra.mxu0 0
        %2026 = vmatprep.subr.bf16.mxu0 0
        %2027 = vmatpush1.bf16.xpose.msra.mxu0 0
        %2028 = vmatprep.subr.bf16.mxu0 0
        %2029 = vmatpush1.bf16.xpose.msra.mxu0 0
        %2030 = vmatprep.subr.bf16.mxu0 0
        %2031 = vmatpush1.bf16.xpose.msra.mxu0 0
        %2032 = vmatprep.subr.bf16.mxu0 0
        %2033 = vmatpush1.bf16.xpose.msra.mxu0 0
        %2034 = vmatprep.subr.bf16.mxu0 0
        %2035 = vmatpush1.bf16.xpose.msra.mxu0 0
        %2036 = vmatprep.subr.bf16.mxu0 0
        %2037 = vmatpush1.bf16.xpose.msra.mxu0 0
        %2038 = vmatprep.subr.bf16.mxu0 0
        %2039 = vmatpush1.bf16.xpose.msra.mxu0 0
        %2040 = vmatprep.subr.bf16.mxu0 0
        %2041 = vmatpush1.bf16.xpose.msra.mxu0 0
        %2042 = vmatprep.subr.bf16.mxu0 0
        %2043 = vmatpush1.bf16.xpose.msra.mxu0 0
        %2044 = vmatprep.mubr.bf16.mxu0 0
        %2045 = vmatmul.mubr.bf16.gmra.mrb[0].mxu0 %v2007
        %v2046 = vpop.f32.mrb[0].mxu0
        %v2047 = vadd.f32 %v1866, %v2046
        %v2048 = vpop.f32.mrb[0].mxu0
        %v2049 = vpop.f32.mrb[0].mxu0
        %v2050 = vpop.f32.mrb[0].mxu0
        %2051 = vdwg.mxu0
        %v2052 = vsel %vm1033, %v1909, -inf
        %2053 = vmax.xlane.f32.xlu0 %v2052
        %v2054 = vpop.xlane.xlu0 %2053
        %v2055 = vsel %vm1033, %v1955, -inf
        %2056 = vmax.xlane.f32.xlu0 %v2055
        %v2057 = vpop.xlane.xlu0 %2056
        %v2058 = vsel %vm1033, %v2001, -inf
        %2059 = vmax.xlane.f32.xlu0 %v2058
        %v2060 = vpop.xlane.xlu0 %2059
        %v2061 = vsel %vm1033, %v2047, -inf
        %2062 = vmax.xlane.f32.xlu0 %v2061
        %v2063 = vpop.xlane.xlu0 %2062
        %v2064 = vsub.f32 %v1909, %v2054
        %v2065 = vsub.f32 %v1955, %v2057
        %v2066 = vsub.f32 %v2001, %v2060
        %v2067 = vsub.f32 %v2047, %v2063
        %v2068 = vmul.f32 %v2064, 1.442695
        %v2069 = vpow.pop %v2068
        %v2070 = vmul.f32 %v2065, 1.442695
        %v2071 = vpow.pop %v2070
        %v2072 = vmul.f32 %v2066, 1.442695
        %v2073 = vpow.pop %v2072
        %v2074 = vmul.f32 %v2067, 1.442695
        %v2075 = vpow.pop %v2074
        %v2076 = vsel %vm1033, %v2069, 0.0
        %2077 = vadd.xlane.f32.xlu0 %v2076
        %v2078 = vpop.xlane.xlu0 %2077
        %v2079 = vsel %vm1033, %v2071, 0.0
        %2080 = vadd.xlane.f32.xlu0 %v2079
        %v2081 = vpop.xlane.xlu0 %2080
        %v2082 = vsel %vm1033, %v2073, 0.0
        %2083 = vadd.xlane.f32.xlu0 %v2082
        %v2084 = vpop.xlane.xlu0 %2083
        %v2085 = vsel %vm1033, %v2075, 0.0
        %2086 = vadd.xlane.f32.xlu0 %v2085
        %v2087 = vpop.xlane.xlu0 %2086
        %v2088 = vrcp.pop %v2078
        %v2089 = vrcp.pop %v2081
        %v2090 = vrcp.pop %v2084
        %v2091 = vrcp.pop %v2087
        %v2092 = vmul.f32 %v2069, %v2088
        %v2093 = vmul.f32 %v2071, %v2089
        %v2094 = vmul.f32 %v2073, %v2090
        %v2095 = vmul.f32 %v2075, %v2091
        %v2096 = vpack.c.bf16 %v2092, %v2092
        %v2097 = vpack.c.bf16 %v2093, %v2093
        %v2098 = vpack.c.bf16 %v2094, %v2094
        %v2099 = vpack.c.bf16 %v2095, %v2095
        %2100 = vrot.lane.b32.xlu0 %v1847, 96
        %v2101 = vpop.permute.xlu0 %2100
        %v2103 = vsel %vm1033, %v2096, 0
        %v2106 = vsel %vm1277, %v2101, 0
        %2108 = vmatprep.subr.bf16.mxu0 0
        %2109 = vmatpush1.bf16.msra.mxu0 %v2106
        %2110 = vmatprep.subr.bf16.mxu0 0
        %2111 = vmatpush1.bf16.msra.mxu0 0
        %2112 = vmatprep.subr.bf16.mxu0 0
        %2113 = vmatpush1.bf16.msra.mxu0 0
        %2114 = vmatprep.subr.bf16.mxu0 0
        %2115 = vmatpush1.bf16.msra.mxu0 0
        %2116 = vmatprep.subr.bf16.mxu0 0
        %2117 = vmatpush1.bf16.msra.mxu0 0
        %2118 = vmatprep.subr.bf16.mxu0 0
        %2119 = vmatpush1.bf16.msra.mxu0 0
        %2120 = vmatprep.subr.bf16.mxu0 0
        %2121 = vmatpush1.bf16.msra.mxu0 0
        %2122 = vmatprep.subr.bf16.mxu0 0
        %2123 = vmatpush1.bf16.msra.mxu0 0
        %2124 = vmatprep.subr.bf16.mxu0 0
        %2125 = vmatpush1.bf16.msra.mxu0 0
        %2126 = vmatprep.subr.bf16.mxu0 0
        %2127 = vmatpush1.bf16.msra.mxu0 0
        %2128 = vmatprep.subr.bf16.mxu0 0
        %2129 = vmatpush1.bf16.msra.mxu0 0
        %2130 = vmatprep.subr.bf16.mxu0 0
        %2131 = vmatpush1.bf16.msra.mxu0 0
        %2132 = vmatprep.subr.bf16.mxu0 0
        %2133 = vmatpush1.bf16.msra.mxu0 0
        %2134 = vmatprep.subr.bf16.mxu0 0
        %2135 = vmatpush1.bf16.msra.mxu0 0
        %2136 = vmatprep.subr.bf16.mxu0 0
        %2137 = vmatpush1.bf16.msra.mxu0 0
        %2138 = vmatprep.subr.bf16.mxu0 0
        %2139 = vmatpush1.bf16.msra.mxu0 0
        %2140 = vmatprep.mubr.bf16.mxu0 0
        %2141 = vmatmul.mubr.bf16.gmra.mrb[0].mxu0 %v2103
        %v2142 = vpop.f32.mrb[0].mxu0
        %v2143 = vadd.f32 0.0, %v2142
        %v2144 = vpop.f32.mrb[0].mxu0
        %v2145 = vpop.f32.mrb[0].mxu0
        %v2146 = vpop.f32.mrb[0].mxu0
        %2147 = vdwg.mxu0
        %2148 = vrot.lane.b32.xlu0 %v1857, 96
        %v2149 = vpop.permute.xlu0 %2148
        %v2151 = vsel %vm1033, %v2097, 0
        %v2154 = vsel %vm1277, %v2149, 0
        %2156 = vmatprep.subr.bf16.mxu0 0
        %2157 = vmatpush1.bf16.msra.mxu0 %v2154
        %2158 = vmatprep.subr.bf16.mxu0 0
        %2159 = vmatpush1.bf16.msra.mxu0 0
        %2160 = vmatprep.subr.bf16.mxu0 0
        %2161 = vmatpush1.bf16.msra.mxu0 0
        %2162 = vmatprep.subr.bf16.mxu0 0
        %2163 = vmatpush1.bf16.msra.mxu0 0
        %2164 = vmatprep.subr.bf16.mxu0 0
        %2165 = vmatpush1.bf16.msra.mxu0 0
        %2166 = vmatprep.subr.bf16.mxu0 0
        %2167 = vmatpush1.bf16.msra.mxu0 0
        %2168 = vmatprep.subr.bf16.mxu0 0
        %2169 = vmatpush1.bf16.msra.mxu0 0
        %2170 = vmatprep.subr.bf16.mxu0 0
        %2171 = vmatpush1.bf16.msra.mxu0 0
        %2172 = vmatprep.subr.bf16.mxu0 0
        %2173 = vmatpush1.bf16.msra.mxu0 0
        %2174 = vmatprep.subr.bf16.mxu0 0
        %2175 = vmatpush1.bf16.msra.mxu0 0
        %2176 = vmatprep.subr.bf16.mxu0 0
        %2177 = vmatpush1.bf16.msra.mxu0 0
        %2178 = vmatprep.subr.bf16.mxu0 0
        %2179 = vmatpush1.bf16.msra.mxu0 0
        %2180 = vmatprep.subr.bf16.mxu0 0
        %2181 = vmatpush1.bf16.msra.mxu0 0
        %2182 = vmatprep.subr.bf16.mxu0 0
        %2183 = vmatpush1.bf16.msra.mxu0 0
        %2184 = vmatprep.subr.bf16.mxu0 0
        %2185 = vmatpush1.bf16.msra.mxu0 0
        %2186 = vmatprep.subr.bf16.mxu0 0
        %2187 = vmatpush1.bf16.msra.mxu0 0
        %2188 = vmatprep.mubr.bf16.mxu0 0
        %2189 = vmatmul.mubr.bf16.gmra.mrb[0].mxu0 %v2151
        %v2190 = vpop.f32.mrb[0].mxu0
        %v2191 = vadd.f32 0.0, %v2190
        %v2192 = vpop.f32.mrb[0].mxu0
        %v2193 = vpop.f32.mrb[0].mxu0
        %v2194 = vpop.f32.mrb[0].mxu0
        %2195 = vdwg.mxu0
        %2196 = vrot.lane.b32.xlu0 %v1859, 96
        %v2197 = vpop.permute.xlu0 %2196
        %v2199 = vsel %vm1033, %v2098, 0
        %v2202 = vsel %vm1277, %v2197, 0
        %2204 = vmatprep.subr.bf16.mxu0 0
        %2205 = vmatpush1.bf16.msra.mxu0 %v2202
        %2206 = vmatprep.subr.bf16.mxu0 0
        %2207 = vmatpush1.bf16.msra.mxu0 0
        %2208 = vmatprep.subr.bf16.mxu0 0
        %2209 = vmatpush1.bf16.msra.mxu0 0
        %2210 = vmatprep.subr.bf16.mxu0 0
        %2211 = vmatpush1.bf16.msra.mxu0 0
        %2212 = vmatprep.subr.bf16.mxu0 0
        %2213 = vmatpush1.bf16.msra.mxu0 0
        %2214 = vmatprep.subr.bf16.mxu0 0
        %2215 = vmatpush1.bf16.msra.mxu0 0
        %2216 = vmatprep.subr.bf16.mxu0 0
        %2217 = vmatpush1.bf16.msra.mxu0 0
        %2218 = vmatprep.subr.bf16.mxu0 0
        %2219 = vmatpush1.bf16.msra.mxu0 0
        %2220 = vmatprep.subr.bf16.mxu0 0
        %2221 = vmatpush1.bf16.msra.mxu0 0
        %2222 = vmatprep.subr.bf16.mxu0 0
        %2223 = vmatpush1.bf16.msra.mxu0 0
        %2224 = vmatprep.subr.bf16.mxu0 0
        %2225 = vmatpush1.bf16.msra.mxu0 0
        %2226 = vmatprep.subr.bf16.mxu0 0
        %2227 = vmatpush1.bf16.msra.mxu0 0
        %2228 = vmatprep.subr.bf16.mxu0 0
        %2229 = vmatpush1.bf16.msra.mxu0 0
        %2230 = vmatprep.subr.bf16.mxu0 0
        %2231 = vmatpush1.bf16.msra.mxu0 0
        %2232 = vmatprep.subr.bf16.mxu0 0
        %2233 = vmatpush1.bf16.msra.mxu0 0
        %2234 = vmatprep.subr.bf16.mxu0 0
        %2235 = vmatpush1.bf16.msra.mxu0 0
        %2236 = vmatprep.mubr.bf16.mxu0 0
        %2237 = vmatmul.mubr.bf16.gmra.mrb[0].mxu0 %v2199
        %v2238 = vpop.f32.mrb[0].mxu0
        %v2239 = vadd.f32 0.0, %v2238
        %v2240 = vpop.f32.mrb[0].mxu0
        %v2241 = vpop.f32.mrb[0].mxu0
        %v2242 = vpop.f32.mrb[0].mxu0
        %2243 = vdwg.mxu0
        %2244 = vrot.lane.b32.xlu0 %v1861, 96
        %v2245 = vpop.permute.xlu0 %2244
        %v2247 = vsel %vm1033, %v2099, 0
        %v2250 = vsel %vm1277, %v2245, 0
        %2252 = vmatprep.subr.bf16.mxu0 0
        %2253 = vmatpush1.bf16.msra.mxu0 %v2250
        %2254 = vmatprep.subr.bf16.mxu0 0
        %2255 = vmatpush1.bf16.msra.mxu0 0
        %2256 = vmatprep.subr.bf16.mxu0 0
        %2257 = vmatpush1.bf16.msra.mxu0 0
        %2258 = vmatprep.subr.bf16.mxu0 0
        %2259 = vmatpush1.bf16.msra.mxu0 0
        %2260 = vmatprep.subr.bf16.mxu0 0
        %2261 = vmatpush1.bf16.msra.mxu0 0
        %2262 = vmatprep.subr.bf16.mxu0 0
        %2263 = vmatpush1.bf16.msra.mxu0 0
        %2264 = vmatprep.subr.bf16.mxu0 0
        %2265 = vmatpush1.bf16.msra.mxu0 0
        %2266 = vmatprep.subr.bf16.mxu0 0
        %2267 = vmatpush1.bf16.msra.mxu0 0
        %2268 = vmatprep.subr.bf16.mxu0 0
        %2269 = vmatpush1.bf16.msra.mxu0 0
        %2270 = vmatprep.subr.bf16.mxu0 0
        %2271 = vmatpush1.bf16.msra.mxu0 0
        %2272 = vmatprep.subr.bf16.mxu0 0
        %2273 = vmatpush1.bf16.msra.mxu0 0
        %2274 = vmatprep.subr.bf16.mxu0 0
        %2275 = vmatpush1.bf16.msra.mxu0 0
        %2276 = vmatprep.subr.bf16.mxu0 0
        %2277 = vmatpush1.bf16.msra.mxu0 0
        %2278 = vmatprep.subr.bf16.mxu0 0
        %2279 = vmatpush1.bf16.msra.mxu0 0
        %2280 = vmatprep.subr.bf16.mxu0 0
        %2281 = vmatpush1.bf16.msra.mxu0 0
        %2282 = vmatprep.subr.bf16.mxu0 0
        %2283 = vmatpush1.bf16.msra.mxu0 0
        %2284 = vmatprep.mubr.bf16.mxu0 0
        %2285 = vmatmul.mubr.bf16.gmra.mrb[0].mxu0 %v2247
        %v2286 = vpop.f32.mrb[0].mxu0
        %v2287 = vadd.f32 0.0, %v2286
        %v2288 = vpop.f32.mrb[0].mxu0
        %v2289 = vpop.f32.mrb[0].mxu0
        %v2290 = vpop.f32.mrb[0].mxu0
        %2291 = vdwg.mxu0
        %v2292 = vld [vmem:[%s15] sm:$0xf]
        %v2293 = vld [vmem:[%s15 + $0x4] sm:$0xf]
        %v2294 = vld [vmem:[%s15 + $0x8] sm:$0xf]
        %v2295 = vld [vmem:[%s15 + $0xc] sm:$0xf]
        %v2296 = vld [vmem:[%s16] sm:$0x1]
        %v2297 = vpack.c.bf16 %v2143, %v2143
        %v2298 = vpack.c.bf16 %v2191, %v2191
        %v2299 = vpack.c.bf16 %v2239, %v2239
        %v2300 = vpack.c.bf16 %v2287, %v2287
        %v2302 = vsel %vm1033, %v2297, 0
        %v2305 = vsel %vm1277, %v2292, 0
        %2307 = vmatprep.subr.bf16.mxu0 0
        %2308 = vmatpush1.bf16.msra.mxu0 %v2305
        %2309 = vmatprep.subr.bf16.mxu0 0
        %2310 = vmatpush1.bf16.msra.mxu0 0
        %2311 = vmatprep.subr.bf16.mxu0 0
        %2312 = vmatpush1.bf16.msra.mxu0 0
        %2313 = vmatprep.subr.bf16.mxu0 0
        %2314 = vmatpush1.bf16.msra.mxu0 0
        %2315 = vmatprep.subr.bf16.mxu0 0
        %2316 = vmatpush1.bf16.msra.mxu0 0
        %2317 = vmatprep.subr.bf16.mxu0 0
        %2318 = vmatpush1.bf16.msra.mxu0 0
        %2319 = vmatprep.subr.bf16.mxu0 0
        %2320 = vmatpush1.bf16.msra.mxu0 0
        %2321 = vmatprep.subr.bf16.mxu0 0
        %2322 = vmatpush1.bf16.msra.mxu0 0
        %2323 = vmatprep.subr.bf16.mxu0 0
        %2324 = vmatpush1.bf16.msra.mxu0 0
        %2325 = vmatprep.subr.bf16.mxu0 0
        %2326 = vmatpush1.bf16.msra.mxu0 0
        %2327 = vmatprep.subr.bf16.mxu0 0
        %2328 = vmatpush1.bf16.msra.mxu0 0
        %2329 = vmatprep.subr.bf16.mxu0 0
        %2330 = vmatpush1.bf16.msra.mxu0 0
        %2331 = vmatprep.subr.bf16.mxu0 0
        %2332 = vmatpush1.bf16.msra.mxu0 0
        %2333 = vmatprep.subr.bf16.mxu0 0
        %2334 = vmatpush1.bf16.msra.mxu0 0
        %2335 = vmatprep.subr.bf16.mxu0 0
        %2336 = vmatpush1.bf16.msra.mxu0 0
        %2337 = vmatprep.subr.bf16.mxu0 0
        %2338 = vmatpush1.bf16.msra.mxu0 0
        %2339 = vmatprep.mubr.bf16.mxu0 0
        %2340 = vmatmul.mubr.bf16.gmra.mrb[0].mxu0 %v2302
        %v2341 = vpop.f32.mrb[0].mxu0
        %v2342 = vadd.f32 0.0, %v2341
        %v2343 = vpop.f32.mrb[0].mxu0
        %v2344 = vpop.f32.mrb[0].mxu0
        %v2345 = vpop.f32.mrb[0].mxu0
        %2346 = vdwg.mxu0
        %v2348 = vsel %vm1033, %v2298, 0
        %v2351 = vsel %vm1277, %v2293, 0
        %2353 = vmatprep.subr.bf16.mxu0 0
        %2354 = vmatpush1.bf16.msra.mxu0 %v2351
        %2355 = vmatprep.subr.bf16.mxu0 0
        %2356 = vmatpush1.bf16.msra.mxu0 0
        %2357 = vmatprep.subr.bf16.mxu0 0
        %2358 = vmatpush1.bf16.msra.mxu0 0
        %2359 = vmatprep.subr.bf16.mxu0 0
        %2360 = vmatpush1.bf16.msra.mxu0 0
        %2361 = vmatprep.subr.bf16.mxu0 0
        %2362 = vmatpush1.bf16.msra.mxu0 0
        %2363 = vmatprep.subr.bf16.mxu0 0
        %2364 = vmatpush1.bf16.msra.mxu0 0
        %2365 = vmatprep.subr.bf16.mxu0 0
        %2366 = vmatpush1.bf16.msra.mxu0 0
        %2367 = vmatprep.subr.bf16.mxu0 0
        %2368 = vmatpush1.bf16.msra.mxu0 0
        %2369 = vmatprep.subr.bf16.mxu0 0
        %2370 = vmatpush1.bf16.msra.mxu0 0
        %2371 = vmatprep.subr.bf16.mxu0 0
        %2372 = vmatpush1.bf16.msra.mxu0 0
        %2373 = vmatprep.subr.bf16.mxu0 0
        %2374 = vmatpush1.bf16.msra.mxu0 0
        %2375 = vmatprep.subr.bf16.mxu0 0
        %2376 = vmatpush1.bf16.msra.mxu0 0
        %2377 = vmatprep.subr.bf16.mxu0 0
        %2378 = vmatpush1.bf16.msra.mxu0 0
        %2379 = vmatprep.subr.bf16.mxu0 0
        %2380 = vmatpush1.bf16.msra.mxu0 0
        %2381 = vmatprep.subr.bf16.mxu0 0
        %2382 = vmatpush1.bf16.msra.mxu0 0
        %2383 = vmatprep.subr.bf16.mxu0 0
        %2384 = vmatpush1.bf16.msra.mxu0 0
        %2385 = vmatprep.mubr.bf16.mxu0 0
        %2386 = vmatmul.mubr.bf16.gmra.mrb[0].mxu0 %v2348
        %v2387 = vpop.f32.mrb[0].mxu0
        %v2388 = vadd.f32 0.0, %v2387
        %v2389 = vpop.f32.mrb[0].mxu0
        %v2390 = vpop.f32.mrb[0].mxu0
        %v2391 = vpop.f32.mrb[0].mxu0
        %2392 = vdwg.mxu0
        %v2394 = vsel %vm1033, %v2299, 0
        %v2397 = vsel %vm1277, %v2294, 0
        %2399 = vmatprep.subr.bf16.mxu0 0
        %2400 = vmatpush1.bf16.msra.mxu0 %v2397
        %2401 = vmatprep.subr.bf16.mxu0 0
        %2402 = vmatpush1.bf16.msra.mxu0 0
        %2403 = vmatprep.subr.bf16.mxu0 0
        %2404 = vmatpush1.bf16.msra.mxu0 0
        %2405 = vmatprep.subr.bf16.mxu0 0
        %2406 = vmatpush1.bf16.msra.mxu0 0
        %2407 = vmatprep.subr.bf16.mxu0 0
        %2408 = vmatpush1.bf16.msra.mxu0 0
        %2409 = vmatprep.subr.bf16.mxu0 0
        %2410 = vmatpush1.bf16.msra.mxu0 0
        %2411 = vmatprep.subr.bf16.mxu0 0
        %2412 = vmatpush1.bf16.msra.mxu0 0
        %2413 = vmatprep.subr.bf16.mxu0 0
        %2414 = vmatpush1.bf16.msra.mxu0 0
        %2415 = vmatprep.subr.bf16.mxu0 0
        %2416 = vmatpush1.bf16.msra.mxu0 0
        %2417 = vmatprep.subr.bf16.mxu0 0
        %2418 = vmatpush1.bf16.msra.mxu0 0
        %2419 = vmatprep.subr.bf16.mxu0 0
        %2420 = vmatpush1.bf16.msra.mxu0 0
        %2421 = vmatprep.subr.bf16.mxu0 0
        %2422 = vmatpush1.bf16.msra.mxu0 0
        %2423 = vmatprep.subr.bf16.mxu0 0
        %2424 = vmatpush1.bf16.msra.mxu0 0
        %2425 = vmatprep.subr.bf16.mxu0 0
        %2426 = vmatpush1.bf16.msra.mxu0 0
        %2427 = vmatprep.subr.bf16.mxu0 0
        %2428 = vmatpush1.bf16.msra.mxu0 0
        %2429 = vmatprep.subr.bf16.mxu0 0
        %2430 = vmatpush1.bf16.msra.mxu0 0
        %2431 = vmatprep.mubr.bf16.mxu0 0
        %2432 = vmatmul.mubr.bf16.gmra.mrb[0].mxu0 %v2394
        %v2433 = vpop.f32.mrb[0].mxu0
        %v2434 = vadd.f32 0.0, %v2433
        %v2435 = vpop.f32.mrb[0].mxu0
        %v2436 = vpop.f32.mrb[0].mxu0
        %v2437 = vpop.f32.mrb[0].mxu0
        %2438 = vdwg.mxu0
        %v2440 = vsel %vm1033, %v2300, 0
        %v2443 = vsel %vm1277, %v2295, 0
        %2445 = vmatprep.subr.bf16.mxu0 0
        %2446 = vmatpush1.bf16.msra.mxu0 %v2443
        %2447 = vmatprep.subr.bf16.mxu0 0
        %2448 = vmatpush1.bf16.msra.mxu0 0
        %2449 = vmatprep.subr.bf16.mxu0 0
        %2450 = vmatpush1.bf16.msra.mxu0 0
        %2451 = vmatprep.subr.bf16.mxu0 0
        %2452 = vmatpush1.bf16.msra.mxu0 0
        %2453 = vmatprep.subr.bf16.mxu0 0
        %2454 = vmatpush1.bf16.msra.mxu0 0
        %2455 = vmatprep.subr.bf16.mxu0 0
        %2456 = vmatpush1.bf16.msra.mxu0 0
        %2457 = vmatprep.subr.bf16.mxu0 0
        %2458 = vmatpush1.bf16.msra.mxu0 0
        %2459 = vmatprep.subr.bf16.mxu0 0
        %2460 = vmatpush1.bf16.msra.mxu0 0
        %2461 = vmatprep.subr.bf16.mxu0 0
        %2462 = vmatpush1.bf16.msra.mxu0 0
        %2463 = vmatprep.subr.bf16.mxu0 0
        %2464 = vmatpush1.bf16.msra.mxu0 0
        %2465 = vmatprep.subr.bf16.mxu0 0
        %2466 = vmatpush1.bf16.msra.mxu0 0
        %2467 = vmatprep.subr.bf16.mxu0 0
        %2468 = vmatpush1.bf16.msra.mxu0 0
        %2469 = vmatprep.subr.bf16.mxu0 0
        %2470 = vmatpush1.bf16.msra.mxu0 0
        %2471 = vmatprep.subr.bf16.mxu0 0
        %2472 = vmatpush1.bf16.msra.mxu0 0
        %2473 = vmatprep.subr.bf16.mxu0 0
        %2474 = vmatpush1.bf16.msra.mxu0 0
        %2475 = vmatprep.subr.bf16.mxu0 0
        %2476 = vmatpush1.bf16.msra.mxu0 0
        %2477 = vmatprep.mubr.bf16.mxu0 0
        %2478 = vmatmul.mubr.bf16.gmra.mrb[0].mxu0 %v2440
        %v2479 = vpop.f32.mrb[0].mxu0
        %v2480 = vadd.f32 0.0, %v2479
        %v2481 = vpop.f32.mrb[0].mxu0
        %v2482 = vpop.f32.mrb[0].mxu0
        %v2483 = vpop.f32.mrb[0].mxu0
        %2484 = vdwg.mxu0
        %v2485 = vsel %vm910, %v2342, 0.0
        %v2486 = vsel %vm910, %v2388, 0.0
        %v2487 = vadd.f32 %v2485, %v2486
        %v2488 = vsel %vm910, %v2434, 0.0
        %v2489 = vadd.f32 %v2487, %v2488
        %v2490 = vsel %vm910, %v2480, 0.0
        %v2491 = vadd.f32 %v2489, %v2490
        %v2493 = vlaneseq
        %v2494 = vshrl.u32 %v2493, 7
        %v2495 = vsub.s32 0, %v2494
        %v2496 = vrot.slane %v2296, %v2495
        %v2498 = vadd.f32 %v2491, %v2496
        %v2499 = vadd.f32 %v1672, %v2498
        %v2500 = vld [vmem:[#allocation14] sm:$0x1]
        %v2501 = vld [vmem:[#allocation16] sm:$0x1]
        %v2502 = vsel %vm910, %v2499, 0.0
        %2503 = vadd.xlane.f32.xlu0 %v2502
        %v2504 = vpop.xlane.xlu0 %2503
        %v2505 = vmul.f32 %v2504, %v914
        %v2506 = vsub.f32 %v2499, %v2505
        %v2507 = vmul.f32 %v2506, %v2506
        %v2508 = vsel %vm910, %v2507, 0.0
        %2509 = vadd.xlane.f32.xlu0 %v2508
        %v2510 = vpop.xlane.xlu0 %2509
        %v2511 = vmul.f32 %v2510, 0.032258064
        %v2512 = vrsqrt.pop %v2511
        %v2513 = vmul.f32 %v2511, %v2512
        %vm2514 = vcmp.eq.f32.partialorder %v2511, inf
        %v2515 = vsel %vm2514, %v2511, %v2513
        %vm2516 = vcmp.eq.f32.partialorder %v2511, 0.0
        %v2517 = vand.u32 %v2511, 2147483648
        %v2518 = vsel %vm2516, %v2517, %v2515
        %v2519 = vadd.f32 %v2518, 1e-06
        %v2520 = vrcp.pop %v2519
        %v2521 = vmul.f32 1.0, %v2520
        %v2522 = vmul.f32 %v2506, %v2521
        %v2524 = vlaneseq
        %v2525 = vshrl.u32 %v2524, 7
        %v2526 = vsub.s32 0, %v2525
        %v2527 = vrot.slane %v2500, %v2526
        %v2529 = vmul.f32 %v2527, %v2522
        %v2531 = vlaneseq
        %v2532 = vshrl.u32 %v2531, 7
        %v2533 = vsub.s32 0, %v2532
        %v2534 = vrot.slane %v2501, %v2533
        %v2536 = vadd.f32 %v2529, %v2534
        %v2537 = vpack.c.bf16 %v2536, %v2536
        %v2538 = vld [vmem:[#allocation17] sm:$0xf]
        %v2539 = vld [vmem:[#allocation17 + $0x4] sm:$0xf]
        %v2540 = vld [vmem:[#allocation17 + $0x8] sm:$0xf]
        %v2541 = vld [vmem:[#allocation17 + $0xc] sm:$0xf]
        %v2542 = vld [vmem:[#allocation19] sm:$0x1]
        %v2544 = vlaneseq
        %v2545 = vshrl.u32 %v2544, 7
        %v2546 = vsub.s32 0, %v2545
        %v2547 = vrot.slane %v2542, %v2546
        %v2553 = vunpack.c.l.b16 %v2538
        %v2554 = vunpack.c.l.b16 %v2539
        %v2555 = vunpack.c.l.b16 %v2540
        %v2556 = vunpack.c.l.b16 %v2541
        %v2557 = vpack.c.b16 %v2554, %v2553
        %v2558 = vpack.c.b16 %v2556, %v2555
        %v2562 = vsel %vm910, %v2537, 0
        %2564 = vmatprep.subr.bf16.mxu0 0
        %2565 = vmatpush1.bf16.msra.mxu0 %v2557
        %2566 = vmatprep.subr.bf16.mxu0 0
        %2567 = vmatpush1.bf16.msra.mxu0 %v2558
        %2568 = vmatprep.subr.bf16.mxu0 0
        %2569 = vmatpush1.bf16.msra.mxu0 0
        %2570 = vmatprep.subr.bf16.mxu0 0
        %2571 = vmatpush1.bf16.msra.mxu0 0
        %2572 = vmatprep.subr.bf16.mxu0 0
        %2573 = vmatpush1.bf16.msra.mxu0 0
        %2574 = vmatprep.subr.bf16.mxu0 0
        %2575 = vmatpush1.bf16.msra.mxu0 0
        %2576 = vmatprep.subr.bf16.mxu0 0
        %2577 = vmatpush1.bf16.msra.mxu0 0
        %2578 = vmatprep.subr.bf16.mxu0 0
        %2579 = vmatpush1.bf16.msra.mxu0 0
        %2580 = vmatprep.subr.bf16.mxu0 0
        %2581 = vmatpush1.bf16.msra.mxu0 0
        %2582 = vmatprep.subr.bf16.mxu0 0
        %2583 = vmatpush1.bf16.msra.mxu0 0
        %2584 = vmatprep.subr.bf16.mxu0 0
        %2585 = vmatpush1.bf16.msra.mxu0 0
        %2586 = vmatprep.subr.bf16.mxu0 0
        %2587 = vmatpush1.bf16.msra.mxu0 0
        %2588 = vmatprep.subr.bf16.mxu0 0
        %2589 = vmatpush1.bf16.msra.mxu0 0
        %2590 = vmatprep.subr.bf16.mxu0 0
        %2591 = vmatpush1.bf16.msra.mxu0 0
        %2592 = vmatprep.subr.bf16.mxu0 0
        %2593 = vmatpush1.bf16.msra.mxu0 0
        %2594 = vmatprep.subr.bf16.mxu0 0
        %2595 = vmatpush1.bf16.msra.mxu0 0
        %2596 = vmatprep.mubr.bf16.mxu0 0
        %2597 = vmatmul.mubr.bf16.gmra.mrb[0].mxu0 %v2562
        %v2598 = vpop.f32.mrb[0].mxu0
        %v2599 = vadd.f32 %v2547, %v2598
        %v2600 = vpop.f32.mrb[0].mxu0
        %v2601 = vpop.f32.mrb[0].mxu0
        %v2602 = vpop.f32.mrb[0].mxu0
        %2603 = vdwg.mxu0
        %v2604 = vmax.f32 %v2599, 0.0
        %v2605 = vpack.c.bf16 %v2604, %v2604
        %v2606 = vld [vmem:[%s21] sm:$0xf]
        %v2607 = vld [vmem:[%s21 + $0x4] sm:$0xf]
        %v2608 = vld [vmem:[%s21 + $0x8] sm:$0xf]
        %v2609 = vld [vmem:[%s21 + $0xc] sm:$0xf]
        %v2610 = vld [vmem:[%s21 + $0x10] sm:$0xf]
        %v2611 = vld [vmem:[%s21 + $0x14] sm:$0xf]
        %v2612 = vld [vmem:[%s21 + $0x18] sm:$0xf]
        %v2613 = vld [vmem:[%s21 + $0x1c] sm:$0xf]
        %v2614 = vld [vmem:[#allocation20] sm:$0x1]
        %v2616 = vlaneseq
        %v2617 = vshrl.u32 %v2616, 7
        %v2618 = vsub.s32 0, %v2617
        %v2619 = vrot.slane %v2614, %v2618
        %v2629 = vunpack.c.l.b16 %v2606
        %v2630 = vunpack.c.l.b16 %v2607
        %v2631 = vunpack.c.l.b16 %v2608
        %v2632 = vunpack.c.l.b16 %v2609
        %v2633 = vunpack.c.l.b16 %v2610
        %v2634 = vunpack.c.l.b16 %v2611
        %v2635 = vunpack.c.l.b16 %v2612
        %v2636 = vunpack.c.l.b16 %v2613
        %v2637 = vpack.c.b16 %v2630, %v2629
        %v2638 = vpack.c.b16 %v2632, %v2631
        %v2639 = vpack.c.b16 %v2634, %v2633
        %v2640 = vpack.c.b16 %v2636, %v2635
        %vm2645 = vcmask 523264
        %v2647 = vsel %vm2645, %v2605, 0
        %2649 = vmatprep.subr.bf16.mxu0 0
        %2650 = vmatpush1.bf16.msra.mxu0 %v2637
        %2651 = vmatprep.subr.bf16.mxu0 0
        %2652 = vmatpush1.bf16.msra.mxu0 %v2638
        %2653 = vmatprep.subr.bf16.mxu0 0
        %2654 = vmatpush1.bf16.msra.mxu0 %v2639
        %2655 = vmatprep.subr.bf16.mxu0 0
        %2656 = vmatpush1.bf16.msra.mxu0 %v2640
        %2657 = vmatprep.subr.bf16.mxu0 0
        %2658 = vmatpush1.bf16.msra.mxu0 0
        %2659 = vmatprep.subr.bf16.mxu0 0
        %2660 = vmatpush1.bf16.msra.mxu0 0
        %2661 = vmatprep.subr.bf16.mxu0 0
        %2662 = vmatpush1.bf16.msra.mxu0 0
        %2663 = vmatprep.subr.bf16.mxu0 0
        %2664 = vmatpush1.bf16.msra.mxu0 0
        %2665 = vmatprep.subr.bf16.mxu0 0
        %2666 = vmatpush1.bf16.msra.mxu0 0
        %2667 = vmatprep.subr.bf16.mxu0 0
        %2668 = vmatpush1.bf16.msra.mxu0 0
        %2669 = vmatprep.subr.bf16.mxu0 0
        %2670 = vmatpush1.bf16.msra.mxu0 0
        %2671 = vmatprep.subr.bf16.mxu0 0
        %2672 = vmatpush1.bf16.msra.mxu0 0
        %2673 = vmatprep.subr.bf16.mxu0 0
        %2674 = vmatpush1.bf16.msra.mxu0 0
        %2675 = vmatprep.subr.bf16.mxu0 0
        %2676 = vmatpush1.bf16.msra.mxu0 0
        %2677 = vmatprep.subr.bf16.mxu0 0
        %2678 = vmatpush1.bf16.msra.mxu0 0
        %2679 = vmatprep.subr.bf16.mxu0 0
        %2680 = vmatpush1.bf16.msra.mxu0 0
        %2681 = vmatprep.mubr.bf16.mxu0 0
        %2682 = vmatmul.mubr.bf16.gmra.mrb[0].mxu0 %v2647
        %v2683 = vpop.f32.mrb[0].mxu0
        %v2684 = vadd.f32 %v2619, %v2683
        %v2685 = vpop.f32.mrb[0].mxu0
        %v2686 = vpop.f32.mrb[0].mxu0
        %v2687 = vpop.f32.mrb[0].mxu0
        %2688 = vdwg.mxu0
        %v2689 = vadd.f32 %v2499, %v2684
        %2690 = vst.msk [vmem:[%s888] sm:$0xff] %vm910, %v2689
        %s2691 = sand.u32 %s552, 1
        %s2692 = scalar_lea.sflag [#allocation4], %s2691
        %s2693 = sand.u32 %s552, 1
        %s2694 = smul.addr %s2693, 8
        %s2695 = scalar_lea.vmem [#allocation22], %s2694
        // Predicated region
        $region161: #{decoder_layer.1} parent=111 // pred_check
          %p2696 = pneg %p562
        $region162: #{decoder_layer.1} parent=111 // pred_check_branch
          %2698 = sbr.rel (%p2696) target = $region164
        $region163: #{decoder_layer.1} parent=111 // pred_region
          %s2700 = ssub.s32 128, 128
          %2701 = vsyncadd %s2692, %s2700
          %s2702 = smul.addr %s46, 128
          %s2703 = scalar_lea.hbm %s23, %s2702
          %s2705 = sshll.u32 %s2695, 4
          %s2706 = int_to_ptr.vmem [resolvable:$true] %s2705
          %2708 = dma.vmem_to_hbm [thread:$0]  %s2706, 128, %s2703, %s2692
        $region164: #{decoder_layer.1} parent=111 // pred_fallthru
          _
      $region112: #{decoder_layer.1} parent=5 // pred_fallthru
        _
      %p2709 = scmp.le.s32.totalorder 2, %s41
      // Predicated region
      $region165: #{decoder_layer.1} parent=5 // pred_check
        %p2710 = pneg %p2709
      $region166: #{decoder_layer.1} parent=5 // pred_check_branch
        %2712 = sbr.rel (%p2710) target = $region168
      $region167: #{decoder_layer.1} parent=5 // pred_region
        %s2713 = ssub.s32 %s41, 2
        // Predicated region
        $region169: #{decoder_layer.1} parent=167 // pred_check
          %p2714 = pneg %p568
        $region170: #{decoder_layer.1} parent=167 // pred_check_branch
          %2716 = sbr.rel (%p2714) target = $region172
        $region171: #{decoder_layer.1} parent=167 // pred_region
          %s2717 = sand.u32 %s553, 1
          %s2718 = scalar_lea.sflag [#allocation4], %s2717
          %s2719 = sand.u32 %s553, 1
          %s2720 = smul.addr %s2719, 8
          %s2721 = scalar_lea.vmem [#allocation22], %s2720
          %2722 = dma.done %s2718, 128
        $region172: #{decoder_layer.1} parent=167 // pred_fallthru
          _
      $region168: #{decoder_layer.1} parent=5 // pred_fallthru
        _
    $region6: #{decoder_layer.1} parent=1 // loop_footer
      %s45 = sadd.s32 1, %s41
    $region7: #{decoder_layer.1} parent=1 // loop_footer_branch
      %40 = sbr.rel target = $region3
    $region8: #{decoder_layer.1} parent=1 // loop_exit
      _
    %2723 = vsyncpa [#allocation3], 1
    %s2724 = scalar_lea.sflag [#allocation3], 1
    %2725 = vsyncpa %s2724, 1
    %2726 = vsyncpa [#allocation6], 1
    %2727 = vsyncpa [#allocation9], 1
    %2728 = vsyncpa [#allocation12], 1
    %2729 = vsyncpa [#allocation15], 1
    %2730 = vsyncpa [#allocation18], 1
    %2731 = vsyncpa [#allocation21], 1
    %2732 = vsyncpa [#allocation4], 1
    %s2733 = scalar_lea.sflag [#allocation4], 1
    %2734 = vsyncpa %s2733, 1

// kernel: decoder_layer.1
$region0: #{decoder_layer.1}
  #allocation0 [shape = 'u32[]', space=smem, size = 0x4, offset = 0x4, fixed_abs, tag = 'smem constant byte address 0x4 - core index']
  #allocation1 [shape = 'u32[144,128]{1,0:T(1,128)}', space=vmem, size = 0x12000, scoped, tag = 'internal scratch']
  %s0 = inlined_call_operand.vmem [shape: f32[2,8,32], index: 0, kind: input, shape index: {}]
  %s1 = inlined_call_operand.vmem [shape: f32[2,8,32], index: 1, kind: input, shape index: {}]
  %s2 = inlined_call_operand.hbm [shape: f32[2,1,8], index: 2, kind: input, shape index: {}]
  %s3 = inlined_call_operand.hbm [shape: f32[1,32], index: 3, kind: input, shape index: {}]
  %s4 = inlined_call_operand.hbm [shape: f32[1,32], index: 4, kind: input, shape index: {}]
  %s5 = inlined_call_operand.vmem [shape: bf16[32,96], index: 5, kind: input, shape index: {}]
  %s6 = inlined_call_operand.hbm [shape: f32[1,96], index: 6, kind: input, shape index: {}]
  %s7 = inlined_call_operand.vmem [shape: bf16[4,8,32], index: 7, kind: input, shape index: {}]
  %s8 = inlined_call_operand.hbm [shape: f32[1,32], index: 8, kind: input, shape index: {}]
  %s9 = inlined_call_operand.hbm [shape: f32[1,32], index: 9, kind: input, shape index: {}]
  %s10 = inlined_call_operand.hbm [shape: f32[1,32], index: 10, kind: input, shape index: {}]
  %s11 = inlined_call_operand.vmem [shape: bf16[32,32], index: 11, kind: input, shape index: {}]
  %s12 = inlined_call_operand.vmem [shape: f32[1,32], index: 12, kind: input, shape index: {}]
  %s13 = inlined_call_operand.vmem [shape: bf16[32,64], index: 13, kind: input, shape index: {}]
  %s14 = inlined_call_operand.vmem [shape: f32[1,64], index: 14, kind: input, shape index: {}]
  %s15 = inlined_call_operand.vmem [shape: bf16[4,8,32], index: 15, kind: input, shape index: {}]
  %s16 = inlined_call_operand.vmem [shape: f32[1,32], index: 16, kind: input, shape index: {}]
  %s17 = inlined_call_operand.hbm [shape: f32[1,32], index: 17, kind: input, shape index: {}]
  %s18 = inlined_call_operand.hbm [shape: f32[1,32], index: 18, kind: input, shape index: {}]
  %s19 = inlined_call_operand.hbm [shape: bf16[32,64], index: 19, kind: input, shape index: {}]
  %s20 = inlined_call_operand.hbm [shape: f32[1,64], index: 20, kind: input, shape index: {}]
  %s21 = inlined_call_operand.vmem [shape: bf16[64,32], index: 21, kind: input, shape index: {}]
  %s22 = inlined_call_operand.hbm [shape: f32[1,32], index: 22, kind: input, shape index: {}]
  %s23 = inlined_call_operand.hbm [shape: f32[2,8,32], index: 23, kind: output, shape index: {}]
  %s24 = sld [smem:[#allocation0]]
  $region173: #{decoder_layer.1} parent=0
    _
  %s26 = ssub.s32 1, %s24
  %s27 = scalar_select 0, %s26, %s24
  $region1: #{decoder_layer.1} parent=0
    #allocation2 [shape = 'u8[1024]{0}', space=vmem, size = 0x400, scoped, tag = 'input window, operand 2']
    #allocation3 [shape = 's32[2]{0}', space=sflag, size = 0x8, scoped, tag = 'scoped memory for decoder_layer.1']
    #allocation4 [shape = 's32[2]{0}', space=sflag, size = 0x8, scoped, tag = 'scoped memory for decoder_layer.1']
    #allocation5 [shape = 'u8[512]{0}', space=vmem, size = 0x400, scoped, tag = 'input window, operand 3, single buffered']
    #allocation6 [shape = 's32[1]{0}', space=sflag, size = 0x4, scoped, tag = 'scoped memory for decoder_layer.1']
    #allocation7 [shape = 'u8[512]{0}', space=vmem, size = 0x400, scoped, tag = 'input window, operand 4, single buffered']
    #allocation8 [shape = 'u8[512]{0}', space=vmem, size = 0x400, scoped, tag = 'input window, operand 6, single buffered']
    #allocation9 [shape = 's32[1]{0}', space=sflag, size = 0x4, scoped, tag = 'scoped memory for decoder_layer.1']
    #allocation10 [shape = 'u8[512]{0}', space=vmem, size = 0x400, scoped, tag = 'input window, operand 8, single buffered']
    #allocation11 [shape = 'u8[512]{0}', space=vmem, size = 0x400, scoped, tag = 'input window, operand 9, single buffered']
    #allocation12 [shape = 's32[1]{0}', space=sflag, size = 0x4, scoped, tag = 'scoped memory for decoder_layer.1']
    #allocation13 [shape = 'u8[512]{0}', space=vmem, size = 0x400, scoped, tag = 'input window, operand 10, single buffered']
    #allocation14 [shape = 'u8[512]{0}', space=vmem, size = 0x400, scoped, tag = 'input window, operand 17, single buffered']
    #allocation15 [shape = 's32[1]{0}', space=sflag, size = 0x4, scoped, tag = 'scoped memory for decoder_layer.1']
    #allocation16 [shape = 'u8[512]{0}', space=vmem, size = 0x400, scoped, tag = 'input window, operand 18, single buffered']
    #allocation17 [shape = 'u8[8192]{0}', space=vmem, size = 0x2000, scoped, tag = 'input window, operand 19, single buffered']
    #allocation18 [shape = 's32[1]{0}', space=sflag, size = 0x4, scoped, tag = 'scoped memory for decoder_layer.1']
    #allocation19 [shape = 'u8[512]{0}', space=vmem, size = 0x400, scoped, tag = 'input window, operand 20, single buffered']
    #allocation20 [shape = 'u8[512]{0}', space=vmem, size = 0x400, scoped, tag = 'input window, operand 22, single buffered']
    #allocation21 [shape = 's32[1]{0}', space=sflag, size = 0x4, scoped, tag = 'scoped memory for decoder_layer.1']
    #allocation22 [shape = 'u8[8192]{0}', space=vmem, size = 0x2000, scoped, tag = 'output window, operand 0']
    %28 = vsyncpa [#allocation3], 0
    %s29 = scalar_lea.sflag [#allocation3], 1
    %30 = vsyncpa %s29, 0
    %31 = vsyncpa [#allocation6], 0
    %32 = vsyncpa [#allocation9], 0
    %33 = vsyncpa [#allocation12], 0
    %34 = vsyncpa [#allocation15], 0
    %35 = vsyncpa [#allocation18], 0
    %36 = vsyncpa [#allocation21], 0
    %37 = vsyncpa [#allocation4], 0
    %s38 = scalar_lea.sflag [#allocation4], 1
    %39 = vsyncpa %s38, 0
    loop: start=0, step=1, limit=4
    $region2: #{decoder_layer.1} parent=1 // loop_pre_header
      _
    $region3: #{decoder_layer.1} parent=1 // loop_header
      %s41 = sphi 0, %s45
      %p42 = scmp.ge.s32.totalorder %s41, 4
      %s51 = sphi 0, %s53
      %s54 = sphi 0, %s51
      %s55 = sphi 0, %s54
      %s71 = sphi 0, %s55
      %s77 = sphi 0, %s79
      %s80 = sphi 0, %s77
      %s81 = sphi 0, %s80
      %s97 = sphi 0, %s81
      %s103 = sphi 0, %s105
      %s106 = sphi 0, %s103
      %s107 = sphi 0, %s106
      %s123 = sphi 0, %s107
      %s127 = sphi 0, %s127
      %s129 = sphi 0, %s127
      %s130 = sphi 0, %s129
      %s144 = sphi 0, %s130
      %s148 = sphi 0, %s148
      %s150 = sphi 0, %s148
      %s151 = sphi 0, %s150
      %s165 = sphi 0, %s151
      %s169 = sphi 0, %s169
      %s171 = sphi 0, %s169
      %s172 = sphi 0, %s171
      %s186 = sphi 0, %s172
      %s190 = sphi 0, %s190
      %s192 = sphi 0, %s190
      %s193 = sphi 0, %s192
      %s207 = sphi 0, %s193
      %s211 = sphi 0, %s211
      %s213 = sphi 0, %s211
      %s214 = sphi 0, %s213
      %s228 = sphi 0, %s214
      %s232 = sphi 0, %s232
      %s234 = sphi 0, %s232
      %s235 = sphi 0, %s234
      %s249 = sphi 0, %s235
      %s253 = sphi 0, %s253
      %s255 = sphi 0, %s253
      %s256 = sphi 0, %s255
      %s270 = sphi 0, %s256
      %s274 = sphi 0, %s274
      %s276 = sphi 0, %s274
      %s277 = sphi 0, %s276
      %s291 = sphi 0, %s277
      %s295 = sphi 0, %s295
      %s297 = sphi 0, %s295
      %s298 = sphi 0, %s297
      %s312 = sphi 0, %s298
      %s316 = sphi 0, %s316
      %s318 = sphi 0, %s316
      %s319 = sphi 0, %s318
      %s333 = sphi 0, %s319
      %s337 = sphi 0, %s337
      %s339 = sphi 0, %s337
      %s340 = sphi 0, %s339
      %s354 = sphi 0, %s340
      %s358 = sphi 0, %s358
      %s360 = sphi 0, %s358
      %s361 = sphi 0, %s360
      %s375 = sphi 0, %s361
      %s379 = sphi 0, %s379
      %s381 = sphi 0, %s379
      %s382 = sphi 0, %s381
      %s396 = sphi 0, %s382
      %s400 = sphi 0, %s400
      %s402 = sphi 0, %s400
      %s403 = sphi 0, %s402
      %s417 = sphi 0, %s403
      %s421 = sphi 0, %s421
      %s423 = sphi 0, %s421
      %s424 = sphi 0, %s423
      %s438 = sphi 0, %s424
      %s442 = sphi 0, %s442
      %s444 = sphi 0, %s442
      %s445 = sphi 0, %s444
      %s459 = sphi 0, %s445
      %s463 = sphi 0, %s463
      %s465 = sphi 0, %s463
      %s466 = sphi 0, %s465
      %s480 = sphi 0, %s466
      %s484 = sphi 0, %s484
      %s486 = sphi 0, %s484
      %s487 = sphi 0, %s486
      %s501 = sphi 0, %s487
      %s505 = sphi 0, %s505
      %s507 = sphi 0, %s505
      %s508 = sphi 0, %s507
      %s522 = sphi 0, %s508
      %s526 = sphi 0, %s526
      %s528 = sphi 0, %s526
      %s529 = sphi 0, %s528
      %s543 = sphi 0, %s529
      %s549 = sphi 0, %s551
      %s552 = sphi 0, %s549
      %s553 = sphi 0, %s552
      %s569 = sphi 0, %s553
    $region4: #{decoder_layer.1} parent=1 // loop_header_branch
      %44 = sbr.rel (%p42) target = $region8
    $region5: #{decoder_layer.1} parent=1 // loop_body
      %s46 = ssub.s32 %s41, 1
      %s47 = ssub.s32 %s41, 2
      %s48 = sadd.s32 %s41, 1
      %s49 = ssub.s32 %s41, %s48
      %p50 = scmp.eq.s32.totalorder %s49, 0
      %s52 = sadd.s32 %s51, 1
      %s53 = scalar_select %p50, %s51, %s52
      %p56 = pneg %p50
      %p57 = scmp.eq.s32.totalorder %s41, 1
      %p58 = por %p56, %p57
      %p59 = scmp.ne.s32.totalorder %s51, %s54
      %p60 = scmp.eq.s32.totalorder %s41, 0
      %p61 = por %p59, %p60
      %p62 = scmp.ne.s32.totalorder %s51, %s54
      %p63 = scmp.eq.s32.totalorder %s46, 1
      %p64 = por %p62, %p63
      %p65 = scmp.ne.s32.totalorder %s54, %s55
      %p66 = scmp.eq.s32.totalorder %s46, 0
      %p67 = por %p65, %p66
      %p68 = scmp.ne.s32.totalorder %s54, %s55
      %p69 = scmp.eq.s32.totalorder %s47, 1
      %p70 = por %p68, %p69
      %p72 = scmp.ne.s32.totalorder %s55, %s71
      %p73 = scmp.eq.s32.totalorder %s47, 0
      %p74 = por %p72, %p73
      %s75 = ssub.s32 %s41, %s48
      %p76 = scmp.eq.s32.totalorder %s75, 0
      %s78 = sadd.s32 %s77, 1
      %s79 = scalar_select %p76, %s77, %s78
      %p82 = pneg %p76
      %p83 = scmp.eq.s32.totalorder %s41, 1
      %p84 = por %p82, %p83
      %p85 = scmp.ne.s32.totalorder %s77, %s80
      %p86 = scmp.eq.s32.totalorder %s41, 0
      %p87 = por %p85, %p86
      %p88 = scmp.ne.s32.totalorder %s77, %s80
      %p89 = scmp.eq.s32.totalorder %s46, 1
      %p90 = por %p88, %p89
      %p91 = scmp.ne.s32.totalorder %s80, %s81
      %p92 = scmp.eq.s32.totalorder %s46, 0
      %p93 = por %p91, %p92
      %p94 = scmp.ne.s32.totalorder %s80, %s81
      %p95 = scmp.eq.s32.totalorder %s47, 1
      %p96 = por %p94, %p95
      %p98 = scmp.ne.s32.totalorder %s81, %s97
      %p99 = scmp.eq.s32.totalorder %s47, 0
      %p100 = por %p98, %p99
      %s101 = ssub.s32 %s41, %s48
      %p102 = scmp.eq.s32.totalorder %s101, 0
      %s104 = sadd.s32 %s103, 1
      %s105 = scalar_select %p102, %s103, %s104
      %p108 = pneg %p102
      %p109 = scmp.eq.s32.totalorder %s41, 1
      %p110 = por %p108, %p109
      %p111 = scmp.ne.s32.totalorder %s103, %s106
      %p112 = scmp.eq.s32.totalorder %s41, 0
      %p113 = por %p111, %p112
      %p114 = scmp.ne.s32.totalorder %s103, %s106
      %p115 = scmp.eq.s32.totalorder %s46, 1
      %p116 = por %p114, %p115
      %p117 = scmp.ne.s32.totalorder %s106, %s107
      %p118 = scmp.eq.s32.totalorder %s46, 0
      %p119 = por %p117, %p118
      %p120 = scmp.ne.s32.totalorder %s106, %s107
      %p121 = scmp.eq.s32.totalorder %s47, 1
      %p122 = por %p120, %p121
      %p124 = scmp.ne.s32.totalorder %s107, %s123
      %p125 = scmp.eq.s32.totalorder %s47, 0
      %p126 = por %p124, %p125
      %s128 = sadd.s32 %s127, 1
      %p131 = scmp.eq.s32.totalorder %s41, 1
      %p132 = scmp.ne.s32.totalorder %s127, %s129
      %p133 = scmp.eq.s32.totalorder %s41, 0
      %p134 = por %p132, %p133
      %p135 = scmp.ne.s32.totalorder %s127, %s129
      %p136 = scmp.eq.s32.totalorder %s46, 1
      %p137 = por %p135, %p136
      %p138 = scmp.ne.s32.totalorder %s129, %s130
      %p139 = scmp.eq.s32.totalorder %s46, 0
      %p140 = por %p138, %p139
      %p141 = scmp.ne.s32.totalorder %s129, %s130
      %p142 = scmp.eq.s32.totalorder %s47, 1
      %p143 = por %p141, %p142
      %p145 = scmp.ne.s32.totalorder %s130, %s144
      %p146 = scmp.eq.s32.totalorder %s47, 0
      %p147 = por %p145, %p146
      %s149 = sadd.s32 %s148, 1
      %p152 = scmp.eq.s32.totalorder %s41, 1
      %p153 = scmp.ne.s32.totalorder %s148, %s150
      %p154 = scmp.eq.s32.totalorder %s41, 0
      %p155 = por %p153, %p154
      %p156 = scmp.ne.s32.totalorder %s148, %s150
      %p157 = scmp.eq.s32.totalorder %s46, 1
      %p158 = por %p156, %p157
      %p159 = scmp.ne.s32.totalorder %s150, %s151
      %p160 = scmp.eq.s32.totalorder %s46, 0
      %p161 = por %p159, %p160
      %p162 = scmp.ne.s32.totalorder %s150, %s151
      %p163 = scmp.eq.s32.totalorder %s47, 1
      %p164 = por %p162, %p163
      %p166 = scmp.ne.s32.totalorder %s151, %s165
      %p167 = scmp.eq.s32.totalorder %s47, 0
      %p168 = por %p166, %p167
      %s170 = sadd.s32 %s169, 1
      %p173 = scmp.eq.s32.totalorder %s41, 1
      %p174 = scmp.ne.s32.totalorder %s169, %s171
      %p175 = scmp.eq.s32.totalorder %s41, 0
      %p176 = por %p174, %p175
      %p177 = scmp.ne.s32.totalorder %s169, %s171
      %p178 = scmp.eq.s32.totalorder %s46, 1
      %p179 = por %p177, %p178
      %p180 = scmp.ne.s32.totalorder %s171, %s172
      %p181 = scmp.eq.s32.totalorder %s46, 0
      %p182 = por %p180, %p181
      %p183 = scmp.ne.s32.totalorder %s171, %s172
      %p184 = scmp.eq.s32.totalorder %s47, 1
      %p185 = por %p183, %p184
      %p187 = scmp.ne.s32.totalorder %s172, %s186
      %p188 = scmp.eq.s32.totalorder %s47, 0
      %p189 = por %p187, %p188
      %s191 = sadd.s32 %s190, 1
      %p194 = scmp.eq.s32.totalorder %s41, 1
      %p195 = scmp.ne.s32.totalorder %s190, %s192
      %p196 = scmp.eq.s32.totalorder %s41, 0
      %p197 = por %p195, %p196
      %p198 = scmp.ne.s32.totalorder %s190, %s192
      %p199 = scmp.eq.s32.totalorder %s46, 1
      %p200 = por %p198, %p199
      %p201 = scmp.ne.s32.totalorder %s192, %s193
      %p202 = scmp.eq.s32.totalorder %s46, 0
      %p203 = por %p201, %p202
      %p204 = scmp.ne.s32.totalorder %s192, %s193
      %p205 = scmp.eq.s32.totalorder %s47, 1
      %p206 = por %p204, %p205
      %p208 = scmp.ne.s32.totalorder %s193, %s207
      %p209 = scmp.eq.s32.totalorder %s47, 0
      %p210 = por %p208, %p209
      %s212 = sadd.s32 %s211, 1
      %p215 = scmp.eq.s32.totalorder %s41, 1
      %p216 = scmp.ne.s32.totalorder %s211, %s213
      %p217 = scmp.eq.s32.totalorder %s41, 0
      %p218 = por %p216, %p217
      %p219 = scmp.ne.s32.totalorder %s211, %s213
      %p220 = scmp.eq.s32.totalorder %s46, 1
      %p221 = por %p219, %p220
      %p222 = scmp.ne.s32.totalorder %s213, %s214
      %p223 = scmp.eq.s32.totalorder %s46, 0
      %p224 = por %p222, %p223
      %p225 = scmp.ne.s32.totalorder %s213, %s214
      %p226 = scmp.eq.s32.totalorder %s47, 1
      %p227 = por %p225, %p226
      %p229 = scmp.ne.s32.totalorder %s214, %s228
      %p230 = scmp.eq.s32.totalorder %s47, 0
      %p231 = por %p229, %p230
      %s233 = sadd.s32 %s232, 1
      %p236 = scmp.eq.s32.totalorder %s41, 1
      %p237 = scmp.ne.s32.totalorder %s232, %s234
      %p238 = scmp.eq.s32.totalorder %s41, 0
      %p239 = por %p237, %p238
      %p240 = scmp.ne.s32.totalorder %s232, %s234
      %p241 = scmp.eq.s32.totalorder %s46, 1
      %p242 = por %p240, %p241
      %p243 = scmp.ne.s32.totalorder %s234, %s235
      %p244 = scmp.eq.s32.totalorder %s46, 0
      %p245 = por %p243, %p244
      %p246 = scmp.ne.s32.totalorder %s234, %s235
      %p247 = scmp.eq.s32.totalorder %s47, 1
      %p248 = por %p246, %p247
      %p250 = scmp.ne.s32.totalorder %s235, %s249
      %p251 = scmp.eq.s32.totalorder %s47, 0
      %p252 = por %p250, %p251
      %s254 = sadd.s32 %s253, 1
      %p257 = scmp.eq.s32.totalorder %s41, 1
      %p258 = scmp.ne.s32.totalorder %s253, %s255
      %p259 = scmp.eq.s32.totalorder %s41, 0
      %p260 = por %p258, %p259
      %p261 = scmp.ne.s32.totalorder %s253, %s255
      %p262 = scmp.eq.s32.totalorder %s46, 1
      %p263 = por %p261, %p262
      %p264 = scmp.ne.s32.totalorder %s255, %s256
      %p265 = scmp.eq.s32.totalorder %s46, 0
      %p266 = por %p264, %p265
      %p267 = scmp.ne.s32.totalorder %s255, %s256
      %p268 = scmp.eq.s32.totalorder %s47, 1
      %p269 = por %p267, %p268
      %p271 = scmp.ne.s32.totalorder %s256, %s270
      %p272 = scmp.eq.s32.totalorder %s47, 0
      %p273 = por %p271, %p272
      %s275 = sadd.s32 %s274, 1
      %p278 = scmp.eq.s32.totalorder %s41, 1
      %p279 = scmp.ne.s32.totalorder %s274, %s276
      %p280 = scmp.eq.s32.totalorder %s41, 0
      %p281 = por %p279, %p280
      %p282 = scmp.ne.s32.totalorder %s274, %s276
      %p283 = scmp.eq.s32.totalorder %s46, 1
      %p284 = por %p282, %p283
      %p285 = scmp.ne.s32.totalorder %s276, %s277
      %p286 = scmp.eq.s32.totalorder %s46, 0
      %p287 = por %p285, %p286
      %p288 = scmp.ne.s32.totalorder %s276, %s277
      %p289 = scmp.eq.s32.totalorder %s47, 1
      %p290 = por %p288, %p289
      %p292 = scmp.ne.s32.totalorder %s277, %s291
      %p293 = scmp.eq.s32.totalorder %s47, 0
      %p294 = por %p292, %p293
      %s296 = sadd.s32 %s295, 1
      %p299 = scmp.eq.s32.totalorder %s41, 1
      %p300 = scmp.ne.s32.totalorder %s295, %s297
      %p301 = scmp.eq.s32.totalorder %s41, 0
      %p302 = por %p300, %p301
      %p303 = scmp.ne.s32.totalorder %s295, %s297
      %p304 = scmp.eq.s32.totalorder %s46, 1
      %p305 = por %p303, %p304
      %p306 = scmp.ne.s32.totalorder %s297, %s298
      %p307 = scmp.eq.s32.totalorder %s46, 0
      %p308 = por %p306, %p307
      %p309 = scmp.ne.s32.totalorder %s297, %s298
      %p310 = scmp.eq.s32.totalorder %s47, 1
      %p311 = por %p309, %p310
      %p313 = scmp.ne.s32.totalorder %s298, %s312
      %p314 = scmp.eq.s32.totalorder %s47, 0
      %p315 = por %p313, %p314
      %s317 = sadd.s32 %s316, 1
      %p320 = scmp.eq.s32.totalorder %s41, 1
      %p321 = scmp.ne.s32.totalorder %s316, %s318
      %p322 = scmp.eq.s32.totalorder %s41, 0
      %p323 = por %p321, %p322
      %p324 = scmp.ne.s32.totalorder %s316, %s318
      %p325 = scmp.eq.s32.totalorder %s46, 1
      %p326 = por %p324, %p325
      %p327 = scmp.ne.s32.totalorder %s318, %s319
      %p328 = scmp.eq.s32.totalorder %s46, 0
      %p329 = por %p327, %p328
      %p330 = scmp.ne.s32.totalorder %s318, %s319
      %p331 = scmp.eq.s32.totalorder %s47, 1
      %p332 = por %p330, %p331
      %p334 = scmp.ne.s32.totalorder %s319, %s333
      %p335 = scmp.eq.s32.totalorder %s47, 0
      %p336 = por %p334, %p335
      %s338 = sadd.s32 %s337, 1
      %p341 = scmp.eq.s32.totalorder %s41, 1
      %p342 = scmp.ne.s32.totalorder %s337, %s339
      %p343 = scmp.eq.s32.totalorder %s41, 0
      %p344 = por %p342, %p343
      %p345 = scmp.ne.s32.totalorder %s337, %s339
      %p346 = scmp.eq.s32.totalorder %s46, 1
      %p347 = por %p345, %p346
      %p348 = scmp.ne.s32.totalorder %s339, %s340
      %p349 = scmp.eq.s32.totalorder %s46, 0
      %p350 = por %p348, %p349
      %p351 = scmp.ne.s32.totalorder %s339, %s340
      %p352 = scmp.eq.s32.totalorder %s47, 1
      %p353 = por %p351, %p352
      %p355 = scmp.ne.s32.totalorder %s340, %s354
      %p356 = scmp.eq.s32.totalorder %s47, 0
      %p357 = por %p355, %p356
      %s359 = sadd.s32 %s358, 1
      %p362 = scmp.eq.s32.totalorder %s41, 1
      %p363 = scmp.ne.s32.totalorder %s358, %s360
      %p364 = scmp.eq.s32.totalorder %s41, 0
      %p365 = por %p363, %p364
      %p366 = scmp.ne.s32.totalorder %s358, %s360
      %p367 = scmp.eq.s32.totalorder %s46, 1
      %p368 = por %p366, %p367
      %p369 = scmp.ne.s32.totalorder %s360, %s361
      %p370 = scmp.eq.s32.totalorder %s46, 0
      %p371 = por %p369, %p370
      %p372 = scmp.ne.s32.totalorder %s360, %s361
      %p373 = scmp.eq.s32.totalorder %s47, 1
      %p374 = por %p372, %p373
      %p376 = scmp.ne.s32.totalorder %s361, %s375
      %p377 = scmp.eq.s32.totalorder %s47, 0
      %p378 = por %p376, %p377
      %s380 = sadd.s32 %s379, 1
      %p383 = scmp.eq.s32.totalorder %s41, 1
      %p384 = scmp.ne.s32.totalorder %s379, %s381
      %p385 = scmp.eq.s32.totalorder %s41, 0
      %p386 = por %p384, %p385
      %p387 = scmp.ne.s32.totalorder %s379, %s381
      %p388 = scmp.eq.s32.totalorder %s46, 1
      %p389 = por %p387, %p388
      %p390 = scmp.ne.s32.totalorder %s381, %s382
      %p391 = scmp.eq.s32.totalorder %s46, 0
      %p392 = por %p390, %p391
      %p393 = scmp.ne.s32.totalorder %s381, %s382
      %p394 = scmp.eq.s32.totalorder %s47, 1
      %p395 = por %p393, %p394
      %p397 = scmp.ne.s32.totalorder %s382, %s396
      %p398 = scmp.eq.s32.totalorder %s47, 0
      %p399 = por %p397, %p398
      %s401 = sadd.s32 %s400, 1
      %p404 = scmp.eq.s32.totalorder %s41, 1
      %p405 = scmp.ne.s32.totalorder %s400, %s402
      %p406 = scmp.eq.s32.totalorder %s41, 0
      %p407 = por %p405, %p406
      %p408 = scmp.ne.s32.totalorder %s400, %s402
      %p409 = scmp.eq.s32.totalorder %s46, 1
      %p410 = por %p408, %p409
      %p411 = scmp.ne.s32.totalorder %s402, %s403
      %p412 = scmp.eq.s32.totalorder %s46, 0
      %p413 = por %p411, %p412
      %p414 = scmp.ne.s32.totalorder %s402, %s403
      %p415 = scmp.eq.s32.totalorder %s47, 1
      %p416 = por %p414, %p415
      %p418 = scmp.ne.s32.totalorder %s403, %s417
      %p419 = scmp.eq.s32.totalorder %s47, 0
      %p420 = por %p418, %p419
      %s422 = sadd.s32 %s421, 1
      %p425 = scmp.eq.s32.totalorder %s41, 1
      %p426 = scmp.ne.s32.totalorder %s421, %s423
      %p427 = scmp.eq.s32.totalorder %s41, 0
      %p428 = por %p426, %p427
      %p429 = scmp.ne.s32.totalorder %s421, %s423
      %p430 = scmp.eq.s32.totalorder %s46, 1
      %p431 = por %p429, %p430
      %p432 = scmp.ne.s32.totalorder %s423, %s424
      %p433 = scmp.eq.s32.totalorder %s46, 0
      %p434 = por %p432, %p433
      %p435 = scmp.ne.s32.totalorder %s423, %s424
      %p436 = scmp.eq.s32.totalorder %s47, 1
      %p437 = por %p435, %p436
      %p439 = scmp.ne.s32.totalorder %s424, %s438
      %p440 = scmp.eq.s32.totalorder %s47, 0
      %p441 = por %p439, %p440
      %s443 = sadd.s32 %s442, 1
      %p446 = scmp.eq.s32.totalorder %s41, 1
      %p447 = scmp.ne.s32.totalorder %s442, %s444
      %p448 = scmp.eq.s32.totalorder %s41, 0
      %p449 = por %p447, %p448
      %p450 = scmp.ne.s32.totalorder %s442, %s444
      %p451 = scmp.eq.s32.totalorder %s46, 1
      %p452 = por %p450, %p451
      %p453 = scmp.ne.s32.totalorder %s444, %s445
      %p454 = scmp.eq.s32.totalorder %s46, 0
      %p455 = por %p453, %p454
      %p456 = scmp.ne.s32.totalorder %s444, %s445
      %p457 = scmp.eq.s32.totalorder %s47, 1
      %p458 = por %p456, %p457
      %p460 = scmp.ne.s32.totalorder %s445, %s459
      %p461 = scmp.eq.s32.totalorder %s47, 0
      %p462 = por %p460, %p461
      %s464 = sadd.s32 %s463, 1
      %p467 = scmp.eq.s32.totalorder %s41, 1
      %p468 = scmp.ne.s32.totalorder %s463, %s465
      %p469 = scmp.eq.s32.totalorder %s41, 0
      %p470 = por %p468, %p469
      %p471 = scmp.ne.s32.totalorder %s463, %s465
      %p472 = scmp.eq.s32.totalorder %s46, 1
      %p473 = por %p471, %p472
      %p474 = scmp.ne.s32.totalorder %s465, %s466
      %p475 = scmp.eq.s32.totalorder %s46, 0
      %p476 = por %p474, %p475
      %p477 = scmp.ne.s32.totalorder %s465, %s466
      %p478 = scmp.eq.s32.totalorder %s47, 1
      %p479 = por %p477, %p478
      %p481 = scmp.ne.s32.totalorder %s466, %s480
      %p482 = scmp.eq.s32.totalorder %s47, 0
      %p483 = por %p481, %p482
      %s485 = sadd.s32 %s484, 1
      %p488 = scmp.eq.s32.totalorder %s41, 1
      %p489 = scmp.ne.s32.totalorder %s484, %s486
      %p490 = scmp.eq.s32.totalorder %s41, 0
      %p491 = por %p489, %p490
      %p492 = scmp.ne.s32.totalorder %s484, %s486
      %p493 = scmp.eq.s32.totalorder %s46, 1
      %p494 = por %p492, %p493
      %p495 = scmp.ne.s32.totalorder %s486, %s487
      %p496 = scmp.eq.s32.totalorder %s46, 0
      %p497 = por %p495, %p496
      %p498 = scmp.ne.s32.totalorder %s486, %s487
      %p499 = scmp.eq.s32.totalorder %s47, 1
      %p500 = por %p498, %p499
      %p502 = scmp.ne.s32.totalorder %s487, %s501
      %p503 = scmp.eq.s32.totalorder %s47, 0
      %p504 = por %p502, %p503
      %s506 = sadd.s32 %s505, 1
      %p509 = scmp.eq.s32.totalorder %s41, 1
      %p510 = scmp.ne.s32.totalorder %s505, %s507
      %p511 = scmp.eq.s32.totalorder %s41, 0
      %p512 = por %p510, %p511
      %p513 = scmp.ne.s32.totalorder %s505, %s507
      %p514 = scmp.eq.s32.totalorder %s46, 1
      %p515 = por %p513, %p514
      %p516 = scmp.ne.s32.totalorder %s507, %s508
      %p517 = scmp.eq.s32.totalorder %s46, 0
      %p518 = por %p516, %p517
      %p519 = scmp.ne.s32.totalorder %s507, %s508
      %p520 = scmp.eq.s32.totalorder %s47, 1
      %p521 = por %p519, %p520
      %p523 = scmp.ne.s32.totalorder %s508, %s522
      %p524 = scmp.eq.s32.totalorder %s47, 0
      %p525 = por %p523, %p524
      %s527 = sadd.s32 %s526, 1
      %p530 = scmp.eq.s32.totalorder %s41, 1
      %p531 = scmp.ne.s32.totalorder %s526, %s528
      %p532 = scmp.eq.s32.totalorder %s41, 0
      %p533 = por %p531, %p532
      %p534 = scmp.ne.s32.totalorder %s526, %s528
      %p535 = scmp.eq.s32.totalorder %s46, 1
      %p536 = por %p534, %p535
      %p537 = scmp.ne.s32.totalorder %s528, %s529
      %p538 = scmp.eq.s32.totalorder %s46, 0
      %p539 = por %p537, %p538
      %p540 = scmp.ne.s32.totalorder %s528, %s529
      %p541 = scmp.eq.s32.totalorder %s47, 1
      %p542 = por %p540, %p541
      %p544 = scmp.ne.s32.totalorder %s529, %s543
      %p545 = scmp.eq.s32.totalorder %s47, 0
      %p546 = por %p544, %p545
      %s547 = ssub.s32 %s41, %s48
      %p548 = scmp.eq.s32.totalorder %s547, 0
      %s550 = sadd.s32 %s549, 1
      %s551 = scalar_select %p548, %s549, %s550
      %p554 = pneg %p548
      %p555 = scmp.eq.s32.totalorder %s41, 1
      %p556 = por %p554, %p555
      %p557 = scmp.ne.s32.totalorder %s549, %s552
      %p558 = scmp.eq.s32.totalorder %s41, 0
      %p559 = por %p557, %p558
      %p560 = scmp.ne.s32.totalorder %s549, %s552
      %p561 = scmp.eq.s32.totalorder %s46, 1
      %p562 = por %p560, %p561
      %p563 = scmp.ne.s32.totalorder %s552, %s553
      %p564 = scmp.eq.s32.totalorder %s46, 0
      %p565 = por %p563, %p564
      %p566 = scmp.ne.s32.totalorder %s552, %s553
      %p567 = scmp.eq.s32.totalorder %s47, 1
      %p568 = por %p566, %p567
      %p570 = scmp.ne.s32.totalorder %s553, %s569
      %p571 = scmp.eq.s32.totalorder %s47, 0
      %p572 = por %p570, %p571
      %p573 = scmp.le.s32.totalorder 1, %s41
      %p574 = scmp.lt.s32.totalorder %s41, 3
      %p575 = pnand %p573, %p574
      %p576 = pneg %p575
      // Predicated region
      $region9: #{decoder_layer.1} parent=5 // pred_check
        _
      $region10: #{decoder_layer.1} parent=5 // pred_check_branch
        %578 = sbr.rel (%p575) target = $region12
      $region11: #{decoder_layer.1} parent=5 // pred_region
        %s579 = ssub.s32 %s41, 1
        // Predicated region
        $region13: #{decoder_layer.1} parent=11 // pred_check
          %p580 = pneg %p140
        $region14: #{decoder_layer.1} parent=11 // pred_check_branch
          %582 = sbr.rel (%p580) target = $region16
        $region15: #{decoder_layer.1} parent=11 // pred_region
          %s584 = ssub.s32 16, 16
          %585 = vsyncadd [#allocation6], %s584
          %s587 = sshll.u32 [#allocation5], 4
          %s588 = int_to_ptr.vmem [resolvable:$true] %s587
          %590 = dma.hbm_to_vmem [thread:$0]  %s3, 16, %s588, [#allocation6]
        $region16: #{decoder_layer.1} parent=11 // pred_fallthru
          _
        // Predicated region
        $region17: #{decoder_layer.1} parent=11 // pred_check
          %p591 = pneg %p161
        $region18: #{decoder_layer.1} parent=11 // pred_check_branch
          %593 = sbr.rel (%p591) target = $region20
        $region19: #{decoder_layer.1} parent=11 // pred_region
          %s595 = ssub.s32 16, 16
          %596 = vsyncadd [#allocation6], %s595
          %s598 = sshll.u32 [#allocation7], 4
          %s599 = int_to_ptr.vmem [resolvable:$true] %s598
          %601 = dma.hbm_to_vmem [thread:$0]  %s4, 16, %s599, [#allocation6]
        $region20: #{decoder_layer.1} parent=11 // pred_fallthru
          _
        // Predicated region
        $region21: #{decoder_layer.1} parent=11 // pred_check
          %p602 = pneg %p182
        $region22: #{decoder_layer.1} parent=11 // pred_check_branch
          %604 = sbr.rel (%p602) target = $region24
        $region23: #{decoder_layer.1} parent=11 // pred_region
          _
        $region24: #{decoder_layer.1} parent=11 // pred_fallthru
          _
        // Predicated region
        $region25: #{decoder_layer.1} parent=11 // pred_check
          %p605 = pneg %p203
        $region26: #{decoder_layer.1} parent=11 // pred_check_branch
          %607 = sbr.rel (%p605) target = $region28
        $region27: #{decoder_layer.1} parent=11 // pred_region
          %s609 = ssub.s32 16, 16
          %610 = vsyncadd [#allocation9], %s609
          %s612 = sshll.u32 [#allocation8], 4
          %s613 = int_to_ptr.vmem [resolvable:$true] %s612
          %615 = dma.hbm_to_vmem [thread:$0]  %s6, 16, %s613, [#allocation9]
        $region28: #{decoder_layer.1} parent=11 // pred_fallthru
          _
        // Predicated region
        $region29: #{decoder_layer.1} parent=11 // pred_check
          %p616 = pneg %p224
        $region30: #{decoder_layer.1} parent=11 // pred_check_branch
          %618 = sbr.rel (%p616) target = $region32
        $region31: #{decoder_layer.1} parent=11 // pred_region
          _
        $region32: #{decoder_layer.1} parent=11 // pred_fallthru
          _
        // Predicated region
        $region33: #{decoder_layer.1} parent=11 // pred_check
          %p619 = pneg %p245
        $region34: #{decoder_layer.1} parent=11 // pred_check_branch
          %621 = sbr.rel (%p619) target = $region36
        $region35: #{decoder_layer.1} parent=11 // pred_region
          %s623 = ssub.s32 16, 16
          %624 = vsyncadd [#allocation9], %s623
          %s626 = sshll.u32 [#allocation10], 4
          %s627 = int_to_ptr.vmem [resolvable:$true] %s626
          %629 = dma.hbm_to_vmem [thread:$0]  %s8, 16, %s627, [#allocation9]
        $region36: #{decoder_layer.1} parent=11 // pred_fallthru
          _
        // Predicated region
        $region37: #{decoder_layer.1} parent=11 // pred_check
          %p630 = pneg %p266
        $region38: #{decoder_layer.1} parent=11 // pred_check_branch
          %632 = sbr.rel (%p630) target = $region40
        $region39: #{decoder_layer.1} parent=11 // pred_region
          %s634 = ssub.s32 16, 16
          %635 = vsyncadd [#allocation12], %s634
          %s637 = sshll.u32 [#allocation11], 4
          %s638 = int_to_ptr.vmem [resolvable:$true] %s637
          %640 = dma.hbm_to_vmem [thread:$0]  %s9, 16, %s638, [#allocation12]
        $region40: #{decoder_layer.1} parent=11 // pred_fallthru
          _
        // Predicated region
        $region41: #{decoder_layer.1} parent=11 // pred_check
          %p641 = pneg %p287
        $region42: #{decoder_layer.1} parent=11 // pred_check_branch
          %643 = sbr.rel (%p641) target = $region44
        $region43: #{decoder_layer.1} parent=11 // pred_region
          %s645 = ssub.s32 16, 16
          %646 = vsyncadd [#allocation12], %s645
          %s648 = sshll.u32 [#allocation13], 4
          %s649 = int_to_ptr.vmem [resolvable:$true] %s648
          %651 = dma.hbm_to_vmem [thread:$0]  %s10, 16, %s649, [#allocation12]
        $region44: #{decoder_layer.1} parent=11 // pred_fallthru
          _
        // Predicated region
        $region45: #{decoder_layer.1} parent=11 // pred_check
          %p652 = pneg %p308
        $region46: #{decoder_layer.1} parent=11 // pred_check_branch
          %654 = sbr.rel (%p652) target = $region48
        $region47: #{decoder_layer.1} parent=11 // pred_region
          _
        $region48: #{decoder_layer.1} parent=11 // pred_fallthru
          _
        // Predicated region
        $region49: #{decoder_layer.1} parent=11 // pred_check
          %p655 = pneg %p329
        $region50: #{decoder_layer.1} parent=11 // pred_check_branch
          %657 = sbr.rel (%p655) target = $region52
        $region51: #{decoder_layer.1} parent=11 // pred_region
          _
        $region52: #{decoder_layer.1} parent=11 // pred_fallthru
          _
        // Predicated region
        $region53: #{decoder_layer.1} parent=11 // pred_check
          %p658 = pneg %p350
        $region54: #{decoder_layer.1} parent=11 // pred_check_branch
          %660 = sbr.rel (%p658) target = $region56
        $region55: #{decoder_layer.1} parent=11 // pred_region
          _
        $region56: #{decoder_layer.1} parent=11 // pred_fallthru
          _
        // Predicated region
        $region57: #{decoder_layer.1} parent=11 // pred_check
          %p661 = pneg %p371
        $region58: #{decoder_layer.1} parent=11 // pred_check_branch
          %663 = sbr.rel (%p661) target = $region60
        $region59: #{decoder_layer.1} parent=11 // pred_region
          _
        $region60: #{decoder_layer.1} parent=11 // pred_fallthru
          _
        // Predicated region
        $region61: #{decoder_layer.1} parent=11 // pred_check
          %p664 = pneg %p392
        $region62: #{decoder_layer.1} parent=11 // pred_check_branch
          %666 = sbr.rel (%p664) target = $region64
        $region63: #{decoder_layer.1} parent=11 // pred_region
          _
        $region64: #{decoder_layer.1} parent=11 // pred_fallthru
          _
        // Predicated region
        $region65: #{decoder_layer.1} parent=11 // pred_check
          %p667 = pneg %p413
        $region66: #{decoder_layer.1} parent=11 // pred_check_branch
          %669 = sbr.rel (%p667) target = $region68
        $region67: #{decoder_layer.1} parent=11 // pred_region
          _
        $region68: #{decoder_layer.1} parent=11 // pred_fallthru
          _
        // Predicated region
        $region69: #{decoder_layer.1} parent=11 // pred_check
          %p670 = pneg %p434
        $region70: #{decoder_layer.1} parent=11 // pred_check_branch
          %672 = sbr.rel (%p670) target = $region72
        $region71: #{decoder_layer.1} parent=11 // pred_region
          %s674 = ssub.s32 16, 16
          %675 = vsyncadd [#allocation15], %s674
          %s677 = sshll.u32 [#allocation14], 4
          %s678 = int_to_ptr.vmem [resolvable:$true] %s677
          %680 = dma.hbm_to_vmem [thread:$0]  %s17, 16, %s678, [#allocation15]
        $region72: #{decoder_layer.1} parent=11 // pred_fallthru
          _
        // Predicated region
        $region73: #{decoder_layer.1} parent=11 // pred_check
          %p681 = pneg %p455
        $region74: #{decoder_layer.1} parent=11 // pred_check_branch
          %683 = sbr.rel (%p681) target = $region76
        $region75: #{decoder_layer.1} parent=11 // pred_region
          %s685 = ssub.s32 16, 16
          %686 = vsyncadd [#allocation15], %s685
          %s688 = sshll.u32 [#allocation16], 4
          %s689 = int_to_ptr.vmem [resolvable:$true] %s688
          %691 = dma.hbm_to_vmem [thread:$0]  %s18, 16, %s689, [#allocation15]
        $region76: #{decoder_layer.1} parent=11 // pred_fallthru
          _
        // Predicated region
        $region77: #{decoder_layer.1} parent=11 // pred_check
          %p692 = pneg %p476
        $region78: #{decoder_layer.1} parent=11 // pred_check_branch
          %694 = sbr.rel (%p692) target = $region80
        $region79: #{decoder_layer.1} parent=11 // pred_region
          %s696 = ssub.s32 256, 256
          %697 = vsyncadd [#allocation18], %s696
          %s698 = sshll.u32 [#allocation17], 4
          %s699 = int_to_ptr.vmem [resolvable:$true] %s698
          %704 = dma.hbm_to_vmem [thread:$0]  %s19, 256, %s699, [#allocation18], 64, 64, 4
        $region80: #{decoder_layer.1} parent=11 // pred_fallthru
          _
        // Predicated region
        $region81: #{decoder_layer.1} parent=11 // pred_check
          %p705 = pneg %p497
        $region82: #{decoder_layer.1} parent=11 // pred_check_branch
          %707 = sbr.rel (%p705) target = $region84
        $region83: #{decoder_layer.1} parent=11 // pred_region
          %s709 = ssub.s32 16, 16
          %710 = vsyncadd [#allocation18], %s709
          %s712 = sshll.u32 [#allocation19], 4
          %s713 = int_to_ptr.vmem [resolvable:$true] %s712
          %715 = dma.hbm_to_vmem [thread:$0]  %s20, 16, %s713, [#allocation18]
        $region84: #{decoder_layer.1} parent=11 // pred_fallthru
          _
        // Predicated region
        $region85: #{decoder_layer.1} parent=11 // pred_check
          %p716 = pneg %p518
        $region86: #{decoder_layer.1} parent=11 // pred_check_branch
          %718 = sbr.rel (%p716) target = $region88
        $region87: #{decoder_layer.1} parent=11 // pred_region
          _
        $region88: #{decoder_layer.1} parent=11 // pred_fallthru
          _
        // Predicated region
        $region89: #{decoder_layer.1} parent=11 // pred_check
          %p719 = pneg %p539
        $region90: #{decoder_layer.1} parent=11 // pred_check_branch
          %721 = sbr.rel (%p719) target = $region92
        $region91: #{decoder_layer.1} parent=11 // pred_region
          %s723 = ssub.s32 16, 16
          %724 = vsyncadd [#allocation21], %s723
          %s726 = sshll.u32 [#allocation20], 4
          %s727 = int_to_ptr.vmem [resolvable:$true] %s726
          %729 = dma.hbm_to_vmem [thread:$0]  %s22, 16, %s727, [#allocation21]
        $region92: #{decoder_layer.1} parent=11 // pred_fallthru
          _
      $region12: #{decoder_layer.1} parent=5 // pred_fallthru
        _
      %p730 = scmp.lt.s32.totalorder %s41, 2
      // Predicated region
      $region93: #{decoder_layer.1} parent=5 // pred_check
        %p731 = pneg %p730
      $region94: #{decoder_layer.1} parent=5 // pred_check_branch
        %733 = sbr.rel (%p731) target = $region96
      $region95: #{decoder_layer.1} parent=5 // pred_region
        // Predicated region
        $region97: #{decoder_layer.1} parent=95 // pred_check
          %p734 = pneg %p61
        $region98: #{decoder_layer.1} parent=95 // pred_check_branch
          %736 = sbr.rel (%p734) target = $region100
        $region99: #{decoder_layer.1} parent=95 // pred_region
          %p737 = scmp.lt.s32.totalorder %s41, 1
          %s738 = scalar_select %p737, %s41, 1
          %s739 = smul.addr %s738, 8
          %s740 = scalar_lea.vmem %s0, %s739
        $region100: #{decoder_layer.1} parent=95 // pred_fallthru
          _
        // Predicated region
        $region101: #{decoder_layer.1} parent=95 // pred_check
          %p741 = pneg %p87
        $region102: #{decoder_layer.1} parent=95 // pred_check_branch
          %743 = sbr.rel (%p741) target = $region104
        $region103: #{decoder_layer.1} parent=95 // pred_region
          %p744 = scmp.lt.s32.totalorder %s41, 1
          %s745 = scalar_select %p744, %s41, 1
          %s746 = smul.addr %s745, 8
          %s747 = scalar_lea.vmem %s1, %s746
        $region104: #{decoder_layer.1} parent=95 // pred_fallthru
          _
        // Predicated region
        $region105: #{decoder_layer.1} parent=95 // pred_check
          %p748 = pneg %p113
        $region106: #{decoder_layer.1} parent=95 // pred_check_branch
          %750 = sbr.rel (%p748) target = $region108
        $region107: #{decoder_layer.1} parent=95 // pred_region
          %s751 = sand.u32 %s103, 1
          %s752 = scalar_lea.sflag [#allocation3], %s751
          %s753 = sand.u32 %s103, 1
          %s754 = scalar_lea.vmem [#allocation2], %s753
          %s756 = ssub.s32 16, 16
          %757 = vsyncadd %s752, %s756
          %s758 = smul.addr %s41, 16
          %s759 = scalar_lea.hbm %s2, %s758
          %s761 = sshll.u32 %s754, 4
          %s762 = int_to_ptr.vmem [resolvable:$true] %s761
          %764 = dma.hbm_to_vmem [thread:$0]  %s759, 16, %s762, %s752
        $region108: #{decoder_layer.1} parent=95 // pred_fallthru
          _
      $region96: #{decoder_layer.1} parent=5 // pred_fallthru
        _
      %p765 = scmp.le.s32.totalorder 1, %s41
      %p766 = scmp.lt.s32.totalorder %s41, 3
      %p767 = pnand %p765, %p766
      %p768 = pneg %p767
      // Predicated region
      $region109: #{decoder_layer.1} parent=5 // pred_check
        _
      $region110: #{decoder_layer.1} parent=5 // pred_check_branch
        %770 = sbr.rel (%p767) target = $region112
      $region111: #{decoder_layer.1} parent=5 // pred_region
        %s771 = ssub.s32 %s41, 1
        %s772 = sand.u32 %s106, 1
        %s773 = scalar_lea.sflag [#allocation3], %s772
        %s774 = sand.u32 %s106, 1
        %s775 = scalar_lea.vmem [#allocation2], %s774
        // Predicated region
        $region113: #{decoder_layer.1} parent=111 // pred_check
          %p776 = pneg %p119
        $region114: #{decoder_layer.1} parent=111 // pred_check_branch
          %778 = sbr.rel (%p776) target = $region116
        $region115: #{decoder_layer.1} parent=111 // pred_region
          %779 = dma.done %s773, 16
        $region116: #{decoder_layer.1} parent=111 // pred_fallthru
          _
        // Predicated region
        $region117: #{decoder_layer.1} parent=111 // pred_check
          %p780 = pneg %p140
        $region118: #{decoder_layer.1} parent=111 // pred_check_branch
          %782 = sbr.rel (%p780) target = $region120
        $region119: #{decoder_layer.1} parent=111 // pred_region
          %783 = dma.done [#allocation6], 16
        $region120: #{decoder_layer.1} parent=111 // pred_fallthru
          _
        // Predicated region
        $region121: #{decoder_layer.1} parent=111 // pred_check
          %p784 = pneg %p161
        $region122: #{decoder_layer.1} parent=111 // pred_check_branch
          %786 = sbr.rel (%p784) target = $region124
        $region123: #{decoder_layer.1} parent=111 // pred_region
          %787 = dma.done [#allocation6], 16
        $region124: #{decoder_layer.1} parent=111 // pred_fallthru
          _
        // Predicated region
        $region125: #{decoder_layer.1} parent=111 // pred_check
          %p788 = pneg %p203
        $region126: #{decoder_layer.1} parent=111 // pred_check_branch
          %790 = sbr.rel (%p788) target = $region128
        $region127: #{decoder_layer.1} parent=111 // pred_region
          %791 = dma.done [#allocation9], 16
        $region128: #{decoder_layer.1} parent=111 // pred_fallthru
          _
        // Predicated region
        $region129: #{decoder_layer.1} parent=111 // pred_check
          %p792 = pneg %p245
        $region130: #{decoder_layer.1} parent=111 // pred_check_branch
          %794 = sbr.rel (%p792) target = $region132
        $region131: #{decoder_layer.1} parent=111 // pred_region
          %795 = dma.done [#allocation9], 16
        $region132: #{decoder_layer.1} parent=111 // pred_fallthru
          _
        // Predicated region
        $region133: #{decoder_layer.1} parent=111 // pred_check
          %p796 = pneg %p266
        $region134: #{decoder_layer.1} parent=111 // pred_check_branch
          %798 = sbr.rel (%p796) target = $region136
        $region135: #{decoder_layer.1} parent=111 // pred_region
          %799 = dma.done [#allocation12], 16
        $region136: #{decoder_layer.1} parent=111 // pred_fallthru
          _
        // Predicated region
        $region137: #{decoder_layer.1} parent=111 // pred_check
          %p800 = pneg %p287
        $region138: #{decoder_layer.1} parent=111 // pred_check_branch
          %802 = sbr.rel (%p800) target = $region140
        $region139: #{decoder_layer.1} parent=111 // pred_region
          %803 = dma.done [#allocation12], 16
        $region140: #{decoder_layer.1} parent=111 // pred_fallthru
          _
        // Predicated region
        $region141: #{decoder_layer.1} parent=111 // pred_check
          %p804 = pneg %p434
        $region142: #{decoder_layer.1} parent=111 // pred_check_branch
          %806 = sbr.rel (%p804) target = $region144
        $region143: #{decoder_layer.1} parent=111 // pred_region
          %807 = dma.done [#allocation15], 16
        $region144: #{decoder_layer.1} parent=111 // pred_fallthru
          _
        // Predicated region
        $region145: #{decoder_layer.1} parent=111 // pred_check
          %p808 = pneg %p455
        $region146: #{decoder_layer.1} parent=111 // pred_check_branch
          %810 = sbr.rel (%p808) target = $region148
        $region147: #{decoder_layer.1} parent=111 // pred_region
          %811 = dma.done [#allocation15], 16
        $region148: #{decoder_layer.1} parent=111 // pred_fallthru
          _
        // Predicated region
        $region149: #{decoder_layer.1} parent=111 // pred_check
          %p812 = pneg %p476
        $region150: #{decoder_layer.1} parent=111 // pred_check_branch
          %814 = sbr.rel (%p812) target = $region152
        $region151: #{decoder_layer.1} parent=111 // pred_region
          %815 = dma.done [#allocation18], 256
        $region152: #{decoder_layer.1} parent=111 // pred_fallthru
          _
        // Predicated region
        $region153: #{decoder_layer.1} parent=111 // pred_check
          %p816 = pneg %p497
        $region154: #{decoder_layer.1} parent=111 // pred_check_branch
          %818 = sbr.rel (%p816) target = $region156
        $region155: #{decoder_layer.1} parent=111 // pred_region
          %819 = dma.done [#allocation18], 16
        $region156: #{decoder_layer.1} parent=111 // pred_fallthru
          _
        // Predicated region
        $region157: #{decoder_layer.1} parent=111 // pred_check
          %p820 = pneg %p539
        $region158: #{decoder_layer.1} parent=111 // pred_check_branch
          %822 = sbr.rel (%p820) target = $region160
        $region159: #{decoder_layer.1} parent=111 // pred_region
          %823 = dma.done [#allocation21], 16
        $region160: #{decoder_layer.1} parent=111 // pred_fallthru
          _
        %p824 = scmp.lt.s32.totalorder %s46, 1
        %s825 = scalar_select %p824, %s46, 1
        %s826 = smul.addr %s825, 8
        %s827 = scalar_lea.vmem %s0, %s826
        %p828 = pneg %p67
        %p829 = pneg %p64
        %p830 = scmp.lt.s32.totalorder %s46, 1
        %s831 = scalar_select %p830, %s46, 1
        %s832 = smul.addr %s831, 8
        %s833 = scalar_lea.vmem %s1, %s832
        %p834 = pneg %p93
        %p835 = pneg %p90
        %s836 = sand.u32 %s106, 1
        %s837 = scalar_lea.sflag [#allocation3], %s836
        %s838 = sand.u32 %s106, 1
        %s839 = scalar_lea.vmem [#allocation2], %s838
        %p840 = pneg %p119
        %p841 = pneg %p116
        %p842 = pneg %p140
        %p843 = pneg %p137
        %p844 = pneg %p161
        %p845 = pneg %p158
        %p846 = pneg %p182
        %p847 = pneg %p179
        %p848 = pneg %p203
        %p849 = pneg %p200
        %p850 = pneg %p224
        %p851 = pneg %p221
        %p852 = pneg %p245
        %p853 = pneg %p242
        %p854 = pneg %p266
        %p855 = pneg %p263
        %p856 = pneg %p287
        %p857 = pneg %p284
        %p858 = pneg %p308
        %p859 = pneg %p305
        %p860 = pneg %p329
        %p861 = pneg %p326
        %p862 = pneg %p350
        %p863 = pneg %p347
        %p864 = pneg %p371
        %p865 = pneg %p368
        %p866 = pneg %p392
        %p867 = pneg %p389
        %p868 = pneg %p413
        %p869 = pneg %p410
        %p870 = pneg %p434
        %p871 = pneg %p431
        %p872 = pneg %p455
        %p873 = pneg %p452
        %p874 = pneg %p476
        %p875 = pneg %p473
        %p876 = pneg %p497
        %p877 = pneg %p494
        %p878 = pneg %p518
        %p879 = pneg %p515
        %p880 = pneg %p539
        %p881 = pneg %p536
        %p882 = pneg %p565
        %p883 = pneg %p562
        %s884 = sand.u32 %s552, 1
        %s885 = scalar_lea.sflag [#allocation4], %s884
        %s886 = sand.u32 %s552, 1
        %s887 = smul.addr %s886, 8
        %s888 = scalar_lea.vmem [#allocation22], %s887
        %p889 = scmp.lt.s32.totalorder %s46, 1
        %s890 = scalar_select %p889, %s46, 1
        %s891 = smul.addr %s890, 8
        %s892 = scalar_lea.vmem %s0, %s891
        %p893 = scmp.lt.s32.totalorder %s46, 1
        %s894 = scalar_select %p893, %s46, 1
        %s895 = smul.addr %s894, 8
        %s896 = scalar_lea.vmem %s1, %s895
        %v898 = vld [vmem:[%s892] sm:$0xff]
        %v899 = vlaneseq
        %v900 = vshrl.u32 %v899, 7
        %v901 = vlaneseq
        %v902 = vand.u32 %v901, 127
        %vm903 = vcmp.le.s32.totalorder %v902, %v900
        %v904 = vsel %vm903, 0.0, -1e+09
        %v905 = vld [vmem:[%s775] sm:$0x1]
        %vm906 = vcmp.eq.f32.partialorder %v905, 0.0
        %v907 = vsel %vm906, -1e+09, 0.0
        %v908 = vld [vmem:[#allocation5] sm:$0x1]
        %v909 = vld [vmem:[#allocation7] sm:$0x1]
        %vm910 = vcmask 261120
        %v911 = vsel %vm910, %v898, 0.0
        %912 = vadd.xlane.f32.xlu0 %v911
        %v913 = vpop.xlane.xlu0 %912
        %v914 = vrcp.pop 32.0
        %v915 = vmul.f32 %v913, %v914
        %v916 = vsub.f32 %v898, %v915
        %v917 = vmul.f32 %v916, %v916
        %v918 = vsel %vm910, %v917, 0.0
        %919 = vadd.xlane.f32.xlu0 %v918
        %v920 = vpop.xlane.xlu0 %919
        %v921 = vmul.f32 %v920, 0.032258064
        %v922 = vrsqrt.pop %v921
        %v923 = vmul.f32 %v921, %v922
        %vm924 = vcmp.eq.f32.partialorder %v921, inf
        %v925 = vsel %vm924, %v921, %v923
        %vm926 = vcmp.eq.f32.partialorder %v921, 0.0
        %v927 = vand.u32 %v921, 2147483648
        %v928 = vsel %vm926, %v927, %v925
        %v929 = vadd.f32 %v928, 1e-06
        %v930 = vrcp.pop %v929
        %v931 = vmul.f32 1.0, %v930
        %v932 = vmul.f32 %v916, %v931
        %v934 = vlaneseq
        %v935 = vshrl.u32 %v934, 7
        %v936 = vsub.s32 0, %v935
        %v937 = vrot.slane %v908, %v936
        %v939 = vmul.f32 %v937, %v932
        %v941 = vlaneseq
        %v942 = vshrl.u32 %v941, 7
        %v943 = vsub.s32 0, %v942
        %v944 = vrot.slane %v909, %v943
        %v946 = vadd.f32 %v939, %v944
        %v947 = vpack.c.bf16 %v946, %v946
        %v948 = vld [vmem:[%s5] sm:$0xf]
        %v949 = vld [vmem:[%s5 + $0x4] sm:$0xf]
        %v950 = vld [vmem:[%s5 + $0x8] sm:$0xf]
        %v951 = vld [vmem:[%s5 + $0xc] sm:$0xf]
        %v952 = vld [vmem:[#allocation8] sm:$0x1]
        %v954 = vlaneseq
        %v955 = vshrl.u32 %v954, 7
        %v956 = vsub.s32 0, %v955
        %v957 = vrot.slane %v952, %v956
        %v963 = vunpack.c.l.b16 %v948
        %v964 = vunpack.c.l.b16 %v949
        %v965 = vunpack.c.l.b16 %v950
        %v966 = vunpack.c.l.b16 %v951
        %v967 = vpack.c.b16 %v964, %v963
        %v968 = vpack.c.b16 %v966, %v965
        %v972 = vsel %vm910, %v947, 0
        %974 = vmatprep.subr.bf16.mxu0 0
        %975 = vmatpush1.bf16.msra.mxu0 %v967
        %976 = vmatprep.subr.bf16.mxu0 0
        %977 = vmatpush1.bf16.msra.mxu0 %v968
        %978 = vmatprep.subr.bf16.mxu0 0
        %979 = vmatpush1.bf16.msra.mxu0 0
        %980 = vmatprep.subr.bf16.mxu0 0
        %981 = vmatpush1.bf16.msra.mxu0 0
        %982 = vmatprep.subr.bf16.mxu0 0
        %983 = vmatpush1.bf16.msra.mxu0 0
        %984 = vmatprep.subr.bf16.mxu0 0
        %985 = vmatpush1.bf16.msra.mxu0 0
        %986 = vmatprep.subr.bf16.mxu0 0
        %987 = vmatpush1.bf16.msra.mxu0 0
        %988 = vmatprep.subr.bf16.mxu0 0
        %989 = vmatpush1.bf16.msra.mxu0 0
        %990 = vmatprep.subr.bf16.mxu0 0
        %991 = vmatpush1.bf16.msra.mxu0 0
        %992 = vmatprep.subr.bf16.mxu0 0
        %993 = vmatpush1.bf16.msra.mxu0 0
        %994 = vmatprep.subr.bf16.mxu0 0
        %995 = vmatpush1.bf16.msra.mxu0 0
        %996 = vmatprep.subr.bf16.mxu0 0
        %997 = vmatpush1.bf16.msra.mxu0 0
        %998 = vmatprep.subr.bf16.mxu0 0
        %999 = vmatpush1.bf16.msra.mxu0 0
        %1000 = vmatprep.subr.bf16.mxu0 0
        %1001 = vmatpush1.bf16.msra.mxu0 0
        %1002 = vmatprep.subr.bf16.mxu0 0
        %1003 = vmatpush1.bf16.msra.mxu0 0
        %1004 = vmatprep.subr.bf16.mxu0 0
        %1005 = vmatpush1.bf16.msra.mxu0 0
        %1006 = vmatprep.mubr.bf16.mxu0 0
        %1007 = vmatmul.mubr.bf16.gmra.mrb[0].mxu0 %v972
        %v1008 = vpop.f32.mrb[0].mxu0
        %v1009 = vadd.f32 %v957, %v1008
        %v1010 = vpop.f32.mrb[0].mxu0
        %v1011 = vpop.f32.mrb[0].mxu0
        %v1012 = vpop.f32.mrb[0].mxu0
        %1013 = vdwg.mxu0
        %v1014 = vmul.f32 %v1009, 0.35355338
        %v1015 = vpack.c.bf16 %v1014, %v1014
        %v1016 = vpack.c.bf16 %v1009, %v1009
        %1018 = vrot.lane.b32.xlu0 %v1015, 120
        %v1019 = vpop.permute.xlu0 %1018
        %1020 = vrot.lane.b32.xlu0 %v1015, 112
        %v1021 = vpop.permute.xlu0 %1020
        %1022 = vrot.lane.b32.xlu0 %v1015, 104
        %v1023 = vpop.permute.xlu0 %1022
        %1025 = vrot.lane.b32.xlu0 %v1016, 120
        %v1026 = vpop.permute.xlu0 %1025
        %1027 = vrot.lane.b32.xlu0 %v1016, 112
        %v1028 = vpop.permute.xlu0 %1027
        %1029 = vrot.lane.b32.xlu0 %v1016, 104
        %v1030 = vpop.permute.xlu0 %1029
        %1031 = vrot.lane.b32.xlu0 %v1016, 96
        %v1032 = vpop.permute.xlu0 %1031
        %vm1033 = vcmask 64512
        %v1035 = vsel %vm1033, %v1015, 0
        %v1038 = vsel %vm1033, %v1032, 0
        %1040 = vmatprep.subr.bf16.mxu0 0
        %1041 = vmatpush1.bf16.xpose.msra.mxu0 %v1038
        %1042 = vmatprep.subr.bf16.mxu0 0
        %1043 = vmatpush1.bf16.xpose.msra.mxu0 0
        %1044 = vmatprep.subr.bf16.mxu0 0
        %1045 = vmatpush1.bf16.xpose.msra.mxu0 0
        %1046 = vmatprep.subr.bf16.mxu0 0
        %1047 = vmatpush1.bf16.xpose.msra.mxu0 0
        %1048 = vmatprep.subr.bf16.mxu0 0
        %1049 = vmatpush1.bf16.xpose.msra.mxu0 0
        %1050 = vmatprep.subr.bf16.mxu0 0
        %1051 = vmatpush1.bf16.xpose.msra.mxu0 0
        %1052 = vmatprep.subr.bf16.mxu0 0
        %1053 = vmatpush1.bf16.xpose.msra.mxu0 0
        %1054 = vmatprep.subr.bf16.mxu0 0
        %1055 = vmatpush1.bf16.xpose.msra.mxu0 0
        %1056 = vmatprep.subr.bf16.mxu0 0
        %1057 = vmatpush1.bf16.xpose.msra.mxu0 0
        %1058 = vmatprep.subr.bf16.mxu0 0
        %1059 = vmatpush1.bf16.xpose.msra.mxu0 0
        %1060 = vmatprep.subr.bf16.mxu0 0
        %1061 = vmatpush1.bf16.xpose.msra.mxu0 0
        %1062 = vmatprep.subr.bf16.mxu0 0
        %1063 = vmatpush1.bf16.xpose.msra.mxu0 0
        %1064 = vmatprep.subr.bf16.mxu0 0
        %1065 = vmatpush1.bf16.xpose.msra.mxu0 0
        %1066 = vmatprep.subr.bf16.mxu0 0
        %1067 = vmatpush1.bf16.xpose.msra.mxu0 0
        %1068 = vmatprep.subr.bf16.mxu0 0
        %1069 = vmatpush1.bf16.xpose.msra.mxu0 0
        %1070 = vmatprep.subr.bf16.mxu0 0
        %1071 = vmatpush1.bf16.xpose.msra.mxu0 0
        %1072 = vmatprep.mubr.bf16.mxu0 0
        %1073 = vmatmul.mubr.bf16.gmra.mrb[0].mxu0 %v1035
        %v1074 = vpop.f32.mrb[0].mxu0
        %v1075 = vadd.f32 %v904, %v1074
        %v1076 = vpop.f32.mrb[0].mxu0
        %v1077 = vpop.f32.mrb[0].mxu0
        %v1078 = vpop.f32.mrb[0].mxu0
        %1079 = vdwg.mxu0
        %1080 = vrot.lane.b32.xlu0 %v1026, 96
        %v1081 = vpop.permute.xlu0 %1080
        %v1083 = vsel %vm1033, %v1019, 0
        %v1086 = vsel %vm1033, %v1081, 0
        %1088 = vmatprep.subr.bf16.mxu0 0
        %1089 = vmatpush1.bf16.xpose.msra.mxu0 %v1086
        %1090 = vmatprep.subr.bf16.mxu0 0
        %1091 = vmatpush1.bf16.xpose.msra.mxu0 0
        %1092 = vmatprep.subr.bf16.mxu0 0
        %1093 = vmatpush1.bf16.xpose.msra.mxu0 0
        %1094 = vmatprep.subr.bf16.mxu0 0
        %1095 = vmatpush1.bf16.xpose.msra.mxu0 0
        %1096 = vmatprep.subr.bf16.mxu0 0
        %1097 = vmatpush1.bf16.xpose.msra.mxu0 0
        %1098 = vmatprep.subr.bf16.mxu0 0
        %1099 = vmatpush1.bf16.xpose.msra.mxu0 0
        %1100 = vmatprep.subr.bf16.mxu0 0
        %1101 = vmatpush1.bf16.xpose.msra.mxu0 0
        %1102 = vmatprep.subr.bf16.mxu0 0
        %1103 = vmatpush1.bf16.xpose.msra.mxu0 0
        %1104 = vmatprep.subr.bf16.mxu0 0
        %1105 = vmatpush1.bf16.xpose.msra.mxu0 0
        %1106 = vmatprep.subr.bf16.mxu0 0
        %1107 = vmatpush1.bf16.xpose.msra.mxu0 0
        %1108 = vmatprep.subr.bf16.mxu0 0
        %1109 = vmatpush1.bf16.xpose.msra.mxu0 0
        %1110 = vmatprep.subr.bf16.mxu0 0
        %1111 = vmatpush1.bf16.xpose.msra.mxu0 0
        %1112 = vmatprep.subr.bf16.mxu0 0
        %1113 = vmatpush1.bf16.xpose.msra.mxu0 0
        %1114 = vmatprep.subr.bf16.mxu0 0
        %1115 = vmatpush1.bf16.xpose.msra.mxu0 0
        %1116 = vmatprep.subr.bf16.mxu0 0
        %1117 = vmatpush1.bf16.xpose.msra.mxu0 0
        %1118 = vmatprep.subr.bf16.mxu0 0
        %1119 = vmatpush1.bf16.xpose.msra.mxu0 0
        %1120 = vmatprep.mubr.bf16.mxu0 0
        %1121 = vmatmul.mubr.bf16.gmra.mrb[0].mxu0 %v1083
        %v1122 = vpop.f32.mrb[0].mxu0
        %v1123 = vadd.f32 %v904, %v1122
        %v1124 = vpop.f32.mrb[0].mxu0
        %v1125 = vpop.f32.mrb[0].mxu0
        %v1126 = vpop.f32.mrb[0].mxu0
        %1127 = vdwg.mxu0
        %1128 = vrot.lane.b32.xlu0 %v1028, 96
        %v1129 = vpop.permute.xlu0 %1128
        %v1131 = vsel %vm1033, %v1021, 0
        %v1134 = vsel %vm1033, %v1129, 0
        %1136 = vmatprep.subr.bf16.mxu0 0
        %1137 = vmatpush1.bf16.xpose.msra.mxu0 %v1134
        %1138 = vmatprep.subr.bf16.mxu0 0
        %1139 = vmatpush1.bf16.xpose.msra.mxu0 0
        %1140 = vmatprep.subr.bf16.mxu0 0
        %1141 = vmatpush1.bf16.xpose.msra.mxu0 0
        %1142 = vmatprep.subr.bf16.mxu0 0
        %1143 = vmatpush1.bf16.xpose.msra.mxu0 0
        %1144 = vmatprep.subr.bf16.mxu0 0
        %1145 = vmatpush1.bf16.xpose.msra.mxu0 0
        %1146 = vmatprep.subr.bf16.mxu0 0
        %1147 = vmatpush1.bf16.xpose.msra.mxu0 0
        %1148 = vmatprep.subr.bf16.mxu0 0
        %1149 = vmatpush1.bf16.xpose.msra.mxu0 0
        %1150 = vmatprep.subr.bf16.mxu0 0
        %1151 = vmatpush1.bf16.xpose.msra.mxu0 0
        %1152 = vmatprep.subr.bf16.mxu0 0
        %1153 = vmatpush1.bf16.xpose.msra.mxu0 0
        %1154 = vmatprep.subr.bf16.mxu0 0
        %1155 = vmatpush1.bf16.xpose.msra.mxu0 0
        %1156 = vmatprep.subr.bf16.mxu0 0
        %1157 = vmatpush1.bf16.xpose.msra.mxu0 0
        %1158 = vmatprep.subr.bf16.mxu0 0
        %1159 = vmatpush1.bf16.xpose.msra.mxu0 0
        %1160 = vmatprep.subr.bf16.mxu0 0
        %1161 = vmatpush1.bf16.xpose.msra.mxu0 0
        %1162 = vmatprep.subr.bf16.mxu0 0
        %1163 = vmatpush1.bf16.xpose.msra.mxu0 0
        %1164 = vmatprep.subr.bf16.mxu0 0
        %1165 = vmatpush1.bf16.xpose.msra.mxu0 0
        %1166 = vmatprep.subr.bf16.mxu0 0
        %1167 = vmatpush1.bf16.xpose.msra.mxu0 0
        %1168 = vmatprep.mubr.bf16.mxu0 0
        %1169 = vmatmul.mubr.bf16.gmra.mrb[0].mxu0 %v1131
        %v1170 = vpop.f32.mrb[0].mxu0
        %v1171 = vadd.f32 %v904, %v1170
        %v1172 = vpop.f32.mrb[0].mxu0
        %v1173 = vpop.f32.mrb[0].mxu0
        %v1174 = vpop.f32.mrb[0].mxu0
        %1175 = vdwg.mxu0
        %1176 = vrot.lane.b32.xlu0 %v1030, 96
        %v1177 = vpop.permute.xlu0 %1176
        %v1179 = vsel %vm1033, %v1023, 0
        %v1182 = vsel %vm1033, %v1177, 0
        %1184 = vmatprep.subr.bf16.mxu0 0
        %1185 = vmatpush1.bf16.xpose.msra.mxu0 %v1182
        %1186 = vmatprep.subr.bf16.mxu0 0
        %1187 = vmatpush1.bf16.xpose.msra.mxu0 0
        %1188 = vmatprep.subr.bf16.mxu0 0
        %1189 = vmatpush1.bf16.xpose.msra.mxu0 0
        %1190 = vmatprep.subr.bf16.mxu0 0
        %1191 = vmatpush1.bf16.xpose.msra.mxu0 0
        %1192 = vmatprep.subr.bf16.mxu0 0
        %1193 = vmatpush1.bf16.xpose.msra.mxu0 0
        %1194 = vmatprep.subr.bf16.mxu0 0
        %1195 = vmatpush1.bf16.xpose.msra.mxu0 0
        %1196 = vmatprep.subr.bf16.mxu0 0
        %1197 = vmatpush1.bf16.xpose.msra.mxu0 0
        %1198 = vmatprep.subr.bf16.mxu0 0
        %1199 = vmatpush1.bf16.xpose.msra.mxu0 0
        %1200 = vmatprep.subr.bf16.mxu0 0
        %1201 = vmatpush1.bf16.xpose.msra.mxu0 0
        %1202 = vmatprep.subr.bf16.mxu0 0
        %1203 = vmatpush1.bf16.xpose.msra.mxu0 0
        %1204 = vmatprep.subr.bf16.mxu0 0
        %1205 = vmatpush1.bf16.xpose.msra.mxu0 0
        %1206 = vmatprep.subr.bf16.mxu0 0
        %1207 = vmatpush1.bf16.xpose.msra.mxu0 0
        %1208 = vmatprep.subr.bf16.mxu0 0
        %1209 = vmatpush1.bf16.xpose.msra.mxu0 0
        %1210 = vmatprep.subr.bf16.mxu0 0
        %1211 = vmatpush1.bf16.xpose.msra.mxu0 0
        %1212 = vmatprep.subr.bf16.mxu0 0
        %1213 = vmatpush1.bf16.xpose.msra.mxu0 0
        %1214 = vmatprep.subr.bf16.mxu0 0
        %1215 = vmatpush1.bf16.xpose.msra.mxu0 0
        %1216 = vmatprep.mubr.bf16.mxu0 0
        %1217 = vmatmul.mubr.bf16.gmra.mrb[0].mxu0 %v1179
        %v1218 = vpop.f32.mrb[0].mxu0
        %v1219 = vadd.f32 %v904, %v1218
        %v1220 = vpop.f32.mrb[0].mxu0
        %v1221 = vpop.f32.mrb[0].mxu0
        %v1222 = vpop.f32.mrb[0].mxu0
        %1223 = vdwg.mxu0
        %v1224 = vsel %vm1033, %v1075, -inf
        %1225 = vmax.xlane.f32.xlu0 %v1224
        %v1226 = vpop.xlane.xlu0 %1225
        %v1227 = vsel %vm1033, %v1123, -inf
        %1228 = vmax.xlane.f32.xlu0 %v1227
        %v1229 = vpop.xlane.xlu0 %1228
        %v1230 = vsel %vm1033, %v1171, -inf
        %1231 = vmax.xlane.f32.xlu0 %v1230
        %v1232 = vpop.xlane.xlu0 %1231
        %v1233 = vsel %vm1033, %v1219, -inf
        %1234 = vmax.xlane.f32.xlu0 %v1233
        %v1235 = vpop.xlane.xlu0 %1234
        %v1236 = vsub.f32 %v1075, %v1226
        %v1237 = vsub.f32 %v1123, %v1229
        %v1238 = vsub.f32 %v1171, %v1232
        %v1239 = vsub.f32 %v1219, %v1235
        %v1240 = vmul.f32 %v1236, 1.442695
        %v1241 = vpow.pop %v1240
        %v1242 = vmul.f32 %v1237, 1.442695
        %v1243 = vpow.pop %v1242
        %v1244 = vmul.f32 %v1238, 1.442695
        %v1245 = vpow.pop %v1244
        %v1246 = vmul.f32 %v1239, 1.442695
        %v1247 = vpow.pop %v1246
        %v1248 = vsel %vm1033, %v1241, 0.0
        %1249 = vadd.xlane.f32.xlu0 %v1248
        %v1250 = vpop.xlane.xlu0 %1249
        %v1251 = vsel %vm1033, %v1243, 0.0
        %1252 = vadd.xlane.f32.xlu0 %v1251
        %v1253 = vpop.xlane.xlu0 %1252
        %v1254 = vsel %vm1033, %v1245, 0.0
        %1255 = vadd.xlane.f32.xlu0 %v1254
        %v1256 = vpop.xlane.xlu0 %1255
        %v1257 = vsel %vm1033, %v1247, 0.0
        %1258 = vadd.xlane.f32.xlu0 %v1257
        %v1259 = vpop.xlane.xlu0 %1258
        %v1260 = vrcp.pop %v1250
        %v1261 = vrcp.pop %v1253
        %v1262 = vrcp.pop %v1256
        %v1263 = vrcp.pop %v1259
        %v1264 = vmul.f32 %v1241, %v1260
        %v1265 = vmul.f32 %v1243, %v1261
        %v1266 = vmul.f32 %v1245, %v1262
        %v1267 = vmul.f32 %v1247, %v1263
        %v1268 = vpack.c.bf16 %v1264, %v1264
        %v1269 = vpack.c.bf16 %v1265, %v1265
        %v1270 = vpack.c.bf16 %v1266, %v1266
        %v1271 = vpack.c.bf16 %v1267, %v1267
        %1272 = vrot.lane.b32.xlu0 %v1016, 64
        %v1273 = vpop.permute.xlu0 %1272
        %v1275 = vsel %vm1033, %v1268, 0
        %vm1277 = vcmask 1043456
        %v1279 = vsel %vm1277, %v1273, 0
        %1281 = vmatprep.subr.bf16.mxu0 0
        %1282 = vmatpush1.bf16.msra.mxu0 %v1279
        %1283 = vmatprep.subr.bf16.mxu0 0
        %1284 = vmatpush1.bf16.msra.mxu0 0
        %1285 = vmatprep.subr.bf16.mxu0 0
        %1286 = vmatpush1.bf16.msra.mxu0 0
        %1287 = vmatprep.subr.bf16.mxu0 0
        %1288 = vmatpush1.bf16.msra.mxu0 0
        %1289 = vmatprep.subr.bf16.mxu0 0
        %1290 = vmatpush1.bf16.msra.mxu0 0
        %1291 = vmatprep.subr.bf16.mxu0 0
        %1292 = vmatpush1.bf16.msra.mxu0 0
        %1293 = vmatprep.subr.bf16.mxu0 0
        %1294 = vmatpush1.bf16.msra.mxu0 0
        %1295 = vmatprep.subr.bf16.mxu0 0
        %1296 = vmatpush1.bf16.msra.mxu0 0
        %1297 = vmatprep.subr.bf16.mxu0 0
        %1298 = vmatpush1.bf16.msra.mxu0 0
        %1299 = vmatprep.subr.bf16.mxu0 0
        %1300 = vmatpush1.bf16.msra.mxu0 0
        %1301 = vmatprep.subr.bf16.mxu0 0
        %1302 = vmatpush1.bf16.msra.mxu0 0
        %1303 = vmatprep.subr.bf16.mxu0 0
        %1304 = vmatpush1.bf16.msra.mxu0 0
        %1305 = vmatprep.subr.bf16.mxu0 0
        %1306 = vmatpush1.bf16.msra.mxu0 0
        %1307 = vmatprep.subr.bf16.mxu0 0
        %1308 = vmatpush1.bf16.msra.mxu0 0
        %1309 = vmatprep.subr.bf16.mxu0 0
        %1310 = vmatpush1.bf16.msra.mxu0 0
        %1311 = vmatprep.subr.bf16.mxu0 0
        %1312 = vmatpush1.bf16.msra.mxu0 0
        %1313 = vmatprep.mubr.bf16.mxu0 0
        %1314 = vmatmul.mubr.bf16.gmra.mrb[0].mxu0 %v1275
        %v1315 = vpop.f32.mrb[0].mxu0
        %v1316 = vadd.f32 0.0, %v1315
        %v1317 = vpop.f32.mrb[0].mxu0
        %v1318 = vpop.f32.mrb[0].mxu0
        %v1319 = vpop.f32.mrb[0].mxu0
        %1320 = vdwg.mxu0
        %1321 = vrot.lane.b32.xlu0 %v1026, 64
        %v1322 = vpop.permute.xlu0 %1321
        %v1324 = vsel %vm1033, %v1269, 0
        %v1327 = vsel %vm1277, %v1322, 0
        %1329 = vmatprep.subr.bf16.mxu0 0
        %1330 = vmatpush1.bf16.msra.mxu0 %v1327
        %1331 = vmatprep.subr.bf16.mxu0 0
        %1332 = vmatpush1.bf16.msra.mxu0 0
        %1333 = vmatprep.subr.bf16.mxu0 0
        %1334 = vmatpush1.bf16.msra.mxu0 0
        %1335 = vmatprep.subr.bf16.mxu0 0
        %1336 = vmatpush1.bf16.msra.mxu0 0
        %1337 = vmatprep.subr.bf16.mxu0 0
        %1338 = vmatpush1.bf16.msra.mxu0 0
        %1339 = vmatprep.subr.bf16.mxu0 0
        %1340 = vmatpush1.bf16.msra.mxu0 0
        %1341 = vmatprep.subr.bf16.mxu0 0
        %1342 = vmatpush1.bf16.msra.mxu0 0
        %1343 = vmatprep.subr.bf16.mxu0 0
        %1344 = vmatpush1.bf16.msra.mxu0 0
        %1345 = vmatprep.subr.bf16.mxu0 0
        %1346 = vmatpush1.bf16.msra.mxu0 0
        %1347 = vmatprep.subr.bf16.mxu0 0
        %1348 = vmatpush1.bf16.msra.mxu0 0
        %1349 = vmatprep.subr.bf16.mxu0 0
        %1350 = vmatpush1.bf16.msra.mxu0 0
        %1351 = vmatprep.subr.bf16.mxu0 0
        %1352 = vmatpush1.bf16.msra.mxu0 0
        %1353 = vmatprep.subr.bf16.mxu0 0
        %1354 = vmatpush1.bf16.msra.mxu0 0
        %1355 = vmatprep.subr.bf16.mxu0 0
        %1356 = vmatpush1.bf16.msra.mxu0 0
        %1357 = vmatprep.subr.bf16.mxu0 0
        %1358 = vmatpush1.bf16.msra.mxu0 0
        %1359 = vmatprep.subr.bf16.mxu0 0
        %1360 = vmatpush1.bf16.msra.mxu0 0
        %1361 = vmatprep.mubr.bf16.mxu0 0
        %1362 = vmatmul.mubr.bf16.gmra.mrb[0].mxu0 %v1324
        %v1363 = vpop.f32.mrb[0].mxu0
        %v1364 = vadd.f32 0.0, %v1363
        %v1365 = vpop.f32.mrb[0].mxu0
        %v1366 = vpop.f32.mrb[0].mxu0
        %v1367 = vpop.f32.mrb[0].mxu0
        %1368 = vdwg.mxu0
        %1369 = vrot.lane.b32.xlu0 %v1028, 64
        %v1370 = vpop.permute.xlu0 %1369
        %v1372 = vsel %vm1033, %v1270, 0
        %v1375 = vsel %vm1277, %v1370, 0
        %1377 = vmatprep.subr.bf16.mxu0 0
        %1378 = vmatpush1.bf16.msra.mxu0 %v1375
        %1379 = vmatprep.subr.bf16.mxu0 0
        %1380 = vmatpush1.bf16.msra.mxu0 0
        %1381 = vmatprep.subr.bf16.mxu0 0
        %1382 = vmatpush1.bf16.msra.mxu0 0
        %1383 = vmatprep.subr.bf16.mxu0 0
        %1384 = vmatpush1.bf16.msra.mxu0 0
        %1385 = vmatprep.subr.bf16.mxu0 0
        %1386 = vmatpush1.bf16.msra.mxu0 0
        %1387 = vmatprep.subr.bf16.mxu0 0
        %1388 = vmatpush1.bf16.msra.mxu0 0
        %1389 = vmatprep.subr.bf16.mxu0 0
        %1390 = vmatpush1.bf16.msra.mxu0 0
        %1391 = vmatprep.subr.bf16.mxu0 0
        %1392 = vmatpush1.bf16.msra.mxu0 0
        %1393 = vmatprep.subr.bf16.mxu0 0
        %1394 = vmatpush1.bf16.msra.mxu0 0
        %1395 = vmatprep.subr.bf16.mxu0 0
        %1396 = vmatpush1.bf16.msra.mxu0 0
        %1397 = vmatprep.subr.bf16.mxu0 0
        %1398 = vmatpush1.bf16.msra.mxu0 0
        %1399 = vmatprep.subr.bf16.mxu0 0
        %1400 = vmatpush1.bf16.msra.mxu0 0
        %1401 = vmatprep.subr.bf16.mxu0 0
        %1402 = vmatpush1.bf16.msra.mxu0 0
        %1403 = vmatprep.subr.bf16.mxu0 0
        %1404 = vmatpush1.bf16.msra.mxu0 0
        %1405 = vmatprep.subr.bf16.mxu0 0
        %1406 = vmatpush1.bf16.msra.mxu0 0
        %1407 = vmatprep.subr.bf16.mxu0 0
        %1408 = vmatpush1.bf16.msra.mxu0 0
        %1409 = vmatprep.mubr.bf16.mxu0 0
        %1410 = vmatmul.mubr.bf16.gmra.mrb[0].mxu0 %v1372
        %v1411 = vpop.f32.mrb[0].mxu0
        %v1412 = vadd.f32 0.0, %v1411
        %v1413 = vpop.f32.mrb[0].mxu0
        %v1414 = vpop.f32.mrb[0].mxu0
        %v1415 = vpop.f32.mrb[0].mxu0
        %1416 = vdwg.mxu0
        %1417 = vrot.lane.b32.xlu0 %v1030, 64
        %v1418 = vpop.permute.xlu0 %1417
        %v1420 = vsel %vm1033, %v1271, 0
        %v1423 = vsel %vm1277, %v1418, 0
        %1425 = vmatprep.subr.bf16.mxu0 0
        %1426 = vmatpush1.bf16.msra.mxu0 %v1423
        %1427 = vmatprep.subr.bf16.mxu0 0
        %1428 = vmatpush1.bf16.msra.mxu0 0
        %1429 = vmatprep.subr.bf16.mxu0 0
        %1430 = vmatpush1.bf16.msra.mxu0 0
        %1431 = vmatprep.subr.bf16.mxu0 0
        %1432 = vmatpush1.bf16.msra.mxu0 0
        %1433 = vmatprep.subr.bf16.mxu0 0
        %1434 = vmatpush1.bf16.msra.mxu0 0
        %1435 = vmatprep.subr.bf16.mxu0 0
        %1436 = vmatpush1.bf16.msra.mxu0 0
        %1437 = vmatprep.subr.bf16.mxu0 0
        %1438 = vmatpush1.bf16.msra.mxu0 0
        %1439 = vmatprep.subr.bf16.mxu0 0
        %1440 = vmatpush1.bf16.msra.mxu0 0
        %1441 = vmatprep.subr.bf16.mxu0 0
        %1442 = vmatpush1.bf16.msra.mxu0 0
        %1443 = vmatprep.subr.bf16.mxu0 0
        %1444 = vmatpush1.bf16.msra.mxu0 0
        %1445 = vmatprep.subr.bf16.mxu0 0
        %1446 = vmatpush1.bf16.msra.mxu0 0
        %1447 = vmatprep.subr.bf16.mxu0 0
        %1448 = vmatpush1.bf16.msra.mxu0 0
        %1449 = vmatprep.subr.bf16.mxu0 0
        %1450 = vmatpush1.bf16.msra.mxu0 0
        %1451 = vmatprep.subr.bf16.mxu0 0
        %1452 = vmatpush1.bf16.msra.mxu0 0
        %1453 = vmatprep.subr.bf16.mxu0 0
        %1454 = vmatpush1.bf16.msra.mxu0 0
        %1455 = vmatprep.subr.bf16.mxu0 0
        %1456 = vmatpush1.bf16.msra.mxu0 0
        %1457 = vmatprep.mubr.bf16.mxu0 0
        %1458 = vmatmul.mubr.bf16.gmra.mrb[0].mxu0 %v1420
        %v1459 = vpop.f32.mrb[0].mxu0
        %v1460 = vadd.f32 0.0, %v1459
        %v1461 = vpop.f32.mrb[0].mxu0
        %v1462 = vpop.f32.mrb[0].mxu0
        %v1463 = vpop.f32.mrb[0].mxu0
        %1464 = vdwg.mxu0
        %v1465 = vld [vmem:[%s7] sm:$0xf]
        %v1466 = vld [vmem:[%s7 + $0x4] sm:$0xf]
        %v1467 = vld [vmem:[%s7 + $0x8] sm:$0xf]
        %v1468 = vld [vmem:[%s7 + $0xc] sm:$0xf]
        %v1469 = vld [vmem:[#allocation10] sm:$0x1]
        %v1470 = vpack.c.bf16 %v1316, %v1316
        %v1471 = vpack.c.bf16 %v1364, %v1364
        %v1472 = vpack.c.bf16 %v1412, %v1412
        %v1473 = vpack.c.bf16 %v1460, %v1460
        %v1475 = vsel %vm1033, %v1470, 0
        %v1478 = vsel %vm1277, %v1465, 0
        %1480 = vmatprep.subr.bf16.mxu0 0
        %1481 = vmatpush1.bf16.msra.mxu0 %v1478
        %1482 = vmatprep.subr.bf16.mxu0 0
        %1483 = vmatpush1.bf16.msra.mxu0 0
        %1484 = vmatprep.subr.bf16.mxu0 0
        %1485 = vmatpush1.bf16.msra.mxu0 0
        %1486 = vmatprep.subr.bf16.mxu0 0
        %1487 = vmatpush1.bf16.msra.mxu0 0
        %1488 = vmatprep.subr.bf16.mxu0 0
        %1489 = vmatpush1.bf16.msra.mxu0 0
        %1490 = vmatprep.subr.bf16.mxu0 0
        %1491 = vmatpush1.bf16.msra.mxu0 0
        %1492 = vmatprep.subr.bf16.mxu0 0
        %1493 = vmatpush1.bf16.msra.mxu0 0
        %1494 = vmatprep.subr.bf16.mxu0 0
        %1495 = vmatpush1.bf16.msra.mxu0 0
        %1496 = vmatprep.subr.bf16.mxu0 0
        %1497 = vmatpush1.bf16.msra.mxu0 0
        %1498 = vmatprep.subr.bf16.mxu0 0
        %1499 = vmatpush1.bf16.msra.mxu0 0
        %1500 = vmatprep.subr.bf16.mxu0 0
        %1501 = vmatpush1.bf16.msra.mxu0 0
        %1502 = vmatprep.subr.bf16.mxu0 0
        %1503 = vmatpush1.bf16.msra.mxu0 0
        %1504 = vmatprep.subr.bf16.mxu0 0
        %1505 = vmatpush1.bf16.msra.mxu0 0
        %1506 = vmatprep.subr.bf16.mxu0 0
        %1507 = vmatpush1.bf16.msra.mxu0 0
        %1508 = vmatprep.subr.bf16.mxu0 0
        %1509 = vmatpush1.bf16.msra.mxu0 0
        %1510 = vmatprep.subr.bf16.mxu0 0
        %1511 = vmatpush1.bf16.msra.mxu0 0
        %1512 = vmatprep.mubr.bf16.mxu0 0
        %1513 = vmatmul.mubr.bf16.gmra.mrb[0].mxu0 %v1475
        %v1514 = vpop.f32.mrb[0].mxu0
        %v1515 = vadd.f32 0.0, %v1514
        %v1516 = vpop.f32.mrb[0].mxu0
        %v1517 = vpop.f32.mrb[0].mxu0
        %v1518 = vpop.f32.mrb[0].mxu0
        %1519 = vdwg.mxu0
        %v1521 = vsel %vm1033, %v1471, 0
        %v1524 = vsel %vm1277, %v1466, 0
        %1526 = vmatprep.subr.bf16.mxu0 0
        %1527 = vmatpush1.bf16.msra.mxu0 %v1524
        %1528 = vmatprep.subr.bf16.mxu0 0
        %1529 = vmatpush1.bf16.msra.mxu0 0
        %1530 = vmatprep.subr.bf16.mxu0 0
        %1531 = vmatpush1.bf16.msra.mxu0 0
        %1532 = vmatprep.subr.bf16.mxu0 0
        %1533 = vmatpush1.bf16.msra.mxu0 0
        %1534 = vmatprep.subr.bf16.mxu0 0
        %1535 = vmatpush1.bf16.msra.mxu0 0
        %1536 = vmatprep.subr.bf16.mxu0 0
        %1537 = vmatpush1.bf16.msra.mxu0 0
        %1538 = vmatprep.subr.bf16.mxu0 0
        %1539 = vmatpush1.bf16.msra.mxu0 0
        %1540 = vmatprep.subr.bf16.mxu0 0
        %1541 = vmatpush1.bf16.msra.mxu0 0
        %1542 = vmatprep.subr.bf16.mxu0 0
        %1543 = vmatpush1.bf16.msra.mxu0 0
        %1544 = vmatprep.subr.bf16.mxu0 0
        %1545 = vmatpush1.bf16.msra.mxu0 0
        %1546 = vmatprep.subr.bf16.mxu0 0
        %1547 = vmatpush1.bf16.msra.mxu0 0
        %1548 = vmatprep.subr.bf16.mxu0 0
        %1549 = vmatpush1.bf16.msra.mxu0 0
        %1550 = vmatprep.subr.bf16.mxu0 0
        %1551 = vmatpush1.bf16.msra.mxu0 0
        %1552 = vmatprep.subr.bf16.mxu0 0
        %1553 = vmatpush1.bf16.msra.mxu0 0
        %1554 = vmatprep.subr.bf16.mxu0 0
        %1555 = vmatpush1.bf16.msra.mxu0 0
        %1556 = vmatprep.subr.bf16.mxu0 0
        %1557 = vmatpush1.bf16.msra.mxu0 0
        %1558 = vmatprep.mubr.bf16.mxu0 0
        %1559 = vmatmul.mubr.bf16.gmra.mrb[0].mxu0 %v1521
        %v1560 = vpop.f32.mrb[0].mxu0
        %v1561 = vadd.f32 0.0, %v1560
        %v1562 = vpop.f32.mrb[0].mxu0
        %v1563 = vpop.f32.mrb[0].mxu0
        %v1564 = vpop.f32.mrb[0].mxu0
        %1565 = vdwg.mxu0
        %v1567 = vsel %vm1033, %v1472, 0
        %v1570 = vsel %vm1277, %v1467, 0
        %1572 = vmatprep.subr.bf16.mxu0 0
        %1573 = vmatpush1.bf16.msra.mxu0 %v1570
        %1574 = vmatprep.subr.bf16.mxu0 0
        %1575 = vmatpush1.bf16.msra.mxu0 0
        %1576 = vmatprep.subr.bf16.mxu0 0
        %1577 = vmatpush1.bf16.msra.mxu0 0
        %1578 = vmatprep.subr.bf16.mxu0 0
        %1579 = vmatpush1.bf16.msra.mxu0 0
        %1580 = vmatprep.subr.bf16.mxu0 0
        %1581 = vmatpush1.bf16.msra.mxu0 0
        %1582 = vmatprep.subr.bf16.mxu0 0
        %1583 = vmatpush1.bf16.msra.mxu0 0
        %1584 = vmatprep.subr.bf16.mxu0 0
        %1585 = vmatpush1.bf16.msra.mxu0 0
        %1586 = vmatprep.subr.bf16.mxu0 0
        %1587 = vmatpush1.bf16.msra.mxu0 0
        %1588 = vmatprep.subr.bf16.mxu0 0
        %1589 = vmatpush1.bf16.msra.mxu0 0
        %1590 = vmatprep.subr.bf16.mxu0 0
        %1591 = vmatpush1.bf16.msra.mxu0 0
        %1592 = vmatprep.subr.bf16.mxu0 0
        %1593 = vmatpush1.bf16.msra.mxu0 0
        %1594 = vmatprep.subr.bf16.mxu0 0
        %1595 = vmatpush1.bf16.msra.mxu0 0
        %1596 = vmatprep.subr.bf16.mxu0 0
        %1597 = vmatpush1.bf16.msra.mxu0 0
        %1598 = vmatprep.subr.bf16.mxu0 0
        %1599 = vmatpush1.bf16.msra.mxu0 0
        %1600 = vmatprep.subr.bf16.mxu0 0
        %1601 = vmatpush1.bf16.msra.mxu0 0
        %1602 = vmatprep.subr.bf16.mxu0 0
        %1603 = vmatpush1.bf16.msra.mxu0 0
        %1604 = vmatprep.mubr.bf16.mxu0 0
        %1605 = vmatmul.mubr.bf16.gmra.mrb[0].mxu0 %v1567
        %v1606 = vpop.f32.mrb[0].mxu0
        %v1607 = vadd.f32 0.0, %v1606
        %v1608 = vpop.f32.mrb[0].mxu0
        %v1609 = vpop.f32.mrb[0].mxu0
        %v1610 = vpop.f32.mrb[0].mxu0
        %1611 = vdwg.mxu0
        %v1613 = vsel %vm1033, %v1473, 0
        %v1616 = vsel %vm1277, %v1468, 0
        %1618 = vmatprep.subr.bf16.mxu0 0
        %1619 = vmatpush1.bf16.msra.mxu0 %v1616
        %1620 = vmatprep.subr.bf16.mxu0 0
        %1621 = vmatpush1.bf16.msra.mxu0 0
        %1622 = vmatprep.subr.bf16.mxu0 0
        %1623 = vmatpush1.bf16.msra.mxu0 0
        %1624 = vmatprep.subr.bf16.mxu0 0
        %1625 = vmatpush1.bf16.msra.mxu0 0
        %1626 = vmatprep.subr.bf16.mxu0 0
        %1627 = vmatpush1.bf16.msra.mxu0 0
        %1628 = vmatprep.subr.bf16.mxu0 0
        %1629 = vmatpush1.bf16.msra.mxu0 0
        %1630 = vmatprep.subr.bf16.mxu0 0
        %1631 = vmatpush1.bf16.msra.mxu0 0
        %1632 = vmatprep.subr.bf16.mxu0 0
        %1633 = vmatpush1.bf16.msra.mxu0 0
        %1634 = vmatprep.subr.bf16.mxu0 0
        %1635 = vmatpush1.bf16.msra.mxu0 0
        %1636 = vmatprep.subr.bf16.mxu0 0
        %1637 = vmatpush1.bf16.msra.mxu0 0
        %1638 = vmatprep.subr.bf16.mxu0 0
        %1639 = vmatpush1.bf16.msra.mxu0 0
        %1640 = vmatprep.subr.bf16.mxu0 0
        %1641 = vmatpush1.bf16.msra.mxu0 0
        %1642 = vmatprep.subr.bf16.mxu0 0
        %1643 = vmatpush1.bf16.msra.mxu0 0
        %1644 = vmatprep.subr.bf16.mxu0 0
        %1645 = vmatpush1.bf16.msra.mxu0 0
        %1646 = vmatprep.subr.bf16.mxu0 0
        %1647 = vmatpush1.bf16.msra.mxu0 0
        %1648 = vmatprep.subr.bf16.mxu0 0
        %1649 = vmatpush1.bf16.msra.mxu0 0
        %1650 = vmatprep.mubr.bf16.mxu0 0
        %1651 = vmatmul.mubr.bf16.gmra.mrb[0].mxu0 %v1613
        %v1652 = vpop.f32.mrb[0].mxu0
        %v1653 = vadd.f32 0.0, %v1652
        %v1654 = vpop.f32.mrb[0].mxu0
        %v1655 = vpop.f32.mrb[0].mxu0
        %v1656 = vpop.f32.mrb[0].mxu0
        %1657 = vdwg.mxu0
        %v1658 = vsel %vm910, %v1515, 0.0
        %v1659 = vsel %vm910, %v1561, 0.0
        %v1660 = vadd.f32 %v1658, %v1659
        %v1661 = vsel %vm910, %v1607, 0.0
        %v1662 = vadd.f32 %v1660, %v1661
        %v1663 = vsel %vm910, %v1653, 0.0
        %v1664 = vadd.f32 %v1662, %v1663
        %v1666 = vlaneseq
        %v1667 = vshrl.u32 %v1666, 7
        %v1668 = vsub.s32 0, %v1667
        %v1669 = vrot.slane %v1469, %v1668
        %v1671 = vadd.f32 %v1664, %v1669
        %v1672 = vadd.f32 %v898, %v1671
        %v1673 = vld [vmem:[#allocation11] sm:$0x1]
        %v1674 = vld [vmem:[#allocation13] sm:$0x1]
        %v1675 = vsel %vm910, %v1672, 0.0
        %1676 = vadd.xlane.f32.xlu0 %v1675
        %v1677 = vpop.xlane.xlu0 %1676
        %v1678 = vmul.f32 %v1677, %v914
        %v1679 = vsub.f32 %v1672, %v1678
        %v1680 = vmul.f32 %v1679, %v1679
        %v1681 = vsel %vm910, %v1680, 0.0
        %1682 = vadd.xlane.f32.xlu0 %v1681
        %v1683 = vpop.xlane.xlu0 %1682
        %v1684 = vmul.f32 %v1683, 0.032258064
        %v1685 = vrsqrt.pop %v1684
        %v1686 = vmul.f32 %v1684, %v1685
        %vm1687 = vcmp.eq.f32.partialorder %v1684, inf
        %v1688 = vsel %vm1687, %v1684, %v1686
        %vm1689 = vcmp.eq.f32.partialorder %v1684, 0.0
        %v1690 = vand.u32 %v1684, 2147483648
        %v1691 = vsel %vm1689, %v1690, %v1688
        %v1692 = vadd.f32 %v1691, 1e-06
        %v1693 = vrcp.pop %v1692
        %v1694 = vmul.f32 1.0, %v1693
        %v1695 = vmul.f32 %v1679, %v1694
        %v1697 = vlaneseq
        %v1698 = vshrl.u32 %v1697, 7
        %v1699 = vsub.s32 0, %v1698
        %v1700 = vrot.slane %v1673, %v1699
        %v1702 = vmul.f32 %v1700, %v1695
        %v1704 = vlaneseq
        %v1705 = vshrl.u32 %v1704, 7
        %v1706 = vsub.s32 0, %v1705
        %v1707 = vrot.slane %v1674, %v1706
        %v1709 = vadd.f32 %v1702, %v1707
        %v1710 = vpack.c.bf16 %v1709, %v1709
        %v1711 = vld [vmem:[%s11] sm:$0xf]
        %v1712 = vld [vmem:[%s11 + $0x4] sm:$0xf]
        %v1713 = vld [vmem:[%s11 + $0x8] sm:$0xf]
        %v1714 = vld [vmem:[%s11 + $0xc] sm:$0xf]
        %v1715 = vld [vmem:[%s12] sm:$0x1]
        %v1717 = vlaneseq
        %v1718 = vshrl.u32 %v1717, 7
        %v1719 = vsub.s32 0, %v1718
        %v1720 = vrot.slane %v1715, %v1719
        %v1726 = vunpack.c.l.b16 %v1711
        %v1727 = vunpack.c.l.b16 %v1712
        %v1728 = vunpack.c.l.b16 %v1713
        %v1729 = vunpack.c.l.b16 %v1714
        %v1730 = vpack.c.b16 %v1727, %v1726
        %v1731 = vpack.c.b16 %v1729, %v1728
        %v1735 = vsel %vm910, %v1710, 0
        %1737 = vmatprep.subr.bf16.mxu0 0
        %1738 = vmatpush1.bf16.msra.mxu0 %v1730
        %1739 = vmatprep.subr.bf16.mxu0 0
        %1740 = vmatpush1.bf16.msra.mxu0 %v1731
        %1741 = vmatprep.subr.bf16.mxu0 0
        %1742 = vmatpush1.bf16.msra.mxu0 0
        %1743 = vmatprep.subr.bf16.mxu0 0
        %1744 = vmatpush1.bf16.msra.mxu0 0
        %1745 = vmatprep.subr.bf16.mxu0 0
        %1746 = vmatpush1.bf16.msra.mxu0 0
        %1747 = vmatprep.subr.bf16.mxu0 0
        %1748 = vmatpush1.bf16.msra.mxu0 0
        %1749 = vmatprep.subr.bf16.mxu0 0
        %1750 = vmatpush1.bf16.msra.mxu0 0
        %1751 = vmatprep.subr.bf16.mxu0 0
        %1752 = vmatpush1.bf16.msra.mxu0 0
        %1753 = vmatprep.subr.bf16.mxu0 0
        %1754 = vmatpush1.bf16.msra.mxu0 0
        %1755 = vmatprep.subr.bf16.mxu0 0
        %1756 = vmatpush1.bf16.msra.mxu0 0
        %1757 = vmatprep.subr.bf16.mxu0 0
        %1758 = vmatpush1.bf16.msra.mxu0 0
        %1759 = vmatprep.subr.bf16.mxu0 0
        %1760 = vmatpush1.bf16.msra.mxu0 0
        %1761 = vmatprep.subr.bf16.mxu0 0
        %1762 = vmatpush1.bf16.msra.mxu0 0
        %1763 = vmatprep.subr.bf16.mxu0 0
        %1764 = vmatpush1.bf16.msra.mxu0 0
        %1765 = vmatprep.subr.bf16.mxu0 0
        %1766 = vmatpush1.bf16.msra.mxu0 0
        %1767 = vmatprep.subr.bf16.mxu0 0
        %1768 = vmatpush1.bf16.msra.mxu0 0
        %1769 = vmatprep.mubr.bf16.mxu0 0
        %1770 = vmatmul.mubr.bf16.gmra.mrb[0].mxu0 %v1735
        %v1771 = vpop.f32.mrb[0].mxu0
        %v1772 = vadd.f32 %v1720, %v1771
        %v1773 = vpop.f32.mrb[0].mxu0
        %v1774 = vpop.f32.mrb[0].mxu0
        %v1775 = vpop.f32.mrb[0].mxu0
        %1776 = vdwg.mxu0
        %v1777 = vmul.f32 %v1772, 0.35355338
        %v1778 = vpack.c.bf16 %v1777, %v1777
        %v1779 = vld [vmem:[%s896] sm:$0xff]
        %v1780 = vpack.c.bf16 %v1779, %v1779
        %v1781 = vld [vmem:[%s13] sm:$0xf]
        %v1782 = vld [vmem:[%s13 + $0x4] sm:$0xf]
        %v1783 = vld [vmem:[%s13 + $0x8] sm:$0xf]
        %v1784 = vld [vmem:[%s13 + $0xc] sm:$0xf]
        %v1785 = vld [vmem:[%s14] sm:$0x1]
        %v1787 = vlaneseq
        %v1788 = vshrl.u32 %v1787, 7
        %v1789 = vsub.s32 0, %v1788
        %v1790 = vrot.slane %v1785, %v1789
        %v1796 = vunpack.c.l.b16 %v1781
        %v1797 = vunpack.c.l.b16 %v1782
        %v1798 = vunpack.c.l.b16 %v1783
        %v1799 = vunpack.c.l.b16 %v1784
        %v1800 = vpack.c.b16 %v1797, %v1796
        %v1801 = vpack.c.b16 %v1799, %v1798
        %v1805 = vsel %vm910, %v1780, 0
        %1807 = vmatprep.subr.bf16.mxu0 0
        %1808 = vmatpush1.bf16.msra.mxu0 %v1800
        %1809 = vmatprep.subr.bf16.mxu0 0
        %1810 = vmatpush1.bf16.msra.mxu0 %v1801
        %1811 = vmatprep.subr.bf16.mxu0 0
        %1812 = vmatpush1.bf16.msra.mxu0 0
        %1813 = vmatprep.subr.bf16.mxu0 0
        %1814 = vmatpush1.bf16.msra.mxu0 0
        %1815 = vmatprep.subr.bf16.mxu0 0
        %1816 = vmatpush1.bf16.msra.mxu0 0
        %1817 = vmatprep.subr.bf16.mxu0 0
        %1818 = vmatpush1.bf16.msra.mxu0 0
        %1819 = vmatprep.subr.bf16.mxu0 0
        %1820 = vmatpush1.bf16.msra.mxu0 0
        %1821 = vmatprep.subr.bf16.mxu0 0
        %1822 = vmatpush1.bf16.msra.mxu0 0
        %1823 = vmatprep.subr.bf16.mxu0 0
        %1824 = vmatpush1.bf16.msra.mxu0 0
        %1825 = vmatprep.subr.bf16.mxu0 0
        %1826 = vmatpush1.bf16.msra.mxu0 0
        %1827 = vmatprep.subr.bf16.mxu0 0
        %1828 = vmatpush1.bf16.msra.mxu0 0
        %1829 = vmatprep.subr.bf16.mxu0 0
        %1830 = vmatpush1.bf16.msra.mxu0 0
        %1831 = vmatprep.subr.bf16.mxu0 0
        %1832 = vmatpush1.bf16.msra.mxu0 0
        %1833 = vmatprep.subr.bf16.mxu0 0
        %1834 = vmatpush1.bf16.msra.mxu0 0
        %1835 = vmatprep.subr.bf16.mxu0 0
        %1836 = vmatpush1.bf16.msra.mxu0 0
        %1837 = vmatprep.subr.bf16.mxu0 0
        %1838 = vmatpush1.bf16.msra.mxu0 0
        %1839 = vmatprep.mubr.bf16.mxu0 0
        %1840 = vmatmul.mubr.bf16.gmra.mrb[0].mxu0 %v1805
        %v1841 = vpop.f32.mrb[0].mxu0
        %v1842 = vadd.f32 %v1790, %v1841
        %v1843 = vpop.f32.mrb[0].mxu0
        %v1844 = vpop.f32.mrb[0].mxu0
        %v1845 = vpop.f32.mrb[0].mxu0
        %1846 = vdwg.mxu0
        %v1847 = vpack.c.bf16 %v1842, %v1842
        %1849 = vrot.lane.b32.xlu0 %v1778, 120
        %v1850 = vpop.permute.xlu0 %1849
        %1851 = vrot.lane.b32.xlu0 %v1778, 112
        %v1852 = vpop.permute.xlu0 %1851
        %1853 = vrot.lane.b32.xlu0 %v1778, 104
        %v1854 = vpop.permute.xlu0 %1853
        %1856 = vrot.lane.b32.xlu0 %v1847, 120
        %v1857 = vpop.permute.xlu0 %1856
        %1858 = vrot.lane.b32.xlu0 %v1847, 112
        %v1859 = vpop.permute.xlu0 %1858
        %1860 = vrot.lane.b32.xlu0 %v1847, 104
        %v1861 = vpop.permute.xlu0 %1860
        %v1863 = vlaneseq
        %v1864 = vshrl.u32 %v1863, 7
        %v1865 = vsub.s32 0, %v1864
        %v1866 = vrot.slane %v907, %v1865
        %v1869 = vsel %vm1033, %v1778, 0
        %v1872 = vsel %vm1033, %v1847, 0
        %1874 = vmatprep.subr.bf16.mxu0 0
        %1875 = vmatpush1.bf16.xpose.msra.mxu0 %v1872
        %1876 = vmatprep.subr.bf16.mxu0 0
        %1877 = vmatpush1.bf16.xpose.msra.mxu0 0
        %1878 = vmatprep.subr.bf16.mxu0 0
        %1879 = vmatpush1.bf16.xpose.msra.mxu0 0
        %1880 = vmatprep.subr.bf16.mxu0 0
        %1881 = vmatpush1.bf16.xpose.msra.mxu0 0
        %1882 = vmatprep.subr.bf16.mxu0 0
        %1883 = vmatpush1.bf16.xpose.msra.mxu0 0
        %1884 = vmatprep.subr.bf16.mxu0 0
        %1885 = vmatpush1.bf16.xpose.msra.mxu0 0
        %1886 = vmatprep.subr.bf16.mxu0 0
        %1887 = vmatpush1.bf16.xpose.msra.mxu0 0
        %1888 = vmatprep.subr.bf16.mxu0 0
        %1889 = vmatpush1.bf16.xpose.msra.mxu0 0
        %1890 = vmatprep.subr.bf16.mxu0 0
        %1891 = vmatpush1.bf16.xpose.msra.mxu0 0
        %1892 = vmatprep.subr.bf16.mxu0 0
        %1893 = vmatpush1.bf16.xpose.msra.mxu0 0
        %1894 = vmatprep.subr.bf16.mxu0 0
        %1895 = vmatpush1.bf16.xpose.msra.mxu0 0
        %1896 = vmatprep.subr.bf16.mxu0 0
        %1897 = vmatpush1.bf16.xpose.msra.mxu0 0
        %1898 = vmatprep.subr.bf16.mxu0 0
        %1899 = vmatpush1.bf16.xpose.msra.mxu0 0
        %1900 = vmatprep.subr.bf16.mxu0 0
        %1901 = vmatpush1.bf16.xpose.msra.mxu0 0
        %1902 = vmatprep.subr.bf16.mxu0 0
        %1903 = vmatpush1.bf16.xpose.msra.mxu0 0
        %1904 = vmatprep.subr.bf16.mxu0 0
        %1905 = vmatpush1.bf16.xpose.msra.mxu0 0
        %1906 = vmatprep.mubr.bf16.mxu0 0
        %1907 = vmatmul.mubr.bf16.gmra.mrb[0].mxu0 %v1869
        %v1908 = vpop.f32.mrb[0].mxu0
        %v1909 = vadd.f32 %v1866, %v1908
        %v1910 = vpop.f32.mrb[0].mxu0
        %v1911 = vpop.f32.mrb[0].mxu0
        %v1912 = vpop.f32.mrb[0].mxu0
        %1913 = vdwg.mxu0
        %v1915 = vsel %vm1033, %v1850, 0
        %v1918 = vsel %vm1033, %v1857, 0
        %1920 = vmatprep.subr.bf16.mxu0 0
        %1921 = vmatpush1.bf16.xpose.msra.mxu0 %v1918
        %1922 = vmatprep.subr.bf16.mxu0 0
        %1923 = vmatpush1.bf16.xpose.msra.mxu0 0
        %1924 = vmatprep.subr.bf16.mxu0 0
        %1925 = vmatpush1.bf16.xpose.msra.mxu0 0
        %1926 = vmatprep.subr.bf16.mxu0 0
        %1927 = vmatpush1.bf16.xpose.msra.mxu0 0
        %1928 = vmatprep.subr.bf16.mxu0 0
        %1929 = vmatpush1.bf16.xpose.msra.mxu0 0
        %1930 = vmatprep.subr.bf16.mxu0 0
        %1931 = vmatpush1.bf16.xpose.msra.mxu0 0
        %1932 = vmatprep.subr.bf16.mxu0 0
        %1933 = vmatpush1.bf16.xpose.msra.mxu0 0
        %1934 = vmatprep.subr.bf16.mxu0 0
        %1935 = vmatpush1.bf16.xpose.msra.mxu0 0
        %1936 = vmatprep.subr.bf16.mxu0 0
        %1937 = vmatpush1.bf16.xpose.msra.mxu0 0
        %1938 = vmatprep.subr.bf16.mxu0 0
        %1939 = vmatpush1.bf16.xpose.msra.mxu0 0
        %1940 = vmatprep.subr.bf16.mxu0 0
        %1941 = vmatpush1.bf16.xpose.msra.mxu0 0
        %1942 = vmatprep.subr.bf16.mxu0 0
        %1943 = vmatpush1.bf16.xpose.msra.mxu0 0
        %1944 = vmatprep.subr.bf16.mxu0 0
        %1945 = vmatpush1.bf16.xpose.msra.mxu0 0
        %1946 = vmatprep.subr.bf16.mxu0 0
        %1947 = vmatpush1.bf16.xpose.msra.mxu0 0
        %1948 = vmatprep.subr.bf16.mxu0 0
        %1949 = vmatpush1.bf16.xpose.msra.mxu0 0
        %1950 = vmatprep.subr.bf16.mxu0 0
        %1951 = vmatpush1.bf16.xpose.msra.mxu0 0
        %1952 = vmatprep.mubr.bf16.mxu0 0
        %1953 = vmatmul.mubr.bf16.gmra.mrb[0].mxu0 %v1915
        %v1954 = vpop.f32.mrb[0].mxu0
        %v1955 = vadd.f32 %v1866, %v1954
        %v1956 = vpop.f32.mrb[0].mxu0
        %v1957 = vpop.f32.mrb[0].mxu0
        %v1958 = vpop.f32.mrb[0].mxu0
        %1959 = vdwg.mxu0
        %v1961 = vsel %vm1033, %v1852, 0
        %v1964 = vsel %vm1033, %v1859, 0
        %1966 = vmatprep.subr.bf16.mxu0 0
        %1967 = vmatpush1.bf16.xpose.msra.mxu0 %v1964
        %1968 = vmatprep.subr.bf16.mxu0 0
        %1969 = vmatpush1.bf16.xpose.msra.mxu0 0
        %1970 = vmatprep.subr.bf16.mxu0 0
        %1971 = vmatpush1.bf16.xpose.msra.mxu0 0
        %1972 = vmatprep.subr.bf16.mxu0 0
        %1973 = vmatpush1.bf16.xpose.msra.mxu0 0
        %1974 = vmatprep.subr.bf16.mxu0 0
        %1975 = vmatpush1.bf16.xpose.msra.mxu0 0
        %1976 = vmatprep.subr.bf16.mxu0 0
        %1977 = vmatpush1.bf16.xpose.msra.mxu0 0
        %1978 = vmatprep.subr.bf16.mxu0 0
        %1979 = vmatpush1.bf16.xpose.msra.mxu0 0
        %1980 = vmatprep.subr.bf16.mxu0 0
        %1981 = vmatpush1.bf16.xpose.msra.mxu0 0
        %1982 = vmatprep.subr.bf16.mxu0 0
        %1983 = vmatpush1.bf16.xpose.msra.mxu0 0
        %1984 = vmatprep.subr.bf16.mxu0 0
        %1985 = vmatpush1.bf16.xpose.msra.mxu0 0
        %1986 = vmatprep.subr.bf16.mxu0 0
        %1987 = vmatpush1.bf16.xpose.msra.mxu0 0
        %1988 = vmatprep.subr.bf16.mxu0 0
        %1989 = vmatpush1.bf16.xpose.msra.mxu0 0
        %1990 = vmatprep.subr.bf16.mxu0 0
        %1991 = vmatpush1.bf16.xpose.msra.mxu0 0
        %1992 = vmatprep.subr.bf16.mxu0 0
        %1993 = vmatpush1.bf16.xpose.msra.mxu0 0
        %1994 = vmatprep.subr.bf16.mxu0 0
        %1995 = vmatpush1.bf16.xpose.msra.mxu0 0
        %1996 = vmatprep.subr.bf16.mxu0 0
        %1997 = vmatpush1.bf16.xpose.msra.mxu0 0
        %1998 = vmatprep.mubr.bf16.mxu0 0
        %1999 = vmatmul.mubr.bf16.gmra.mrb[0].mxu0 %v1961
        %v2000 = vpop.f32.mrb[0].mxu0
        %v2001 = vadd.f32 %v1866, %v2000
        %v2002 = vpop.f32.mrb[0].mxu0
        %v2003 = vpop.f32.mrb[0].mxu0
        %v2004 = vpop.f32.mrb[0].mxu0
        %2005 = vdwg.mxu0
        %v2007 = vsel %vm1033, %v1854, 0
        %v2010 = vsel %vm1033, %v1861, 0
        %2012 = vmatprep.subr.bf16.mxu0 0
        %2013 = vmatpush1.bf16.xpose.msra.mxu0 %v2010
        %2014 = vmatprep.subr.bf16.mxu0 0
        %2015 = vmatpush1.bf16.xpose.msra.mxu0 0
        %2016 = vmatprep.subr.bf16.mxu0 0
        %2017 = vmatpush1.bf16.xpose.msra.mxu0 0
        %2018 = vmatprep.subr.bf16.mxu0 0
        %2019 = vmatpush1.bf16.xpose.msra.mxu0 0
        %2020 = vmatprep.subr.bf16.mxu0 0
        %2021 = vmatpush1.bf16.xpose.msra.mxu0 0
        %2022 = vmatprep.subr.bf16.mxu0 0
        %2023 = vmatpush1.bf16.xpose.msra.mxu0 0
        %2024 = vmatprep.subr.bf16.mxu0 0
        %2025 = vmatpush1.bf16.xpose.msra.mxu0 0
        %2026 = vmatprep.subr.bf16.mxu0 0
        %2027 = vmatpush1.bf16.xpose.msra.mxu0 0
        %2028 = vmatprep.subr.bf16.mxu0 0
        %2029 = vmatpush1.bf16.xpose.msra.mxu0 0
        %2030 = vmatprep.subr.bf16.mxu0 0
        %2031 = vmatpush1.bf16.xpose.msra.mxu0 0
        %2032 = vmatprep.subr.bf16.mxu0 0
        %2033 = vmatpush1.bf16.xpose.msra.mxu0 0
        %2034 = vmatprep.subr.bf16.mxu0 0
        %2035 = vmatpush1.bf16.xpose.msra.mxu0 0
        %2036 = vmatprep.subr.bf16.mxu0 0
        %2037 = vmatpush1.bf16.xpose.msra.mxu0 0
        %2038 = vmatprep.subr.bf16.mxu0 0
        %2039 = vmatpush1.bf16.xpose.msra.mxu0 0
        %2040 = vmatprep.subr.bf16.mxu0 0
        %2041 = vmatpush1.bf16.xpose.msra.mxu0 0
        %2042 = vmatprep.subr.bf16.mxu0 0
        %2043 = vmatpush1.bf16.xpose.msra.mxu0 0
        %2044 = vmatprep.mubr.bf16.mxu0 0
        %2045 = vmatmul.mubr.bf16.gmra.mrb[0].mxu0 %v2007
        %v2046 = vpop.f32.mrb[0].mxu0
        %v2047 = vadd.f32 %v1866, %v2046
        %v2048 = vpop.f32.mrb[0].mxu0
        %v2049 = vpop.f32.mrb[0].mxu0
        %v2050 = vpop.f32.mrb[0].mxu0
        %2051 = vdwg.mxu0
        %v2052 = vsel %vm1033, %v1909, -inf
        %2053 = vmax.xlane.f32.xlu0 %v2052
        %v2054 = vpop.xlane.xlu0 %2053
        %v2055 = vsel %vm1033, %v1955, -inf
        %2056 = vmax.xlane.f32.xlu0 %v2055
        %v2057 = vpop.xlane.xlu0 %2056
        %v2058 = vsel %vm1033, %v2001, -inf
        %2059 = vmax.xlane.f32.xlu0 %v2058
        %v2060 = vpop.xlane.xlu0 %2059
        %v2061 = vsel %vm1033, %v2047, -inf
        %2062 = vmax.xlane.f32.xlu0 %v2061
        %v2063 = vpop.xlane.xlu0 %2062
        %v2064 = vsub.f32 %v1909, %v2054
        %v2065 = vsub.f32 %v1955, %v2057
        %v2066 = vsub.f32 %v2001, %v2060
        %v2067 = vsub.f32 %v2047, %v2063
        %v2068 = vmul.f32 %v2064, 1.442695
        %v2069 = vpow.pop %v2068
        %v2070 = vmul.f32 %v2065, 1.442695
        %v2071 = vpow.pop %v2070
        %v2072 = vmul.f32 %v2066, 1.442695
        %v2073 = vpow.pop %v2072
        %v2074 = vmul.f32 %v2067, 1.442695
        %v2075 = vpow.pop %v2074
        %v2076 = vsel %vm1033, %v2069, 0.0
        %2077 = vadd.xlane.f32.xlu0 %v2076
        %v2078 = vpop.xlane.xlu0 %2077
        %v2079 = vsel %vm1033, %v2071, 0.0
        %2080 = vadd.xlane.f32.xlu0 %v2079
        %v2081 = vpop.xlane.xlu0 %2080
        %v2082 = vsel %vm1033, %v2073, 0.0
        %2083 = vadd.xlane.f32.xlu0 %v2082
        %v2084 = vpop.xlane.xlu0 %2083
        %v2085 = vsel %vm1033, %v2075, 0.0
        %2086 = vadd.xlane.f32.xlu0 %v2085
        %v2087 = vpop.xlane.xlu0 %2086
        %v2088 = vrcp.pop %v2078
        %v2089 = vrcp.pop %v2081
        %v2090 = vrcp.pop %v2084
        %v2091 = vrcp.pop %v2087
        %v2092 = vmul.f32 %v2069, %v2088
        %v2093 = vmul.f32 %v2071, %v2089
        %v2094 = vmul.f32 %v2073, %v2090
        %v2095 = vmul.f32 %v2075, %v2091
        %v2096 = vpack.c.bf16 %v2092, %v2092
        %v2097 = vpack.c.bf16 %v2093, %v2093
        %v2098 = vpack.c.bf16 %v2094, %v2094
        %v2099 = vpack.c.bf16 %v2095, %v2095
        %2100 = vrot.lane.b32.xlu0 %v1847, 96
        %v2101 = vpop.permute.xlu0 %2100
        %v2103 = vsel %vm1033, %v2096, 0
        %v2106 = vsel %vm1277, %v2101, 0
        %2108 = vmatprep.subr.bf16.mxu0 0
        %2109 = vmatpush1.bf16.msra.mxu0 %v2106
        %2110 = vmatprep.subr.bf16.mxu0 0
        %2111 = vmatpush1.bf16.msra.mxu0 0
        %2112 = vmatprep.subr.bf16.mxu0 0
        %2113 = vmatpush1.bf16.msra.mxu0 0
        %2114 = vmatprep.subr.bf16.mxu0 0
        %2115 = vmatpush1.bf16.msra.mxu0 0
        %2116 = vmatprep.subr.bf16.mxu0 0
        %2117 = vmatpush1.bf16.msra.mxu0 0
        %2118 = vmatprep.subr.bf16.mxu0 0
        %2119 = vmatpush1.bf16.msra.mxu0 0
        %2120 = vmatprep.subr.bf16.mxu0 0
        %2121 = vmatpush1.bf16.msra.mxu0 0
        %2122 = vmatprep.subr.bf16.mxu0 0
        %2123 = vmatpush1.bf16.msra.mxu0 0
        %2124 = vmatprep.subr.bf16.mxu0 0
        %2125 = vmatpush1.bf16.msra.mxu0 0
        %2126 = vmatprep.subr.bf16.mxu0 0
        %2127 = vmatpush1.bf16.msra.mxu0 0
        %2128 = vmatprep.subr.bf16.mxu0 0
        %2129 = vmatpush1.bf16.msra.mxu0 0
        %2130 = vmatprep.subr.bf16.mxu0 0
        %2131 = vmatpush1.bf16.msra.mxu0 0
        %2132 = vmatprep.subr.bf16.mxu0 0
        %2133 = vmatpush1.bf16.msra.mxu0 0
        %2134 = vmatprep.subr.bf16.mxu0 0
        %2135 = vmatpush1.bf16.msra.mxu0 0
        %2136 = vmatprep.subr.bf16.mxu0 0
        %2137 = vmatpush1.bf16.msra.mxu0 0
        %2138 = vmatprep.subr.bf16.mxu0 0
        %2139 = vmatpush1.bf16.msra.mxu0 0
        %2140 = vmatprep.mubr.bf16.mxu0 0
        %2141 = vmatmul.mubr.bf16.gmra.mrb[0].mxu0 %v2103
        %v2142 = vpop.f32.mrb[0].mxu0
        %v2143 = vadd.f32 0.0, %v2142
        %v2144 = vpop.f32.mrb[0].mxu0
        %v2145 = vpop.f32.mrb[0].mxu0
        %v2146 = vpop.f32.mrb[0].mxu0
        %2147 = vdwg.mxu0
        %2148 = vrot.lane.b32.xlu0 %v1857, 96
        %v2149 = vpop.permute.xlu0 %2148
        %v2151 = vsel %vm1033, %v2097, 0
        %v2154 = vsel %vm1277, %v2149, 0
        %2156 = vmatprep.subr.bf16.mxu0 0
        %2157 = vmatpush1.bf16.msra.mxu0 %v2154
        %2158 = vmatprep.subr.bf16.mxu0 0
        %2159 = vmatpush1.bf16.msra.mxu0 0
        %2160 = vmatprep.subr.bf16.mxu0 0
        %2161 = vmatpush1.bf16.msra.mxu0 0
        %2162 = vmatprep.subr.bf16.mxu0 0
        %2163 = vmatpush1.bf16.msra.mxu0 0
        %2164 = vmatprep.subr.bf16.mxu0 0
        %2165 = vmatpush1.bf16.msra.mxu0 0
        %2166 = vmatprep.subr.bf16.mxu0 0
        %2167 = vmatpush1.bf16.msra.mxu0 0
        %2168 = vmatprep.subr.bf16.mxu0 0
        %2169 = vmatpush1.bf16.msra.mxu0 0
        %2170 = vmatprep.subr.bf16.mxu0 0
        %2171 = vmatpush1.bf16.msra.mxu0 0
        %2172 = vmatprep.subr.bf16.mxu0 0
        %2173 = vmatpush1.bf16.msra.mxu0 0
        %2174 = vmatprep.subr.bf16.mxu0 0
        %2175 = vmatpush1.bf16.msra.mxu0 0
        %2176 = vmatprep.subr.bf16.mxu0 0
        %2177 = vmatpush1.bf16.msra.mxu0 0
        %2178 = vmatprep.subr.bf16.mxu0 0
        %2179 = vmatpush1.bf16.msra.mxu0 0
        %2180 = vmatprep.subr.bf16.mxu0 0
        %2181 = vmatpush1.bf16.msra.mxu0 0
        %2182 = vmatprep.subr.bf16.mxu0 0
        %2183 = vmatpush1.bf16.msra.mxu0 0
        %2184 = vmatprep.subr.bf16.mxu0 0
        %2185 = vmatpush1.bf16.msra.mxu0 0
        %2186 = vmatprep.subr.bf16.mxu0 0
        %2187 = vmatpush1.bf16.msra.mxu0 0
        %2188 = vmatprep.mubr.bf16.mxu0 0
        %2189 = vmatmul.mubr.bf16.gmra.mrb[0].mxu0 %v2151
        %v2190 = vpop.f32.mrb[0].mxu0
        %v2191 = vadd.f32 0.0, %v2190
        %v2192 = vpop.f32.mrb[0].mxu0
        %v2193 = vpop.f32.mrb[0].mxu0
        %v2194 = vpop.f32.mrb[0].mxu0
        %2195 = vdwg.mxu0
        %2196 = vrot.lane.b32.xlu0 %v1859, 96
        %v2197 = vpop.permute.xlu0 %2196
        %v2199 = vsel %vm1033, %v2098, 0
        %v2202 = vsel %vm1277, %v2197, 0
        %2204 = vmatprep.subr.bf16.mxu0 0
        %2205 = vmatpush1.bf16.msra.mxu0 %v2202
        %2206 = vmatprep.subr.bf16.mxu0 0
        %2207 = vmatpush1.bf16.msra.mxu0 0
        %2208 = vmatprep.subr.bf16.mxu0 0
        %2209 = vmatpush1.bf16.msra.mxu0 0
        %2210 = vmatprep.subr.bf16.mxu0 0
        %2211 = vmatpush1.bf16.msra.mxu0 0
        %2212 = vmatprep.subr.bf16.mxu0 0
        %2213 = vmatpush1.bf16.msra.mxu0 0
        %2214 = vmatprep.subr.bf16.mxu0 0
        %2215 = vmatpush1.bf16.msra.mxu0 0
        %2216 = vmatprep.subr.bf16.mxu0 0
        %2217 = vmatpush1.bf16.msra.mxu0 0
        %2218 = vmatprep.subr.bf16.mxu0 0
        %2219 = vmatpush1.bf16.msra.mxu0 0
        %2220 = vmatprep.subr.bf16.mxu0 0
        %2221 = vmatpush1.bf16.msra.mxu0 0
        %2222 = vmatprep.subr.bf16.mxu0 0
        %2223 = vmatpush1.bf16.msra.mxu0 0
        %2224 = vmatprep.subr.bf16.mxu0 0
        %2225 = vmatpush1.bf16.msra.mxu0 0
        %2226 = vmatprep.subr.bf16.mxu0 0
        %2227 = vmatpush1.bf16.msra.mxu0 0
        %2228 = vmatprep.subr.bf16.mxu0 0
        %2229 = vmatpush1.bf16.msra.mxu0 0
        %2230 = vmatprep.subr.bf16.mxu0 0
        %2231 = vmatpush1.bf16.msra.mxu0 0
        %2232 = vmatprep.subr.bf16.mxu0 0
        %2233 = vmatpush1.bf16.msra.mxu0 0
        %2234 = vmatprep.subr.bf16.mxu0 0
        %2235 = vmatpush1.bf16.msra.mxu0 0
        %2236 = vmatprep.mubr.bf16.mxu0 0
        %2237 = vmatmul.mubr.bf16.gmra.mrb[0].mxu0 %v2199
        %v2238 = vpop.f32.mrb[0].mxu0
        %v2239 = vadd.f32 0.0, %v2238
        %v2240 = vpop.f32.mrb[0].mxu0
        %v2241 = vpop.f32.mrb[0].mxu0
        %v2242 = vpop.f32.mrb[0].mxu0
        %2243 = vdwg.mxu0
        %2244 = vrot.lane.b32.xlu0 %v1861, 96
        %v2245 = vpop.permute.xlu0 %2244
        %v2247 = vsel %vm1033, %v2099, 0
        %v2250 = vsel %vm1277, %v2245, 0
        %2252 = vmatprep.subr.bf16.mxu0 0
        %2253 = vmatpush1.bf16.msra.mxu0 %v2250
        %2254 = vmatprep.subr.bf16.mxu0 0
        %2255 = vmatpush1.bf16.msra.mxu0 0
        %2256 = vmatprep.subr.bf16.mxu0 0
        %2257 = vmatpush1.bf16.msra.mxu0 0
        %2258 = vmatprep.subr.bf16.mxu0 0
        %2259 = vmatpush1.bf16.msra.mxu0 0
        %2260 = vmatprep.subr.bf16.mxu0 0
        %2261 = vmatpush1.bf16.msra.mxu0 0
        %2262 = vmatprep.subr.bf16.mxu0 0
        %2263 = vmatpush1.bf16.msra.mxu0 0
        %2264 = vmatprep.subr.bf16.mxu0 0
        %2265 = vmatpush1.bf16.msra.mxu0 0
        %2266 = vmatprep.subr.bf16.mxu0 0
        %2267 = vmatpush1.bf16.msra.mxu0 0
        %2268 = vmatprep.subr.bf16.mxu0 0
        %2269 = vmatpush1.bf16.msra.mxu0 0
        %2270 = vmatprep.subr.bf16.mxu0 0
        %2271 = vmatpush1.bf16.msra.mxu0 0
        %2272 = vmatprep.subr.bf16.mxu0 0
        %2273 = vmatpush1.bf16.msra.mxu0 0
        %2274 = vmatprep.subr.bf16.mxu0 0
        %2275 = vmatpush1.bf16.msra.mxu0 0
        %2276 = vmatprep.subr.bf16.mxu0 0
        %2277 = vmatpush1.bf16.msra.mxu0 0
        %2278 = vmatprep.subr.bf16.mxu0 0
        %2279 = vmatpush1.bf16.msra.mxu0 0
        %2280 = vmatprep.subr.bf16.mxu0 0
        %2281 = vmatpush1.bf16.msra.mxu0 0
        %2282 = vmatprep.subr.bf16.mxu0 0
        %2283 = vmatpush1.bf16.msra.mxu0 0
        %2284 = vmatprep.mubr.bf16.mxu0 0
        %2285 = vmatmul.mubr.bf16.gmra.mrb[0].mxu0 %v2247
        %v2286 = vpop.f32.mrb[0].mxu0
        %v2287 = vadd.f32 0.0, %v2286
        %v2288 = vpop.f32.mrb[0].mxu0
        %v2289 = vpop.f32.mrb[0].mxu0
        %v2290 = vpop.f32.mrb[0].mxu0
        %2291 = vdwg.mxu0
        %v2292 = vld [vmem:[%s15] sm:$0xf]
        %v2293 = vld [vmem:[%s15 + $0x4] sm:$0xf]
        %v2294 = vld [vmem:[%s15 + $0x8] sm:$0xf]
        %v2295 = vld [vmem:[%s15 + $0xc] sm:$0xf]
        %v2296 = vld [vmem:[%s16] sm:$0x1]
        %v2297 = vpack.c.bf16 %v2143, %v2143
        %v2298 = vpack.c.bf16 %v2191, %v2191
        %v2299 = vpack.c.bf16 %v2239, %v2239
        %v2300 = vpack.c.bf16 %v2287, %v2287
        %v2302 = vsel %vm1033, %v2297, 0
        %v2305 = vsel %vm1277, %v2292, 0
        %2307 = vmatprep.subr.bf16.mxu0 0
        %2308 = vmatpush1.bf16.msra.mxu0 %v2305
        %2309 = vmatprep.subr.bf16.mxu0 0
        %2310 = vmatpush1.bf16.msra.mxu0 0
        %2311 = vmatprep.subr.bf16.mxu0 0
        %2312 = vmatpush1.bf16.msra.mxu0 0
        %2313 = vmatprep.subr.bf16.mxu0 0
        %2314 = vmatpush1.bf16.msra.mxu0 0
        %2315 = vmatprep.subr.bf16.mxu0 0
        %2316 = vmatpush1.bf16.msra.mxu0 0
        %2317 = vmatprep.subr.bf16.mxu0 0
        %2318 = vmatpush1.bf16.msra.mxu0 0
        %2319 = vmatprep.subr.bf16.mxu0 0
        %2320 = vmatpush1.bf16.msra.mxu0 0
        %2321 = vmatprep.subr.bf16.mxu0 0
        %2322 = vmatpush1.bf16.msra.mxu0 0
        %2323 = vmatprep.subr.bf16.mxu0 0
        %2324 = vmatpush1.bf16.msra.mxu0 0
        %2325 = vmatprep.subr.bf16.mxu0 0
        %2326 = vmatpush1.bf16.msra.mxu0 0
        %2327 = vmatprep.subr.bf16.mxu0 0
        %2328 = vmatpush1.bf16.msra.mxu0 0
        %2329 = vmatprep.subr.bf16.mxu0 0
        %2330 = vmatpush1.bf16.msra.mxu0 0
        %2331 = vmatprep.subr.bf16.mxu0 0
        %2332 = vmatpush1.bf16.msra.mxu0 0
        %2333 = vmatprep.subr.bf16.mxu0 0
        %2334 = vmatpush1.bf16.msra.mxu0 0
        %2335 = vmatprep.subr.bf16.mxu0 0
        %2336 = vmatpush1.bf16.msra.mxu0 0
        %2337 = vmatprep.subr.bf16.mxu0 0
        %2338 = vmatpush1.bf16.msra.mxu0 0
        %2339 = vmatprep.mubr.bf16.mxu0 0
        %2340 = vmatmul.mubr.bf16.gmra.mrb[0].mxu0 %v2302
        %v2341 = vpop.f32.mrb[0].mxu0
        %v2342 = vadd.f32 0.0, %v2341
        %v2343 = vpop.f32.mrb[0].mxu0
        %v2344 = vpop.f32.mrb[0].mxu0
        %v2345 = vpop.f32.mrb[0].mxu0
        %2346 = vdwg.mxu0
        %v2348 = vsel %vm1033, %v2298, 0
        %v2351 = vsel %vm1277, %v2293, 0
        %2353 = vmatprep.subr.bf16.mxu0 0
        %2354 = vmatpush1.bf16.msra.mxu0 %v2351
        %2355 = vmatprep.subr.bf16.mxu0 0
        %2356 = vmatpush1.bf16.msra.mxu0 0
        %2357 = vmatprep.subr.bf16.mxu0 0
        %2358 = vmatpush1.bf16.msra.mxu0 0
        %2359 = vmatprep.subr.bf16.mxu0 0
        %2360 = vmatpush1.bf16.msra.mxu0 0
        %2361 = vmatprep.subr.bf16.mxu0 0
        %2362 = vmatpush1.bf16.msra.mxu0 0
        %2363 = vmatprep.subr.bf16.mxu0 0
        %2364 = vmatpush1.bf16.msra.mxu0 0
        %2365 = vmatprep.subr.bf16.mxu0 0
        %2366 = vmatpush1.bf16.msra.mxu0 0
        %2367 = vmatprep.subr.bf16.mxu0 0
        %2368 = vmatpush1.bf16.msra.mxu0 0
        %2369 = vmatprep.subr.bf16.mxu0 0
        %2370 = vmatpush1.bf16.msra.mxu0 0
        %2371 = vmatprep.subr.bf16.mxu0 0
        %2372 = vmatpush1.bf16.msra.mxu0 0
        %2373 = vmatprep.subr.bf16.mxu0 0
        %2374 = vmatpush1.bf16.msra.mxu0 0
        %2375 = vmatprep.subr.bf16.mxu0 0
        %2376 = vmatpush1.bf16.msra.mxu0 0
        %2377 = vmatprep.subr.bf16.mxu0 0
        %2378 = vmatpush1.bf16.msra.mxu0 0
        %2379 = vmatprep.subr.bf16.mxu0 0
        %2380 = vmatpush1.bf16.msra.mxu0 0
        %2381 = vmatprep.subr.bf16.mxu0 0
        %2382 = vmatpush1.bf16.msra.mxu0 0
        %2383 = vmatprep.subr.bf16.mxu0 0
        %2384 = vmatpush1.bf16.msra.mxu0 0
        %2385 = vmatprep.mubr.bf16.mxu0 0
        %2386 = vmatmul.mubr.bf16.gmra.mrb[0].mxu0 %v2348
        %v2387 = vpop.f32.mrb[0].mxu0
        %v2388 = vadd.f32 0.0, %v2387
        %v2389 = vpop.f32.mrb[0].mxu0
        %v2390 = vpop.f32.mrb[0].mxu0
        %v2391 = vpop.f32.mrb[0].mxu0
        %2392 = vdwg.mxu0
        %v2394 = vsel %vm1033, %v2299, 0
        %v2397 = vsel %vm1277, %v2294, 0
        %2399 = vmatprep.subr.bf16.mxu0 0
        %2400 = vmatpush1.bf16.msra.mxu0 %v2397
        %2401 = vmatprep.subr.bf16.mxu0 0
        %2402 = vmatpush1.bf16.msra.mxu0 0
        %2403 = vmatprep.subr.bf16.mxu0 0
        %2404 = vmatpush1.bf16.msra.mxu0 0
        %2405 = vmatprep.subr.bf16.mxu0 0
        %2406 = vmatpush1.bf16.msra.mxu0 0
        %2407 = vmatprep.subr.bf16.mxu0 0
        %2408 = vmatpush1.bf16.msra.mxu0 0
        %2409 = vmatprep.subr.bf16.mxu0 0
        %2410 = vmatpush1.bf16.msra.mxu0 0
        %2411 = vmatprep.subr.bf16.mxu0 0
        %2412 = vmatpush1.bf16.msra.mxu0 0
        %2413 = vmatprep.subr.bf16.mxu0 0
        %2414 = vmatpush1.bf16.msra.mxu0 0
        %2415 = vmatprep.subr.bf16.mxu0 0
        %2416 = vmatpush1.bf16.msra.mxu0 0
        %2417 = vmatprep.subr.bf16.mxu0 0
        %2418 = vmatpush1.bf16.msra.mxu0 0
        %2419 = vmatprep.subr.bf16.mxu0 0
        %2420 = vmatpush1.bf16.msra.mxu0 0
        %2421 = vmatprep.subr.bf16.mxu0 0
        %2422 = vmatpush1.bf16.msra.mxu0 0
        %2423 = vmatprep.subr.bf16.mxu0 0
        %2424 = vmatpush1.bf16.msra.mxu0 0
        %2425 = vmatprep.subr.bf16.mxu0 0
        %2426 = vmatpush1.bf16.msra.mxu0 0
        %2427 = vmatprep.subr.bf16.mxu0 0
        %2428 = vmatpush1.bf16.msra.mxu0 0
        %2429 = vmatprep.subr.bf16.mxu0 0
        %2430 = vmatpush1.bf16.msra.mxu0 0
        %2431 = vmatprep.mubr.bf16.mxu0 0
        %2432 = vmatmul.mubr.bf16.gmra.mrb[0].mxu0 %v2394
        %v2433 = vpop.f32.mrb[0].mxu0
        %v2434 = vadd.f32 0.0, %v2433
        %v2435 = vpop.f32.mrb[0].mxu0
        %v2436 = vpop.f32.mrb[0].mxu0
        %v2437 = vpop.f32.mrb[0].mxu0
        %2438 = vdwg.mxu0
        %v2440 = vsel %vm1033, %v2300, 0
        %v2443 = vsel %vm1277, %v2295, 0
        %2445 = vmatprep.subr.bf16.mxu0 0
        %2446 = vmatpush1.bf16.msra.mxu0 %v2443
        %2447 = vmatprep.subr.bf16.mxu0 0
        %2448 = vmatpush1.bf16.msra.mxu0 0
        %2449 = vmatprep.subr.bf16.mxu0 0
        %2450 = vmatpush1.bf16.msra.mxu0 0
        %2451 = vmatprep.subr.bf16.mxu0 0
        %2452 = vmatpush1.bf16.msra.mxu0 0
        %2453 = vmatprep.subr.bf16.mxu0 0
        %2454 = vmatpush1.bf16.msra.mxu0 0
        %2455 = vmatprep.subr.bf16.mxu0 0
        %2456 = vmatpush1.bf16.msra.mxu0 0
        %2457 = vmatprep.subr.bf16.mxu0 0
        %2458 = vmatpush1.bf16.msra.mxu0 0
        %2459 = vmatprep.subr.bf16.mxu0 0
        %2460 = vmatpush1.bf16.msra.mxu0 0
        %2461 = vmatprep.subr.bf16.mxu0 0
        %2462 = vmatpush1.bf16.msra.mxu0 0
        %2463 = vmatprep.subr.bf16.mxu0 0
        %2464 = vmatpush1.bf16.msra.mxu0 0
        %2465 = vmatprep.subr.bf16.mxu0 0
        %2466 = vmatpush1.bf16.msra.mxu0 0
        %2467 = vmatprep.subr.bf16.mxu0 0
        %2468 = vmatpush1.bf16.msra.mxu0 0
        %2469 = vmatprep.subr.bf16.mxu0 0
        %2470 = vmatpush1.bf16.msra.mxu0 0
        %2471 = vmatprep.subr.bf16.mxu0 0
        %2472 = vmatpush1.bf16.msra.mxu0 0
        %2473 = vmatprep.subr.bf16.mxu0 0
        %2474 = vmatpush1.bf16.msra.mxu0 0
        %2475 = vmatprep.subr.bf16.mxu0 0
        %2476 = vmatpush1.bf16.msra.mxu0 0
        %2477 = vmatprep.mubr.bf16.mxu0 0
        %2478 = vmatmul.mubr.bf16.gmra.mrb[0].mxu0 %v2440
        %v2479 = vpop.f32.mrb[0].mxu0
        %v2480 = vadd.f32 0.0, %v2479
        %v2481 = vpop.f32.mrb[0].mxu0
        %v2482 = vpop.f32.mrb[0].mxu0
        %v2483 = vpop.f32.mrb[0].mxu0
        %2484 = vdwg.mxu0
        %v2485 = vsel %vm910, %v2342, 0.0
        %v2486 = vsel %vm910, %v2388, 0.0
        %v2487 = vadd.f32 %v2485, %v2486
        %v2488 = vsel %vm910, %v2434, 0.0
        %v2489 = vadd.f32 %v2487, %v2488
        %v2490 = vsel %vm910, %v2480, 0.0
        %v2491 = vadd.f32 %v2489, %v2490
        %v2493 = vlaneseq
        %v2494 = vshrl.u32 %v2493, 7
        %v2495 = vsub.s32 0, %v2494
        %v2496 = vrot.slane %v2296, %v2495
        %v2498 = vadd.f32 %v2491, %v2496
        %v2499 = vadd.f32 %v1672, %v2498
        %v2500 = vld [vmem:[#allocation14] sm:$0x1]
        %v2501 = vld [vmem:[#allocation16] sm:$0x1]
        %v2502 = vsel %vm910, %v2499, 0.0
        %2503 = vadd.xlane.f32.xlu0 %v2502
        %v2504 = vpop.xlane.xlu0 %2503
        %v2505 = vmul.f32 %v2504, %v914
        %v2506 = vsub.f32 %v2499, %v2505
        %v2507 = vmul.f32 %v2506, %v2506
        %v2508 = vsel %vm910, %v2507, 0.0
        %2509 = vadd.xlane.f32.xlu0 %v2508
        %v2510 = vpop.xlane.xlu0 %2509
        %v2511 = vmul.f32 %v2510, 0.032258064
        %v2512 = vrsqrt.pop %v2511
        %v2513 = vmul.f32 %v2511, %v2512
        %vm2514 = vcmp.eq.f32.partialorder %v2511, inf
        %v2515 = vsel %vm2514, %v2511, %v2513
        %vm2516 = vcmp.eq.f32.partialorder %v2511, 0.0
        %v2517 = vand.u32 %v2511, 2147483648
        %v2518 = vsel %vm2516, %v2517, %v2515
        %v2519 = vadd.f32 %v2518, 1e-06
        %v2520 = vrcp.pop %v2519
        %v2521 = vmul.f32 1.0, %v2520
        %v2522 = vmul.f32 %v2506, %v2521
        %v2524 = vlaneseq
        %v2525 = vshrl.u32 %v2524, 7
        %v2526 = vsub.s32 0, %v2525
        %v2527 = vrot.slane %v2500, %v2526
        %v2529 = vmul.f32 %v2527, %v2522
        %v2531 = vlaneseq
        %v2532 = vshrl.u32 %v2531, 7
        %v2533 = vsub.s32 0, %v2532
        %v2534 = vrot.slane %v2501, %v2533
        %v2536 = vadd.f32 %v2529, %v2534
        %v2537 = vpack.c.bf16 %v2536, %v2536
        %v2538 = vld [vmem:[#allocation17] sm:$0xf]
        %v2539 = vld [vmem:[#allocation17 + $0x4] sm:$0xf]
        %v2540 = vld [vmem:[#allocation17 + $0x8] sm:$0xf]
        %v2541 = vld [vmem:[#allocation17 + $0xc] sm:$0xf]
        %v2542 = vld [vmem:[#allocation19] sm:$0x1]
        %v2544 = vlaneseq
        %v2545 = vshrl.u32 %v2544, 7
        %v2546 = vsub.s32 0, %v2545
        %v2547 = vrot.slane %v2542, %v2546
        %v2553 = vunpack.c.l.b16 %v2538
        %v2554 = vunpack.c.l.b16 %v2539
        %v2555 = vunpack.c.l.b16 %v2540
        %v2556 = vunpack.c.l.b16 %v2541
        %v2557 = vpack.c.b16 %v2554, %v2553
        %v2558 = vpack.c.b16 %v2556, %v2555
        %v2562 = vsel %vm910, %v2537, 0
        %2564 = vmatprep.subr.bf16.mxu0 0
        %2565 = vmatpush1.bf16.msra.mxu0 %v2557
        %2566 = vmatprep.subr.bf16.mxu0 0
        %2567 = vmatpush1.bf16.msra.mxu0 %v2558
        %2568 = vmatprep.subr.bf16.mxu0 0
        %2569 = vmatpush1.bf16.msra.mxu0 0
        %2570 = vmatprep.subr.bf16.mxu0 0
        %2571 = vmatpush1.bf16.msra.mxu0 0
        %2572 = vmatprep.subr.bf16.mxu0 0
        %2573 = vmatpush1.bf16.msra.mxu0 0
        %2574 = vmatprep.subr.bf16.mxu0 0
        %2575 = vmatpush1.bf16.msra.mxu0 0
        %2576 = vmatprep.subr.bf16.mxu0 0
        %2577 = vmatpush1.bf16.msra.mxu0 0
        %2578 = vmatprep.subr.bf16.mxu0 0
        %2579 = vmatpush1.bf16.msra.mxu0 0
        %2580 = vmatprep.subr.bf16.mxu0 0
        %2581 = vmatpush1.bf16.msra.mxu0 0
        %2582 = vmatprep.subr.bf16.mxu0 0
        %2583 = vmatpush1.bf16.msra.mxu0 0
        %2584 = vmatprep.subr.bf16.mxu0 0
        %2585 = vmatpush1.bf16.msra.mxu0 0
        %2586 = vmatprep.subr.bf16.mxu0 0
        %2587 = vmatpush1.bf16.msra.mxu0 0
        %2588 = vmatprep.subr.bf16.mxu0 0
        %2589 = vmatpush1.bf16.msra.mxu0 0
        %2590 = vmatprep.subr.bf16.mxu0 0
        %2591 = vmatpush1.bf16.msra.mxu0 0
        %2592 = vmatprep.subr.bf16.mxu0 0
        %2593 = vmatpush1.bf16.msra.mxu0 0
        %2594 = vmatprep.subr.bf16.mxu0 0
        %2595 = vmatpush1.bf16.msra.mxu0 0
        %2596 = vmatprep.mubr.bf16.mxu0 0
        %2597 = vmatmul.mubr.bf16.gmra.mrb[0].mxu0 %v2562
        %v2598 = vpop.f32.mrb[0].mxu0
        %v2599 = vadd.f32 %v2547, %v2598
        %v2600 = vpop.f32.mrb[0].mxu0
        %v2601 = vpop.f32.mrb[0].mxu0
        %v2602 = vpop.f32.mrb[0].mxu0
        %2603 = vdwg.mxu0
        %v2604 = vmax.f32 %v2599, 0.0
        %v2605 = vpack.c.bf16 %v2604, %v2604
        %v2606 = vld [vmem:[%s21] sm:$0xf]
        %v2607 = vld [vmem:[%s21 + $0x4] sm:$0xf]
        %v2608 = vld [vmem:[%s21 + $0x8] sm:$0xf]
        %v2609 = vld [vmem:[%s21 + $0xc] sm:$0xf]
        %v2610 = vld [vmem:[%s21 + $0x10] sm:$0xf]
        %v2611 = vld [vmem:[%s21 + $0x14] sm:$0xf]
        %v2612 = vld [vmem:[%s21 + $0x18] sm:$0xf]
        %v2613 = vld [vmem:[%s21 + $0x1c] sm:$0xf]
        %v2614 = vld [vmem:[#allocation20] sm:$0x1]
        %v2616 = vlaneseq
        %v2617 = vshrl.u32 %v2616, 7
        %v2618 = vsub.s32 0, %v2617
        %v2619 = vrot.slane %v2614, %v2618
        %v2629 = vunpack.c.l.b16 %v2606
        %v2630 = vunpack.c.l.b16 %v2607
        %v2631 = vunpack.c.l.b16 %v2608
        %v2632 = vunpack.c.l.b16 %v2609
        %v2633 = vunpack.c.l.b16 %v2610
        %v2634 = vunpack.c.l.b16 %v2611
        %v2635 = vunpack.c.l.b16 %v2612
        %v2636 = vunpack.c.l.b16 %v2613
        %v2637 = vpack.c.b16 %v2630, %v2629
        %v2638 = vpack.c.b16 %v2632, %v2631
        %v2639 = vpack.c.b16 %v2634, %v2633
        %v2640 = vpack.c.b16 %v2636, %v2635
        %vm2645 = vcmask 523264
        %v2647 = vsel %vm2645, %v2605, 0
        %2649 = vmatprep.subr.bf16.mxu0 0
        %2650 = vmatpush1.bf16.msra.mxu0 %v2637
        %2651 = vmatprep.subr.bf16.mxu0 0
        %2652 = vmatpush1.bf16.msra.mxu0 %v2638
        %2653 = vmatprep.subr.bf16.mxu0 0
        %2654 = vmatpush1.bf16.msra.mxu0 %v2639
        %2655 = vmatprep.subr.bf16.mxu0 0
        %2656 = vmatpush1.bf16.msra.mxu0 %v2640
        %2657 = vmatprep.subr.bf16.mxu0 0
        %2658 = vmatpush1.bf16.msra.mxu0 0
        %2659 = vmatprep.subr.bf16.mxu0 0
        %2660 = vmatpush1.bf16.msra.mxu0 0
        %2661 = vmatprep.subr.bf16.mxu0 0
        %2662 = vmatpush1.bf16.msra.mxu0 0
        %2663 = vmatprep.subr.bf16.mxu0 0
        %2664 = vmatpush1.bf16.msra.mxu0 0
        %2665 = vmatprep.subr.bf16.mxu0 0
        %2666 = vmatpush1.bf16.msra.mxu0 0
        %2667 = vmatprep.subr.bf16.mxu0 0
        %2668 = vmatpush1.bf16.msra.mxu0 0
        %2669 = vmatprep.subr.bf16.mxu0 0
        %2670 = vmatpush1.bf16.msra.mxu0 0
        %2671 = vmatprep.subr.bf16.mxu0 0
        %2672 = vmatpush1.bf16.msra.mxu0 0
        %2673 = vmatprep.subr.bf16.mxu0 0
        %2674 = vmatpush1.bf16.msra.mxu0 0
        %2675 = vmatprep.subr.bf16.mxu0 0
        %2676 = vmatpush1.bf16.msra.mxu0 0
        %2677 = vmatprep.subr.bf16.mxu0 0
        %2678 = vmatpush1.bf16.msra.mxu0 0
        %2679 = vmatprep.subr.bf16.mxu0 0
        %2680 = vmatpush1.bf16.msra.mxu0 0
        %2681 = vmatprep.mubr.bf16.mxu0 0
        %2682 = vmatmul.mubr.bf16.gmra.mrb[0].mxu0 %v2647
        %v2683 = vpop.f32.mrb[0].mxu0
        %v2684 = vadd.f32 %v2619, %v2683
        %v2685 = vpop.f32.mrb[0].mxu0
        %v2686 = vpop.f32.mrb[0].mxu0
        %v2687 = vpop.f32.mrb[0].mxu0
        %2688 = vdwg.mxu0
        %v2689 = vadd.f32 %v2499, %v2684
        %2690 = vst.msk [vmem:[%s888] sm:$0xff] %vm910, %v2689
        %s2691 = sand.u32 %s552, 1
        %s2692 = scalar_lea.sflag [#allocation4], %s2691
        %s2693 = sand.u32 %s552, 1
        %s2694 = smul.addr %s2693, 8
        %s2695 = scalar_lea.vmem [#allocation22], %s2694
        // Predicated region
        $region161: #{decoder_layer.1} parent=111 // pred_check
          %p2696 = pneg %p562
        $region162: #{decoder_layer.1} parent=111 // pred_check_branch
          %2698 = sbr.rel (%p2696) target = $region164
        $region163: #{decoder_layer.1} parent=111 // pred_region
          %s2700 = ssub.s32 128, 128
          %2701 = vsyncadd %s2692, %s2700
          %s2702 = smul.addr %s46, 128
          %s2703 = scalar_lea.hbm %s23, %s2702
          %s2705 = sshll.u32 %s2695, 4
          %s2706 = int_to_ptr.vmem [resolvable:$true] %s2705
          %2708 = dma.vmem_to_hbm [thread:$0]  %s2706, 128, %s2703, %s2692
        $region164: #{decoder_layer.1} parent=111 // pred_fallthru
          _
      $region112: #{decoder_layer.1} parent=5 // pred_fallthru
        _
      %p2709 = scmp.le.s32.totalorder 2, %s41
      // Predicated region
      $region165: #{decoder_layer.1} parent=5 // pred_check
        %p2710 = pneg %p2709
      $region166: #{decoder_layer.1} parent=5 // pred_check_branch
        %2712 = sbr.rel (%p2710) target = $region168
      $region167: #{decoder_layer.1} parent=5 // pred_region
        %s2713 = ssub.s32 %s41, 2
        // Predicated region
        $region169: #{decoder_layer.1} parent=167 // pred_check
          %p2714 = pneg %p568
        $region170: #{decoder_layer.1} parent=167 // pred_check_branch
          %2716 = sbr.rel (%p2714) target = $region172
        $region171: #{decoder_layer.1} parent=167 // pred_region
          %s2717 = sand.u32 %s553, 1
          %s2718 = scalar_lea.sflag [#allocation4], %s2717
          %s2719 = sand.u32 %s553, 1
          %s2720 = smul.addr %s2719, 8
          %s2721 = scalar_lea.vmem [#allocation22], %s2720
          %2722 = dma.done %s2718, 128
        $region172: #{decoder_layer.1} parent=167 // pred_fallthru
          _
      $region168: #{decoder_layer.1} parent=5 // pred_fallthru
        _
    $region6: #{decoder_layer.1} parent=1 // loop_footer
      %s45 = sadd.s32 1, %s41
    $region7: #{decoder_layer.1} parent=1 // loop_footer_branch
      %40 = sbr.rel target = $region3
    $region8: #{decoder_layer.1} parent=1 // loop_exit
      _
    %2723 = vsyncpa [#allocation3], 1
    %s2724 = scalar_lea.sflag [#allocation3], 1
    %2725 = vsyncpa %s2724, 1
    %2726 = vsyncpa [#allocation6], 1
    %2727 = vsyncpa [#allocation9], 1
    %2728 = vsyncpa [#allocation12], 1
    %2729 = vsyncpa [#allocation15], 1
    %2730 = vsyncpa [#allocation18], 1
    %2731 = vsyncpa [#allocation21], 1
    %2732 = vsyncpa [#allocation4], 1
    %s2733 = scalar_lea.sflag [#allocation4], 1
    %2734 = vsyncpa %s2733, 1

</llo_original>
